<compile_context>
chip_gen: v7x
topology: tpu7x:2x2x1
jax: 0.10.0
libtpu: 0.0.40
codegen_flags: <defaults>
</compile_context>

<pallas_src>
import functools

import jax
import jax.numpy as jnp
from jax import lax
from jax.experimental import pallas as pl
from jax.experimental.pallas import tpu as pltpu

EPS = 1e-5                           # PyTorch BatchNorm2d default eps
COMPUTE_DTYPE = jnp.bfloat16         # bf16 storage/MXU inputs, f32 accumulation
VMEM_LIMIT_BYTES = 32 * 1024 * 1024  # safe on v5e/v6e (128 MiB) and v7x (64 MiB)


def _row_tiles(Ho):
    """Output-row striping so the BlockSpec pipeline has >=2 steps per image."""
    for th in (16, 8):
        if Ho % th == 0 and Ho // th >= 2:
            return th, Ho // th
    return Ho, 1


# ---------------------------------------------------------------------------
# Pallas kernels
# ---------------------------------------------------------------------------
def _make_conv_kernel(kh, stride, relu, has_residual, Hq):
    """Fused Conv(kh,stride)+bias(+residual)(+ReLU) over one output-row stripe.

    Blocks:
      x_ref : (1, H+2, W+2, Cin)   3x3 stride 1 (padded, resident across rows)
              (1, H,   W,   Cin)   1x1
              (1, 4*Hq, Wq, Cin)   3x3 stride 2 (4 stride phases stacked on rows)
      w_ref : (kh, kh, Cin, Cout)  BN(eval) already folded in
      b_ref : (1, Cout) f32
      r_ref : (1, TH, Wo, Cout)    optional residual stripe
      o_ref : (1, TH, Wo, Cout)    output row stripe
    """
    def kernel(*refs):
        if has_residual:
            x_ref, w_ref, b_ref, r_ref, o_ref = refs
        else:
            x_ref, w_ref, b_ref, o_ref = refs
        _, TH, Wo, Co = o_ref.shape
        Cin = x_ref.shape[-1]
        M = TH * Wo
        row0 = pl.multiple_of(pl.program_id(1) * TH, TH)

        if kh == 1:
            xs = x_ref[0, pl.ds(row0, TH), :, :].reshape(M, Cin)
            acc = jnp.dot(xs, w_ref[0, 0], preferred_element_type=jnp.float32)
        else:
            acc = jnp.zeros((M, Co), jnp.float32)
            for dy in range(3):
                for dx in range(3):
                    if stride == 1:
                        xs = x_ref[0, pl.ds(row0 + dy, TH), pl.ds(dx, Wo), :]
                    else:  # pre-split 4 stride phases
                        ph = 2 * (dy % 2) + (dx % 2)
                        xs = x_ref[0, pl.ds(ph * Hq + row0 + dy // 2, TH),
                                   pl.ds(dx // 2, Wo), :]
                    acc = acc + jnp.dot(xs.reshape(M, Cin), w_ref[dy, dx],
                                        preferred_element_type=jnp.float32)

        acc = acc + b_ref[...].astype(jnp.float32)
        if has_residual:
            acc = acc + r_ref[...].reshape(M, Co).astype(jnp.float32)
        if relu:
            acc = jnp.maximum(acc, 0.0)
        o_ref[...] = acc.reshape(1, TH, Wo, Co).astype(o_ref.dtype)

    return kernel


def _make_branch_kernel(n_blocks):
    """A chain of n_blocks BasicBlocks (2 convs + residual + ReLU each) with all
    intermediate activations kept in VMEM scratch (ping-pong padded buffers)."""
    def kernel(x_ref, w_ref, b_ref, o_ref, ybuf, tbuf):
        _, H, W, C = o_ref.shape
        M = H * W

        ybuf[...] = x_ref[0]                       # padded input (borders = 0)
        tbuf[...] = jnp.zeros(tbuf.shape, tbuf.dtype)

        def conv3x3(buf, wi):
            acc = jnp.zeros((M, C), jnp.float32)
            for dy in range(3):
                for dx in range(3):
                    xs = buf[dy:dy + H, dx:dx + W, :].reshape(M, C)
                    acc = acc + jnp.dot(xs, w_ref[wi, dy * 3 + dx],
                                        preferred_element_type=jnp.float32)
            return acc + b_ref[wi].astype(jnp.float32)

        for blk in range(n_blocks):
            t = jnp.maximum(conv3x3(ybuf, 2 * blk), 0.0)
            tbuf[1:H + 1, 1:W + 1, :] = t.reshape(H, W, C).astype(tbuf.dtype)
            y = conv3x3(tbuf, 2 * blk + 1)
            y = y + ybuf[1:H + 1, 1:W + 1, :].reshape(M, C).astype(jnp.float32)
            y = jnp.maximum(y, 0.0)
            ybuf[1:H + 1, 1:W + 1, :] = y.reshape(H, W, C).astype(ybuf.dtype)

        o_ref[...] = ybuf[1:H + 1, 1:W + 1, :].reshape(1, H, W, C)

    return kernel


def _make_fuse_kernel(factors):
    """relu(sum_j upsample(term_j, factors[j])); upsample done in VMEM."""
    n = len(factors)

    def kernel(*refs):
        o_ref = refs[n]
        _, Ho, Wo, C = o_ref.shape
        acc = jnp.zeros((Ho, Wo, C), jnp.float32)
        for t_ref, f in zip(refs[:n], factors):
            t = t_ref[0]
            if f > 1:
                h, w = Ho // f, Wo // f
                t = jnp.broadcast_to(t[:, None, :, :], (h, f, w, C)).reshape(Ho, w, C)
                t = jnp.broadcast_to(t[:, :, None, :], (Ho, w, f, C)).reshape(Ho, Wo, C)
            acc = acc + t.astype(jnp.float32)
        o_ref[...] = jnp.maximum(acc, 0.0).reshape(1, Ho, Wo, C).astype(o_ref.dtype)

    return kernel


# ---------------------------------------------------------------------------
# Pallas op wrappers (jitted per unique shape / static signature)
# ---------------------------------------------------------------------------
@functools.partial(jax.jit, static_argnames=("stride", "relu"))
def _conv_op(x, w, b, residual=None, *, stride, relu):
    N, H, W, Cin = x.shape
    kh, _, _, Cout = w.shape

    if kh == 1:
        Ho, Wo = H, W
        x_in = x
        Hq = 0
    elif stride == 1:
        Ho, Wo = H, W
        x_in = jnp.pad(x, ((0, 0), (1, 1), (1, 1), (0, 0)))
        Hq = 0
    else:
        Ho = (H - 1) // 2 + 1
        Wo = (W - 1) // 2 + 1
        Hq, Wq = Ho + 1, Wo + 1
        # TODO(synk): host-side 4-phase split = one extra HBM round trip of the
        # input for stride-2 convs; replace with an in-kernel strided gather.
        xp = jnp.pad(x, ((0, 0), (1, 2 * Hq - 1 - H), (1, 2 * Wq - 1 - W), (0, 0)))
        x_in = jnp.concatenate(
            [xp[:, py::2, px::2, :] for py in (0, 1) for px in (0, 1)], axis=1)

    TH, R = _row_tiles(Ho)
    xblock = (1,) + x_in.shape[1:]

    in_specs = [
        pl.BlockSpec(xblock, lambda n, r: (n, 0, 0, 0)),   # resident across rows
        pl.BlockSpec(w.shape, lambda n, r: (0, 0, 0, 0)),
        pl.BlockSpec(b.shape, lambda n, r: (0, 0)),
    ]
    args = [x_in, w, b]
    if residual is not None:
        in_specs.append(pl.BlockSpec((1, TH, Wo, Cout), lambda n, r: (n, r, 0, 0)))
        args.append(residual)

    return pl.pallas_call(
        _make_conv_kernel(kh, stride, relu, residual is not None, Hq),
        out_shape=jax.ShapeDtypeStruct((N, Ho, Wo, Cout), x.dtype),
        grid=(N, R),
        in_specs=in_specs,
        out_specs=pl.BlockSpec((1, TH, Wo, Cout), lambda n, r: (n, r, 0, 0)),
        compiler_params=pltpu.CompilerParams(
            dimension_semantics=("parallel", "arbitrary"),
            vmem_limit_bytes=VMEM_LIMIT_BYTES),
    )(*args)


@jax.jit
def _branch_op(x, w, b):
    N, H, W, C = x.shape
    n_blocks = w.shape[0] // 2
    xp = jnp.pad(x, ((0, 0), (1, 1), (1, 1), (0, 0)))
    return pl.pallas_call(
        _make_branch_kernel(n_blocks),
        out_shape=jax.ShapeDtypeStruct((N, H, W, C), x.dtype),
        grid=(N,),
        in_specs=[pl.BlockSpec((1, H + 2, W + 2, C), lambda n: (n, 0, 0, 0)),
                  pl.BlockSpec(w.shape, lambda n: (0, 0, 0, 0)),
                  pl.BlockSpec(b.shape, lambda n: (0, 0))],
        out_specs=pl.BlockSpec((1, H, W, C), lambda n: (n, 0, 0, 0)),
        scratch_shapes=[pltpu.VMEM((H + 2, W + 2, C), x.dtype),
                        pltpu.VMEM((H + 2, W + 2, C), x.dtype)],
        compiler_params=pltpu.CompilerParams(
            dimension_semantics=("parallel",),
            vmem_limit_bytes=VMEM_LIMIT_BYTES),
    )(xp, w, b)


@functools.partial(jax.jit, static_argnames=("factors",))
def _fuse_op(*terms, factors):
    base = terms[factors.index(1)]
    N, Ho, Wo, C = base.shape
    in_specs = [pl.BlockSpec((1,) + t.shape[1:], lambda n: (n, 0, 0, 0))
                for t in terms]
    return pl.pallas_call(
        _make_fuse_kernel(factors),
        out_shape=jax.ShapeDtypeStruct((N, Ho, Wo, C), base.dtype),
        grid=(N,),
        in_specs=in_specs,
        out_specs=pl.BlockSpec((1, Ho, Wo, C), lambda n: (n, 0, 0, 0)),
        compiler_params=pltpu.CompilerParams(
            dimension_semantics=("parallel",),
            vmem_limit_bytes=VMEM_LIMIT_BYTES),
    )(*terms)


def _pallas_conv(x, cp, relu, residual=None):
    return _conv_op(x, cp["w"], cp["b"], residual, stride=cp["stride"], relu=relu)


def _pallas_branch(x, bp):
    return _branch_op(x, bp["w"], bp["b"])


def _pallas_fuse(terms, factors):
    if len(terms) == 1 and factors[0] == 1:
        return jax.nn.relu(terms[0])
    return _fuse_op(*terms, factors=tuple(factors))


# ---------------------------------------------------------------------------
# Pure-XLA reference (same prepped parameters, same bf16 activation flow)
# ---------------------------------------------------------------------------
def _ref_conv_apply(x, w, b, stride, relu, residual=None):
    k = w.shape[0]
    pad = ((1, 1), (1, 1)) if k == 3 else ((0, 0), (0, 0))
    y = lax.conv_general_dilated(
        x.astype(jnp.float32), w.astype(jnp.float32),
        window_strides=(stride, stride), padding=pad,
        dimension_numbers=("NHWC", "HWIO", "NHWC"),
        precision=lax.Precision.HIGHEST)
    y = y + b.reshape(1, 1, 1, -1).astype(jnp.float32)
    if residual is not None:
        y = y + residual.astype(jnp.float32)
    if relu:
        y = jnp.maximum(y, 0.0)
    return y.astype(COMPUTE_DTYPE)


def _ref_conv(x, cp, relu, residual=None):
    return _ref_conv_apply(x, cp["w"], cp["b"], cp["stride"], relu, residual)


def _ref_branch(x, bp):
    w, b = bp["w"], bp["b"]
    nb, C = w.shape[0] // 2, w.shape[-1]
    for blk in range(nb):
        t = _ref_conv_apply(x, w[2 * blk].reshape(3, 3, C, C), b[2 * blk], 1, True)
        x = _ref_conv_apply(t, w[2 * blk + 1].reshape(3, 3, C, C), b[2 * blk + 1],
                            1, True, residual=x)
    return x


def _ref_fuse(terms, factors):
    acc = 0.0
    for t, f in zip(terms, factors):
        if f > 1:
            t = jnp.repeat(jnp.repeat(t, f, axis=1), f, axis=2)
        acc = acc + t.astype(jnp.float32)
    return jnp.maximum(acc, 0.0).astype(COMPUTE_DTYPE)


# ---------------------------------------------------------------------------
# HRNet architecture (shared by Pallas path and reference)
# ---------------------------------------------------------------------------
def _bottleneck(x, p, conv):
    residual = x if p["downsample"] is None else conv(x, p["downsample"], relu=False)
    out = conv(x, p["conv1"], relu=True)
    out = conv(out, p["conv2"], relu=True)
    return conv(out, p["conv3"], relu=True, residual=residual)


def _stage_module(xs, p, conv, branch_fn, fuse_fn):
    ys = [branch_fn(x_i, bp) for x_i, bp in zip(xs, p["branches"])]
    outs = []
    for row in p["fuse"]:
        terms, factors = [], []
        for j, f in enumerate(row):
            if f is None:                               # Identity (i == j)
                terms.append(ys[j]); factors.append(1)
            elif f["kind"] == "up":                     # 1x1 conv+BN, then upsample
                terms.append(conv(ys[j], f["conv"], relu=False))
                factors.append(f["factor"])
            else:                                       # chain of stride-2 conv+BN
                t = ys[j]
                n = len(f["convs"])
                for k, cp in enumerate(f["convs"]):
                    t = conv(t, cp, relu=(k < n - 1))
                terms.append(t); factors.append(1)
        outs.append(fuse_fn(terms, factors))
    return outs


def _hrnet_forward(x, P, conv, branch_fn, fuse_fn):
    x = conv(x, P["conv1"], relu=True)
    x = conv(x, P["conv2"], relu=True)
    for blk in P["layer1"]:
        x = _bottleneck(x, blk, conv)
    xs = [conv(x, P["transition1"][0], relu=True),
          conv(x, P["transition1"][1], relu=True)]
    for st in P["stage2"]:
        xs = _stage_module(xs, st, conv, branch_fn, fuse_fn)
    xs = [xs[0], xs[1], conv(xs[-1], P["transition2"], relu=True)]
    for st in P["stage3"]:
        xs = _stage_module(xs, st, conv, branch_fn, fuse_fn)
    xs = [xs[0], xs[1], xs[2], conv(xs[-1], P["transition3"], relu=True)]
    for st in P["stage4"]:
        xs = _stage_module(xs, st, conv, branch_fn, fuse_fn)
    return conv(xs[0], P["final"], relu=False)


def hrnet_forward_pallas(x_nchw, prepped):
    x = jnp.transpose(x_nchw, (0, 2, 3, 1)).astype(COMPUTE_DTYPE)
    y = _hrnet_forward(x, prepped, _pallas_conv, _pallas_branch, _pallas_fuse)
    return jnp.transpose(y.astype(jnp.float32), (0, 3, 1, 2))


def hrnet_forward_reference(x_nchw, prepped):
    x = jnp.transpose(x_nchw, (0, 2, 3, 1)).astype(COMPUTE_DTYPE)
    y = _hrnet_forward(x, prepped, _ref_conv, _ref_branch, _ref_fuse)
    return jnp.transpose(y.astype(jnp.float32), (0, 3, 1, 2))


# ---------------------------------------------------------------------------
# Parameters: torch-like init + one-time BN fold / layout prep
# ---------------------------------------------------------------------------
class _KeyGen:
    def __init__(self, key):
        self._key = key

    def __call__(self):
        self._key, sub = jax.random.split(self._key)
        return sub


def _conv_bn_params(kg, cin, cout, ksize, stride):
    std = (2.0 / (ksize * ksize * cin)) ** 0.5
    return {
        "w": std * jax.random.normal(kg(), (ksize, ksize, cin, cout), jnp.float32),
        "stride": stride, "bias": None,
        "bn": {
            "gamma": 0.7 + 0.05 * jax.random.normal(kg(), (cout,), jnp.float32),
            "beta": 0.05 * jax.random.normal(kg(), (cout,), jnp.float32),
            "mean": 0.05 * jax.random.normal(kg(), (cout,), jnp.float32),
            "var": jnp.abs(1.0 + 0.1 * jax.random.normal(kg(), (cout,), jnp.float32)),
        },
    }


def _conv_bias_params(kg, cin, cout, ksize, stride):
    std = (2.0 / (ksize * ksize * cin)) ** 0.5
    return {
        "w": std * jax.random.normal(kg(), (ksize, ksize, cin, cout), jnp.float32),
        "stride": stride,
        "bias": 0.05 * jax.random.normal(kg(), (cout,), jnp.float32),
        "bn": None,
    }


def _basic_params(kg, width):
    return {"conv1": _conv_bn_params(kg, width, width, 3, 1),
            "conv2": _conv_bn_params(kg, width, width, 3, 1)}


def _bottleneck_params(kg, inplanes, planes, downsample):
    return {"conv1": _conv_bn_params(kg, inplanes, planes, 1, 1),
            "conv2": _conv_bn_params(kg, planes, planes, 3, 1),
            "conv3": _conv_bn_params(kg, planes, planes * 4, 1, 1),
            "downsample": (_conv_bn_params(kg, inplanes, planes * 4, 1, 1)
                           if downsample else None)}


def _stage_params(kg, input_branches, output_branches, c):
    branches = [[_basic_params(kg, c * 2 ** i) for _ in range(4)]
                for i in range(input_branches)]
    fuse = []
    for i in range(output_branches):
        row = []
        for j in range(input_branches):
            if i == j:
                row.append(None)
            elif i < j:
                row.append({"kind": "up", "factor": int(2 ** (j - i)),
                            "conv": _conv_bn_params(kg, c * 2 ** j, c * 2 ** i, 1, 1)})
            else:
                convs = [_conv_bn_params(kg, c * 2 ** j, c * 2 ** j, 3, 2)
                         for _ in range(i - j - 1)]
                convs.append(_conv_bn_params(kg, c * 2 ** j, c * 2 ** i, 3, 2))
                row.append({"kind": "down", "convs": convs})
        fuse.append(row)
    return {"branches": branches, "fuse": fuse}


def init_hrnet_params(key, base_channel=16, num_joints=17):
    kg = _KeyGen(key)
    c = base_channel
    return {
        "conv1": _conv_bn_params(kg, 3, 64, 3, 2),
        "conv2": _conv_bn_params(kg, 64, 64, 3, 2),
        "layer1": ([_bottleneck_params(kg, 64, 64, True)] +
                   [_bottleneck_params(kg, 256, 64, False) for _ in range(3)]),
        "transition1": [_conv_bn_params(kg, 256, c, 3, 1),
                        _conv_bn_params(kg, 256, 2 * c, 3, 2)],
        "stage2": [_stage_params(kg, 2, 2, c)],
        "transition2": _conv_bn_params(kg, 2 * c, 4 * c, 3, 2),
        "stage3": [_stage_params(kg, 3, 3, c) for _ in range(4)],
        "transition3": _conv_bn_params(kg, 4 * c, 8 * c, 3, 2),
        "stage4": [_stage_params(kg, 4, 4, c),
                   _stage_params(kg, 4, 4, c),
                   _stage_params(kg, 4, 1, c)],
        "final": _conv_bias_params(kg, c, num_joints, 1, 1),
    }


def prepare_params(params):
    """One-time: fold BN(eval) into weights (f32), cast to compute dtype, stack
    BasicBlock-chain weights per branch.  Done at model load, not per forward."""
    def conv(p):
        w = p["w"].astype(jnp.float32)
        bn = p["bn"]
        if bn is not None:
            scale = bn["gamma"] / jnp.sqrt(bn["var"] + EPS)
            w = w * scale[None, None, None, :]
            b = bn["beta"] - scale * bn["mean"]
        else:
            b = jnp.zeros((w.shape[-1],), jnp.float32)
        if p["bias"] is not None:
            b = b + p["bias"]
        return {"w": w.astype(COMPUTE_DTYPE),
                "b": b.astype(jnp.float32).reshape(1, -1),
                "stride": int(p["stride"])}

    def branch(blocks):
        ws, bs = [], []
        for blk in blocks:
            for key in ("conv1", "conv2"):
                c = conv(blk[key])
                ws.append(c["w"].reshape(9, c["w"].shape[2], c["w"].shape[3]))
                bs.append(c["b"].reshape(-1))
        return {"w": jnp.stack(ws), "b": jnp.stack(bs)}

    def fuse_entry(f):
        if f is None:
            return None
        if f["kind"] == "up":
            return {"kind": "up", "factor": f["factor"], "conv": conv(f["conv"])}
        return {"kind": "down", "convs": [conv(c) for c in f["convs"]]}

    def stage(sp):
        return {"branches": [branch(br) for br in sp["branches"]],
                "fuse": [[fuse_entry(f) for f in row] for row in sp["fuse"]]}

    return {
        "conv1": conv(params["conv1"]),
        "conv2": conv(params["conv2"]),
        "layer1": [{"conv1": conv(b["conv1"]), "conv2": conv(b["conv2"]),
                    "conv3": conv(b["conv3"]),
                    "downsample": (None if b["downsample"] is None
                                   else conv(b["downsample"]))}
                   for b in params["layer1"]],
        "transition1": [conv(t) for t in params["transition1"]],
        "stage2": [stage(s) for s in params["stage2"]],
        "transition2": conv(params["transition2"]),
        "stage3": [stage(s) for s in params["stage3"]],
        "transition3": conv(params["transition3"]),
        "stage4": [stage(s) for s in params["stage4"]],
        "final": conv(params["final"]),
    }


# ---------------------------------------------------------------------------
# Driver
# ---------------------------------------------------------------------------
if __name__ == "__main__":
    key = jax.random.PRNGKey(0)
    kparam, kx = jax.random.split(key)

    # Small shapes consistent with the module (base_channel is a ctor arg).
    params = init_hrnet_params(kparam, base_channel=16, num_joints=17)
    prepped = prepare_params(params)
    x = jax.random.normal(kx, (2, 3, 64, 64), jnp.float32)

    y = hrnet_forward_pallas(x, prepped)
    jax.block_until_ready(y)
    assert y.shape == (2, 17, 16, 16), y.shape

    y_ref = hrnet_forward_reference(x, prepped)
    jax.block_until_ready(y_ref)
    rel_err = float(jnp.max(jnp.abs(y - y_ref)) /
                    (jnp.max(jnp.abs(y_ref)) + 1e-6))
    # Tolerance baselined for bf16 activations persisted between layers (both
    # paths quantize activations to bf16; products are exact, accumulation f32).
    assert rel_err < 2e-2, f"Pallas vs XLA reference mismatch: rel_err={rel_err}"

    print("KERNEL_OK")
</pallas_src>

<mosaic_0001>
module attributes {stable_mosaic.version = 11 : i64} {
  func.func @kernel(%arg0: i32, %arg1: i32, %arg2: memref<1x132x33x3xbf16, #tpu.memory_space<vmem>>, %arg3: memref<3x3x3x64xbf16, #tpu.memory_space<vmem>>, %arg4: memref<1x64xf32, #tpu.memory_space<vmem>>, %arg5: memref<1x16x32x64xbf16, #tpu.memory_space<vmem>>) attributes {dimension_semantics = [#tpu.dimension_semantics<parallel>, #tpu.dimension_semantics<arbitrary>], iteration_bounds = array<i64: 2, 2>, scalar_prefetch = 0 : i64, scratch_operands = 0 : i64, tpu.core_type = #tpu.core_type<tc>, window_params = [{transform_indices = @transform_0, window_bounds = array<i64: 1, 132, 33, 3>}, {pipeline_mode = #tpu.pipeline_mode<synchronous>, transform_indices = @transform_1, window_bounds = array<i64: 3, 3, 3, 64>}, {pipeline_mode = #tpu.pipeline_mode<synchronous>, transform_indices = @transform_2, window_bounds = array<i64: 1, 64>}, {transform_indices = @transform_3, window_bounds = array<i64: 1, 16, 32, 64>}]} {
    %c16_i32 = arith.constant 16 : i32
    %0 = arith.muli %arg1, %c16_i32 : i32
    %1 = tpu.assume_multiple %0, 16 : i32
    %cst = arith.constant 0.000000e+00 : f32
    %2 = vector.broadcast %cst : f32 to vector<512x64xf32>
    %c0_i32 = arith.constant 0 : i32
    %3 = arith.addi %c0_i32, %1 : i32
    %c0_i32_0 = arith.constant 0 : i32
    %4 = arith.addi %3, %c0_i32_0 : i32
    %c0 = arith.constant 0 : index
    %5 = arith.index_cast %4 : i32 to index
    %c0_1 = arith.constant 0 : index
    %c0_2 = arith.constant 0 : index
    %6 = vector.load %arg2[%c0, %5, %c0_1, %c0_2] : memref<1x132x33x3xbf16, #tpu.memory_space<vmem>>, vector<1x16x32x3xbf16>
    %7 = vector.shape_cast %6 : vector<1x16x32x3xbf16> to vector<16x32x3xbf16>
    %8 = vector.shape_cast %7 : vector<16x32x3xbf16> to vector<512x3xbf16>
    %c0_3 = arith.constant 0 : index
    %c0_4 = arith.constant 0 : index
    %c0_5 = arith.constant 0 : index
    %c0_6 = arith.constant 0 : index
    %9 = vector.load %arg3[%c0_3, %c0_4, %c0_5, %c0_6] : memref<3x3x3x64xbf16, #tpu.memory_space<vmem>>, vector<1x1x3x64xbf16>
    %10 = vector.shape_cast %9 : vector<1x1x3x64xbf16> to vector<3x64xbf16>
    %cst_7 = arith.constant dense<0.000000e+00> : vector<512x64xf32>
    %11 = tpu.matmul %8, %10, %cst_7 {dimension_numbers = #tpu.dot_dimension_numbers<[1], [0], [0], [1], [0, 0, 1, 1], [], []>} : vector<512x3xbf16>, vector<3x64xbf16>, vector<512x64xf32> -> vector<512x64xf32>
    %12 = arith.addf %2, %11 : vector<512x64xf32>
    %c33_i32 = arith.constant 33 : i32
    %13 = arith.addi %c33_i32, %1 : i32
    %c0_i32_8 = arith.constant 0 : i32
    %14 = arith.addi %13, %c0_i32_8 : i32
    %c0_9 = arith.constant 0 : index
    %15 = arith.index_cast %14 : i32 to index
    %c0_10 = arith.constant 0 : index
    %c0_11 = arith.constant 0 : index
    %16 = vector.load %arg2[%c0_9, %15, %c0_10, %c0_11] : memref<1x132x33x3xbf16, #tpu.memory_space<vmem>>, vector<1x16x32x3xbf16>
    %17 = vector.shape_cast %16 : vector<1x16x32x3xbf16> to vector<16x32x3xbf16>
    %18 = vector.shape_cast %17 : vector<16x32x3xbf16> to vector<512x3xbf16>
    %c0_12 = arith.constant 0 : index
    %c1 = arith.constant 1 : index
    %c0_13 = arith.constant 0 : index
    %c0_14 = arith.constant 0 : index
    %19 = vector.load %arg3[%c0_12, %c1, %c0_13, %c0_14] : memref<3x3x3x64xbf16, #tpu.memory_space<vmem>>, vector<1x1x3x64xbf16>
    %20 = vector.shape_cast %19 : vector<1x1x3x64xbf16> to vector<3x64xbf16>
    %cst_15 = arith.constant dense<0.000000e+00> : vector<512x64xf32>
    %21 = tpu.matmul %18, %20, %cst_15 {dimension_numbers = #tpu.dot_dimension_numbers<[1], [0], [0], [1], [0, 0, 1, 1], [], []>} : vector<512x3xbf16>, vector<3x64xbf16>, vector<512x64xf32> -> vector<512x64xf32>
    %22 = arith.addf %12, %21 : vector<512x64xf32>
    %c0_i32_16 = arith.constant 0 : i32
    %23 = arith.addi %c0_i32_16, %1 : i32
    %c0_i32_17 = arith.constant 0 : i32
    %24 = arith.addi %23, %c0_i32_17 : i32
    %c0_18 = arith.constant 0 : index
    %25 = arith.index_cast %24 : i32 to index
    %c1_19 = arith.constant 1 : index
    %c0_20 = arith.constant 0 : index
    %26 = vector.load %arg2[%c0_18, %25, %c1_19, %c0_20] : memref<1x132x33x3xbf16, #tpu.memory_space<vmem>>, vector<1x16x32x3xbf16>
    %27 = vector.shape_cast %26 : vector<1x16x32x3xbf16> to vector<16x32x3xbf16>
    %28 = vector.shape_cast %27 : vector<16x32x3xbf16> to vector<512x3xbf16>
    %c0_21 = arith.constant 0 : index
    %c2 = arith.constant 2 : index
    %c0_22 = arith.constant 0 : index
    %c0_23 = arith.constant 0 : index
    %29 = vector.load %arg3[%c0_21, %c2, %c0_22, %c0_23] : memref<3x3x3x64xbf16, #tpu.memory_space<vmem>>, vector<1x1x3x64xbf16>
    %30 = vector.shape_cast %29 : vector<1x1x3x64xbf16> to vector<3x64xbf16>
    %cst_24 = arith.constant dense<0.000000e+00> : vector<512x64xf32>
    %31 = tpu.matmul %28, %30, %cst_24 {dimension_numbers = #tpu.dot_dimension_numbers<[1], [0], [0], [1], [0, 0, 1, 1], [], []>} : vector<512x3xbf16>, vector<3x64xbf16>, vector<512x64xf32> -> vector<512x64xf32>
    %32 = arith.addf %22, %31 : vector<512x64xf32>
    %c66_i32 = arith.constant 66 : i32
    %33 = arith.addi %c66_i32, %1 : i32
    %c0_i32_25 = arith.constant 0 : i32
    %34 = arith.addi %33, %c0_i32_25 : i32
    %c0_26 = arith.constant 0 : index
    %35 = arith.index_cast %34 : i32 to index
    %c0_27 = arith.constant 0 : index
    %c0_28 = arith.constant 0 : index
    %36 = vector.load %arg2[%c0_26, %35, %c0_27, %c0_28] : memref<1x132x33x3xbf16, #tpu.memory_space<vmem>>, vector<1x16x32x3xbf16>
    %37 = vector.shape_cast %36 : vector<1x16x32x3xbf16> to vector<16x32x3xbf16>
    %38 = vector.shape_cast %37 : vector<16x32x3xbf16> to vector<512x3xbf16>
    %c1_29 = arith.constant 1 : index
    %c0_30 = arith.constant 0 : index
    %c0_31 = arith.constant 0 : index
    %c0_32 = arith.constant 0 : index
    %39 = vector.load %arg3[%c1_29, %c0_30, %c0_31, %c0_32] : memref<3x3x3x64xbf16, #tpu.memory_space<vmem>>, vector<1x1x3x64xbf16>
    %40 = vector.shape_cast %39 : vector<1x1x3x64xbf16> to vector<3x64xbf16>
    %cst_33 = arith.constant dense<0.000000e+00> : vector<512x64xf32>
    %41 = tpu.matmul %38, %40, %cst_33 {dimension_numbers = #tpu.dot_dimension_numbers<[1], [0], [0], [1], [0, 0, 1, 1], [], []>} : vector<512x3xbf16>, vector<3x64xbf16>, vector<512x64xf32> -> vector<512x64xf32>
    %42 = arith.addf %32, %41 : vector<512x64xf32>
    %c99_i32 = arith.constant 99 : i32
    %43 = arith.addi %c99_i32, %1 : i32
    %c0_i32_34 = arith.constant 0 : i32
    %44 = arith.addi %43, %c0_i32_34 : i32
    %c0_35 = arith.constant 0 : index
    %45 = arith.index_cast %44 : i32 to index
    %c0_36 = arith.constant 0 : index
    %c0_37 = arith.constant 0 : index
    %46 = vector.load %arg2[%c0_35, %45, %c0_36, %c0_37] : memref<1x132x33x3xbf16, #tpu.memory_space<vmem>>, vector<1x16x32x3xbf16>
    %47 = vector.shape_cast %46 : vector<1x16x32x3xbf16> to vector<16x32x3xbf16>
    %48 = vector.shape_cast %47 : vector<16x32x3xbf16> to vector<512x3xbf16>
    %c1_38 = arith.constant 1 : index
    %c1_39 = arith.constant 1 : index
    %c0_40 = arith.constant 0 : index
    %c0_41 = arith.constant 0 : index
    %49 = vector.load %arg3[%c1_38, %c1_39, %c0_40, %c0_41] : memref<3x3x3x64xbf16, #tpu.memory_space<vmem>>, vector<1x1x3x64xbf16>
    %50 = vector.shape_cast %49 : vector<1x1x3x64xbf16> to vector<3x64xbf16>
    %cst_42 = arith.constant dense<0.000000e+00> : vector<512x64xf32>
    %51 = tpu.matmul %48, %50, %cst_42 {dimension_numbers = #tpu.dot_dimension_numbers<[1], [0], [0], [1], [0, 0, 1, 1], [], []>} : vector<512x3xbf16>, vector<3x64xbf16>, vector<512x64xf32> -> vector<512x64xf32>
    %52 = arith.addf %42, %51 : vector<512x64xf32>
    %c66_i32_43 = arith.constant 66 : i32
    %53 = arith.addi %c66_i32_43, %1 : i32
    %c0_i32_44 = arith.constant 0 : i32
    %54 = arith.addi %53, %c0_i32_44 : i32
    %c0_45 = arith.constant 0 : index
    %55 = arith.index_cast %54 : i32 to index
    %c1_46 = arith.constant 1 : index
    %c0_47 = arith.constant 0 : index
    %56 = vector.load %arg2[%c0_45, %55, %c1_46, %c0_47] : memref<1x132x33x3xbf16, #tpu.memory_space<vmem>>, vector<1x16x32x3xbf16>
    %57 = vector.shape_cast %56 : vector<1x16x32x3xbf16> to vector<16x32x3xbf16>
    %58 = vector.shape_cast %57 : vector<16x32x3xbf16> to vector<512x3xbf16>
    %c1_48 = arith.constant 1 : index
    %c2_49 = arith.constant 2 : index
    %c0_50 = arith.constant 0 : index
    %c0_51 = arith.constant 0 : index
    %59 = vector.load %arg3[%c1_48, %c2_49, %c0_50, %c0_51] : memref<3x3x3x64xbf16, #tpu.memory_space<vmem>>, vector<1x1x3x64xbf16>
    %60 = vector.shape_cast %59 : vector<1x1x3x64xbf16> to vector<3x64xbf16>
    %cst_52 = arith.constant dense<0.000000e+00> : vector<512x64xf32>
    %61 = tpu.matmul %58, %60, %cst_52 {dimension_numbers = #tpu.dot_dimension_numbers<[1], [0], [0], [1], [0, 0, 1, 1], [], []>} : vector<512x3xbf16>, vector<3x64xbf16>, vector<512x64xf32> -> vector<512x64xf32>
    %62 = arith.addf %52, %61 : vector<512x64xf32>
    %c0_i32_53 = arith.constant 0 : i32
    %63 = arith.addi %c0_i32_53, %1 : i32
    %c1_i32 = arith.constant 1 : i32
    %64 = arith.addi %63, %c1_i32 : i32
    %c0_54 = arith.constant 0 : index
    %65 = arith.index_cast %64 : i32 to index
    %c0_55 = arith.constant 0 : index
    %c0_56 = arith.constant 0 : index
    %66 = vector.load %arg2[%c0_54, %65, %c0_55, %c0_56] : memref<1x132x33x3xbf16, #tpu.memory_space<vmem>>, vector<1x16x32x3xbf16>
    %67 = vector.shape_cast %66 : vector<1x16x32x3xbf16> to vector<16x32x3xbf16>
    %68 = vector.shape_cast %67 : vector<16x32x3xbf16> to vector<512x3xbf16>
    %c2_57 = arith.constant 2 : index
    %c0_58 = arith.constant 0 : index
    %c0_59 = arith.constant 0 : index
    %c0_60 = arith.constant 0 : index
    %69 = vector.load %arg3[%c2_57, %c0_58, %c0_59, %c0_60] : memref<3x3x3x64xbf16, #tpu.memory_space<vmem>>, vector<1x1x3x64xbf16>
    %70 = vector.shape_cast %69 : vector<1x1x3x64xbf16> to vector<3x64xbf16>
    %cst_61 = arith.constant dense<0.000000e+00> : vector<512x64xf32>
    %71 = tpu.matmul %68, %70, %cst_61 {dimension_numbers = #tpu.dot_dimension_numbers<[1], [0], [0], [1], [0, 0, 1, 1], [], []>} : vector<512x3xbf16>, vector<3x64xbf16>, vector<512x64xf32> -> vector<512x64xf32>
    %72 = arith.addf %62, %71 : vector<512x64xf32>
    %c33_i32_62 = arith.constant 33 : i32
    %73 = arith.addi %c33_i32_62, %1 : i32
    %c1_i32_63 = arith.constant 1 : i32
    %74 = arith.addi %73, %c1_i32_63 : i32
    %c0_64 = arith.constant 0 : index
    %75 = arith.index_cast %74 : i32 to index
    %c0_65 = arith.constant 0 : index
    %c0_66 = arith.constant 0 : index
    %76 = vector.load %arg2[%c0_64, %75, %c0_65, %c0_66] : memref<1x132x33x3xbf16, #tpu.memory_space<vmem>>, vector<1x16x32x3xbf16>
    %77 = vector.shape_cast %76 : vector<1x16x32x3xbf16> to vector<16x32x3xbf16>
    %78 = vector.shape_cast %77 : vector<16x32x3xbf16> to vector<512x3xbf16>
    %c2_67 = arith.constant 2 : index
    %c1_68 = arith.constant 1 : index
    %c0_69 = arith.constant 0 : index
    %c0_70 = arith.constant 0 : index
    %79 = vector.load %arg3[%c2_67, %c1_68, %c0_69, %c0_70] : memref<3x3x3x64xbf16, #tpu.memory_space<vmem>>, vector<1x1x3x64xbf16>
    %80 = vector.shape_cast %79 : vector<1x1x3x64xbf16> to vector<3x64xbf16>
    %cst_71 = arith.constant dense<0.000000e+00> : vector<512x64xf32>
    %81 = tpu.matmul %78, %80, %cst_71 {dimension_numbers = #tpu.dot_dimension_numbers<[1], [0], [0], [1], [0, 0, 1, 1], [], []>} : vector<512x3xbf16>, vector<3x64xbf16>, vector<512x64xf32> -> vector<512x64xf32>
    %82 = arith.addf %72, %81 : vector<512x64xf32>
    %c0_i32_72 = arith.constant 0 : i32
    %83 = arith.addi %c0_i32_72, %1 : i32
    %c1_i32_73 = arith.constant 1 : i32
    %84 = arith.addi %83, %c1_i32_73 : i32
    %c0_74 = arith.constant 0 : index
    %85 = arith.index_cast %84 : i32 to index
    %c1_75 = arith.constant 1 : index
    %c0_76 = arith.constant 0 : index
    %86 = vector.load %arg2[%c0_74, %85, %c1_75, %c0_76] : memref<1x132x33x3xbf16, #tpu.memory_space<vmem>>, vector<1x16x32x3xbf16>
    %87 = vector.shape_cast %86 : vector<1x16x32x3xbf16> to vector<16x32x3xbf16>
    %88 = vector.shape_cast %87 : vector<16x32x3xbf16> to vector<512x3xbf16>
    %c2_77 = arith.constant 2 : index
    %c2_78 = arith.constant 2 : index
    %c0_79 = arith.constant 0 : index
    %c0_80 = arith.constant 0 : index
    %89 = vector.load %arg3[%c2_77, %c2_78, %c0_79, %c0_80] : memref<3x3x3x64xbf16, #tpu.memory_space<vmem>>, vector<1x1x3x64xbf16>
    %90 = vector.shape_cast %89 : vector<1x1x3x64xbf16> to vector<3x64xbf16>
    %cst_81 = arith.constant dense<0.000000e+00> : vector<512x64xf32>
    %91 = tpu.matmul %88, %90, %cst_81 {dimension_numbers = #tpu.dot_dimension_numbers<[1], [0], [0], [1], [0, 0, 1, 1], [], []>} : vector<512x3xbf16>, vector<3x64xbf16>, vector<512x64xf32> -> vector<512x64xf32>
    %92 = arith.addf %82, %91 : vector<512x64xf32>
    %c0_82 = arith.constant 0 : index
    %c0_83 = arith.constant 0 : index
    %93 = vector.load %arg4[%c0_82, %c0_83] : memref<1x64xf32, #tpu.memory_space<vmem>>, vector<1x64xf32>
    %94 = vector.broadcast %93 : vector<1x64xf32> to vector<512x64xf32>
    %95 = arith.addf %92, %94 : vector<512x64xf32>
    %cst_84 = arith.constant 0.000000e+00 : f32
    %96 = vector.broadcast %cst_84 : f32 to vector<512x64xf32>
    %97 = arith.maximumf %95, %96 : vector<512x64xf32>
    %98 = vector.shape_cast %97 : vector<512x64xf32> to vector<1x16x32x64xf32>
    %99 = arith.truncf %98 : vector<1x16x32x64xf32> to vector<1x16x32x64xbf16>
    %c0_85 = arith.constant 0 : index
    %c0_86 = arith.constant 0 : index
    %c0_87 = arith.constant 0 : index
    %c0_88 = arith.constant 0 : index
    %100 = vector.load %arg5[%c0_85, %c0_86, %c0_87, %c0_88] : memref<1x16x32x64xbf16, #tpu.memory_space<vmem>>, vector<1x16x32x64xbf16>
    tpu.vector_store %arg5[%c0_85, %c0_86, %c0_87, %c0_88], %99 {strides = array<i32>} : memref<1x16x32x64xbf16, #tpu.memory_space<vmem>>, vector<1x16x32x64xbf16>,
    return
  }
  func.func @transform_0(%arg0: i32, %arg1: i32) -> (i32, i32, i32, i32) {
    %c0_i32 = arith.constant 0 : i32
    %c0_i32_0 = arith.constant 0 : i32
    %c0_i32_1 = arith.constant 0 : i32
    %c0_i32_2 = arith.constant 0 : i32
    return %arg0, %c0_i32, %c0_i32_0, %c0_i32_1 : i32, i32, i32, i32
  }
  func.func @transform_1(%arg0: i32, %arg1: i32) -> (i32, i32, i32, i32) {
    %c0_i32 = arith.constant 0 : i32
    %c0_i32_0 = arith.constant 0 : i32
    %c0_i32_1 = arith.constant 0 : i32
    %c0_i32_2 = arith.constant 0 : i32
    %c0_i32_3 = arith.constant 0 : i32
    return %c0_i32, %c0_i32_0, %c0_i32_1, %c0_i32_2 : i32, i32, i32, i32
  }
  func.func @transform_2(%arg0: i32, %arg1: i32) -> (i32, i32) {
    %c0_i32 = arith.constant 0 : i32
    %c0_i32_0 = arith.constant 0 : i32
    %c0_i32_1 = arith.constant 0 : i32
    return %c0_i32, %c0_i32_0 : i32, i32
  }
  func.func @transform_3(%arg0: i32, %arg1: i32) -> (i32, i32, i32, i32) {
    %c0_i32 = arith.constant 0 : i32
    %c0_i32_0 = arith.constant 0 : i32
    %c0_i32_1 = arith.constant 0 : i32
    return %arg0, %arg1, %c0_i32, %c0_i32_0 : i32, i32, i32, i32
  }
}

</mosaic_0001>

<llo_original>
// kernel: _conv_op.1
$region0: #{_conv_op.1}
  #allocation0 [shape = 'u32[]', space=smem, size = 0x4, offset = 0x4, fixed_abs, tag = 'smem constant byte address 0x4 - core index']
  #allocation1 [shape = 'u32[144,128]{1,0:T(1,128)}', space=vmem, size = 0x12000, scoped, tag = 'internal scratch']
  %s0 = inlined_call_operand.vmem [shape: bf16[2,132,33,3], index: 0, kind: input, shape index: {}]
  %s1 = inlined_call_operand.vmem [shape: bf16[3,3,3,64], index: 1, kind: input, shape index: {}]
  %s2 = inlined_call_operand.vmem [shape: f32[1,64], index: 2, kind: input, shape index: {}]
  %s3 = inlined_call_operand.hbm [shape: bf16[2,32,32,64], index: 3, kind: output, shape index: {}]
  %s4 = sld [smem:[#allocation0]]
  $region45: #{_conv_op.1} parent=0
    _
  %s6 = ssub.s32 1, %s4
  %s7 = scalar_select 0, %s6, %s4
  $region1: #{_conv_op.1} parent=0
    #allocation2 [shape = 'u8[262144]{0}', space=vmem, size = 0x40000, scoped, tag = 'output window, operand 0']
    #allocation3 [shape = 's32[2]{0}', space=sflag, size = 0x8, scoped, tag = 'scoped memory for _conv_op.1']
    %8 = vsyncpa [#allocation3], 0
    %s9 = scalar_lea.sflag [#allocation3], 1
    %10 = vsyncpa %s9, 0
    loop: start=0, step=1, limit=6
    $region2: #{_conv_op.1} parent=1 // loop_pre_header
      _
    $region3: #{_conv_op.1} parent=1 // loop_header
      %s12 = sphi 0, %s16
      %p13 = scmp.ge.s32.totalorder %s12, 6
      %s19 = sphi 0, %s31
      %s20 = sphi 0, %s27
      %s21 = sphi 0, %s19
      %s22 = sphi 0, %s20
      %s23 = sphi 0, %s21
      %s24 = sphi 0, %s22
      %s34 = sphi 0, %s36
      %s37 = sphi 0, %s34
      %s38 = sphi 0, %s37
      %s54 = sphi 0, %s38
      %s58 = sphi 0, %s58
      %s60 = sphi 0, %s58
      %s61 = sphi 0, %s60
      %s75 = sphi 0, %s61
      %s79 = sphi 0, %s79
      %s81 = sphi 0, %s79
      %s82 = sphi 0, %s81
      %s96 = sphi 0, %s82
      %s104 = sphi 0, %s106
      %s107 = sphi 0, %s104
      %s108 = sphi 0, %s107
      %s124 = sphi 0, %s108
    $region4: #{_conv_op.1} parent=1 // loop_header_branch
      %15 = sbr.rel (%p13) target = $region8
    $region5: #{_conv_op.1} parent=1 // loop_body
      %s17 = ssub.s32 %s12, 1
      %s18 = ssub.s32 %s12, 2
      %s25 = sadd.s32 1, %s20
      %p26 = scmp.ge.s32.totalorder %s25, 2
      %s27 = scalar_select %p26, 0, %s25
      %s28 = sadd.s32 1, %s19
      %s29 = scalar_select %p26, %s28, %s19
      %p30 = scmp.ge.s32.totalorder %s29, 2
      %s31 = scalar_select %p30, 0, %s29
      %s32 = ssub.s32 %s19, %s31
      %p33 = scmp.eq.s32.totalorder %s32, 0
      %s35 = sadd.s32 %s34, 1
      %s36 = scalar_select %p33, %s34, %s35
      %p39 = pneg %p33
      %p40 = scmp.eq.s32.totalorder %s12, 3
      %p41 = por %p39, %p40
      %p42 = scmp.ne.s32.totalorder %s34, %s37
      %p43 = scmp.eq.s32.totalorder %s12, 0
      %p44 = por %p42, %p43
      %p45 = scmp.ne.s32.totalorder %s34, %s37
      %p46 = scmp.eq.s32.totalorder %s17, 3
      %p47 = por %p45, %p46
      %p48 = scmp.ne.s32.totalorder %s37, %s38
      %p49 = scmp.eq.s32.totalorder %s17, 0
      %p50 = por %p48, %p49
      %p51 = scmp.ne.s32.totalorder %s37, %s38
      %p52 = scmp.eq.s32.totalorder %s18, 3
      %p53 = por %p51, %p52
      %p55 = scmp.ne.s32.totalorder %s38, %s54
      %p56 = scmp.eq.s32.totalorder %s18, 0
      %p57 = por %p55, %p56
      %s59 = sadd.s32 %s58, 1
      %p62 = scmp.eq.s32.totalorder %s12, 3
      %p63 = scmp.ne.s32.totalorder %s58, %s60
      %p64 = scmp.eq.s32.totalorder %s12, 0
      %p65 = por %p63, %p64
      %p66 = scmp.ne.s32.totalorder %s58, %s60
      %p67 = scmp.eq.s32.totalorder %s17, 3
      %p68 = por %p66, %p67
      %p69 = scmp.ne.s32.totalorder %s60, %s61
      %p70 = scmp.eq.s32.totalorder %s17, 0
      %p71 = por %p69, %p70
      %p72 = scmp.ne.s32.totalorder %s60, %s61
      %p73 = scmp.eq.s32.totalorder %s18, 3
      %p74 = por %p72, %p73
      %p76 = scmp.ne.s32.totalorder %s61, %s75
      %p77 = scmp.eq.s32.totalorder %s18, 0
      %p78 = por %p76, %p77
      %s80 = sadd.s32 %s79, 1
      %p83 = scmp.eq.s32.totalorder %s12, 3
      %p84 = scmp.ne.s32.totalorder %s79, %s81
      %p85 = scmp.eq.s32.totalorder %s12, 0
      %p86 = por %p84, %p85
      %p87 = scmp.ne.s32.totalorder %s79, %s81
      %p88 = scmp.eq.s32.totalorder %s17, 3
      %p89 = por %p87, %p88
      %p90 = scmp.ne.s32.totalorder %s81, %s82
      %p91 = scmp.eq.s32.totalorder %s17, 0
      %p92 = por %p90, %p91
      %p93 = scmp.ne.s32.totalorder %s81, %s82
      %p94 = scmp.eq.s32.totalorder %s18, 3
      %p95 = por %p93, %p94
      %p97 = scmp.ne.s32.totalorder %s82, %s96
      %p98 = scmp.eq.s32.totalorder %s18, 0
      %p99 = por %p97, %p98
      %s100 = ssub.s32 %s19, %s31
      %s101 = ssub.s32 %s20, %s27
      %s102 = sor.u32 %s100, %s101
      %p103 = scmp.eq.s32.totalorder %s102, 0
      %s105 = sadd.s32 %s104, 1
      %s106 = scalar_select %p103, %s104, %s105
      %p109 = pneg %p103
      %p110 = scmp.eq.s32.totalorder %s12, 3
      %p111 = por %p109, %p110
      %p112 = scmp.ne.s32.totalorder %s104, %s107
      %p113 = scmp.eq.s32.totalorder %s12, 0
      %p114 = por %p112, %p113
      %p115 = scmp.ne.s32.totalorder %s104, %s107
      %p116 = scmp.eq.s32.totalorder %s17, 3
      %p117 = por %p115, %p116
      %p118 = scmp.ne.s32.totalorder %s107, %s108
      %p119 = scmp.eq.s32.totalorder %s17, 0
      %p120 = por %p118, %p119
      %p121 = scmp.ne.s32.totalorder %s107, %s108
      %p122 = scmp.eq.s32.totalorder %s18, 3
      %p123 = por %p121, %p122
      %p125 = scmp.ne.s32.totalorder %s108, %s124
      %p126 = scmp.eq.s32.totalorder %s18, 0
      %p127 = por %p125, %p126
      %p128 = scmp.le.s32.totalorder 1, %s12
      %p129 = scmp.lt.s32.totalorder %s12, 5
      %p130 = pnand %p128, %p129
      %p131 = pneg %p130
      // Predicated region
      $region9: #{_conv_op.1} parent=5 // pred_check
        _
      $region10: #{_conv_op.1} parent=5 // pred_check_branch
        %133 = sbr.rel (%p130) target = $region12
      $region11: #{_conv_op.1} parent=5 // pred_region
        %s134 = ssub.s32 %s12, 1
        // Predicated region
        $region13: #{_conv_op.1} parent=11 // pred_check
          %p135 = pneg %p71
        $region14: #{_conv_op.1} parent=11 // pred_check_branch
          %137 = sbr.rel (%p135) target = $region16
        $region15: #{_conv_op.1} parent=11 // pred_region
          _
        $region16: #{_conv_op.1} parent=11 // pred_fallthru
          _
        // Predicated region
        $region17: #{_conv_op.1} parent=11 // pred_check
          %p138 = pneg %p92
        $region18: #{_conv_op.1} parent=11 // pred_check_branch
          %140 = sbr.rel (%p138) target = $region20
        $region19: #{_conv_op.1} parent=11 // pred_region
          _
        $region20: #{_conv_op.1} parent=11 // pred_fallthru
          _
      $region12: #{_conv_op.1} parent=5 // pred_fallthru
        _
      %p141 = scmp.lt.s32.totalorder %s12, 4
      // Predicated region
      $region21: #{_conv_op.1} parent=5 // pred_check
        %p142 = pneg %p141
      $region22: #{_conv_op.1} parent=5 // pred_check_branch
        %144 = sbr.rel (%p142) target = $region24
      $region23: #{_conv_op.1} parent=5 // pred_region
        // Predicated region
        $region25: #{_conv_op.1} parent=23 // pred_check
          %p145 = pneg %p44
        $region26: #{_conv_op.1} parent=23 // pred_check_branch
          %147 = sbr.rel (%p145) target = $region28
        $region27: #{_conv_op.1} parent=23 // pred_region
          %p148 = scmp.lt.s32.totalorder %s19, 1
          %s149 = scalar_select %p148, %s19, 1
          %s150 = smul.addr %s149, 660
          %s151 = smul.addr %s150, 4
          %s152 = scalar_lea.vmem %s0, %s151
        $region28: #{_conv_op.1} parent=23 // pred_fallthru
          _
      $region24: #{_conv_op.1} parent=5 // pred_fallthru
        _
      %p153 = scmp.le.s32.totalorder 1, %s12
      %p154 = scmp.lt.s32.totalorder %s12, 5
      %p155 = pnand %p153, %p154
      %p156 = pneg %p155
      // Predicated region
      $region29: #{_conv_op.1} parent=5 // pred_check
        _
      $region30: #{_conv_op.1} parent=5 // pred_check_branch
        %158 = sbr.rel (%p155) target = $region32
      $region31: #{_conv_op.1} parent=5 // pred_region
        %s159 = ssub.s32 %s12, 1
        %p160 = scmp.lt.s32.totalorder %s21, 1
        %s161 = scalar_select %p160, %s21, 1
        %s162 = smul.addr %s161, 660
        %s163 = smul.addr %s162, 4
        %s164 = scalar_lea.vmem %s0, %s163
        %p165 = pneg %p50
        %p166 = pneg %p47
        %p167 = pneg %p71
        %p168 = pneg %p68
        %p169 = pneg %p92
        %p170 = pneg %p89
        %p171 = pneg %p120
        %p172 = pneg %p117
        %s173 = sand.u32 %s107, 1
        %s174 = scalar_lea.sflag [#allocation3], %s173
        %s175 = sand.u32 %s107, 1
        %s176 = smul.addr %s175, 256
        %s177 = scalar_lea.vmem [#allocation2], %s176
        %p178 = scmp.lt.s32.totalorder %s21, 1
        %s179 = scalar_select %p178, %s21, 1
        %s180 = smul.addr %s179, 660
        %s181 = smul.addr %s180, 4
        %s182 = scalar_lea.vmem %s0, %s181
        %s183 = smul.u32 16, %s22
        %s185 = smul.u32 %s22, 16
        %s186 = smul.u32 %s185, 5
        %s187 = smul.addr %s186, 4
        %s188 = scalar_lea.vmem %s182, %s187
        %v189 = vld [vmem:[%s188] sm:$0xf]
        %v190 = vld [vmem:[%s188 + $0x4] sm:$0xf]
        %v191 = vld [vmem:[%s188 + $0x8] sm:$0xf]
        %v192 = vld [vmem:[%s188 + $0xc] sm:$0xf]
        %v193 = vld [vmem:[%s188 + $0x14] sm:$0xf]
        %v194 = vld [vmem:[%s188 + $0x18] sm:$0xf]
        %v195 = vld [vmem:[%s188 + $0x1c] sm:$0xf]
        %v196 = vld [vmem:[%s188 + $0x20] sm:$0xf]
        %v197 = vld [vmem:[%s188 + $0x28] sm:$0xf]
        %v198 = vld [vmem:[%s188 + $0x2c] sm:$0xf]
        %v199 = vld [vmem:[%s188 + $0x30] sm:$0xf]
        %v200 = vld [vmem:[%s188 + $0x34] sm:$0xf]
        %v201 = vld [vmem:[%s188 + $0x3c] sm:$0xf]
        %v202 = vld [vmem:[%s188 + $0x40] sm:$0xf]
        %v203 = vld [vmem:[%s188 + $0x44] sm:$0xf]
        %v204 = vld [vmem:[%s188 + $0x48] sm:$0xf]
        %v205 = vld [vmem:[%s188 + $0x50] sm:$0xf]
        %v206 = vld [vmem:[%s188 + $0x54] sm:$0xf]
        %v207 = vld [vmem:[%s188 + $0x58] sm:$0xf]
        %v208 = vld [vmem:[%s188 + $0x5c] sm:$0xf]
        %v209 = vld [vmem:[%s188 + $0x64] sm:$0xf]
        %v210 = vld [vmem:[%s188 + $0x68] sm:$0xf]
        %v211 = vld [vmem:[%s188 + $0x6c] sm:$0xf]
        %v212 = vld [vmem:[%s188 + $0x70] sm:$0xf]
        %v213 = vld [vmem:[%s188 + $0x78] sm:$0xf]
        %v214 = vld [vmem:[%s188 + $0x7c] sm:$0xf]
        %v215 = vld [vmem:[%s188 + $0x80] sm:$0xf]
        %v216 = vld [vmem:[%s188 + $0x84] sm:$0xf]
        %v217 = vld [vmem:[%s188 + $0x8c] sm:$0xf]
        %v218 = vld [vmem:[%s188 + $0x90] sm:$0xf]
        %v219 = vld [vmem:[%s188 + $0x94] sm:$0xf]
        %v220 = vld [vmem:[%s188 + $0x98] sm:$0xf]
        %v221 = vld [vmem:[%s188 + $0xa0] sm:$0xf]
        %v222 = vld [vmem:[%s188 + $0xa4] sm:$0xf]
        %v223 = vld [vmem:[%s188 + $0xa8] sm:$0xf]
        %v224 = vld [vmem:[%s188 + $0xac] sm:$0xf]
        %v225 = vld [vmem:[%s188 + $0xb4] sm:$0xf]
        %v226 = vld [vmem:[%s188 + $0xb8] sm:$0xf]
        %v227 = vld [vmem:[%s188 + $0xbc] sm:$0xf]
        %v228 = vld [vmem:[%s188 + $0xc0] sm:$0xf]
        %v229 = vld [vmem:[%s188 + $0xc8] sm:$0xf]
        %v230 = vld [vmem:[%s188 + $0xcc] sm:$0xf]
        %v231 = vld [vmem:[%s188 + $0xd0] sm:$0xf]
        %v232 = vld [vmem:[%s188 + $0xd4] sm:$0xf]
        %v233 = vld [vmem:[%s188 + $0xdc] sm:$0xf]
        %v234 = vld [vmem:[%s188 + $0xe0] sm:$0xf]
        %v235 = vld [vmem:[%s188 + $0xe4] sm:$0xf]
        %v236 = vld [vmem:[%s188 + $0xe8] sm:$0xf]
        %v237 = vld [vmem:[%s188 + $0xf0] sm:$0xf]
        %v238 = vld [vmem:[%s188 + $0xf4] sm:$0xf]
        %v239 = vld [vmem:[%s188 + $0xf8] sm:$0xf]
        %v240 = vld [vmem:[%s188 + $0xfc] sm:$0xf]
        %v241 = vld [vmem:[%s188 + $0x104] sm:$0xf]
        %v242 = vld [vmem:[%s188 + $0x108] sm:$0xf]
        %v243 = vld [vmem:[%s188 + $0x10c] sm:$0xf]
        %v244 = vld [vmem:[%s188 + $0x110] sm:$0xf]
        %v245 = vld [vmem:[%s188 + $0x118] sm:$0xf]
        %v246 = vld [vmem:[%s188 + $0x11c] sm:$0xf]
        %v247 = vld [vmem:[%s188 + $0x120] sm:$0xf]
        %v248 = vld [vmem:[%s188 + $0x124] sm:$0xf]
        %v249 = vld [vmem:[%s188 + $0x12c] sm:$0xf]
        %v250 = vld [vmem:[%s188 + $0x130] sm:$0xf]
        %v251 = vld [vmem:[%s188 + $0x134] sm:$0xf]
        %v252 = vld [vmem:[%s188 + $0x138] sm:$0xf]
        %v253 = vld [vmem:[%s1] sm:$0x3]
        %s254 = sadd.s32 %s185, 33
        %s255 = smul.u32 %s254, 5
        %s256 = smul.addr %s255, 4
        %s257 = scalar_lea.vmem %s182, %s256
        %v258 = vld [vmem:[%s257] sm:$0xf]
        %v259 = vld [vmem:[%s257 + $0x4] sm:$0xf]
        %v260 = vld [vmem:[%s257 + $0x8] sm:$0xf]
        %v261 = vld [vmem:[%s257 + $0xc] sm:$0xf]
        %v262 = vld [vmem:[%s257 + $0x14] sm:$0xf]
        %v263 = vld [vmem:[%s257 + $0x18] sm:$0xf]
        %v264 = vld [vmem:[%s257 + $0x1c] sm:$0xf]
        %v265 = vld [vmem:[%s257 + $0x20] sm:$0xf]
        %v266 = vld [vmem:[%s257 + $0x28] sm:$0xf]
        %v267 = vld [vmem:[%s257 + $0x2c] sm:$0xf]
        %v268 = vld [vmem:[%s257 + $0x30] sm:$0xf]
        %v269 = vld [vmem:[%s257 + $0x34] sm:$0xf]
        %v270 = vld [vmem:[%s257 + $0x3c] sm:$0xf]
        %v271 = vld [vmem:[%s257 + $0x40] sm:$0xf]
        %v272 = vld [vmem:[%s257 + $0x44] sm:$0xf]
        %v273 = vld [vmem:[%s257 + $0x48] sm:$0xf]
        %v274 = vld [vmem:[%s257 + $0x50] sm:$0xf]
        %v275 = vld [vmem:[%s257 + $0x54] sm:$0xf]
        %v276 = vld [vmem:[%s257 + $0x58] sm:$0xf]
        %v277 = vld [vmem:[%s257 + $0x5c] sm:$0xf]
        %v278 = vld [vmem:[%s257 + $0x64] sm:$0xf]
        %v279 = vld [vmem:[%s257 + $0x68] sm:$0xf]
        %v280 = vld [vmem:[%s257 + $0x6c] sm:$0xf]
        %v281 = vld [vmem:[%s257 + $0x70] sm:$0xf]
        %v282 = vld [vmem:[%s257 + $0x78] sm:$0xf]
        %v283 = vld [vmem:[%s257 + $0x7c] sm:$0xf]
        %v284 = vld [vmem:[%s257 + $0x80] sm:$0xf]
        %v285 = vld [vmem:[%s257 + $0x84] sm:$0xf]
        %v286 = vld [vmem:[%s257 + $0x8c] sm:$0xf]
        %v287 = vld [vmem:[%s257 + $0x90] sm:$0xf]
        %v288 = vld [vmem:[%s257 + $0x94] sm:$0xf]
        %v289 = vld [vmem:[%s257 + $0x98] sm:$0xf]
        %v290 = vld [vmem:[%s257 + $0xa0] sm:$0xf]
        %v291 = vld [vmem:[%s257 + $0xa4] sm:$0xf]
        %v292 = vld [vmem:[%s257 + $0xa8] sm:$0xf]
        %v293 = vld [vmem:[%s257 + $0xac] sm:$0xf]
        %v294 = vld [vmem:[%s257 + $0xb4] sm:$0xf]
        %v295 = vld [vmem:[%s257 + $0xb8] sm:$0xf]
        %v296 = vld [vmem:[%s257 + $0xbc] sm:$0xf]
        %v297 = vld [vmem:[%s257 + $0xc0] sm:$0xf]
        %v298 = vld [vmem:[%s257 + $0xc8] sm:$0xf]
        %v299 = vld [vmem:[%s257 + $0xcc] sm:$0xf]
        %v300 = vld [vmem:[%s257 + $0xd0] sm:$0xf]
        %v301 = vld [vmem:[%s257 + $0xd4] sm:$0xf]
        %v302 = vld [vmem:[%s257 + $0xdc] sm:$0xf]
        %v303 = vld [vmem:[%s257 + $0xe0] sm:$0xf]
        %v304 = vld [vmem:[%s257 + $0xe4] sm:$0xf]
        %v305 = vld [vmem:[%s257 + $0xe8] sm:$0xf]
        %v306 = vld [vmem:[%s257 + $0xf0] sm:$0xf]
        %v307 = vld [vmem:[%s257 + $0xf4] sm:$0xf]
        %v308 = vld [vmem:[%s257 + $0xf8] sm:$0xf]
        %v309 = vld [vmem:[%s257 + $0xfc] sm:$0xf]
        %v310 = vld [vmem:[%s257 + $0x104] sm:$0xf]
        %v311 = vld [vmem:[%s257 + $0x108] sm:$0xf]
        %v312 = vld [vmem:[%s257 + $0x10c] sm:$0xf]
        %v313 = vld [vmem:[%s257 + $0x110] sm:$0xf]
        %v314 = vld [vmem:[%s257 + $0x118] sm:$0xf]
        %v315 = vld [vmem:[%s257 + $0x11c] sm:$0xf]
        %v316 = vld [vmem:[%s257 + $0x120] sm:$0xf]
        %v317 = vld [vmem:[%s257 + $0x124] sm:$0xf]
        %v318 = vld [vmem:[%s257 + $0x12c] sm:$0xf]
        %v319 = vld [vmem:[%s257 + $0x130] sm:$0xf]
        %v320 = vld [vmem:[%s257 + $0x134] sm:$0xf]
        %v321 = vld [vmem:[%s257 + $0x138] sm:$0xf]
        %s322 = scalar_lea.vmem %s1, 2
        %v323 = vld [vmem:[%s322] sm:$0x3]
        %v388 = vunpack.c.l.b16 %v258
        %v389 = vunpack.c.l.b16 %v259
        %v390 = vunpack.c.l.b16 %v260
        %v391 = vunpack.c.l.b16 %v261
        %v392 = vunpack.c.l.b16 %v262
        %v393 = vunpack.c.l.b16 %v263
        %v394 = vunpack.c.l.b16 %v264
        %v395 = vunpack.c.l.b16 %v265
        %v396 = vunpack.c.l.b16 %v266
        %v397 = vunpack.c.l.b16 %v267
        %v398 = vunpack.c.l.b16 %v268
        %v399 = vunpack.c.l.b16 %v269
        %v400 = vunpack.c.l.b16 %v270
        %v401 = vunpack.c.l.b16 %v271
        %v402 = vunpack.c.l.b16 %v272
        %v403 = vunpack.c.l.b16 %v273
        %v404 = vunpack.c.l.b16 %v274
        %v405 = vunpack.c.l.b16 %v275
        %v406 = vunpack.c.l.b16 %v276
        %v407 = vunpack.c.l.b16 %v277
        %v408 = vunpack.c.l.b16 %v278
        %v409 = vunpack.c.l.b16 %v279
        %v410 = vunpack.c.l.b16 %v280
        %v411 = vunpack.c.l.b16 %v281
        %v412 = vunpack.c.l.b16 %v282
        %v413 = vunpack.c.l.b16 %v283
        %v414 = vunpack.c.l.b16 %v284
        %v415 = vunpack.c.l.b16 %v285
        %v416 = vunpack.c.l.b16 %v286
        %v417 = vunpack.c.l.b16 %v287
        %v418 = vunpack.c.l.b16 %v288
        %v419 = vunpack.c.l.b16 %v289
        %v420 = vunpack.c.l.b16 %v290
        %v421 = vunpack.c.l.b16 %v291
        %v422 = vunpack.c.l.b16 %v292
        %v423 = vunpack.c.l.b16 %v293
        %v424 = vunpack.c.l.b16 %v294
        %v425 = vunpack.c.l.b16 %v295
        %v426 = vunpack.c.l.b16 %v296
        %v427 = vunpack.c.l.b16 %v297
        %v428 = vunpack.c.l.b16 %v298
        %v429 = vunpack.c.l.b16 %v299
        %v430 = vunpack.c.l.b16 %v300
        %v431 = vunpack.c.l.b16 %v301
        %v432 = vunpack.c.l.b16 %v302
        %v433 = vunpack.c.l.b16 %v303
        %v434 = vunpack.c.l.b16 %v304
        %v435 = vunpack.c.l.b16 %v305
        %v436 = vunpack.c.l.b16 %v306
        %v437 = vunpack.c.l.b16 %v307
        %v438 = vunpack.c.l.b16 %v308
        %v439 = vunpack.c.l.b16 %v309
        %v440 = vunpack.c.l.b16 %v310
        %v441 = vunpack.c.l.b16 %v311
        %v442 = vunpack.c.l.b16 %v312
        %v443 = vunpack.c.l.b16 %v313
        %v444 = vunpack.c.l.b16 %v314
        %v445 = vunpack.c.l.b16 %v315
        %v446 = vunpack.c.l.b16 %v316
        %v447 = vunpack.c.l.b16 %v317
        %v448 = vunpack.c.l.b16 %v318
        %v449 = vunpack.c.l.b16 %v319
        %v450 = vunpack.c.l.b16 %v320
        %v451 = vunpack.c.l.b16 %v321
        %v452 = vpack.c.b16 %v389, %v388
        %v453 = vpack.c.b16 %v391, %v390
        %v454 = vpack.c.b16 %v393, %v392
        %v455 = vpack.c.b16 %v395, %v394
        %v456 = vpack.c.b16 %v397, %v396
        %v457 = vpack.c.b16 %v399, %v398
        %v458 = vpack.c.b16 %v401, %v400
        %v459 = vpack.c.b16 %v403, %v402
        %v460 = vpack.c.b16 %v405, %v404
        %v461 = vpack.c.b16 %v407, %v406
        %v462 = vpack.c.b16 %v409, %v408
        %v463 = vpack.c.b16 %v411, %v410
        %v464 = vpack.c.b16 %v413, %v412
        %v465 = vpack.c.b16 %v415, %v414
        %v466 = vpack.c.b16 %v417, %v416
        %v467 = vpack.c.b16 %v419, %v418
        %v468 = vpack.c.b16 %v421, %v420
        %v469 = vpack.c.b16 %v423, %v422
        %v470 = vpack.c.b16 %v425, %v424
        %v471 = vpack.c.b16 %v427, %v426
        %v472 = vpack.c.b16 %v429, %v428
        %v473 = vpack.c.b16 %v431, %v430
        %v474 = vpack.c.b16 %v433, %v432
        %v475 = vpack.c.b16 %v435, %v434
        %v476 = vpack.c.b16 %v437, %v436
        %v477 = vpack.c.b16 %v439, %v438
        %v478 = vpack.c.b16 %v441, %v440
        %v479 = vpack.c.b16 %v443, %v442
        %v480 = vpack.c.b16 %v445, %v444
        %v481 = vpack.c.b16 %v447, %v446
        %v482 = vpack.c.b16 %v449, %v448
        %v483 = vpack.c.b16 %v451, %v450
        %vm484 = vcmask 23552
        %v486 = vsel %vm484, %v452, 0
        %v489 = vsel %vm484, %v453, 0
        %v492 = vsel %vm484, %v454, 0
        %v495 = vsel %vm484, %v455, 0
        %v498 = vsel %vm484, %v456, 0
        %v501 = vsel %vm484, %v457, 0
        %v504 = vsel %vm484, %v458, 0
        %v507 = vsel %vm484, %v459, 0
        %v510 = vsel %vm484, %v460, 0
        %v513 = vsel %vm484, %v461, 0
        %v516 = vsel %vm484, %v462, 0
        %v519 = vsel %vm484, %v463, 0
        %v522 = vsel %vm484, %v464, 0
        %v525 = vsel %vm484, %v465, 0
        %v528 = vsel %vm484, %v466, 0
        %v531 = vsel %vm484, %v467, 0
        %v534 = vsel %vm484, %v468, 0
        %v537 = vsel %vm484, %v469, 0
        %v540 = vsel %vm484, %v470, 0
        %v543 = vsel %vm484, %v471, 0
        %v546 = vsel %vm484, %v472, 0
        %v549 = vsel %vm484, %v473, 0
        %v552 = vsel %vm484, %v474, 0
        %v555 = vsel %vm484, %v475, 0
        %v558 = vsel %vm484, %v476, 0
        %v561 = vsel %vm484, %v477, 0
        %v564 = vsel %vm484, %v478, 0
        %v567 = vsel %vm484, %v479, 0
        %v570 = vsel %vm484, %v480, 0
        %v573 = vsel %vm484, %v481, 0
        %v576 = vsel %vm484, %v482, 0
        %v579 = vsel %vm484, %v483, 0
        %vm581 = vcmask 1040384
        %vm582 = vcmask 1041408
        %v583 = vsel %vm581, 4294967295, 65535
        %v584 = vsel %vm582, %v583, 0
        %v586 = vand.u32 %v323, %v584
        %588 = vmatprep.subr.bf16.mxu0 0
        %589 = vmatpush1.bf16.msra.mxu0 %v586
        %590 = vmatprep.subr.bf16.mxu0 0
        %591 = vmatpush1.bf16.msra.mxu0 0
        %592 = vmatprep.subr.bf16.mxu0 0
        %593 = vmatpush1.bf16.msra.mxu0 0
        %594 = vmatprep.subr.bf16.mxu0 0
        %595 = vmatpush1.bf16.msra.mxu0 0
        %596 = vmatprep.subr.bf16.mxu0 0
        %597 = vmatpush1.bf16.msra.mxu0 0
        %598 = vmatprep.subr.bf16.mxu0 0
        %599 = vmatpush1.bf16.msra.mxu0 0
        %600 = vmatprep.subr.bf16.mxu0 0
        %601 = vmatpush1.bf16.msra.mxu0 0
        %602 = vmatprep.subr.bf16.mxu0 0
        %603 = vmatpush1.bf16.msra.mxu0 0
        %604 = vmatprep.subr.bf16.mxu0 0
        %605 = vmatpush1.bf16.msra.mxu0 0
        %606 = vmatprep.subr.bf16.mxu0 0
        %607 = vmatpush1.bf16.msra.mxu0 0
        %608 = vmatprep.subr.bf16.mxu0 0
        %609 = vmatpush1.bf16.msra.mxu0 0
        %610 = vmatprep.subr.bf16.mxu0 0
        %611 = vmatpush1.bf16.msra.mxu0 0
        %612 = vmatprep.subr.bf16.mxu0 0
        %613 = vmatpush1.bf16.msra.mxu0 0
        %614 = vmatprep.subr.bf16.mxu0 0
        %615 = vmatpush1.bf16.msra.mxu0 0
        %616 = vmatprep.subr.bf16.mxu0 0
        %617 = vmatpush1.bf16.msra.mxu0 0
        %618 = vmatprep.subr.bf16.mxu0 0
        %619 = vmatpush1.bf16.msra.mxu0 0
        %620 = vmatprep.mubr.bf16.mxu0 0
        %621 = vmatmul.mubr.bf16.gmra.mrb[0].mxu0 %v486
        %v622 = vpop.f32.mrb[0].mxu0
        %v623 = vadd.f32 0.0, %v622
        %v624 = vpop.f32.mrb[0].mxu0
        %v625 = vpop.f32.mrb[0].mxu0
        %v626 = vadd.f32 0.0, %v625
        %v627 = vpop.f32.mrb[0].mxu0
        %628 = vmatprep.mubr.bf16.mxu0 0
        %629 = vmatmul.mubr.bf16.gmra.mrb[0].mxu0 %v489
        %v630 = vpop.f32.mrb[0].mxu0
        %v631 = vadd.f32 0.0, %v630
        %v632 = vpop.f32.mrb[0].mxu0
        %v633 = vpop.f32.mrb[0].mxu0
        %v634 = vadd.f32 0.0, %v633
        %v635 = vpop.f32.mrb[0].mxu0
        %636 = vmatprep.mubr.bf16.mxu0 0
        %637 = vmatmul.mubr.bf16.gmra.mrb[0].mxu0 %v492
        %v638 = vpop.f32.mrb[0].mxu0
        %v639 = vadd.f32 0.0, %v638
        %v640 = vpop.f32.mrb[0].mxu0
        %v641 = vpop.f32.mrb[0].mxu0
        %v642 = vadd.f32 0.0, %v641
        %v643 = vpop.f32.mrb[0].mxu0
        %644 = vmatprep.mubr.bf16.mxu0 0
        %645 = vmatmul.mubr.bf16.gmra.mrb[0].mxu0 %v495
        %v646 = vpop.f32.mrb[0].mxu0
        %v647 = vadd.f32 0.0, %v646
        %v648 = vpop.f32.mrb[0].mxu0
        %v649 = vpop.f32.mrb[0].mxu0
        %v650 = vadd.f32 0.0, %v649
        %v651 = vpop.f32.mrb[0].mxu0
        %652 = vmatprep.mubr.bf16.mxu0 0
        %653 = vmatmul.mubr.bf16.gmra.mrb[0].mxu0 %v498
        %v654 = vpop.f32.mrb[0].mxu0
        %v655 = vadd.f32 0.0, %v654
        %v656 = vpop.f32.mrb[0].mxu0
        %v657 = vpop.f32.mrb[0].mxu0
        %v658 = vadd.f32 0.0, %v657
        %v659 = vpop.f32.mrb[0].mxu0
        %660 = vmatprep.mubr.bf16.mxu0 0
        %661 = vmatmul.mubr.bf16.gmra.mrb[0].mxu0 %v501
        %v662 = vpop.f32.mrb[0].mxu0
        %v663 = vadd.f32 0.0, %v662
        %v664 = vpop.f32.mrb[0].mxu0
        %v665 = vpop.f32.mrb[0].mxu0
        %v666 = vadd.f32 0.0, %v665
        %v667 = vpop.f32.mrb[0].mxu0
        %668 = vmatprep.mubr.bf16.mxu0 0
        %669 = vmatmul.mubr.bf16.gmra.mrb[0].mxu0 %v504
        %v670 = vpop.f32.mrb[0].mxu0
        %v671 = vadd.f32 0.0, %v670
        %v672 = vpop.f32.mrb[0].mxu0
        %v673 = vpop.f32.mrb[0].mxu0
        %v674 = vadd.f32 0.0, %v673
        %v675 = vpop.f32.mrb[0].mxu0
        %676 = vmatprep.mubr.bf16.mxu0 0
        %677 = vmatmul.mubr.bf16.gmra.mrb[0].mxu0 %v507
        %v678 = vpop.f32.mrb[0].mxu0
        %v679 = vadd.f32 0.0, %v678
        %v680 = vpop.f32.mrb[0].mxu0
        %v681 = vpop.f32.mrb[0].mxu0
        %v682 = vadd.f32 0.0, %v681
        %v683 = vpop.f32.mrb[0].mxu0
        %684 = vmatprep.mubr.bf16.mxu0 0
        %685 = vmatmul.mubr.bf16.gmra.mrb[0].mxu0 %v510
        %v686 = vpop.f32.mrb[0].mxu0
        %v687 = vadd.f32 0.0, %v686
        %v688 = vpop.f32.mrb[0].mxu0
        %v689 = vpop.f32.mrb[0].mxu0
        %v690 = vadd.f32 0.0, %v689
        %v691 = vpop.f32.mrb[0].mxu0
        %692 = vmatprep.mubr.bf16.mxu0 0
        %693 = vmatmul.mubr.bf16.gmra.mrb[0].mxu0 %v513
        %v694 = vpop.f32.mrb[0].mxu0
        %v695 = vadd.f32 0.0, %v694
        %v696 = vpop.f32.mrb[0].mxu0
        %v697 = vpop.f32.mrb[0].mxu0
        %v698 = vadd.f32 0.0, %v697
        %v699 = vpop.f32.mrb[0].mxu0
        %700 = vmatprep.mubr.bf16.mxu0 0
        %701 = vmatmul.mubr.bf16.gmra.mrb[0].mxu0 %v516
        %v702 = vpop.f32.mrb[0].mxu0
        %v703 = vadd.f32 0.0, %v702
        %v704 = vpop.f32.mrb[0].mxu0
        %v705 = vpop.f32.mrb[0].mxu0
        %v706 = vadd.f32 0.0, %v705
        %v707 = vpop.f32.mrb[0].mxu0
        %708 = vmatprep.mubr.bf16.mxu0 0
        %709 = vmatmul.mubr.bf16.gmra.mrb[0].mxu0 %v519
        %v710 = vpop.f32.mrb[0].mxu0
        %v711 = vadd.f32 0.0, %v710
        %v712 = vpop.f32.mrb[0].mxu0
        %v713 = vpop.f32.mrb[0].mxu0
        %v714 = vadd.f32 0.0, %v713
        %v715 = vpop.f32.mrb[0].mxu0
        %716 = vmatprep.mubr.bf16.mxu0 0
        %717 = vmatmul.mubr.bf16.gmra.mrb[0].mxu0 %v522
        %v718 = vpop.f32.mrb[0].mxu0
        %v719 = vadd.f32 0.0, %v718
        %v720 = vpop.f32.mrb[0].mxu0
        %v721 = vpop.f32.mrb[0].mxu0
        %v722 = vadd.f32 0.0, %v721
        %v723 = vpop.f32.mrb[0].mxu0
        %724 = vmatprep.mubr.bf16.mxu0 0
        %725 = vmatmul.mubr.bf16.gmra.mrb[0].mxu0 %v525
        %v726 = vpop.f32.mrb[0].mxu0
        %v727 = vadd.f32 0.0, %v726
        %v728 = vpop.f32.mrb[0].mxu0
        %v729 = vpop.f32.mrb[0].mxu0
        %v730 = vadd.f32 0.0, %v729
        %v731 = vpop.f32.mrb[0].mxu0
        %732 = vmatprep.mubr.bf16.mxu0 0
        %733 = vmatmul.mubr.bf16.gmra.mrb[0].mxu0 %v528
        %v734 = vpop.f32.mrb[0].mxu0
        %v735 = vadd.f32 0.0, %v734
        %v736 = vpop.f32.mrb[0].mxu0
        %v737 = vpop.f32.mrb[0].mxu0
        %v738 = vadd.f32 0.0, %v737
        %v739 = vpop.f32.mrb[0].mxu0
        %740 = vmatprep.mubr.bf16.mxu0 0
        %741 = vmatmul.mubr.bf16.gmra.mrb[0].mxu0 %v531
        %v742 = vpop.f32.mrb[0].mxu0
        %v743 = vadd.f32 0.0, %v742
        %v744 = vpop.f32.mrb[0].mxu0
        %v745 = vpop.f32.mrb[0].mxu0
        %v746 = vadd.f32 0.0, %v745
        %v747 = vpop.f32.mrb[0].mxu0
        %748 = vmatprep.mubr.bf16.mxu0 0
        %749 = vmatmul.mubr.bf16.gmra.mrb[0].mxu0 %v534
        %v750 = vpop.f32.mrb[0].mxu0
        %v751 = vadd.f32 0.0, %v750
        %v752 = vpop.f32.mrb[0].mxu0
        %v753 = vpop.f32.mrb[0].mxu0
        %v754 = vadd.f32 0.0, %v753
        %v755 = vpop.f32.mrb[0].mxu0
        %756 = vmatprep.mubr.bf16.mxu0 0
        %757 = vmatmul.mubr.bf16.gmra.mrb[0].mxu0 %v537
        %v758 = vpop.f32.mrb[0].mxu0
        %v759 = vadd.f32 0.0, %v758
        %v760 = vpop.f32.mrb[0].mxu0
        %v761 = vpop.f32.mrb[0].mxu0
        %v762 = vadd.f32 0.0, %v761
        %v763 = vpop.f32.mrb[0].mxu0
        %764 = vmatprep.mubr.bf16.mxu0 0
        %765 = vmatmul.mubr.bf16.gmra.mrb[0].mxu0 %v540
        %v766 = vpop.f32.mrb[0].mxu0
        %v767 = vadd.f32 0.0, %v766
        %v768 = vpop.f32.mrb[0].mxu0
        %v769 = vpop.f32.mrb[0].mxu0
        %v770 = vadd.f32 0.0, %v769
        %v771 = vpop.f32.mrb[0].mxu0
        %772 = vmatprep.mubr.bf16.mxu0 0
        %773 = vmatmul.mubr.bf16.gmra.mrb[0].mxu0 %v543
        %v774 = vpop.f32.mrb[0].mxu0
        %v775 = vadd.f32 0.0, %v774
        %v776 = vpop.f32.mrb[0].mxu0
        %v777 = vpop.f32.mrb[0].mxu0
        %v778 = vadd.f32 0.0, %v777
        %v779 = vpop.f32.mrb[0].mxu0
        %780 = vmatprep.mubr.bf16.mxu0 0
        %781 = vmatmul.mubr.bf16.gmra.mrb[0].mxu0 %v546
        %v782 = vpop.f32.mrb[0].mxu0
        %v783 = vadd.f32 0.0, %v782
        %v784 = vpop.f32.mrb[0].mxu0
        %v785 = vpop.f32.mrb[0].mxu0
        %v786 = vadd.f32 0.0, %v785
        %v787 = vpop.f32.mrb[0].mxu0
        %788 = vmatprep.mubr.bf16.mxu0 0
        %789 = vmatmul.mubr.bf16.gmra.mrb[0].mxu0 %v549
        %v790 = vpop.f32.mrb[0].mxu0
        %v791 = vadd.f32 0.0, %v790
        %v792 = vpop.f32.mrb[0].mxu0
        %v793 = vpop.f32.mrb[0].mxu0
        %v794 = vadd.f32 0.0, %v793
        %v795 = vpop.f32.mrb[0].mxu0
        %796 = vmatprep.mubr.bf16.mxu0 0
        %797 = vmatmul.mubr.bf16.gmra.mrb[0].mxu0 %v552
        %v798 = vpop.f32.mrb[0].mxu0
        %v799 = vadd.f32 0.0, %v798
        %v800 = vpop.f32.mrb[0].mxu0
        %v801 = vpop.f32.mrb[0].mxu0
        %v802 = vadd.f32 0.0, %v801
        %v803 = vpop.f32.mrb[0].mxu0
        %804 = vmatprep.mubr.bf16.mxu0 0
        %805 = vmatmul.mubr.bf16.gmra.mrb[0].mxu0 %v555
        %v806 = vpop.f32.mrb[0].mxu0
        %v807 = vadd.f32 0.0, %v806
        %v808 = vpop.f32.mrb[0].mxu0
        %v809 = vpop.f32.mrb[0].mxu0
        %v810 = vadd.f32 0.0, %v809
        %v811 = vpop.f32.mrb[0].mxu0
        %812 = vmatprep.mubr.bf16.mxu0 0
        %813 = vmatmul.mubr.bf16.gmra.mrb[0].mxu0 %v558
        %v814 = vpop.f32.mrb[0].mxu0
        %v815 = vadd.f32 0.0, %v814
        %v816 = vpop.f32.mrb[0].mxu0
        %v817 = vpop.f32.mrb[0].mxu0
        %v818 = vadd.f32 0.0, %v817
        %v819 = vpop.f32.mrb[0].mxu0
        %820 = vmatprep.mubr.bf16.mxu0 0
        %821 = vmatmul.mubr.bf16.gmra.mrb[0].mxu0 %v561
        %v822 = vpop.f32.mrb[0].mxu0
        %v823 = vadd.f32 0.0, %v822
        %v824 = vpop.f32.mrb[0].mxu0
        %v825 = vpop.f32.mrb[0].mxu0
        %v826 = vadd.f32 0.0, %v825
        %v827 = vpop.f32.mrb[0].mxu0
        %828 = vmatprep.mubr.bf16.mxu0 0
        %829 = vmatmul.mubr.bf16.gmra.mrb[0].mxu0 %v564
        %v830 = vpop.f32.mrb[0].mxu0
        %v831 = vadd.f32 0.0, %v830
        %v832 = vpop.f32.mrb[0].mxu0
        %v833 = vpop.f32.mrb[0].mxu0
        %v834 = vadd.f32 0.0, %v833
        %v835 = vpop.f32.mrb[0].mxu0
        %836 = vmatprep.mubr.bf16.mxu0 0
        %837 = vmatmul.mubr.bf16.gmra.mrb[0].mxu0 %v567
        %v838 = vpop.f32.mrb[0].mxu0
        %v839 = vadd.f32 0.0, %v838
        %v840 = vpop.f32.mrb[0].mxu0
        %v841 = vpop.f32.mrb[0].mxu0
        %v842 = vadd.f32 0.0, %v841
        %v843 = vpop.f32.mrb[0].mxu0
        %844 = vmatprep.mubr.bf16.mxu0 0
        %845 = vmatmul.mubr.bf16.gmra.mrb[0].mxu0 %v570
        %v846 = vpop.f32.mrb[0].mxu0
        %v847 = vadd.f32 0.0, %v846
        %v848 = vpop.f32.mrb[0].mxu0
        %v849 = vpop.f32.mrb[0].mxu0
        %v850 = vadd.f32 0.0, %v849
        %v851 = vpop.f32.mrb[0].mxu0
        %852 = vmatprep.mubr.bf16.mxu0 0
        %853 = vmatmul.mubr.bf16.gmra.mrb[0].mxu0 %v573
        %v854 = vpop.f32.mrb[0].mxu0
        %v855 = vadd.f32 0.0, %v854
        %v856 = vpop.f32.mrb[0].mxu0
        %v857 = vpop.f32.mrb[0].mxu0
        %v858 = vadd.f32 0.0, %v857
        %v859 = vpop.f32.mrb[0].mxu0
        %860 = vmatprep.mubr.bf16.mxu0 0
        %861 = vmatmul.mubr.bf16.gmra.mrb[0].mxu0 %v576
        %v862 = vpop.f32.mrb[0].mxu0
        %v863 = vadd.f32 0.0, %v862
        %v864 = vpop.f32.mrb[0].mxu0
        %v865 = vpop.f32.mrb[0].mxu0
        %v866 = vadd.f32 0.0, %v865
        %v867 = vpop.f32.mrb[0].mxu0
        %868 = vmatprep.mubr.bf16.mxu0 0
        %869 = vmatmul.mubr.bf16.gmra.mrb[0].mxu0 %v579
        %v870 = vpop.f32.mrb[0].mxu0
        %v871 = vadd.f32 0.0, %v870
        %v872 = vpop.f32.mrb[0].mxu0
        %v873 = vpop.f32.mrb[0].mxu0
        %v874 = vadd.f32 0.0, %v873
        %v875 = vpop.f32.mrb[0].mxu0
        %876 = vdwg.mxu0
        %v941 = vunpack.c.l.b16 %v189
        %v942 = vunpack.c.l.b16 %v190
        %v943 = vunpack.c.l.b16 %v191
        %v944 = vunpack.c.l.b16 %v192
        %v945 = vunpack.c.l.b16 %v193
        %v946 = vunpack.c.l.b16 %v194
        %v947 = vunpack.c.l.b16 %v195
        %v948 = vunpack.c.l.b16 %v196
        %v949 = vunpack.c.l.b16 %v197
        %v950 = vunpack.c.l.b16 %v198
        %v951 = vunpack.c.l.b16 %v199
        %v952 = vunpack.c.l.b16 %v200
        %v953 = vunpack.c.l.b16 %v201
        %v954 = vunpack.c.l.b16 %v202
        %v955 = vunpack.c.l.b16 %v203
        %v956 = vunpack.c.l.b16 %v204
        %v957 = vunpack.c.l.b16 %v205
        %v958 = vunpack.c.l.b16 %v206
        %v959 = vunpack.c.l.b16 %v207
        %v960 = vunpack.c.l.b16 %v208
        %v961 = vunpack.c.l.b16 %v209
        %v962 = vunpack.c.l.b16 %v210
        %v963 = vunpack.c.l.b16 %v211
        %v964 = vunpack.c.l.b16 %v212
        %v965 = vunpack.c.l.b16 %v213
        %v966 = vunpack.c.l.b16 %v214
        %v967 = vunpack.c.l.b16 %v215
        %v968 = vunpack.c.l.b16 %v216
        %v969 = vunpack.c.l.b16 %v217
        %v970 = vunpack.c.l.b16 %v218
        %v971 = vunpack.c.l.b16 %v219
        %v972 = vunpack.c.l.b16 %v220
        %v973 = vunpack.c.l.b16 %v221
        %v974 = vunpack.c.l.b16 %v222
        %v975 = vunpack.c.l.b16 %v223
        %v976 = vunpack.c.l.b16 %v224
        %v977 = vunpack.c.l.b16 %v225
        %v978 = vunpack.c.l.b16 %v226
        %v979 = vunpack.c.l.b16 %v227
        %v980 = vunpack.c.l.b16 %v228
        %v981 = vunpack.c.l.b16 %v229
        %v982 = vunpack.c.l.b16 %v230
        %v983 = vunpack.c.l.b16 %v231
        %v984 = vunpack.c.l.b16 %v232
        %v985 = vunpack.c.l.b16 %v233
        %v986 = vunpack.c.l.b16 %v234
        %v987 = vunpack.c.l.b16 %v235
        %v988 = vunpack.c.l.b16 %v236
        %v989 = vunpack.c.l.b16 %v237
        %v990 = vunpack.c.l.b16 %v238
        %v991 = vunpack.c.l.b16 %v239
        %v992 = vunpack.c.l.b16 %v240
        %v993 = vunpack.c.l.b16 %v241
        %v994 = vunpack.c.l.b16 %v242
        %v995 = vunpack.c.l.b16 %v243
        %v996 = vunpack.c.l.b16 %v244
        %v997 = vunpack.c.l.b16 %v245
        %v998 = vunpack.c.l.b16 %v246
        %v999 = vunpack.c.l.b16 %v247
        %v1000 = vunpack.c.l.b16 %v248
        %v1001 = vunpack.c.l.b16 %v249
        %v1002 = vunpack.c.l.b16 %v250
        %v1003 = vunpack.c.l.b16 %v251
        %v1004 = vunpack.c.l.b16 %v252
        %v1005 = vpack.c.b16 %v942, %v941
        %v1006 = vpack.c.b16 %v944, %v943
        %v1007 = vpack.c.b16 %v946, %v945
        %v1008 = vpack.c.b16 %v948, %v947
        %v1009 = vpack.c.b16 %v950, %v949
        %v1010 = vpack.c.b16 %v952, %v951
        %v1011 = vpack.c.b16 %v954, %v953
        %v1012 = vpack.c.b16 %v956, %v955
        %v1013 = vpack.c.b16 %v958, %v957
        %v1014 = vpack.c.b16 %v960, %v959
        %v1015 = vpack.c.b16 %v962, %v961
        %v1016 = vpack.c.b16 %v964, %v963
        %v1017 = vpack.c.b16 %v966, %v965
        %v1018 = vpack.c.b16 %v968, %v967
        %v1019 = vpack.c.b16 %v970, %v969
        %v1020 = vpack.c.b16 %v972, %v971
        %v1021 = vpack.c.b16 %v974, %v973
        %v1022 = vpack.c.b16 %v976, %v975
        %v1023 = vpack.c.b16 %v978, %v977
        %v1024 = vpack.c.b16 %v980, %v979
        %v1025 = vpack.c.b16 %v982, %v981
        %v1026 = vpack.c.b16 %v984, %v983
        %v1027 = vpack.c.b16 %v986, %v985
        %v1028 = vpack.c.b16 %v988, %v987
        %v1029 = vpack.c.b16 %v990, %v989
        %v1030 = vpack.c.b16 %v992, %v991
        %v1031 = vpack.c.b16 %v994, %v993
        %v1032 = vpack.c.b16 %v996, %v995
        %v1033 = vpack.c.b16 %v998, %v997
        %v1034 = vpack.c.b16 %v1000, %v999
        %v1035 = vpack.c.b16 %v1002, %v1001
        %v1036 = vpack.c.b16 %v1004, %v1003
        %v1038 = vsel %vm484, %v1005, 0
        %v1041 = vsel %vm484, %v1006, 0
        %v1044 = vsel %vm484, %v1007, 0
        %v1047 = vsel %vm484, %v1008, 0
        %v1050 = vsel %vm484, %v1009, 0
        %v1053 = vsel %vm484, %v1010, 0
        %v1056 = vsel %vm484, %v1011, 0
        %v1059 = vsel %vm484, %v1012, 0
        %v1062 = vsel %vm484, %v1013, 0
        %v1065 = vsel %vm484, %v1014, 0
        %v1068 = vsel %vm484, %v1015, 0
        %v1071 = vsel %vm484, %v1016, 0
        %v1074 = vsel %vm484, %v1017, 0
        %v1077 = vsel %vm484, %v1018, 0
        %v1080 = vsel %vm484, %v1019, 0
        %v1083 = vsel %vm484, %v1020, 0
        %v1086 = vsel %vm484, %v1021, 0
        %v1089 = vsel %vm484, %v1022, 0
        %v1092 = vsel %vm484, %v1023, 0
        %v1095 = vsel %vm484, %v1024, 0
        %v1098 = vsel %vm484, %v1025, 0
        %v1101 = vsel %vm484, %v1026, 0
        %v1104 = vsel %vm484, %v1027, 0
        %v1107 = vsel %vm484, %v1028, 0
        %v1110 = vsel %vm484, %v1029, 0
        %v1113 = vsel %vm484, %v1030, 0
        %v1116 = vsel %vm484, %v1031, 0
        %v1119 = vsel %vm484, %v1032, 0
        %v1122 = vsel %vm484, %v1033, 0
        %v1125 = vsel %vm484, %v1034, 0
        %v1128 = vsel %vm484, %v1035, 0
        %v1131 = vsel %vm484, %v1036, 0
        %v1134 = vand.u32 %v253, %v584
        %1136 = vmatprep.subr.bf16.mxu0 0
        %1137 = vmatpush1.bf16.msra.mxu0 %v1134
        %1138 = vmatprep.subr.bf16.mxu0 0
        %1139 = vmatpush1.bf16.msra.mxu0 0
        %1140 = vmatprep.subr.bf16.mxu0 0
        %1141 = vmatpush1.bf16.msra.mxu0 0
        %1142 = vmatprep.subr.bf16.mxu0 0
        %1143 = vmatpush1.bf16.msra.mxu0 0
        %1144 = vmatprep.subr.bf16.mxu0 0
        %1145 = vmatpush1.bf16.msra.mxu0 0
        %1146 = vmatprep.subr.bf16.mxu0 0
        %1147 = vmatpush1.bf16.msra.mxu0 0
        %1148 = vmatprep.subr.bf16.mxu0 0
        %1149 = vmatpush1.bf16.msra.mxu0 0
        %1150 = vmatprep.subr.bf16.mxu0 0
        %1151 = vmatpush1.bf16.msra.mxu0 0
        %1152 = vmatprep.subr.bf16.mxu0 0
        %1153 = vmatpush1.bf16.msra.mxu0 0
        %1154 = vmatprep.subr.bf16.mxu0 0
        %1155 = vmatpush1.bf16.msra.mxu0 0
        %1156 = vmatprep.subr.bf16.mxu0 0
        %1157 = vmatpush1.bf16.msra.mxu0 0
        %1158 = vmatprep.subr.bf16.mxu0 0
        %1159 = vmatpush1.bf16.msra.mxu0 0
        %1160 = vmatprep.subr.bf16.mxu0 0
        %1161 = vmatpush1.bf16.msra.mxu0 0
        %1162 = vmatprep.subr.bf16.mxu0 0
        %1163 = vmatpush1.bf16.msra.mxu0 0
        %1164 = vmatprep.subr.bf16.mxu0 0
        %1165 = vmatpush1.bf16.msra.mxu0 0
        %1166 = vmatprep.subr.bf16.mxu0 0
        %1167 = vmatpush1.bf16.msra.mxu0 0
        %1168 = vmatprep.mubr.bf16.mxu0 0
        %1169 = vmatmul.mubr.bf16.gmra.mrb[0].mxu0 %v1038
        %v1170 = vpop.f32.mrb[0].mxu0
        %v1171 = vadd.f32 %v623, %v1170
        %v1172 = vpop.f32.mrb[0].mxu0
        %v1173 = vpop.f32.mrb[0].mxu0
        %v1174 = vadd.f32 %v626, %v1173
        %v1175 = vpop.f32.mrb[0].mxu0
        %1176 = vmatprep.mubr.bf16.mxu0 0
        %1177 = vmatmul.mubr.bf16.gmra.mrb[0].mxu0 %v1041
        %v1178 = vpop.f32.mrb[0].mxu0
        %v1179 = vadd.f32 %v631, %v1178
        %v1180 = vpop.f32.mrb[0].mxu0
        %v1181 = vpop.f32.mrb[0].mxu0
        %v1182 = vadd.f32 %v634, %v1181
        %v1183 = vpop.f32.mrb[0].mxu0
        %1184 = vmatprep.mubr.bf16.mxu0 0
        %1185 = vmatmul.mubr.bf16.gmra.mrb[0].mxu0 %v1044
        %v1186 = vpop.f32.mrb[0].mxu0
        %v1187 = vadd.f32 %v639, %v1186
        %v1188 = vpop.f32.mrb[0].mxu0
        %v1189 = vpop.f32.mrb[0].mxu0
        %v1190 = vadd.f32 %v642, %v1189
        %v1191 = vpop.f32.mrb[0].mxu0
        %1192 = vmatprep.mubr.bf16.mxu0 0
        %1193 = vmatmul.mubr.bf16.gmra.mrb[0].mxu0 %v1047
        %v1194 = vpop.f32.mrb[0].mxu0
        %v1195 = vadd.f32 %v647, %v1194
        %v1196 = vpop.f32.mrb[0].mxu0
        %v1197 = vpop.f32.mrb[0].mxu0
        %v1198 = vadd.f32 %v650, %v1197
        %v1199 = vpop.f32.mrb[0].mxu0
        %1200 = vmatprep.mubr.bf16.mxu0 0
        %1201 = vmatmul.mubr.bf16.gmra.mrb[0].mxu0 %v1050
        %v1202 = vpop.f32.mrb[0].mxu0
        %v1203 = vadd.f32 %v655, %v1202
        %v1204 = vpop.f32.mrb[0].mxu0
        %v1205 = vpop.f32.mrb[0].mxu0
        %v1206 = vadd.f32 %v658, %v1205
        %v1207 = vpop.f32.mrb[0].mxu0
        %1208 = vmatprep.mubr.bf16.mxu0 0
        %1209 = vmatmul.mubr.bf16.gmra.mrb[0].mxu0 %v1053
        %v1210 = vpop.f32.mrb[0].mxu0
        %v1211 = vadd.f32 %v663, %v1210
        %v1212 = vpop.f32.mrb[0].mxu0
        %v1213 = vpop.f32.mrb[0].mxu0
        %v1214 = vadd.f32 %v666, %v1213
        %v1215 = vpop.f32.mrb[0].mxu0
        %1216 = vmatprep.mubr.bf16.mxu0 0
        %1217 = vmatmul.mubr.bf16.gmra.mrb[0].mxu0 %v1056
        %v1218 = vpop.f32.mrb[0].mxu0
        %v1219 = vadd.f32 %v671, %v1218
        %v1220 = vpop.f32.mrb[0].mxu0
        %v1221 = vpop.f32.mrb[0].mxu0
        %v1222 = vadd.f32 %v674, %v1221
        %v1223 = vpop.f32.mrb[0].mxu0
        %1224 = vmatprep.mubr.bf16.mxu0 0
        %1225 = vmatmul.mubr.bf16.gmra.mrb[0].mxu0 %v1059
        %v1226 = vpop.f32.mrb[0].mxu0
        %v1227 = vadd.f32 %v679, %v1226
        %v1228 = vpop.f32.mrb[0].mxu0
        %v1229 = vpop.f32.mrb[0].mxu0
        %v1230 = vadd.f32 %v682, %v1229
        %v1231 = vpop.f32.mrb[0].mxu0
        %1232 = vmatprep.mubr.bf16.mxu0 0
        %1233 = vmatmul.mubr.bf16.gmra.mrb[0].mxu0 %v1062
        %v1234 = vpop.f32.mrb[0].mxu0
        %v1235 = vadd.f32 %v687, %v1234
        %v1236 = vpop.f32.mrb[0].mxu0
        %v1237 = vpop.f32.mrb[0].mxu0
        %v1238 = vadd.f32 %v690, %v1237
        %v1239 = vpop.f32.mrb[0].mxu0
        %1240 = vmatprep.mubr.bf16.mxu0 0
        %1241 = vmatmul.mubr.bf16.gmra.mrb[0].mxu0 %v1065
        %v1242 = vpop.f32.mrb[0].mxu0
        %v1243 = vadd.f32 %v695, %v1242
        %v1244 = vpop.f32.mrb[0].mxu0
        %v1245 = vpop.f32.mrb[0].mxu0
        %v1246 = vadd.f32 %v698, %v1245
        %v1247 = vpop.f32.mrb[0].mxu0
        %1248 = vmatprep.mubr.bf16.mxu0 0
        %1249 = vmatmul.mubr.bf16.gmra.mrb[0].mxu0 %v1068
        %v1250 = vpop.f32.mrb[0].mxu0
        %v1251 = vadd.f32 %v703, %v1250
        %v1252 = vpop.f32.mrb[0].mxu0
        %v1253 = vpop.f32.mrb[0].mxu0
        %v1254 = vadd.f32 %v706, %v1253
        %v1255 = vpop.f32.mrb[0].mxu0
        %1256 = vmatprep.mubr.bf16.mxu0 0
        %1257 = vmatmul.mubr.bf16.gmra.mrb[0].mxu0 %v1071
        %v1258 = vpop.f32.mrb[0].mxu0
        %v1259 = vadd.f32 %v711, %v1258
        %v1260 = vpop.f32.mrb[0].mxu0
        %v1261 = vpop.f32.mrb[0].mxu0
        %v1262 = vadd.f32 %v714, %v1261
        %v1263 = vpop.f32.mrb[0].mxu0
        %1264 = vmatprep.mubr.bf16.mxu0 0
        %1265 = vmatmul.mubr.bf16.gmra.mrb[0].mxu0 %v1074
        %v1266 = vpop.f32.mrb[0].mxu0
        %v1267 = vadd.f32 %v719, %v1266
        %v1268 = vpop.f32.mrb[0].mxu0
        %v1269 = vpop.f32.mrb[0].mxu0
        %v1270 = vadd.f32 %v722, %v1269
        %v1271 = vpop.f32.mrb[0].mxu0
        %1272 = vmatprep.mubr.bf16.mxu0 0
        %1273 = vmatmul.mubr.bf16.gmra.mrb[0].mxu0 %v1077
        %v1274 = vpop.f32.mrb[0].mxu0
        %v1275 = vadd.f32 %v727, %v1274
        %v1276 = vpop.f32.mrb[0].mxu0
        %v1277 = vpop.f32.mrb[0].mxu0
        %v1278 = vadd.f32 %v730, %v1277
        %v1279 = vpop.f32.mrb[0].mxu0
        %1280 = vmatprep.mubr.bf16.mxu0 0
        %1281 = vmatmul.mubr.bf16.gmra.mrb[0].mxu0 %v1080
        %v1282 = vpop.f32.mrb[0].mxu0
        %v1283 = vadd.f32 %v735, %v1282
        %v1284 = vpop.f32.mrb[0].mxu0
        %v1285 = vpop.f32.mrb[0].mxu0
        %v1286 = vadd.f32 %v738, %v1285
        %v1287 = vpop.f32.mrb[0].mxu0
        %1288 = vmatprep.mubr.bf16.mxu0 0
        %1289 = vmatmul.mubr.bf16.gmra.mrb[0].mxu0 %v1083
        %v1290 = vpop.f32.mrb[0].mxu0
        %v1291 = vadd.f32 %v743, %v1290
        %v1292 = vpop.f32.mrb[0].mxu0
        %v1293 = vpop.f32.mrb[0].mxu0
        %v1294 = vadd.f32 %v746, %v1293
        %v1295 = vpop.f32.mrb[0].mxu0
        %1296 = vmatprep.mubr.bf16.mxu0 0
        %1297 = vmatmul.mubr.bf16.gmra.mrb[0].mxu0 %v1086
        %v1298 = vpop.f32.mrb[0].mxu0
        %v1299 = vadd.f32 %v751, %v1298
        %v1300 = vpop.f32.mrb[0].mxu0
        %v1301 = vpop.f32.mrb[0].mxu0
        %v1302 = vadd.f32 %v754, %v1301
        %v1303 = vpop.f32.mrb[0].mxu0
        %1304 = vmatprep.mubr.bf16.mxu0 0
        %1305 = vmatmul.mubr.bf16.gmra.mrb[0].mxu0 %v1089
        %v1306 = vpop.f32.mrb[0].mxu0
        %v1307 = vadd.f32 %v759, %v1306
        %v1308 = vpop.f32.mrb[0].mxu0
        %v1309 = vpop.f32.mrb[0].mxu0
        %v1310 = vadd.f32 %v762, %v1309
        %v1311 = vpop.f32.mrb[0].mxu0
        %1312 = vmatprep.mubr.bf16.mxu0 0
        %1313 = vmatmul.mubr.bf16.gmra.mrb[0].mxu0 %v1092
        %v1314 = vpop.f32.mrb[0].mxu0
        %v1315 = vadd.f32 %v767, %v1314
        %v1316 = vpop.f32.mrb[0].mxu0
        %v1317 = vpop.f32.mrb[0].mxu0
        %v1318 = vadd.f32 %v770, %v1317
        %v1319 = vpop.f32.mrb[0].mxu0
        %1320 = vmatprep.mubr.bf16.mxu0 0
        %1321 = vmatmul.mubr.bf16.gmra.mrb[0].mxu0 %v1095
        %v1322 = vpop.f32.mrb[0].mxu0
        %v1323 = vadd.f32 %v775, %v1322
        %v1324 = vpop.f32.mrb[0].mxu0
        %v1325 = vpop.f32.mrb[0].mxu0
        %v1326 = vadd.f32 %v778, %v1325
        %v1327 = vpop.f32.mrb[0].mxu0
        %1328 = vmatprep.mubr.bf16.mxu0 0
        %1329 = vmatmul.mubr.bf16.gmra.mrb[0].mxu0 %v1098
        %v1330 = vpop.f32.mrb[0].mxu0
        %v1331 = vadd.f32 %v783, %v1330
        %v1332 = vpop.f32.mrb[0].mxu0
        %v1333 = vpop.f32.mrb[0].mxu0
        %v1334 = vadd.f32 %v786, %v1333
        %v1335 = vpop.f32.mrb[0].mxu0
        %1336 = vmatprep.mubr.bf16.mxu0 0
        %1337 = vmatmul.mubr.bf16.gmra.mrb[0].mxu0 %v1101
        %v1338 = vpop.f32.mrb[0].mxu0
        %v1339 = vadd.f32 %v791, %v1338
        %v1340 = vpop.f32.mrb[0].mxu0
        %v1341 = vpop.f32.mrb[0].mxu0
        %v1342 = vadd.f32 %v794, %v1341
        %v1343 = vpop.f32.mrb[0].mxu0
        %1344 = vmatprep.mubr.bf16.mxu0 0
        %1345 = vmatmul.mubr.bf16.gmra.mrb[0].mxu0 %v1104
        %v1346 = vpop.f32.mrb[0].mxu0
        %v1347 = vadd.f32 %v799, %v1346
        %v1348 = vpop.f32.mrb[0].mxu0
        %v1349 = vpop.f32.mrb[0].mxu0
        %v1350 = vadd.f32 %v802, %v1349
        %v1351 = vpop.f32.mrb[0].mxu0
        %1352 = vmatprep.mubr.bf16.mxu0 0
        %1353 = vmatmul.mubr.bf16.gmra.mrb[0].mxu0 %v1107
        %v1354 = vpop.f32.mrb[0].mxu0
        %v1355 = vadd.f32 %v807, %v1354
        %v1356 = vpop.f32.mrb[0].mxu0
        %v1357 = vpop.f32.mrb[0].mxu0
        %v1358 = vadd.f32 %v810, %v1357
        %v1359 = vpop.f32.mrb[0].mxu0
        %1360 = vmatprep.mubr.bf16.mxu0 0
        %1361 = vmatmul.mubr.bf16.gmra.mrb[0].mxu0 %v1110
        %v1362 = vpop.f32.mrb[0].mxu0
        %v1363 = vadd.f32 %v815, %v1362
        %v1364 = vpop.f32.mrb[0].mxu0
        %v1365 = vpop.f32.mrb[0].mxu0
        %v1366 = vadd.f32 %v818, %v1365
        %v1367 = vpop.f32.mrb[0].mxu0
        %1368 = vmatprep.mubr.bf16.mxu0 0
        %1369 = vmatmul.mubr.bf16.gmra.mrb[0].mxu0 %v1113
        %v1370 = vpop.f32.mrb[0].mxu0
        %v1371 = vadd.f32 %v823, %v1370
        %v1372 = vpop.f32.mrb[0].mxu0
        %v1373 = vpop.f32.mrb[0].mxu0
        %v1374 = vadd.f32 %v826, %v1373
        %v1375 = vpop.f32.mrb[0].mxu0
        %1376 = vmatprep.mubr.bf16.mxu0 0
        %1377 = vmatmul.mubr.bf16.gmra.mrb[0].mxu0 %v1116
        %v1378 = vpop.f32.mrb[0].mxu0
        %v1379 = vadd.f32 %v831, %v1378
        %v1380 = vpop.f32.mrb[0].mxu0
        %v1381 = vpop.f32.mrb[0].mxu0
        %v1382 = vadd.f32 %v834, %v1381
        %v1383 = vpop.f32.mrb[0].mxu0
        %1384 = vmatprep.mubr.bf16.mxu0 0
        %1385 = vmatmul.mubr.bf16.gmra.mrb[0].mxu0 %v1119
        %v1386 = vpop.f32.mrb[0].mxu0
        %v1387 = vadd.f32 %v839, %v1386
        %v1388 = vpop.f32.mrb[0].mxu0
        %v1389 = vpop.f32.mrb[0].mxu0
        %v1390 = vadd.f32 %v842, %v1389
        %v1391 = vpop.f32.mrb[0].mxu0
        %1392 = vmatprep.mubr.bf16.mxu0 0
        %1393 = vmatmul.mubr.bf16.gmra.mrb[0].mxu0 %v1122
        %v1394 = vpop.f32.mrb[0].mxu0
        %v1395 = vadd.f32 %v847, %v1394
        %v1396 = vpop.f32.mrb[0].mxu0
        %v1397 = vpop.f32.mrb[0].mxu0
        %v1398 = vadd.f32 %v850, %v1397
        %v1399 = vpop.f32.mrb[0].mxu0
        %1400 = vmatprep.mubr.bf16.mxu0 0
        %1401 = vmatmul.mubr.bf16.gmra.mrb[0].mxu0 %v1125
        %v1402 = vpop.f32.mrb[0].mxu0
        %v1403 = vadd.f32 %v855, %v1402
        %v1404 = vpop.f32.mrb[0].mxu0
        %v1405 = vpop.f32.mrb[0].mxu0
        %v1406 = vadd.f32 %v858, %v1405
        %v1407 = vpop.f32.mrb[0].mxu0
        %1408 = vmatprep.mubr.bf16.mxu0 0
        %1409 = vmatmul.mubr.bf16.gmra.mrb[0].mxu0 %v1128
        %v1410 = vpop.f32.mrb[0].mxu0
        %v1411 = vadd.f32 %v863, %v1410
        %v1412 = vpop.f32.mrb[0].mxu0
        %v1413 = vpop.f32.mrb[0].mxu0
        %v1414 = vadd.f32 %v866, %v1413
        %v1415 = vpop.f32.mrb[0].mxu0
        %1416 = vmatprep.mubr.bf16.mxu0 0
        %1417 = vmatmul.mubr.bf16.gmra.mrb[0].mxu0 %v1131
        %v1418 = vpop.f32.mrb[0].mxu0
        %v1419 = vadd.f32 %v871, %v1418
        %v1420 = vpop.f32.mrb[0].mxu0
        %v1421 = vpop.f32.mrb[0].mxu0
        %v1422 = vadd.f32 %v874, %v1421
        %v1423 = vpop.f32.mrb[0].mxu0
        %1424 = vdwg.mxu0
        %v1425 = vld [vmem:[%s188] sm:$0xf]
        %v1426 = vld [vmem:[%s188 + $0x4] sm:$0xf]
        %v1427 = vld [vmem:[%s188 + $0x8] sm:$0xf]
        %v1428 = vld [vmem:[%s188 + $0xc] sm:$0xf]
        %v1429 = vld [vmem:[%s188 + $0x10] sm:$0x1]
        %v1430 = vld [vmem:[%s188 + $0x14] sm:$0xf]
        %v1431 = vld [vmem:[%s188 + $0x18] sm:$0xf]
        %v1432 = vld [vmem:[%s188 + $0x1c] sm:$0xf]
        %v1433 = vld [vmem:[%s188 + $0x20] sm:$0xf]
        %v1434 = vld [vmem:[%s188 + $0x24] sm:$0x1]
        %v1435 = vld [vmem:[%s188 + $0x28] sm:$0xf]
        %v1436 = vld [vmem:[%s188 + $0x2c] sm:$0xf]
        %v1437 = vld [vmem:[%s188 + $0x30] sm:$0xf]
        %v1438 = vld [vmem:[%s188 + $0x34] sm:$0xf]
        %v1439 = vld [vmem:[%s188 + $0x38] sm:$0x1]
        %v1440 = vld [vmem:[%s188 + $0x3c] sm:$0xf]
        %v1441 = vld [vmem:[%s188 + $0x40] sm:$0xf]
        %v1442 = vld [vmem:[%s188 + $0x44] sm:$0xf]
        %v1443 = vld [vmem:[%s188 + $0x48] sm:$0xf]
        %v1444 = vld [vmem:[%s188 + $0x4c] sm:$0x1]
        %v1445 = vld [vmem:[%s188 + $0x50] sm:$0xf]
        %v1446 = vld [vmem:[%s188 + $0x54] sm:$0xf]
        %v1447 = vld [vmem:[%s188 + $0x58] sm:$0xf]
        %v1448 = vld [vmem:[%s188 + $0x5c] sm:$0xf]
        %v1449 = vld [vmem:[%s188 + $0x60] sm:$0x1]
        %v1450 = vld [vmem:[%s188 + $0x64] sm:$0xf]
        %v1451 = vld [vmem:[%s188 + $0x68] sm:$0xf]
        %v1452 = vld [vmem:[%s188 + $0x6c] sm:$0xf]
        %v1453 = vld [vmem:[%s188 + $0x70] sm:$0xf]
        %v1454 = vld [vmem:[%s188 + $0x74] sm:$0x1]
        %v1455 = vld [vmem:[%s188 + $0x78] sm:$0xf]
        %v1456 = vld [vmem:[%s188 + $0x7c] sm:$0xf]
        %v1457 = vld [vmem:[%s188 + $0x80] sm:$0xf]
        %v1458 = vld [vmem:[%s188 + $0x84] sm:$0xf]
        %v1459 = vld [vmem:[%s188 + $0x88] sm:$0x1]
        %v1460 = vld [vmem:[%s188 + $0x8c] sm:$0xf]
        %v1461 = vld [vmem:[%s188 + $0x90] sm:$0xf]
        %v1462 = vld [vmem:[%s188 + $0x94] sm:$0xf]
        %v1463 = vld [vmem:[%s188 + $0x98] sm:$0xf]
        %v1464 = vld [vmem:[%s188 + $0x9c] sm:$0x1]
        %v1465 = vld [vmem:[%s188 + $0xa0] sm:$0xf]
        %v1466 = vld [vmem:[%s188 + $0xa4] sm:$0xf]
        %v1467 = vld [vmem:[%s188 + $0xa8] sm:$0xf]
        %v1468 = vld [vmem:[%s188 + $0xac] sm:$0xf]
        %v1469 = vld [vmem:[%s188 + $0xb0] sm:$0x1]
        %v1470 = vld [vmem:[%s188 + $0xb4] sm:$0xf]
        %v1471 = vld [vmem:[%s188 + $0xb8] sm:$0xf]
        %v1472 = vld [vmem:[%s188 + $0xbc] sm:$0xf]
        %v1473 = vld [vmem:[%s188 + $0xc0] sm:$0xf]
        %v1474 = vld [vmem:[%s188 + $0xc4] sm:$0x1]
        %v1475 = vld [vmem:[%s188 + $0xc8] sm:$0xf]
        %v1476 = vld [vmem:[%s188 + $0xcc] sm:$0xf]
        %v1477 = vld [vmem:[%s188 + $0xd0] sm:$0xf]
        %v1478 = vld [vmem:[%s188 + $0xd4] sm:$0xf]
        %v1479 = vld [vmem:[%s188 + $0xd8] sm:$0x1]
        %v1480 = vld [vmem:[%s188 + $0xdc] sm:$0xf]
        %v1481 = vld [vmem:[%s188 + $0xe0] sm:$0xf]
        %v1482 = vld [vmem:[%s188 + $0xe4] sm:$0xf]
        %v1483 = vld [vmem:[%s188 + $0xe8] sm:$0xf]
        %v1484 = vld [vmem:[%s188 + $0xec] sm:$0x1]
        %v1485 = vld [vmem:[%s188 + $0xf0] sm:$0xf]
        %v1486 = vld [vmem:[%s188 + $0xf4] sm:$0xf]
        %v1487 = vld [vmem:[%s188 + $0xf8] sm:$0xf]
        %v1488 = vld [vmem:[%s188 + $0xfc] sm:$0xf]
        %v1489 = vld [vmem:[%s188 + $0x100] sm:$0x1]
        %v1490 = vld [vmem:[%s188 + $0x104] sm:$0xf]
        %v1491 = vld [vmem:[%s188 + $0x108] sm:$0xf]
        %v1492 = vld [vmem:[%s188 + $0x10c] sm:$0xf]
        %v1493 = vld [vmem:[%s188 + $0x110] sm:$0xf]
        %v1494 = vld [vmem:[%s188 + $0x114] sm:$0x1]
        %v1495 = vld [vmem:[%s188 + $0x118] sm:$0xf]
        %v1496 = vld [vmem:[%s188 + $0x11c] sm:$0xf]
        %v1497 = vld [vmem:[%s188 + $0x120] sm:$0xf]
        %v1498 = vld [vmem:[%s188 + $0x124] sm:$0xf]
        %v1499 = vld [vmem:[%s188 + $0x128] sm:$0x1]
        %v1500 = vld [vmem:[%s188 + $0x12c] sm:$0xf]
        %v1501 = vld [vmem:[%s188 + $0x130] sm:$0xf]
        %v1502 = vld [vmem:[%s188 + $0x134] sm:$0xf]
        %v1503 = vld [vmem:[%s188 + $0x138] sm:$0xf]
        %v1504 = vld [vmem:[%s188 + $0x13c] sm:$0x1]
        %vm1505 = vsmask.f32 3328
        %vm1506 = vsmask.f32 7440
        %vm1507 = vmor %vm1505, %vm1506
        %v1509 = vshrl.u32 %v1425, 16
        %v1511 = vrot.slane %v1509, 4
        %v1512 = vshll.u32 %v1425, 16
        %v1514 = vrot.slane %v1512, 5
        %v1515 = vor.u32 %v1511, %v1514
        %v1516 = vrot.slane %v1515, 4
        %v1518 = vshll.u32 %v1426, 16
        %v1520 = vrot.slane %v1518, 5
        %v1521 = vsel %vm1507, %v1516, %v1520
        %v1522 = vshrl.u32 %v1426, 16
        %v1524 = vrot.slane %v1522, 4
        %v1525 = vor.u32 %v1524, %v1520
        %v1526 = vrot.slane %v1525, 4
        %v1528 = vshll.u32 %v1427, 16
        %v1530 = vrot.slane %v1528, 5
        %v1531 = vsel %vm1507, %v1526, %v1530
        %v1532 = vshrl.u32 %v1427, 16
        %v1534 = vrot.slane %v1532, 4
        %v1535 = vor.u32 %v1534, %v1530
        %v1536 = vrot.slane %v1535, 4
        %v1538 = vshll.u32 %v1428, 16
        %v1540 = vrot.slane %v1538, 5
        %v1541 = vsel %vm1507, %v1536, %v1540
        %v1542 = vshrl.u32 %v1428, 16
        %v1544 = vrot.slane %v1542, 4
        %v1545 = vor.u32 %v1544, %v1540
        %v1546 = vrot.slane %v1545, 4
        %v1548 = vshll.u32 %v1429, 16
        %v1550 = vrot.slane %v1548, 5
        %v1551 = vsel %vm1507, %v1546, %v1550
        %v1553 = vshrl.u32 %v1430, 16
        %v1555 = vrot.slane %v1553, 4
        %v1556 = vshll.u32 %v1430, 16
        %v1558 = vrot.slane %v1556, 5
        %v1559 = vor.u32 %v1555, %v1558
        %v1560 = vrot.slane %v1559, 4
        %v1562 = vshll.u32 %v1431, 16
        %v1564 = vrot.slane %v1562, 5
        %v1565 = vsel %vm1507, %v1560, %v1564
        %v1566 = vshrl.u32 %v1431, 16
        %v1568 = vrot.slane %v1566, 4
        %v1569 = vor.u32 %v1568, %v1564
        %v1570 = vrot.slane %v1569, 4
        %v1572 = vshll.u32 %v1432, 16
        %v1574 = vrot.slane %v1572, 5
        %v1575 = vsel %vm1507, %v1570, %v1574
        %v1576 = vshrl.u32 %v1432, 16
        %v1578 = vrot.slane %v1576, 4
        %v1579 = vor.u32 %v1578, %v1574
        %v1580 = vrot.slane %v1579, 4
        %v1582 = vshll.u32 %v1433, 16
        %v1584 = vrot.slane %v1582, 5
        %v1585 = vsel %vm1507, %v1580, %v1584
        %v1586 = vshrl.u32 %v1433, 16
        %v1588 = vrot.slane %v1586, 4
        %v1589 = vor.u32 %v1588, %v1584
        %v1590 = vrot.slane %v1589, 4
        %v1592 = vshll.u32 %v1434, 16
        %v1594 = vrot.slane %v1592, 5
        %v1595 = vsel %vm1507, %v1590, %v1594
        %v1597 = vshrl.u32 %v1435, 16
        %v1599 = vrot.slane %v1597, 4
        %v1600 = vshll.u32 %v1435, 16
        %v1602 = vrot.slane %v1600, 5
        %v1603 = vor.u32 %v1599, %v1602
        %v1604 = vrot.slane %v1603, 4
        %v1606 = vshll.u32 %v1436, 16
        %v1608 = vrot.slane %v1606, 5
        %v1609 = vsel %vm1507, %v1604, %v1608
        %v1610 = vshrl.u32 %v1436, 16
        %v1612 = vrot.slane %v1610, 4
        %v1613 = vor.u32 %v1612, %v1608
        %v1614 = vrot.slane %v1613, 4
        %v1616 = vshll.u32 %v1437, 16
        %v1618 = vrot.slane %v1616, 5
        %v1619 = vsel %vm1507, %v1614, %v1618
        %v1620 = vshrl.u32 %v1437, 16
        %v1622 = vrot.slane %v1620, 4
        %v1623 = vor.u32 %v1622, %v1618
        %v1624 = vrot.slane %v1623, 4
        %v1626 = vshll.u32 %v1438, 16
        %v1628 = vrot.slane %v1626, 5
        %v1629 = vsel %vm1507, %v1624, %v1628
        %v1630 = vshrl.u32 %v1438, 16
        %v1632 = vrot.slane %v1630, 4
        %v1633 = vor.u32 %v1632, %v1628
        %v1634 = vrot.slane %v1633, 4
        %v1636 = vshll.u32 %v1439, 16
        %v1638 = vrot.slane %v1636, 5
        %v1639 = vsel %vm1507, %v1634, %v1638
        %v1641 = vshrl.u32 %v1440, 16
        %v1643 = vrot.slane %v1641, 4
        %v1644 = vshll.u32 %v1440, 16
        %v1646 = vrot.slane %v1644, 5
        %v1647 = vor.u32 %v1643, %v1646
        %v1648 = vrot.slane %v1647, 4
        %v1650 = vshll.u32 %v1441, 16
        %v1652 = vrot.slane %v1650, 5
        %v1653 = vsel %vm1507, %v1648, %v1652
        %v1654 = vshrl.u32 %v1441, 16
        %v1656 = vrot.slane %v1654, 4
        %v1657 = vor.u32 %v1656, %v1652
        %v1658 = vrot.slane %v1657, 4
        %v1660 = vshll.u32 %v1442, 16
        %v1662 = vrot.slane %v1660, 5
        %v1663 = vsel %vm1507, %v1658, %v1662
        %v1664 = vshrl.u32 %v1442, 16
        %v1666 = vrot.slane %v1664, 4
        %v1667 = vor.u32 %v1666, %v1662
        %v1668 = vrot.slane %v1667, 4
        %v1670 = vshll.u32 %v1443, 16
        %v1672 = vrot.slane %v1670, 5
        %v1673 = vsel %vm1507, %v1668, %v1672
        %v1674 = vshrl.u32 %v1443, 16
        %v1676 = vrot.slane %v1674, 4
        %v1677 = vor.u32 %v1676, %v1672
        %v1678 = vrot.slane %v1677, 4
        %v1680 = vshll.u32 %v1444, 16
        %v1682 = vrot.slane %v1680, 5
        %v1683 = vsel %vm1507, %v1678, %v1682
        %v1685 = vshrl.u32 %v1445, 16
        %v1687 = vrot.slane %v1685, 4
        %v1688 = vshll.u32 %v1445, 16
        %v1690 = vrot.slane %v1688, 5
        %v1691 = vor.u32 %v1687, %v1690
        %v1692 = vrot.slane %v1691, 4
        %v1694 = vshll.u32 %v1446, 16
        %v1696 = vrot.slane %v1694, 5
        %v1697 = vsel %vm1507, %v1692, %v1696
        %v1698 = vshrl.u32 %v1446, 16
        %v1700 = vrot.slane %v1698, 4
        %v1701 = vor.u32 %v1700, %v1696
        %v1702 = vrot.slane %v1701, 4
        %v1704 = vshll.u32 %v1447, 16
        %v1706 = vrot.slane %v1704, 5
        %v1707 = vsel %vm1507, %v1702, %v1706
        %v1708 = vshrl.u32 %v1447, 16
        %v1710 = vrot.slane %v1708, 4
        %v1711 = vor.u32 %v1710, %v1706
        %v1712 = vrot.slane %v1711, 4
        %v1714 = vshll.u32 %v1448, 16
        %v1716 = vrot.slane %v1714, 5
        %v1717 = vsel %vm1507, %v1712, %v1716
        %v1718 = vshrl.u32 %v1448, 16
        %v1720 = vrot.slane %v1718, 4
        %v1721 = vor.u32 %v1720, %v1716
        %v1722 = vrot.slane %v1721, 4
        %v1724 = vshll.u32 %v1449, 16
        %v1726 = vrot.slane %v1724, 5
        %v1727 = vsel %vm1507, %v1722, %v1726
        %v1729 = vshrl.u32 %v1450, 16
        %v1731 = vrot.slane %v1729, 4
        %v1732 = vshll.u32 %v1450, 16
        %v1734 = vrot.slane %v1732, 5
        %v1735 = vor.u32 %v1731, %v1734
        %v1736 = vrot.slane %v1735, 4
        %v1738 = vshll.u32 %v1451, 16
        %v1740 = vrot.slane %v1738, 5
        %v1741 = vsel %vm1507, %v1736, %v1740
        %v1742 = vshrl.u32 %v1451, 16
        %v1744 = vrot.slane %v1742, 4
        %v1745 = vor.u32 %v1744, %v1740
        %v1746 = vrot.slane %v1745, 4
        %v1748 = vshll.u32 %v1452, 16
        %v1750 = vrot.slane %v1748, 5
        %v1751 = vsel %vm1507, %v1746, %v1750
        %v1752 = vshrl.u32 %v1452, 16
        %v1754 = vrot.slane %v1752, 4
        %v1755 = vor.u32 %v1754, %v1750
        %v1756 = vrot.slane %v1755, 4
        %v1758 = vshll.u32 %v1453, 16
        %v1760 = vrot.slane %v1758, 5
        %v1761 = vsel %vm1507, %v1756, %v1760
        %v1762 = vshrl.u32 %v1453, 16
        %v1764 = vrot.slane %v1762, 4
        %v1765 = vor.u32 %v1764, %v1760
        %v1766 = vrot.slane %v1765, 4
        %v1768 = vshll.u32 %v1454, 16
        %v1770 = vrot.slane %v1768, 5
        %v1771 = vsel %vm1507, %v1766, %v1770
        %v1773 = vshrl.u32 %v1455, 16
        %v1775 = vrot.slane %v1773, 4
        %v1776 = vshll.u32 %v1455, 16
        %v1778 = vrot.slane %v1776, 5
        %v1779 = vor.u32 %v1775, %v1778
        %v1780 = vrot.slane %v1779, 4
        %v1782 = vshll.u32 %v1456, 16
        %v1784 = vrot.slane %v1782, 5
        %v1785 = vsel %vm1507, %v1780, %v1784
        %v1786 = vshrl.u32 %v1456, 16
        %v1788 = vrot.slane %v1786, 4
        %v1789 = vor.u32 %v1788, %v1784
        %v1790 = vrot.slane %v1789, 4
        %v1792 = vshll.u32 %v1457, 16
        %v1794 = vrot.slane %v1792, 5
        %v1795 = vsel %vm1507, %v1790, %v1794
        %v1796 = vshrl.u32 %v1457, 16
        %v1798 = vrot.slane %v1796, 4
        %v1799 = vor.u32 %v1798, %v1794
        %v1800 = vrot.slane %v1799, 4
        %v1802 = vshll.u32 %v1458, 16
        %v1804 = vrot.slane %v1802, 5
        %v1805 = vsel %vm1507, %v1800, %v1804
        %v1806 = vshrl.u32 %v1458, 16
        %v1808 = vrot.slane %v1806, 4
        %v1809 = vor.u32 %v1808, %v1804
        %v1810 = vrot.slane %v1809, 4
        %v1812 = vshll.u32 %v1459, 16
        %v1814 = vrot.slane %v1812, 5
        %v1815 = vsel %vm1507, %v1810, %v1814
        %v1817 = vshrl.u32 %v1460, 16
        %v1819 = vrot.slane %v1817, 4
        %v1820 = vshll.u32 %v1460, 16
        %v1822 = vrot.slane %v1820, 5
        %v1823 = vor.u32 %v1819, %v1822
        %v1824 = vrot.slane %v1823, 4
        %v1826 = vshll.u32 %v1461, 16
        %v1828 = vrot.slane %v1826, 5
        %v1829 = vsel %vm1507, %v1824, %v1828
        %v1830 = vshrl.u32 %v1461, 16
        %v1832 = vrot.slane %v1830, 4
        %v1833 = vor.u32 %v1832, %v1828
        %v1834 = vrot.slane %v1833, 4
        %v1836 = vshll.u32 %v1462, 16
        %v1838 = vrot.slane %v1836, 5
        %v1839 = vsel %vm1507, %v1834, %v1838
        %v1840 = vshrl.u32 %v1462, 16
        %v1842 = vrot.slane %v1840, 4
        %v1843 = vor.u32 %v1842, %v1838
        %v1844 = vrot.slane %v1843, 4
        %v1846 = vshll.u32 %v1463, 16
        %v1848 = vrot.slane %v1846, 5
        %v1849 = vsel %vm1507, %v1844, %v1848
        %v1850 = vshrl.u32 %v1463, 16
        %v1852 = vrot.slane %v1850, 4
        %v1853 = vor.u32 %v1852, %v1848
        %v1854 = vrot.slane %v1853, 4
        %v1856 = vshll.u32 %v1464, 16
        %v1858 = vrot.slane %v1856, 5
        %v1859 = vsel %vm1507, %v1854, %v1858
        %v1861 = vshrl.u32 %v1465, 16
        %v1863 = vrot.slane %v1861, 4
        %v1864 = vshll.u32 %v1465, 16
        %v1866 = vrot.slane %v1864, 5
        %v1867 = vor.u32 %v1863, %v1866
        %v1868 = vrot.slane %v1867, 4
        %v1870 = vshll.u32 %v1466, 16
        %v1872 = vrot.slane %v1870, 5
        %v1873 = vsel %vm1507, %v1868, %v1872
        %v1874 = vshrl.u32 %v1466, 16
        %v1876 = vrot.slane %v1874, 4
        %v1877 = vor.u32 %v1876, %v1872
        %v1878 = vrot.slane %v1877, 4
        %v1880 = vshll.u32 %v1467, 16
        %v1882 = vrot.slane %v1880, 5
        %v1883 = vsel %vm1507, %v1878, %v1882
        %v1884 = vshrl.u32 %v1467, 16
        %v1886 = vrot.slane %v1884, 4
        %v1887 = vor.u32 %v1886, %v1882
        %v1888 = vrot.slane %v1887, 4
        %v1890 = vshll.u32 %v1468, 16
        %v1892 = vrot.slane %v1890, 5
        %v1893 = vsel %vm1507, %v1888, %v1892
        %v1894 = vshrl.u32 %v1468, 16
        %v1896 = vrot.slane %v1894, 4
        %v1897 = vor.u32 %v1896, %v1892
        %v1898 = vrot.slane %v1897, 4
        %v1900 = vshll.u32 %v1469, 16
        %v1902 = vrot.slane %v1900, 5
        %v1903 = vsel %vm1507, %v1898, %v1902
        %v1905 = vshrl.u32 %v1470, 16
        %v1907 = vrot.slane %v1905, 4
        %v1908 = vshll.u32 %v1470, 16
        %v1910 = vrot.slane %v1908, 5
        %v1911 = vor.u32 %v1907, %v1910
        %v1912 = vrot.slane %v1911, 4
        %v1914 = vshll.u32 %v1471, 16
        %v1916 = vrot.slane %v1914, 5
        %v1917 = vsel %vm1507, %v1912, %v1916
        %v1918 = vshrl.u32 %v1471, 16
        %v1920 = vrot.slane %v1918, 4
        %v1921 = vor.u32 %v1920, %v1916
        %v1922 = vrot.slane %v1921, 4
        %v1924 = vshll.u32 %v1472, 16
        %v1926 = vrot.slane %v1924, 5
        %v1927 = vsel %vm1507, %v1922, %v1926
        %v1928 = vshrl.u32 %v1472, 16
        %v1930 = vrot.slane %v1928, 4
        %v1931 = vor.u32 %v1930, %v1926
        %v1932 = vrot.slane %v1931, 4
        %v1934 = vshll.u32 %v1473, 16
        %v1936 = vrot.slane %v1934, 5
        %v1937 = vsel %vm1507, %v1932, %v1936
        %v1938 = vshrl.u32 %v1473, 16
        %v1940 = vrot.slane %v1938, 4
        %v1941 = vor.u32 %v1940, %v1936
        %v1942 = vrot.slane %v1941, 4
        %v1944 = vshll.u32 %v1474, 16
        %v1946 = vrot.slane %v1944, 5
        %v1947 = vsel %vm1507, %v1942, %v1946
        %v1949 = vshrl.u32 %v1475, 16
        %v1951 = vrot.slane %v1949, 4
        %v1952 = vshll.u32 %v1475, 16
        %v1954 = vrot.slane %v1952, 5
        %v1955 = vor.u32 %v1951, %v1954
        %v1956 = vrot.slane %v1955, 4
        %v1958 = vshll.u32 %v1476, 16
        %v1960 = vrot.slane %v1958, 5
        %v1961 = vsel %vm1507, %v1956, %v1960
        %v1962 = vshrl.u32 %v1476, 16
        %v1964 = vrot.slane %v1962, 4
        %v1965 = vor.u32 %v1964, %v1960
        %v1966 = vrot.slane %v1965, 4
        %v1968 = vshll.u32 %v1477, 16
        %v1970 = vrot.slane %v1968, 5
        %v1971 = vsel %vm1507, %v1966, %v1970
        %v1972 = vshrl.u32 %v1477, 16
        %v1974 = vrot.slane %v1972, 4
        %v1975 = vor.u32 %v1974, %v1970
        %v1976 = vrot.slane %v1975, 4
        %v1978 = vshll.u32 %v1478, 16
        %v1980 = vrot.slane %v1978, 5
        %v1981 = vsel %vm1507, %v1976, %v1980
        %v1982 = vshrl.u32 %v1478, 16
        %v1984 = vrot.slane %v1982, 4
        %v1985 = vor.u32 %v1984, %v1980
        %v1986 = vrot.slane %v1985, 4
        %v1988 = vshll.u32 %v1479, 16
        %v1990 = vrot.slane %v1988, 5
        %v1991 = vsel %vm1507, %v1986, %v1990
        %v1993 = vshrl.u32 %v1480, 16
        %v1995 = vrot.slane %v1993, 4
        %v1996 = vshll.u32 %v1480, 16
        %v1998 = vrot.slane %v1996, 5
        %v1999 = vor.u32 %v1995, %v1998
        %v2000 = vrot.slane %v1999, 4
        %v2002 = vshll.u32 %v1481, 16
        %v2004 = vrot.slane %v2002, 5
        %v2005 = vsel %vm1507, %v2000, %v2004
        %v2006 = vshrl.u32 %v1481, 16
        %v2008 = vrot.slane %v2006, 4
        %v2009 = vor.u32 %v2008, %v2004
        %v2010 = vrot.slane %v2009, 4
        %v2012 = vshll.u32 %v1482, 16
        %v2014 = vrot.slane %v2012, 5
        %v2015 = vsel %vm1507, %v2010, %v2014
        %v2016 = vshrl.u32 %v1482, 16
        %v2018 = vrot.slane %v2016, 4
        %v2019 = vor.u32 %v2018, %v2014
        %v2020 = vrot.slane %v2019, 4
        %v2022 = vshll.u32 %v1483, 16
        %v2024 = vrot.slane %v2022, 5
        %v2025 = vsel %vm1507, %v2020, %v2024
        %v2026 = vshrl.u32 %v1483, 16
        %v2028 = vrot.slane %v2026, 4
        %v2029 = vor.u32 %v2028, %v2024
        %v2030 = vrot.slane %v2029, 4
        %v2032 = vshll.u32 %v1484, 16
        %v2034 = vrot.slane %v2032, 5
        %v2035 = vsel %vm1507, %v2030, %v2034
        %v2037 = vshrl.u32 %v1485, 16
        %v2039 = vrot.slane %v2037, 4
        %v2040 = vshll.u32 %v1485, 16
        %v2042 = vrot.slane %v2040, 5
        %v2043 = vor.u32 %v2039, %v2042
        %v2044 = vrot.slane %v2043, 4
        %v2046 = vshll.u32 %v1486, 16
        %v2048 = vrot.slane %v2046, 5
        %v2049 = vsel %vm1507, %v2044, %v2048
        %v2050 = vshrl.u32 %v1486, 16
        %v2052 = vrot.slane %v2050, 4
        %v2053 = vor.u32 %v2052, %v2048
        %v2054 = vrot.slane %v2053, 4
        %v2056 = vshll.u32 %v1487, 16
        %v2058 = vrot.slane %v2056, 5
        %v2059 = vsel %vm1507, %v2054, %v2058
        %v2060 = vshrl.u32 %v1487, 16
        %v2062 = vrot.slane %v2060, 4
        %v2063 = vor.u32 %v2062, %v2058
        %v2064 = vrot.slane %v2063, 4
        %v2066 = vshll.u32 %v1488, 16
        %v2068 = vrot.slane %v2066, 5
        %v2069 = vsel %vm1507, %v2064, %v2068
        %v2070 = vshrl.u32 %v1488, 16
        %v2072 = vrot.slane %v2070, 4
        %v2073 = vor.u32 %v2072, %v2068
        %v2074 = vrot.slane %v2073, 4
        %v2076 = vshll.u32 %v1489, 16
        %v2078 = vrot.slane %v2076, 5
        %v2079 = vsel %vm1507, %v2074, %v2078
        %v2081 = vshrl.u32 %v1490, 16
        %v2083 = vrot.slane %v2081, 4
        %v2084 = vshll.u32 %v1490, 16
        %v2086 = vrot.slane %v2084, 5
        %v2087 = vor.u32 %v2083, %v2086
        %v2088 = vrot.slane %v2087, 4
        %v2090 = vshll.u32 %v1491, 16
        %v2092 = vrot.slane %v2090, 5
        %v2093 = vsel %vm1507, %v2088, %v2092
        %v2094 = vshrl.u32 %v1491, 16
        %v2096 = vrot.slane %v2094, 4
        %v2097 = vor.u32 %v2096, %v2092
        %v2098 = vrot.slane %v2097, 4
        %v2100 = vshll.u32 %v1492, 16
        %v2102 = vrot.slane %v2100, 5
        %v2103 = vsel %vm1507, %v2098, %v2102
        %v2104 = vshrl.u32 %v1492, 16
        %v2106 = vrot.slane %v2104, 4
        %v2107 = vor.u32 %v2106, %v2102
        %v2108 = vrot.slane %v2107, 4
        %v2110 = vshll.u32 %v1493, 16
        %v2112 = vrot.slane %v2110, 5
        %v2113 = vsel %vm1507, %v2108, %v2112
        %v2114 = vshrl.u32 %v1493, 16
        %v2116 = vrot.slane %v2114, 4
        %v2117 = vor.u32 %v2116, %v2112
        %v2118 = vrot.slane %v2117, 4
        %v2120 = vshll.u32 %v1494, 16
        %v2122 = vrot.slane %v2120, 5
        %v2123 = vsel %vm1507, %v2118, %v2122
        %v2125 = vshrl.u32 %v1495, 16
        %v2127 = vrot.slane %v2125, 4
        %v2128 = vshll.u32 %v1495, 16
        %v2130 = vrot.slane %v2128, 5
        %v2131 = vor.u32 %v2127, %v2130
        %v2132 = vrot.slane %v2131, 4
        %v2134 = vshll.u32 %v1496, 16
        %v2136 = vrot.slane %v2134, 5
        %v2137 = vsel %vm1507, %v2132, %v2136
        %v2138 = vshrl.u32 %v1496, 16
        %v2140 = vrot.slane %v2138, 4
        %v2141 = vor.u32 %v2140, %v2136
        %v2142 = vrot.slane %v2141, 4
        %v2144 = vshll.u32 %v1497, 16
        %v2146 = vrot.slane %v2144, 5
        %v2147 = vsel %vm1507, %v2142, %v2146
        %v2148 = vshrl.u32 %v1497, 16
        %v2150 = vrot.slane %v2148, 4
        %v2151 = vor.u32 %v2150, %v2146
        %v2152 = vrot.slane %v2151, 4
        %v2154 = vshll.u32 %v1498, 16
        %v2156 = vrot.slane %v2154, 5
        %v2157 = vsel %vm1507, %v2152, %v2156
        %v2158 = vshrl.u32 %v1498, 16
        %v2160 = vrot.slane %v2158, 4
        %v2161 = vor.u32 %v2160, %v2156
        %v2162 = vrot.slane %v2161, 4
        %v2164 = vshll.u32 %v1499, 16
        %v2166 = vrot.slane %v2164, 5
        %v2167 = vsel %vm1507, %v2162, %v2166
        %v2169 = vshrl.u32 %v1500, 16
        %v2171 = vrot.slane %v2169, 4
        %v2172 = vshll.u32 %v1500, 16
        %v2174 = vrot.slane %v2172, 5
        %v2175 = vor.u32 %v2171, %v2174
        %v2176 = vrot.slane %v2175, 4
        %v2178 = vshll.u32 %v1501, 16
        %v2180 = vrot.slane %v2178, 5
        %v2181 = vsel %vm1507, %v2176, %v2180
        %v2182 = vshrl.u32 %v1501, 16
        %v2184 = vrot.slane %v2182, 4
        %v2185 = vor.u32 %v2184, %v2180
        %v2186 = vrot.slane %v2185, 4
        %v2188 = vshll.u32 %v1502, 16
        %v2190 = vrot.slane %v2188, 5
        %v2191 = vsel %vm1507, %v2186, %v2190
        %v2192 = vshrl.u32 %v1502, 16
        %v2194 = vrot.slane %v2192, 4
        %v2195 = vor.u32 %v2194, %v2190
        %v2196 = vrot.slane %v2195, 4
        %v2198 = vshll.u32 %v1503, 16
        %v2200 = vrot.slane %v2198, 5
        %v2201 = vsel %vm1507, %v2196, %v2200
        %v2202 = vshrl.u32 %v1503, 16
        %v2204 = vrot.slane %v2202, 4
        %v2205 = vor.u32 %v2204, %v2200
        %v2206 = vrot.slane %v2205, 4
        %v2208 = vshll.u32 %v1504, 16
        %v2210 = vrot.slane %v2208, 5
        %v2211 = vsel %vm1507, %v2206, %v2210
        %s2212 = scalar_lea.vmem %s1, 4
        %v2213 = vld [vmem:[%s2212] sm:$0x3]
        %v2214 = vunpack.c.l.b16 %v1521
        %v2215 = vunpack.c.l.b16 %v1531
        %v2216 = vunpack.c.l.b16 %v1541
        %v2217 = vunpack.c.l.b16 %v1551
        %v2218 = vunpack.c.l.b16 %v1565
        %v2219 = vunpack.c.l.b16 %v1575
        %v2220 = vunpack.c.l.b16 %v1585
        %v2221 = vunpack.c.l.b16 %v1595
        %v2222 = vunpack.c.l.b16 %v1609
        %v2223 = vunpack.c.l.b16 %v1619
        %v2224 = vunpack.c.l.b16 %v1629
        %v2225 = vunpack.c.l.b16 %v1639
        %v2226 = vunpack.c.l.b16 %v1653
        %v2227 = vunpack.c.l.b16 %v1663
        %v2228 = vunpack.c.l.b16 %v1673
        %v2229 = vunpack.c.l.b16 %v1683
        %v2230 = vunpack.c.l.b16 %v1697
        %v2231 = vunpack.c.l.b16 %v1707
        %v2232 = vunpack.c.l.b16 %v1717
        %v2233 = vunpack.c.l.b16 %v1727
        %v2234 = vunpack.c.l.b16 %v1741
        %v2235 = vunpack.c.l.b16 %v1751
        %v2236 = vunpack.c.l.b16 %v1761
        %v2237 = vunpack.c.l.b16 %v1771
        %v2238 = vunpack.c.l.b16 %v1785
        %v2239 = vunpack.c.l.b16 %v1795
        %v2240 = vunpack.c.l.b16 %v1805
        %v2241 = vunpack.c.l.b16 %v1815
        %v2242 = vunpack.c.l.b16 %v1829
        %v2243 = vunpack.c.l.b16 %v1839
        %v2244 = vunpack.c.l.b16 %v1849
        %v2245 = vunpack.c.l.b16 %v1859
        %v2246 = vunpack.c.l.b16 %v1873
        %v2247 = vunpack.c.l.b16 %v1883
        %v2248 = vunpack.c.l.b16 %v1893
        %v2249 = vunpack.c.l.b16 %v1903
        %v2250 = vunpack.c.l.b16 %v1917
        %v2251 = vunpack.c.l.b16 %v1927
        %v2252 = vunpack.c.l.b16 %v1937
        %v2253 = vunpack.c.l.b16 %v1947
        %v2254 = vunpack.c.l.b16 %v1961
        %v2255 = vunpack.c.l.b16 %v1971
        %v2256 = vunpack.c.l.b16 %v1981
        %v2257 = vunpack.c.l.b16 %v1991
        %v2258 = vunpack.c.l.b16 %v2005
        %v2259 = vunpack.c.l.b16 %v2015
        %v2260 = vunpack.c.l.b16 %v2025
        %v2261 = vunpack.c.l.b16 %v2035
        %v2262 = vunpack.c.l.b16 %v2049
        %v2263 = vunpack.c.l.b16 %v2059
        %v2264 = vunpack.c.l.b16 %v2069
        %v2265 = vunpack.c.l.b16 %v2079
        %v2266 = vunpack.c.l.b16 %v2093
        %v2267 = vunpack.c.l.b16 %v2103
        %v2268 = vunpack.c.l.b16 %v2113
        %v2269 = vunpack.c.l.b16 %v2123
        %v2270 = vunpack.c.l.b16 %v2137
        %v2271 = vunpack.c.l.b16 %v2147
        %v2272 = vunpack.c.l.b16 %v2157
        %v2273 = vunpack.c.l.b16 %v2167
        %v2274 = vunpack.c.l.b16 %v2181
        %v2275 = vunpack.c.l.b16 %v2191
        %v2276 = vunpack.c.l.b16 %v2201
        %v2277 = vunpack.c.l.b16 %v2211
        %v2278 = vpack.c.b16 %v2215, %v2214
        %v2279 = vpack.c.b16 %v2217, %v2216
        %v2280 = vpack.c.b16 %v2219, %v2218
        %v2281 = vpack.c.b16 %v2221, %v2220
        %v2282 = vpack.c.b16 %v2223, %v2222
        %v2283 = vpack.c.b16 %v2225, %v2224
        %v2284 = vpack.c.b16 %v2227, %v2226
        %v2285 = vpack.c.b16 %v2229, %v2228
        %v2286 = vpack.c.b16 %v2231, %v2230
        %v2287 = vpack.c.b16 %v2233, %v2232
        %v2288 = vpack.c.b16 %v2235, %v2234
        %v2289 = vpack.c.b16 %v2237, %v2236
        %v2290 = vpack.c.b16 %v2239, %v2238
        %v2291 = vpack.c.b16 %v2241, %v2240
        %v2292 = vpack.c.b16 %v2243, %v2242
        %v2293 = vpack.c.b16 %v2245, %v2244
        %v2294 = vpack.c.b16 %v2247, %v2246
        %v2295 = vpack.c.b16 %v2249, %v2248
        %v2296 = vpack.c.b16 %v2251, %v2250
        %v2297 = vpack.c.b16 %v2253, %v2252
        %v2298 = vpack.c.b16 %v2255, %v2254
        %v2299 = vpack.c.b16 %v2257, %v2256
        %v2300 = vpack.c.b16 %v2259, %v2258
        %v2301 = vpack.c.b16 %v2261, %v2260
        %v2302 = vpack.c.b16 %v2263, %v2262
        %v2303 = vpack.c.b16 %v2265, %v2264
        %v2304 = vpack.c.b16 %v2267, %v2266
        %v2305 = vpack.c.b16 %v2269, %v2268
        %v2306 = vpack.c.b16 %v2271, %v2270
        %v2307 = vpack.c.b16 %v2273, %v2272
        %v2308 = vpack.c.b16 %v2275, %v2274
        %v2309 = vpack.c.b16 %v2277, %v2276
        %v2311 = vsel %vm484, %v2278, 0
        %v2314 = vsel %vm484, %v2279, 0
        %v2317 = vsel %vm484, %v2280, 0
        %v2320 = vsel %vm484, %v2281, 0
        %v2323 = vsel %vm484, %v2282, 0
        %v2326 = vsel %vm484, %v2283, 0
        %v2329 = vsel %vm484, %v2284, 0
        %v2332 = vsel %vm484, %v2285, 0
        %v2335 = vsel %vm484, %v2286, 0
        %v2338 = vsel %vm484, %v2287, 0
        %v2341 = vsel %vm484, %v2288, 0
        %v2344 = vsel %vm484, %v2289, 0
        %v2347 = vsel %vm484, %v2290, 0
        %v2350 = vsel %vm484, %v2291, 0
        %v2353 = vsel %vm484, %v2292, 0
        %v2356 = vsel %vm484, %v2293, 0
        %v2359 = vsel %vm484, %v2294, 0
        %v2362 = vsel %vm484, %v2295, 0
        %v2365 = vsel %vm484, %v2296, 0
        %v2368 = vsel %vm484, %v2297, 0
        %v2371 = vsel %vm484, %v2298, 0
        %v2374 = vsel %vm484, %v2299, 0
        %v2377 = vsel %vm484, %v2300, 0
        %v2380 = vsel %vm484, %v2301, 0
        %v2383 = vsel %vm484, %v2302, 0
        %v2386 = vsel %vm484, %v2303, 0
        %v2389 = vsel %vm484, %v2304, 0
        %v2392 = vsel %vm484, %v2305, 0
        %v2395 = vsel %vm484, %v2306, 0
        %v2398 = vsel %vm484, %v2307, 0
        %v2401 = vsel %vm484, %v2308, 0
        %v2404 = vsel %vm484, %v2309, 0
        %v2407 = vand.u32 %v2213, %v584
        %2409 = vmatprep.subr.bf16.mxu0 0
        %2410 = vmatpush1.bf16.msra.mxu0 %v2407
        %2411 = vmatprep.subr.bf16.mxu0 0
        %2412 = vmatpush1.bf16.msra.mxu0 0
        %2413 = vmatprep.subr.bf16.mxu0 0
        %2414 = vmatpush1.bf16.msra.mxu0 0
        %2415 = vmatprep.subr.bf16.mxu0 0
        %2416 = vmatpush1.bf16.msra.mxu0 0
        %2417 = vmatprep.subr.bf16.mxu0 0
        %2418 = vmatpush1.bf16.msra.mxu0 0
        %2419 = vmatprep.subr.bf16.mxu0 0
        %2420 = vmatpush1.bf16.msra.mxu0 0
        %2421 = vmatprep.subr.bf16.mxu0 0
        %2422 = vmatpush1.bf16.msra.mxu0 0
        %2423 = vmatprep.subr.bf16.mxu0 0
        %2424 = vmatpush1.bf16.msra.mxu0 0
        %2425 = vmatprep.subr.bf16.mxu0 0
        %2426 = vmatpush1.bf16.msra.mxu0 0
        %2427 = vmatprep.subr.bf16.mxu0 0
        %2428 = vmatpush1.bf16.msra.mxu0 0
        %2429 = vmatprep.subr.bf16.mxu0 0
        %2430 = vmatpush1.bf16.msra.mxu0 0
        %2431 = vmatprep.subr.bf16.mxu0 0
        %2432 = vmatpush1.bf16.msra.mxu0 0
        %2433 = vmatprep.subr.bf16.mxu0 0
        %2434 = vmatpush1.bf16.msra.mxu0 0
        %2435 = vmatprep.subr.bf16.mxu0 0
        %2436 = vmatpush1.bf16.msra.mxu0 0
        %2437 = vmatprep.subr.bf16.mxu0 0
        %2438 = vmatpush1.bf16.msra.mxu0 0
        %2439 = vmatprep.subr.bf16.mxu0 0
        %2440 = vmatpush1.bf16.msra.mxu0 0
        %2441 = vmatprep.mubr.bf16.mxu0 0
        %2442 = vmatmul.mubr.bf16.gmra.mrb[0].mxu0 %v2311
        %v2443 = vpop.f32.mrb[0].mxu0
        %v2444 = vadd.f32 0.0, %v2443
        %v2445 = vpop.f32.mrb[0].mxu0
        %v2446 = vpop.f32.mrb[0].mxu0
        %v2447 = vadd.f32 0.0, %v2446
        %v2448 = vpop.f32.mrb[0].mxu0
        %2449 = vmatprep.mubr.bf16.mxu0 0
        %2450 = vmatmul.mubr.bf16.gmra.mrb[0].mxu0 %v2314
        %v2451 = vpop.f32.mrb[0].mxu0
        %v2452 = vadd.f32 0.0, %v2451
        %v2453 = vpop.f32.mrb[0].mxu0
        %v2454 = vpop.f32.mrb[0].mxu0
        %v2455 = vadd.f32 0.0, %v2454
        %v2456 = vpop.f32.mrb[0].mxu0
        %2457 = vmatprep.mubr.bf16.mxu0 0
        %2458 = vmatmul.mubr.bf16.gmra.mrb[0].mxu0 %v2317
        %v2459 = vpop.f32.mrb[0].mxu0
        %v2460 = vadd.f32 0.0, %v2459
        %v2461 = vpop.f32.mrb[0].mxu0
        %v2462 = vpop.f32.mrb[0].mxu0
        %v2463 = vadd.f32 0.0, %v2462
        %v2464 = vpop.f32.mrb[0].mxu0
        %2465 = vmatprep.mubr.bf16.mxu0 0
        %2466 = vmatmul.mubr.bf16.gmra.mrb[0].mxu0 %v2320
        %v2467 = vpop.f32.mrb[0].mxu0
        %v2468 = vadd.f32 0.0, %v2467
        %v2469 = vpop.f32.mrb[0].mxu0
        %v2470 = vpop.f32.mrb[0].mxu0
        %v2471 = vadd.f32 0.0, %v2470
        %v2472 = vpop.f32.mrb[0].mxu0
        %2473 = vmatprep.mubr.bf16.mxu0 0
        %2474 = vmatmul.mubr.bf16.gmra.mrb[0].mxu0 %v2323
        %v2475 = vpop.f32.mrb[0].mxu0
        %v2476 = vadd.f32 0.0, %v2475
        %v2477 = vpop.f32.mrb[0].mxu0
        %v2478 = vpop.f32.mrb[0].mxu0
        %v2479 = vadd.f32 0.0, %v2478
        %v2480 = vpop.f32.mrb[0].mxu0
        %2481 = vmatprep.mubr.bf16.mxu0 0
        %2482 = vmatmul.mubr.bf16.gmra.mrb[0].mxu0 %v2326
        %v2483 = vpop.f32.mrb[0].mxu0
        %v2484 = vadd.f32 0.0, %v2483
        %v2485 = vpop.f32.mrb[0].mxu0
        %v2486 = vpop.f32.mrb[0].mxu0
        %v2487 = vadd.f32 0.0, %v2486
        %v2488 = vpop.f32.mrb[0].mxu0
        %2489 = vmatprep.mubr.bf16.mxu0 0
        %2490 = vmatmul.mubr.bf16.gmra.mrb[0].mxu0 %v2329
        %v2491 = vpop.f32.mrb[0].mxu0
        %v2492 = vadd.f32 0.0, %v2491
        %v2493 = vpop.f32.mrb[0].mxu0
        %v2494 = vpop.f32.mrb[0].mxu0
        %v2495 = vadd.f32 0.0, %v2494
        %v2496 = vpop.f32.mrb[0].mxu0
        %2497 = vmatprep.mubr.bf16.mxu0 0
        %2498 = vmatmul.mubr.bf16.gmra.mrb[0].mxu0 %v2332
        %v2499 = vpop.f32.mrb[0].mxu0
        %v2500 = vadd.f32 0.0, %v2499
        %v2501 = vpop.f32.mrb[0].mxu0
        %v2502 = vpop.f32.mrb[0].mxu0
        %v2503 = vadd.f32 0.0, %v2502
        %v2504 = vpop.f32.mrb[0].mxu0
        %2505 = vmatprep.mubr.bf16.mxu0 0
        %2506 = vmatmul.mubr.bf16.gmra.mrb[0].mxu0 %v2335
        %v2507 = vpop.f32.mrb[0].mxu0
        %v2508 = vadd.f32 0.0, %v2507
        %v2509 = vpop.f32.mrb[0].mxu0
        %v2510 = vpop.f32.mrb[0].mxu0
        %v2511 = vadd.f32 0.0, %v2510
        %v2512 = vpop.f32.mrb[0].mxu0
        %2513 = vmatprep.mubr.bf16.mxu0 0
        %2514 = vmatmul.mubr.bf16.gmra.mrb[0].mxu0 %v2338
        %v2515 = vpop.f32.mrb[0].mxu0
        %v2516 = vadd.f32 0.0, %v2515
        %v2517 = vpop.f32.mrb[0].mxu0
        %v2518 = vpop.f32.mrb[0].mxu0
        %v2519 = vadd.f32 0.0, %v2518
        %v2520 = vpop.f32.mrb[0].mxu0
        %2521 = vmatprep.mubr.bf16.mxu0 0
        %2522 = vmatmul.mubr.bf16.gmra.mrb[0].mxu0 %v2341
        %v2523 = vpop.f32.mrb[0].mxu0
        %v2524 = vadd.f32 0.0, %v2523
        %v2525 = vpop.f32.mrb[0].mxu0
        %v2526 = vpop.f32.mrb[0].mxu0
        %v2527 = vadd.f32 0.0, %v2526
        %v2528 = vpop.f32.mrb[0].mxu0
        %2529 = vmatprep.mubr.bf16.mxu0 0
        %2530 = vmatmul.mubr.bf16.gmra.mrb[0].mxu0 %v2344
        %v2531 = vpop.f32.mrb[0].mxu0
        %v2532 = vadd.f32 0.0, %v2531
        %v2533 = vpop.f32.mrb[0].mxu0
        %v2534 = vpop.f32.mrb[0].mxu0
        %v2535 = vadd.f32 0.0, %v2534
        %v2536 = vpop.f32.mrb[0].mxu0
        %2537 = vmatprep.mubr.bf16.mxu0 0
        %2538 = vmatmul.mubr.bf16.gmra.mrb[0].mxu0 %v2347
        %v2539 = vpop.f32.mrb[0].mxu0
        %v2540 = vadd.f32 0.0, %v2539
        %v2541 = vpop.f32.mrb[0].mxu0
        %v2542 = vpop.f32.mrb[0].mxu0
        %v2543 = vadd.f32 0.0, %v2542
        %v2544 = vpop.f32.mrb[0].mxu0
        %2545 = vmatprep.mubr.bf16.mxu0 0
        %2546 = vmatmul.mubr.bf16.gmra.mrb[0].mxu0 %v2350
        %v2547 = vpop.f32.mrb[0].mxu0
        %v2548 = vadd.f32 0.0, %v2547
        %v2549 = vpop.f32.mrb[0].mxu0
        %v2550 = vpop.f32.mrb[0].mxu0
        %v2551 = vadd.f32 0.0, %v2550
        %v2552 = vpop.f32.mrb[0].mxu0
        %2553 = vmatprep.mubr.bf16.mxu0 0
        %2554 = vmatmul.mubr.bf16.gmra.mrb[0].mxu0 %v2353
        %v2555 = vpop.f32.mrb[0].mxu0
        %v2556 = vadd.f32 0.0, %v2555
        %v2557 = vpop.f32.mrb[0].mxu0
        %v2558 = vpop.f32.mrb[0].mxu0
        %v2559 = vadd.f32 0.0, %v2558
        %v2560 = vpop.f32.mrb[0].mxu0
        %2561 = vmatprep.mubr.bf16.mxu0 0
        %2562 = vmatmul.mubr.bf16.gmra.mrb[0].mxu0 %v2356
        %v2563 = vpop.f32.mrb[0].mxu0
        %v2564 = vadd.f32 0.0, %v2563
        %v2565 = vpop.f32.mrb[0].mxu0
        %v2566 = vpop.f32.mrb[0].mxu0
        %v2567 = vadd.f32 0.0, %v2566
        %v2568 = vpop.f32.mrb[0].mxu0
        %2569 = vmatprep.mubr.bf16.mxu0 0
        %2570 = vmatmul.mubr.bf16.gmra.mrb[0].mxu0 %v2359
        %v2571 = vpop.f32.mrb[0].mxu0
        %v2572 = vadd.f32 0.0, %v2571
        %v2573 = vpop.f32.mrb[0].mxu0
        %v2574 = vpop.f32.mrb[0].mxu0
        %v2575 = vadd.f32 0.0, %v2574
        %v2576 = vpop.f32.mrb[0].mxu0
        %2577 = vmatprep.mubr.bf16.mxu0 0
        %2578 = vmatmul.mubr.bf16.gmra.mrb[0].mxu0 %v2362
        %v2579 = vpop.f32.mrb[0].mxu0
        %v2580 = vadd.f32 0.0, %v2579
        %v2581 = vpop.f32.mrb[0].mxu0
        %v2582 = vpop.f32.mrb[0].mxu0
        %v2583 = vadd.f32 0.0, %v2582
        %v2584 = vpop.f32.mrb[0].mxu0
        %2585 = vmatprep.mubr.bf16.mxu0 0
        %2586 = vmatmul.mubr.bf16.gmra.mrb[0].mxu0 %v2365
        %v2587 = vpop.f32.mrb[0].mxu0
        %v2588 = vadd.f32 0.0, %v2587
        %v2589 = vpop.f32.mrb[0].mxu0
        %v2590 = vpop.f32.mrb[0].mxu0
        %v2591 = vadd.f32 0.0, %v2590
        %v2592 = vpop.f32.mrb[0].mxu0
        %2593 = vmatprep.mubr.bf16.mxu0 0
        %2594 = vmatmul.mubr.bf16.gmra.mrb[0].mxu0 %v2368
        %v2595 = vpop.f32.mrb[0].mxu0
        %v2596 = vadd.f32 0.0, %v2595
        %v2597 = vpop.f32.mrb[0].mxu0
        %v2598 = vpop.f32.mrb[0].mxu0
        %v2599 = vadd.f32 0.0, %v2598
        %v2600 = vpop.f32.mrb[0].mxu0
        %2601 = vmatprep.mubr.bf16.mxu0 0
        %2602 = vmatmul.mubr.bf16.gmra.mrb[0].mxu0 %v2371
        %v2603 = vpop.f32.mrb[0].mxu0
        %v2604 = vadd.f32 0.0, %v2603
        %v2605 = vpop.f32.mrb[0].mxu0
        %v2606 = vpop.f32.mrb[0].mxu0
        %v2607 = vadd.f32 0.0, %v2606
        %v2608 = vpop.f32.mrb[0].mxu0
        %2609 = vmatprep.mubr.bf16.mxu0 0
        %2610 = vmatmul.mubr.bf16.gmra.mrb[0].mxu0 %v2374
        %v2611 = vpop.f32.mrb[0].mxu0
        %v2612 = vadd.f32 0.0, %v2611
        %v2613 = vpop.f32.mrb[0].mxu0
        %v2614 = vpop.f32.mrb[0].mxu0
        %v2615 = vadd.f32 0.0, %v2614
        %v2616 = vpop.f32.mrb[0].mxu0
        %2617 = vmatprep.mubr.bf16.mxu0 0
        %2618 = vmatmul.mubr.bf16.gmra.mrb[0].mxu0 %v2377
        %v2619 = vpop.f32.mrb[0].mxu0
        %v2620 = vadd.f32 0.0, %v2619
        %v2621 = vpop.f32.mrb[0].mxu0
        %v2622 = vpop.f32.mrb[0].mxu0
        %v2623 = vadd.f32 0.0, %v2622
        %v2624 = vpop.f32.mrb[0].mxu0
        %2625 = vmatprep.mubr.bf16.mxu0 0
        %2626 = vmatmul.mubr.bf16.gmra.mrb[0].mxu0 %v2380
        %v2627 = vpop.f32.mrb[0].mxu0
        %v2628 = vadd.f32 0.0, %v2627
        %v2629 = vpop.f32.mrb[0].mxu0
        %v2630 = vpop.f32.mrb[0].mxu0
        %v2631 = vadd.f32 0.0, %v2630
        %v2632 = vpop.f32.mrb[0].mxu0
        %2633 = vmatprep.mubr.bf16.mxu0 0
        %2634 = vmatmul.mubr.bf16.gmra.mrb[0].mxu0 %v2383
        %v2635 = vpop.f32.mrb[0].mxu0
        %v2636 = vadd.f32 0.0, %v2635
        %v2637 = vpop.f32.mrb[0].mxu0
        %v2638 = vpop.f32.mrb[0].mxu0
        %v2639 = vadd.f32 0.0, %v2638
        %v2640 = vpop.f32.mrb[0].mxu0
        %2641 = vmatprep.mubr.bf16.mxu0 0
        %2642 = vmatmul.mubr.bf16.gmra.mrb[0].mxu0 %v2386
        %v2643 = vpop.f32.mrb[0].mxu0
        %v2644 = vadd.f32 0.0, %v2643
        %v2645 = vpop.f32.mrb[0].mxu0
        %v2646 = vpop.f32.mrb[0].mxu0
        %v2647 = vadd.f32 0.0, %v2646
        %v2648 = vpop.f32.mrb[0].mxu0
        %2649 = vmatprep.mubr.bf16.mxu0 0
        %2650 = vmatmul.mubr.bf16.gmra.mrb[0].mxu0 %v2389
        %v2651 = vpop.f32.mrb[0].mxu0
        %v2652 = vadd.f32 0.0, %v2651
        %v2653 = vpop.f32.mrb[0].mxu0
        %v2654 = vpop.f32.mrb[0].mxu0
        %v2655 = vadd.f32 0.0, %v2654
        %v2656 = vpop.f32.mrb[0].mxu0
        %2657 = vmatprep.mubr.bf16.mxu0 0
        %2658 = vmatmul.mubr.bf16.gmra.mrb[0].mxu0 %v2392
        %v2659 = vpop.f32.mrb[0].mxu0
        %v2660 = vadd.f32 0.0, %v2659
        %v2661 = vpop.f32.mrb[0].mxu0
        %v2662 = vpop.f32.mrb[0].mxu0
        %v2663 = vadd.f32 0.0, %v2662
        %v2664 = vpop.f32.mrb[0].mxu0
        %2665 = vmatprep.mubr.bf16.mxu0 0
        %2666 = vmatmul.mubr.bf16.gmra.mrb[0].mxu0 %v2395
        %v2667 = vpop.f32.mrb[0].mxu0
        %v2668 = vadd.f32 0.0, %v2667
        %v2669 = vpop.f32.mrb[0].mxu0
        %v2670 = vpop.f32.mrb[0].mxu0
        %v2671 = vadd.f32 0.0, %v2670
        %v2672 = vpop.f32.mrb[0].mxu0
        %2673 = vmatprep.mubr.bf16.mxu0 0
        %2674 = vmatmul.mubr.bf16.gmra.mrb[0].mxu0 %v2398
        %v2675 = vpop.f32.mrb[0].mxu0
        %v2676 = vadd.f32 0.0, %v2675
        %v2677 = vpop.f32.mrb[0].mxu0
        %v2678 = vpop.f32.mrb[0].mxu0
        %v2679 = vadd.f32 0.0, %v2678
        %v2680 = vpop.f32.mrb[0].mxu0
        %2681 = vmatprep.mubr.bf16.mxu0 0
        %2682 = vmatmul.mubr.bf16.gmra.mrb[0].mxu0 %v2401
        %v2683 = vpop.f32.mrb[0].mxu0
        %v2684 = vadd.f32 0.0, %v2683
        %v2685 = vpop.f32.mrb[0].mxu0
        %v2686 = vpop.f32.mrb[0].mxu0
        %v2687 = vadd.f32 0.0, %v2686
        %v2688 = vpop.f32.mrb[0].mxu0
        %2689 = vmatprep.mubr.bf16.mxu0 0
        %2690 = vmatmul.mubr.bf16.gmra.mrb[0].mxu0 %v2404
        %v2691 = vpop.f32.mrb[0].mxu0
        %v2692 = vadd.f32 0.0, %v2691
        %v2693 = vpop.f32.mrb[0].mxu0
        %v2694 = vpop.f32.mrb[0].mxu0
        %v2695 = vadd.f32 0.0, %v2694
        %v2696 = vpop.f32.mrb[0].mxu0
        %2697 = vdwg.mxu0
        %v2698 = vadd.f32 %v1171, %v2444
        %v2699 = vadd.f32 %v1174, %v2447
        %v2700 = vadd.f32 %v1179, %v2452
        %v2701 = vadd.f32 %v1182, %v2455
        %v2702 = vadd.f32 %v1187, %v2460
        %v2703 = vadd.f32 %v1190, %v2463
        %v2704 = vadd.f32 %v1195, %v2468
        %v2705 = vadd.f32 %v1198, %v2471
        %v2706 = vadd.f32 %v1203, %v2476
        %v2707 = vadd.f32 %v1206, %v2479
        %v2708 = vadd.f32 %v1211, %v2484
        %v2709 = vadd.f32 %v1214, %v2487
        %v2710 = vadd.f32 %v1219, %v2492
        %v2711 = vadd.f32 %v1222, %v2495
        %v2712 = vadd.f32 %v1227, %v2500
        %v2713 = vadd.f32 %v1230, %v2503
        %v2714 = vadd.f32 %v1235, %v2508
        %v2715 = vadd.f32 %v1238, %v2511
        %v2716 = vadd.f32 %v1243, %v2516
        %v2717 = vadd.f32 %v1246, %v2519
        %v2718 = vadd.f32 %v1251, %v2524
        %v2719 = vadd.f32 %v1254, %v2527
        %v2720 = vadd.f32 %v1259, %v2532
        %v2721 = vadd.f32 %v1262, %v2535
        %v2722 = vadd.f32 %v1267, %v2540
        %v2723 = vadd.f32 %v1270, %v2543
        %v2724 = vadd.f32 %v1275, %v2548
        %v2725 = vadd.f32 %v1278, %v2551
        %v2726 = vadd.f32 %v1283, %v2556
        %v2727 = vadd.f32 %v1286, %v2559
        %v2728 = vadd.f32 %v1291, %v2564
        %v2729 = vadd.f32 %v1294, %v2567
        %v2730 = vadd.f32 %v1299, %v2572
        %v2731 = vadd.f32 %v1302, %v2575
        %v2732 = vadd.f32 %v1307, %v2580
        %v2733 = vadd.f32 %v1310, %v2583
        %v2734 = vadd.f32 %v1315, %v2588
        %v2735 = vadd.f32 %v1318, %v2591
        %v2736 = vadd.f32 %v1323, %v2596
        %v2737 = vadd.f32 %v1326, %v2599
        %v2738 = vadd.f32 %v1331, %v2604
        %v2739 = vadd.f32 %v1334, %v2607
        %v2740 = vadd.f32 %v1339, %v2612
        %v2741 = vadd.f32 %v1342, %v2615
        %v2742 = vadd.f32 %v1347, %v2620
        %v2743 = vadd.f32 %v1350, %v2623
        %v2744 = vadd.f32 %v1355, %v2628
        %v2745 = vadd.f32 %v1358, %v2631
        %v2746 = vadd.f32 %v1363, %v2636
        %v2747 = vadd.f32 %v1366, %v2639
        %v2748 = vadd.f32 %v1371, %v2644
        %v2749 = vadd.f32 %v1374, %v2647
        %v2750 = vadd.f32 %v1379, %v2652
        %v2751 = vadd.f32 %v1382, %v2655
        %v2752 = vadd.f32 %v1387, %v2660
        %v2753 = vadd.f32 %v1390, %v2663
        %v2754 = vadd.f32 %v1395, %v2668
        %v2755 = vadd.f32 %v1398, %v2671
        %v2756 = vadd.f32 %v1403, %v2676
        %v2757 = vadd.f32 %v1406, %v2679
        %v2758 = vadd.f32 %v1411, %v2684
        %v2759 = vadd.f32 %v1414, %v2687
        %v2760 = vadd.f32 %v1419, %v2692
        %v2761 = vadd.f32 %v1422, %v2695
        %s2762 = sadd.s32 %s185, 66
        %s2763 = smul.u32 %s2762, 5
        %s2764 = smul.addr %s2763, 4
        %s2765 = scalar_lea.vmem %s182, %s2764
        %v2766 = vld [vmem:[%s2765] sm:$0xf]
        %v2767 = vld [vmem:[%s2765 + $0x4] sm:$0xf]
        %v2768 = vld [vmem:[%s2765 + $0x8] sm:$0xf]
        %v2769 = vld [vmem:[%s2765 + $0xc] sm:$0xf]
        %v2770 = vld [vmem:[%s2765 + $0x14] sm:$0xf]
        %v2771 = vld [vmem:[%s2765 + $0x18] sm:$0xf]
        %v2772 = vld [vmem:[%s2765 + $0x1c] sm:$0xf]
        %v2773 = vld [vmem:[%s2765 + $0x20] sm:$0xf]
        %v2774 = vld [vmem:[%s2765 + $0x28] sm:$0xf]
        %v2775 = vld [vmem:[%s2765 + $0x2c] sm:$0xf]
        %v2776 = vld [vmem:[%s2765 + $0x30] sm:$0xf]
        %v2777 = vld [vmem:[%s2765 + $0x34] sm:$0xf]
        %v2778 = vld [vmem:[%s2765 + $0x3c] sm:$0xf]
        %v2779 = vld [vmem:[%s2765 + $0x40] sm:$0xf]
        %v2780 = vld [vmem:[%s2765 + $0x44] sm:$0xf]
        %v2781 = vld [vmem:[%s2765 + $0x48] sm:$0xf]
        %v2782 = vld [vmem:[%s2765 + $0x50] sm:$0xf]
        %v2783 = vld [vmem:[%s2765 + $0x54] sm:$0xf]
        %v2784 = vld [vmem:[%s2765 + $0x58] sm:$0xf]
        %v2785 = vld [vmem:[%s2765 + $0x5c] sm:$0xf]
        %v2786 = vld [vmem:[%s2765 + $0x64] sm:$0xf]
        %v2787 = vld [vmem:[%s2765 + $0x68] sm:$0xf]
        %v2788 = vld [vmem:[%s2765 + $0x6c] sm:$0xf]
        %v2789 = vld [vmem:[%s2765 + $0x70] sm:$0xf]
        %v2790 = vld [vmem:[%s2765 + $0x78] sm:$0xf]
        %v2791 = vld [vmem:[%s2765 + $0x7c] sm:$0xf]
        %v2792 = vld [vmem:[%s2765 + $0x80] sm:$0xf]
        %v2793 = vld [vmem:[%s2765 + $0x84] sm:$0xf]
        %v2794 = vld [vmem:[%s2765 + $0x8c] sm:$0xf]
        %v2795 = vld [vmem:[%s2765 + $0x90] sm:$0xf]
        %v2796 = vld [vmem:[%s2765 + $0x94] sm:$0xf]
        %v2797 = vld [vmem:[%s2765 + $0x98] sm:$0xf]
        %v2798 = vld [vmem:[%s2765 + $0xa0] sm:$0xf]
        %v2799 = vld [vmem:[%s2765 + $0xa4] sm:$0xf]
        %v2800 = vld [vmem:[%s2765 + $0xa8] sm:$0xf]
        %v2801 = vld [vmem:[%s2765 + $0xac] sm:$0xf]
        %v2802 = vld [vmem:[%s2765 + $0xb4] sm:$0xf]
        %v2803 = vld [vmem:[%s2765 + $0xb8] sm:$0xf]
        %v2804 = vld [vmem:[%s2765 + $0xbc] sm:$0xf]
        %v2805 = vld [vmem:[%s2765 + $0xc0] sm:$0xf]
        %v2806 = vld [vmem:[%s2765 + $0xc8] sm:$0xf]
        %v2807 = vld [vmem:[%s2765 + $0xcc] sm:$0xf]
        %v2808 = vld [vmem:[%s2765 + $0xd0] sm:$0xf]
        %v2809 = vld [vmem:[%s2765 + $0xd4] sm:$0xf]
        %v2810 = vld [vmem:[%s2765 + $0xdc] sm:$0xf]
        %v2811 = vld [vmem:[%s2765 + $0xe0] sm:$0xf]
        %v2812 = vld [vmem:[%s2765 + $0xe4] sm:$0xf]
        %v2813 = vld [vmem:[%s2765 + $0xe8] sm:$0xf]
        %v2814 = vld [vmem:[%s2765 + $0xf0] sm:$0xf]
        %v2815 = vld [vmem:[%s2765 + $0xf4] sm:$0xf]
        %v2816 = vld [vmem:[%s2765 + $0xf8] sm:$0xf]
        %v2817 = vld [vmem:[%s2765 + $0xfc] sm:$0xf]
        %v2818 = vld [vmem:[%s2765 + $0x104] sm:$0xf]
        %v2819 = vld [vmem:[%s2765 + $0x108] sm:$0xf]
        %v2820 = vld [vmem:[%s2765 + $0x10c] sm:$0xf]
        %v2821 = vld [vmem:[%s2765 + $0x110] sm:$0xf]
        %v2822 = vld [vmem:[%s2765 + $0x118] sm:$0xf]
        %v2823 = vld [vmem:[%s2765 + $0x11c] sm:$0xf]
        %v2824 = vld [vmem:[%s2765 + $0x120] sm:$0xf]
        %v2825 = vld [vmem:[%s2765 + $0x124] sm:$0xf]
        %v2826 = vld [vmem:[%s2765 + $0x12c] sm:$0xf]
        %v2827 = vld [vmem:[%s2765 + $0x130] sm:$0xf]
        %v2828 = vld [vmem:[%s2765 + $0x134] sm:$0xf]
        %v2829 = vld [vmem:[%s2765 + $0x138] sm:$0xf]
        %s2830 = scalar_lea.vmem %s1, 6
        %v2831 = vld [vmem:[%s2830] sm:$0x3]
        %v2896 = vunpack.c.l.b16 %v2766
        %v2897 = vunpack.c.l.b16 %v2767
        %v2898 = vunpack.c.l.b16 %v2768
        %v2899 = vunpack.c.l.b16 %v2769
        %v2900 = vunpack.c.l.b16 %v2770
        %v2901 = vunpack.c.l.b16 %v2771
        %v2902 = vunpack.c.l.b16 %v2772
        %v2903 = vunpack.c.l.b16 %v2773
        %v2904 = vunpack.c.l.b16 %v2774
        %v2905 = vunpack.c.l.b16 %v2775
        %v2906 = vunpack.c.l.b16 %v2776
        %v2907 = vunpack.c.l.b16 %v2777
        %v2908 = vunpack.c.l.b16 %v2778
        %v2909 = vunpack.c.l.b16 %v2779
        %v2910 = vunpack.c.l.b16 %v2780
        %v2911 = vunpack.c.l.b16 %v2781
        %v2912 = vunpack.c.l.b16 %v2782
        %v2913 = vunpack.c.l.b16 %v2783
        %v2914 = vunpack.c.l.b16 %v2784
        %v2915 = vunpack.c.l.b16 %v2785
        %v2916 = vunpack.c.l.b16 %v2786
        %v2917 = vunpack.c.l.b16 %v2787
        %v2918 = vunpack.c.l.b16 %v2788
        %v2919 = vunpack.c.l.b16 %v2789
        %v2920 = vunpack.c.l.b16 %v2790
        %v2921 = vunpack.c.l.b16 %v2791
        %v2922 = vunpack.c.l.b16 %v2792
        %v2923 = vunpack.c.l.b16 %v2793
        %v2924 = vunpack.c.l.b16 %v2794
        %v2925 = vunpack.c.l.b16 %v2795
        %v2926 = vunpack.c.l.b16 %v2796
        %v2927 = vunpack.c.l.b16 %v2797
        %v2928 = vunpack.c.l.b16 %v2798
        %v2929 = vunpack.c.l.b16 %v2799
        %v2930 = vunpack.c.l.b16 %v2800
        %v2931 = vunpack.c.l.b16 %v2801
        %v2932 = vunpack.c.l.b16 %v2802
        %v2933 = vunpack.c.l.b16 %v2803
        %v2934 = vunpack.c.l.b16 %v2804
        %v2935 = vunpack.c.l.b16 %v2805
        %v2936 = vunpack.c.l.b16 %v2806
        %v2937 = vunpack.c.l.b16 %v2807
        %v2938 = vunpack.c.l.b16 %v2808
        %v2939 = vunpack.c.l.b16 %v2809
        %v2940 = vunpack.c.l.b16 %v2810
        %v2941 = vunpack.c.l.b16 %v2811
        %v2942 = vunpack.c.l.b16 %v2812
        %v2943 = vunpack.c.l.b16 %v2813
        %v2944 = vunpack.c.l.b16 %v2814
        %v2945 = vunpack.c.l.b16 %v2815
        %v2946 = vunpack.c.l.b16 %v2816
        %v2947 = vunpack.c.l.b16 %v2817
        %v2948 = vunpack.c.l.b16 %v2818
        %v2949 = vunpack.c.l.b16 %v2819
        %v2950 = vunpack.c.l.b16 %v2820
        %v2951 = vunpack.c.l.b16 %v2821
        %v2952 = vunpack.c.l.b16 %v2822
        %v2953 = vunpack.c.l.b16 %v2823
        %v2954 = vunpack.c.l.b16 %v2824
        %v2955 = vunpack.c.l.b16 %v2825
        %v2956 = vunpack.c.l.b16 %v2826
        %v2957 = vunpack.c.l.b16 %v2827
        %v2958 = vunpack.c.l.b16 %v2828
        %v2959 = vunpack.c.l.b16 %v2829
        %v2960 = vpack.c.b16 %v2897, %v2896
        %v2961 = vpack.c.b16 %v2899, %v2898
        %v2962 = vpack.c.b16 %v2901, %v2900
        %v2963 = vpack.c.b16 %v2903, %v2902
        %v2964 = vpack.c.b16 %v2905, %v2904
        %v2965 = vpack.c.b16 %v2907, %v2906
        %v2966 = vpack.c.b16 %v2909, %v2908
        %v2967 = vpack.c.b16 %v2911, %v2910
        %v2968 = vpack.c.b16 %v2913, %v2912
        %v2969 = vpack.c.b16 %v2915, %v2914
        %v2970 = vpack.c.b16 %v2917, %v2916
        %v2971 = vpack.c.b16 %v2919, %v2918
        %v2972 = vpack.c.b16 %v2921, %v2920
        %v2973 = vpack.c.b16 %v2923, %v2922
        %v2974 = vpack.c.b16 %v2925, %v2924
        %v2975 = vpack.c.b16 %v2927, %v2926
        %v2976 = vpack.c.b16 %v2929, %v2928
        %v2977 = vpack.c.b16 %v2931, %v2930
        %v2978 = vpack.c.b16 %v2933, %v2932
        %v2979 = vpack.c.b16 %v2935, %v2934
        %v2980 = vpack.c.b16 %v2937, %v2936
        %v2981 = vpack.c.b16 %v2939, %v2938
        %v2982 = vpack.c.b16 %v2941, %v2940
        %v2983 = vpack.c.b16 %v2943, %v2942
        %v2984 = vpack.c.b16 %v2945, %v2944
        %v2985 = vpack.c.b16 %v2947, %v2946
        %v2986 = vpack.c.b16 %v2949, %v2948
        %v2987 = vpack.c.b16 %v2951, %v2950
        %v2988 = vpack.c.b16 %v2953, %v2952
        %v2989 = vpack.c.b16 %v2955, %v2954
        %v2990 = vpack.c.b16 %v2957, %v2956
        %v2991 = vpack.c.b16 %v2959, %v2958
        %v2993 = vsel %vm484, %v2960, 0
        %v2996 = vsel %vm484, %v2961, 0
        %v2999 = vsel %vm484, %v2962, 0
        %v3002 = vsel %vm484, %v2963, 0
        %v3005 = vsel %vm484, %v2964, 0
        %v3008 = vsel %vm484, %v2965, 0
        %v3011 = vsel %vm484, %v2966, 0
        %v3014 = vsel %vm484, %v2967, 0
        %v3017 = vsel %vm484, %v2968, 0
        %v3020 = vsel %vm484, %v2969, 0
        %v3023 = vsel %vm484, %v2970, 0
        %v3026 = vsel %vm484, %v2971, 0
        %v3029 = vsel %vm484, %v2972, 0
        %v3032 = vsel %vm484, %v2973, 0
        %v3035 = vsel %vm484, %v2974, 0
        %v3038 = vsel %vm484, %v2975, 0
        %v3041 = vsel %vm484, %v2976, 0
        %v3044 = vsel %vm484, %v2977, 0
        %v3047 = vsel %vm484, %v2978, 0
        %v3050 = vsel %vm484, %v2979, 0
        %v3053 = vsel %vm484, %v2980, 0
        %v3056 = vsel %vm484, %v2981, 0
        %v3059 = vsel %vm484, %v2982, 0
        %v3062 = vsel %vm484, %v2983, 0
        %v3065 = vsel %vm484, %v2984, 0
        %v3068 = vsel %vm484, %v2985, 0
        %v3071 = vsel %vm484, %v2986, 0
        %v3074 = vsel %vm484, %v2987, 0
        %v3077 = vsel %vm484, %v2988, 0
        %v3080 = vsel %vm484, %v2989, 0
        %v3083 = vsel %vm484, %v2990, 0
        %v3086 = vsel %vm484, %v2991, 0
        %v3089 = vand.u32 %v2831, %v584
        %3091 = vmatprep.subr.bf16.mxu0 0
        %3092 = vmatpush1.bf16.msra.mxu0 %v3089
        %3093 = vmatprep.subr.bf16.mxu0 0
        %3094 = vmatpush1.bf16.msra.mxu0 0
        %3095 = vmatprep.subr.bf16.mxu0 0
        %3096 = vmatpush1.bf16.msra.mxu0 0
        %3097 = vmatprep.subr.bf16.mxu0 0
        %3098 = vmatpush1.bf16.msra.mxu0 0
        %3099 = vmatprep.subr.bf16.mxu0 0
        %3100 = vmatpush1.bf16.msra.mxu0 0
        %3101 = vmatprep.subr.bf16.mxu0 0
        %3102 = vmatpush1.bf16.msra.mxu0 0
        %3103 = vmatprep.subr.bf16.mxu0 0
        %3104 = vmatpush1.bf16.msra.mxu0 0
        %3105 = vmatprep.subr.bf16.mxu0 0
        %3106 = vmatpush1.bf16.msra.mxu0 0
        %3107 = vmatprep.subr.bf16.mxu0 0
        %3108 = vmatpush1.bf16.msra.mxu0 0
        %3109 = vmatprep.subr.bf16.mxu0 0
        %3110 = vmatpush1.bf16.msra.mxu0 0
        %3111 = vmatprep.subr.bf16.mxu0 0
        %3112 = vmatpush1.bf16.msra.mxu0 0
        %3113 = vmatprep.subr.bf16.mxu0 0
        %3114 = vmatpush1.bf16.msra.mxu0 0
        %3115 = vmatprep.subr.bf16.mxu0 0
        %3116 = vmatpush1.bf16.msra.mxu0 0
        %3117 = vmatprep.subr.bf16.mxu0 0
        %3118 = vmatpush1.bf16.msra.mxu0 0
        %3119 = vmatprep.subr.bf16.mxu0 0
        %3120 = vmatpush1.bf16.msra.mxu0 0
        %3121 = vmatprep.subr.bf16.mxu0 0
        %3122 = vmatpush1.bf16.msra.mxu0 0
        %3123 = vmatprep.mubr.bf16.mxu0 0
        %3124 = vmatmul.mubr.bf16.gmra.mrb[0].mxu0 %v2993
        %v3125 = vpop.f32.mrb[0].mxu0
        %v3126 = vadd.f32 0.0, %v3125
        %v3127 = vpop.f32.mrb[0].mxu0
        %v3128 = vpop.f32.mrb[0].mxu0
        %v3129 = vadd.f32 0.0, %v3128
        %v3130 = vpop.f32.mrb[0].mxu0
        %3131 = vmatprep.mubr.bf16.mxu0 0
        %3132 = vmatmul.mubr.bf16.gmra.mrb[0].mxu0 %v2996
        %v3133 = vpop.f32.mrb[0].mxu0
        %v3134 = vadd.f32 0.0, %v3133
        %v3135 = vpop.f32.mrb[0].mxu0
        %v3136 = vpop.f32.mrb[0].mxu0
        %v3137 = vadd.f32 0.0, %v3136
        %v3138 = vpop.f32.mrb[0].mxu0
        %3139 = vmatprep.mubr.bf16.mxu0 0
        %3140 = vmatmul.mubr.bf16.gmra.mrb[0].mxu0 %v2999
        %v3141 = vpop.f32.mrb[0].mxu0
        %v3142 = vadd.f32 0.0, %v3141
        %v3143 = vpop.f32.mrb[0].mxu0
        %v3144 = vpop.f32.mrb[0].mxu0
        %v3145 = vadd.f32 0.0, %v3144
        %v3146 = vpop.f32.mrb[0].mxu0
        %3147 = vmatprep.mubr.bf16.mxu0 0
        %3148 = vmatmul.mubr.bf16.gmra.mrb[0].mxu0 %v3002
        %v3149 = vpop.f32.mrb[0].mxu0
        %v3150 = vadd.f32 0.0, %v3149
        %v3151 = vpop.f32.mrb[0].mxu0
        %v3152 = vpop.f32.mrb[0].mxu0
        %v3153 = vadd.f32 0.0, %v3152
        %v3154 = vpop.f32.mrb[0].mxu0
        %3155 = vmatprep.mubr.bf16.mxu0 0
        %3156 = vmatmul.mubr.bf16.gmra.mrb[0].mxu0 %v3005
        %v3157 = vpop.f32.mrb[0].mxu0
        %v3158 = vadd.f32 0.0, %v3157
        %v3159 = vpop.f32.mrb[0].mxu0
        %v3160 = vpop.f32.mrb[0].mxu0
        %v3161 = vadd.f32 0.0, %v3160
        %v3162 = vpop.f32.mrb[0].mxu0
        %3163 = vmatprep.mubr.bf16.mxu0 0
        %3164 = vmatmul.mubr.bf16.gmra.mrb[0].mxu0 %v3008
        %v3165 = vpop.f32.mrb[0].mxu0
        %v3166 = vadd.f32 0.0, %v3165
        %v3167 = vpop.f32.mrb[0].mxu0
        %v3168 = vpop.f32.mrb[0].mxu0
        %v3169 = vadd.f32 0.0, %v3168
        %v3170 = vpop.f32.mrb[0].mxu0
        %3171 = vmatprep.mubr.bf16.mxu0 0
        %3172 = vmatmul.mubr.bf16.gmra.mrb[0].mxu0 %v3011
        %v3173 = vpop.f32.mrb[0].mxu0
        %v3174 = vadd.f32 0.0, %v3173
        %v3175 = vpop.f32.mrb[0].mxu0
        %v3176 = vpop.f32.mrb[0].mxu0
        %v3177 = vadd.f32 0.0, %v3176
        %v3178 = vpop.f32.mrb[0].mxu0
        %3179 = vmatprep.mubr.bf16.mxu0 0
        %3180 = vmatmul.mubr.bf16.gmra.mrb[0].mxu0 %v3014
        %v3181 = vpop.f32.mrb[0].mxu0
        %v3182 = vadd.f32 0.0, %v3181
        %v3183 = vpop.f32.mrb[0].mxu0
        %v3184 = vpop.f32.mrb[0].mxu0
        %v3185 = vadd.f32 0.0, %v3184
        %v3186 = vpop.f32.mrb[0].mxu0
        %3187 = vmatprep.mubr.bf16.mxu0 0
        %3188 = vmatmul.mubr.bf16.gmra.mrb[0].mxu0 %v3017
        %v3189 = vpop.f32.mrb[0].mxu0
        %v3190 = vadd.f32 0.0, %v3189
        %v3191 = vpop.f32.mrb[0].mxu0
        %v3192 = vpop.f32.mrb[0].mxu0
        %v3193 = vadd.f32 0.0, %v3192
        %v3194 = vpop.f32.mrb[0].mxu0
        %3195 = vmatprep.mubr.bf16.mxu0 0
        %3196 = vmatmul.mubr.bf16.gmra.mrb[0].mxu0 %v3020
        %v3197 = vpop.f32.mrb[0].mxu0
        %v3198 = vadd.f32 0.0, %v3197
        %v3199 = vpop.f32.mrb[0].mxu0
        %v3200 = vpop.f32.mrb[0].mxu0
        %v3201 = vadd.f32 0.0, %v3200
        %v3202 = vpop.f32.mrb[0].mxu0
        %3203 = vmatprep.mubr.bf16.mxu0 0
        %3204 = vmatmul.mubr.bf16.gmra.mrb[0].mxu0 %v3023
        %v3205 = vpop.f32.mrb[0].mxu0
        %v3206 = vadd.f32 0.0, %v3205
        %v3207 = vpop.f32.mrb[0].mxu0
        %v3208 = vpop.f32.mrb[0].mxu0
        %v3209 = vadd.f32 0.0, %v3208
        %v3210 = vpop.f32.mrb[0].mxu0
        %3211 = vmatprep.mubr.bf16.mxu0 0
        %3212 = vmatmul.mubr.bf16.gmra.mrb[0].mxu0 %v3026
        %v3213 = vpop.f32.mrb[0].mxu0
        %v3214 = vadd.f32 0.0, %v3213
        %v3215 = vpop.f32.mrb[0].mxu0
        %v3216 = vpop.f32.mrb[0].mxu0
        %v3217 = vadd.f32 0.0, %v3216
        %v3218 = vpop.f32.mrb[0].mxu0
        %3219 = vmatprep.mubr.bf16.mxu0 0
        %3220 = vmatmul.mubr.bf16.gmra.mrb[0].mxu0 %v3029
        %v3221 = vpop.f32.mrb[0].mxu0
        %v3222 = vadd.f32 0.0, %v3221
        %v3223 = vpop.f32.mrb[0].mxu0
        %v3224 = vpop.f32.mrb[0].mxu0
        %v3225 = vadd.f32 0.0, %v3224
        %v3226 = vpop.f32.mrb[0].mxu0
        %3227 = vmatprep.mubr.bf16.mxu0 0
        %3228 = vmatmul.mubr.bf16.gmra.mrb[0].mxu0 %v3032
        %v3229 = vpop.f32.mrb[0].mxu0
        %v3230 = vadd.f32 0.0, %v3229
        %v3231 = vpop.f32.mrb[0].mxu0
        %v3232 = vpop.f32.mrb[0].mxu0
        %v3233 = vadd.f32 0.0, %v3232
        %v3234 = vpop.f32.mrb[0].mxu0
        %3235 = vmatprep.mubr.bf16.mxu0 0
        %3236 = vmatmul.mubr.bf16.gmra.mrb[0].mxu0 %v3035
        %v3237 = vpop.f32.mrb[0].mxu0
        %v3238 = vadd.f32 0.0, %v3237
        %v3239 = vpop.f32.mrb[0].mxu0
        %v3240 = vpop.f32.mrb[0].mxu0
        %v3241 = vadd.f32 0.0, %v3240
        %v3242 = vpop.f32.mrb[0].mxu0
        %3243 = vmatprep.mubr.bf16.mxu0 0
        %3244 = vmatmul.mubr.bf16.gmra.mrb[0].mxu0 %v3038
        %v3245 = vpop.f32.mrb[0].mxu0
        %v3246 = vadd.f32 0.0, %v3245
        %v3247 = vpop.f32.mrb[0].mxu0
        %v3248 = vpop.f32.mrb[0].mxu0
        %v3249 = vadd.f32 0.0, %v3248
        %v3250 = vpop.f32.mrb[0].mxu0
        %3251 = vmatprep.mubr.bf16.mxu0 0
        %3252 = vmatmul.mubr.bf16.gmra.mrb[0].mxu0 %v3041
        %v3253 = vpop.f32.mrb[0].mxu0
        %v3254 = vadd.f32 0.0, %v3253
        %v3255 = vpop.f32.mrb[0].mxu0
        %v3256 = vpop.f32.mrb[0].mxu0
        %v3257 = vadd.f32 0.0, %v3256
        %v3258 = vpop.f32.mrb[0].mxu0
        %3259 = vmatprep.mubr.bf16.mxu0 0
        %3260 = vmatmul.mubr.bf16.gmra.mrb[0].mxu0 %v3044
        %v3261 = vpop.f32.mrb[0].mxu0
        %v3262 = vadd.f32 0.0, %v3261
        %v3263 = vpop.f32.mrb[0].mxu0
        %v3264 = vpop.f32.mrb[0].mxu0
        %v3265 = vadd.f32 0.0, %v3264
        %v3266 = vpop.f32.mrb[0].mxu0
        %3267 = vmatprep.mubr.bf16.mxu0 0
        %3268 = vmatmul.mubr.bf16.gmra.mrb[0].mxu0 %v3047
        %v3269 = vpop.f32.mrb[0].mxu0
        %v3270 = vadd.f32 0.0, %v3269
        %v3271 = vpop.f32.mrb[0].mxu0
        %v3272 = vpop.f32.mrb[0].mxu0
        %v3273 = vadd.f32 0.0, %v3272
        %v3274 = vpop.f32.mrb[0].mxu0
        %3275 = vmatprep.mubr.bf16.mxu0 0
        %3276 = vmatmul.mubr.bf16.gmra.mrb[0].mxu0 %v3050
        %v3277 = vpop.f32.mrb[0].mxu0
        %v3278 = vadd.f32 0.0, %v3277
        %v3279 = vpop.f32.mrb[0].mxu0
        %v3280 = vpop.f32.mrb[0].mxu0
        %v3281 = vadd.f32 0.0, %v3280
        %v3282 = vpop.f32.mrb[0].mxu0
        %3283 = vmatprep.mubr.bf16.mxu0 0
        %3284 = vmatmul.mubr.bf16.gmra.mrb[0].mxu0 %v3053
        %v3285 = vpop.f32.mrb[0].mxu0
        %v3286 = vadd.f32 0.0, %v3285
        %v3287 = vpop.f32.mrb[0].mxu0
        %v3288 = vpop.f32.mrb[0].mxu0
        %v3289 = vadd.f32 0.0, %v3288
        %v3290 = vpop.f32.mrb[0].mxu0
        %3291 = vmatprep.mubr.bf16.mxu0 0
        %3292 = vmatmul.mubr.bf16.gmra.mrb[0].mxu0 %v3056
        %v3293 = vpop.f32.mrb[0].mxu0
        %v3294 = vadd.f32 0.0, %v3293
        %v3295 = vpop.f32.mrb[0].mxu0
        %v3296 = vpop.f32.mrb[0].mxu0
        %v3297 = vadd.f32 0.0, %v3296
        %v3298 = vpop.f32.mrb[0].mxu0
        %3299 = vmatprep.mubr.bf16.mxu0 0
        %3300 = vmatmul.mubr.bf16.gmra.mrb[0].mxu0 %v3059
        %v3301 = vpop.f32.mrb[0].mxu0
        %v3302 = vadd.f32 0.0, %v3301
        %v3303 = vpop.f32.mrb[0].mxu0
        %v3304 = vpop.f32.mrb[0].mxu0
        %v3305 = vadd.f32 0.0, %v3304
        %v3306 = vpop.f32.mrb[0].mxu0
        %3307 = vmatprep.mubr.bf16.mxu0 0
        %3308 = vmatmul.mubr.bf16.gmra.mrb[0].mxu0 %v3062
        %v3309 = vpop.f32.mrb[0].mxu0
        %v3310 = vadd.f32 0.0, %v3309
        %v3311 = vpop.f32.mrb[0].mxu0
        %v3312 = vpop.f32.mrb[0].mxu0
        %v3313 = vadd.f32 0.0, %v3312
        %v3314 = vpop.f32.mrb[0].mxu0
        %3315 = vmatprep.mubr.bf16.mxu0 0
        %3316 = vmatmul.mubr.bf16.gmra.mrb[0].mxu0 %v3065
        %v3317 = vpop.f32.mrb[0].mxu0
        %v3318 = vadd.f32 0.0, %v3317
        %v3319 = vpop.f32.mrb[0].mxu0
        %v3320 = vpop.f32.mrb[0].mxu0
        %v3321 = vadd.f32 0.0, %v3320
        %v3322 = vpop.f32.mrb[0].mxu0
        %3323 = vmatprep.mubr.bf16.mxu0 0
        %3324 = vmatmul.mubr.bf16.gmra.mrb[0].mxu0 %v3068
        %v3325 = vpop.f32.mrb[0].mxu0
        %v3326 = vadd.f32 0.0, %v3325
        %v3327 = vpop.f32.mrb[0].mxu0
        %v3328 = vpop.f32.mrb[0].mxu0
        %v3329 = vadd.f32 0.0, %v3328
        %v3330 = vpop.f32.mrb[0].mxu0
        %3331 = vmatprep.mubr.bf16.mxu0 0
        %3332 = vmatmul.mubr.bf16.gmra.mrb[0].mxu0 %v3071
        %v3333 = vpop.f32.mrb[0].mxu0
        %v3334 = vadd.f32 0.0, %v3333
        %v3335 = vpop.f32.mrb[0].mxu0
        %v3336 = vpop.f32.mrb[0].mxu0
        %v3337 = vadd.f32 0.0, %v3336
        %v3338 = vpop.f32.mrb[0].mxu0
        %3339 = vmatprep.mubr.bf16.mxu0 0
        %3340 = vmatmul.mubr.bf16.gmra.mrb[0].mxu0 %v3074
        %v3341 = vpop.f32.mrb[0].mxu0
        %v3342 = vadd.f32 0.0, %v3341
        %v3343 = vpop.f32.mrb[0].mxu0
        %v3344 = vpop.f32.mrb[0].mxu0
        %v3345 = vadd.f32 0.0, %v3344
        %v3346 = vpop.f32.mrb[0].mxu0
        %3347 = vmatprep.mubr.bf16.mxu0 0
        %3348 = vmatmul.mubr.bf16.gmra.mrb[0].mxu0 %v3077
        %v3349 = vpop.f32.mrb[0].mxu0
        %v3350 = vadd.f32 0.0, %v3349
        %v3351 = vpop.f32.mrb[0].mxu0
        %v3352 = vpop.f32.mrb[0].mxu0
        %v3353 = vadd.f32 0.0, %v3352
        %v3354 = vpop.f32.mrb[0].mxu0
        %3355 = vmatprep.mubr.bf16.mxu0 0
        %3356 = vmatmul.mubr.bf16.gmra.mrb[0].mxu0 %v3080
        %v3357 = vpop.f32.mrb[0].mxu0
        %v3358 = vadd.f32 0.0, %v3357
        %v3359 = vpop.f32.mrb[0].mxu0
        %v3360 = vpop.f32.mrb[0].mxu0
        %v3361 = vadd.f32 0.0, %v3360
        %v3362 = vpop.f32.mrb[0].mxu0
        %3363 = vmatprep.mubr.bf16.mxu0 0
        %3364 = vmatmul.mubr.bf16.gmra.mrb[0].mxu0 %v3083
        %v3365 = vpop.f32.mrb[0].mxu0
        %v3366 = vadd.f32 0.0, %v3365
        %v3367 = vpop.f32.mrb[0].mxu0
        %v3368 = vpop.f32.mrb[0].mxu0
        %v3369 = vadd.f32 0.0, %v3368
        %v3370 = vpop.f32.mrb[0].mxu0
        %3371 = vmatprep.mubr.bf16.mxu0 0
        %3372 = vmatmul.mubr.bf16.gmra.mrb[0].mxu0 %v3086
        %v3373 = vpop.f32.mrb[0].mxu0
        %v3374 = vadd.f32 0.0, %v3373
        %v3375 = vpop.f32.mrb[0].mxu0
        %v3376 = vpop.f32.mrb[0].mxu0
        %v3377 = vadd.f32 0.0, %v3376
        %v3378 = vpop.f32.mrb[0].mxu0
        %3379 = vdwg.mxu0
        %v3380 = vadd.f32 %v2698, %v3126
        %v3381 = vadd.f32 %v2699, %v3129
        %v3382 = vadd.f32 %v2700, %v3134
        %v3383 = vadd.f32 %v2701, %v3137
        %v3384 = vadd.f32 %v2702, %v3142
        %v3385 = vadd.f32 %v2703, %v3145
        %v3386 = vadd.f32 %v2704, %v3150
        %v3387 = vadd.f32 %v2705, %v3153
        %v3388 = vadd.f32 %v2706, %v3158
        %v3389 = vadd.f32 %v2707, %v3161
        %v3390 = vadd.f32 %v2708, %v3166
        %v3391 = vadd.f32 %v2709, %v3169
        %v3392 = vadd.f32 %v2710, %v3174
        %v3393 = vadd.f32 %v2711, %v3177
        %v3394 = vadd.f32 %v2712, %v3182
        %v3395 = vadd.f32 %v2713, %v3185
        %v3396 = vadd.f32 %v2714, %v3190
        %v3397 = vadd.f32 %v2715, %v3193
        %v3398 = vadd.f32 %v2716, %v3198
        %v3399 = vadd.f32 %v2717, %v3201
        %v3400 = vadd.f32 %v2718, %v3206
        %v3401 = vadd.f32 %v2719, %v3209
        %v3402 = vadd.f32 %v2720, %v3214
        %v3403 = vadd.f32 %v2721, %v3217
        %v3404 = vadd.f32 %v2722, %v3222
        %v3405 = vadd.f32 %v2723, %v3225
        %v3406 = vadd.f32 %v2724, %v3230
        %v3407 = vadd.f32 %v2725, %v3233
        %v3408 = vadd.f32 %v2726, %v3238
        %v3409 = vadd.f32 %v2727, %v3241
        %v3410 = vadd.f32 %v2728, %v3246
        %v3411 = vadd.f32 %v2729, %v3249
        %v3412 = vadd.f32 %v2730, %v3254
        %v3413 = vadd.f32 %v2731, %v3257
        %v3414 = vadd.f32 %v2732, %v3262
        %v3415 = vadd.f32 %v2733, %v3265
        %v3416 = vadd.f32 %v2734, %v3270
        %v3417 = vadd.f32 %v2735, %v3273
        %v3418 = vadd.f32 %v2736, %v3278
        %v3419 = vadd.f32 %v2737, %v3281
        %v3420 = vadd.f32 %v2738, %v3286
        %v3421 = vadd.f32 %v2739, %v3289
        %v3422 = vadd.f32 %v2740, %v3294
        %v3423 = vadd.f32 %v2741, %v3297
        %v3424 = vadd.f32 %v2742, %v3302
        %v3425 = vadd.f32 %v2743, %v3305
        %v3426 = vadd.f32 %v2744, %v3310
        %v3427 = vadd.f32 %v2745, %v3313
        %v3428 = vadd.f32 %v2746, %v3318
        %v3429 = vadd.f32 %v2747, %v3321
        %v3430 = vadd.f32 %v2748, %v3326
        %v3431 = vadd.f32 %v2749, %v3329
        %v3432 = vadd.f32 %v2750, %v3334
        %v3433 = vadd.f32 %v2751, %v3337
        %v3434 = vadd.f32 %v2752, %v3342
        %v3435 = vadd.f32 %v2753, %v3345
        %v3436 = vadd.f32 %v2754, %v3350
        %v3437 = vadd.f32 %v2755, %v3353
        %v3438 = vadd.f32 %v2756, %v3358
        %v3439 = vadd.f32 %v2757, %v3361
        %v3440 = vadd.f32 %v2758, %v3366
        %v3441 = vadd.f32 %v2759, %v3369
        %v3442 = vadd.f32 %v2760, %v3374
        %v3443 = vadd.f32 %v2761, %v3377
        %s3444 = sadd.s32 %s185, 99
        %s3445 = smul.u32 %s3444, 5
        %s3446 = smul.addr %s3445, 4
        %s3447 = scalar_lea.vmem %s182, %s3446
        %v3448 = vld [vmem:[%s3447] sm:$0xf]
        %v3449 = vld [vmem:[%s3447 + $0x4] sm:$0xf]
        %v3450 = vld [vmem:[%s3447 + $0x8] sm:$0xf]
        %v3451 = vld [vmem:[%s3447 + $0xc] sm:$0xf]
        %v3452 = vld [vmem:[%s3447 + $0x14] sm:$0xf]
        %v3453 = vld [vmem:[%s3447 + $0x18] sm:$0xf]
        %v3454 = vld [vmem:[%s3447 + $0x1c] sm:$0xf]
        %v3455 = vld [vmem:[%s3447 + $0x20] sm:$0xf]
        %v3456 = vld [vmem:[%s3447 + $0x28] sm:$0xf]
        %v3457 = vld [vmem:[%s3447 + $0x2c] sm:$0xf]
        %v3458 = vld [vmem:[%s3447 + $0x30] sm:$0xf]
        %v3459 = vld [vmem:[%s3447 + $0x34] sm:$0xf]
        %v3460 = vld [vmem:[%s3447 + $0x3c] sm:$0xf]
        %v3461 = vld [vmem:[%s3447 + $0x40] sm:$0xf]
        %v3462 = vld [vmem:[%s3447 + $0x44] sm:$0xf]
        %v3463 = vld [vmem:[%s3447 + $0x48] sm:$0xf]
        %v3464 = vld [vmem:[%s3447 + $0x50] sm:$0xf]
        %v3465 = vld [vmem:[%s3447 + $0x54] sm:$0xf]
        %v3466 = vld [vmem:[%s3447 + $0x58] sm:$0xf]
        %v3467 = vld [vmem:[%s3447 + $0x5c] sm:$0xf]
        %v3468 = vld [vmem:[%s3447 + $0x64] sm:$0xf]
        %v3469 = vld [vmem:[%s3447 + $0x68] sm:$0xf]
        %v3470 = vld [vmem:[%s3447 + $0x6c] sm:$0xf]
        %v3471 = vld [vmem:[%s3447 + $0x70] sm:$0xf]
        %v3472 = vld [vmem:[%s3447 + $0x78] sm:$0xf]
        %v3473 = vld [vmem:[%s3447 + $0x7c] sm:$0xf]
        %v3474 = vld [vmem:[%s3447 + $0x80] sm:$0xf]
        %v3475 = vld [vmem:[%s3447 + $0x84] sm:$0xf]
        %v3476 = vld [vmem:[%s3447 + $0x8c] sm:$0xf]
        %v3477 = vld [vmem:[%s3447 + $0x90] sm:$0xf]
        %v3478 = vld [vmem:[%s3447 + $0x94] sm:$0xf]
        %v3479 = vld [vmem:[%s3447 + $0x98] sm:$0xf]
        %v3480 = vld [vmem:[%s3447 + $0xa0] sm:$0xf]
        %v3481 = vld [vmem:[%s3447 + $0xa4] sm:$0xf]
        %v3482 = vld [vmem:[%s3447 + $0xa8] sm:$0xf]
        %v3483 = vld [vmem:[%s3447 + $0xac] sm:$0xf]
        %v3484 = vld [vmem:[%s3447 + $0xb4] sm:$0xf]
        %v3485 = vld [vmem:[%s3447 + $0xb8] sm:$0xf]
        %v3486 = vld [vmem:[%s3447 + $0xbc] sm:$0xf]
        %v3487 = vld [vmem:[%s3447 + $0xc0] sm:$0xf]
        %v3488 = vld [vmem:[%s3447 + $0xc8] sm:$0xf]
        %v3489 = vld [vmem:[%s3447 + $0xcc] sm:$0xf]
        %v3490 = vld [vmem:[%s3447 + $0xd0] sm:$0xf]
        %v3491 = vld [vmem:[%s3447 + $0xd4] sm:$0xf]
        %v3492 = vld [vmem:[%s3447 + $0xdc] sm:$0xf]
        %v3493 = vld [vmem:[%s3447 + $0xe0] sm:$0xf]
        %v3494 = vld [vmem:[%s3447 + $0xe4] sm:$0xf]
        %v3495 = vld [vmem:[%s3447 + $0xe8] sm:$0xf]
        %v3496 = vld [vmem:[%s3447 + $0xf0] sm:$0xf]
        %v3497 = vld [vmem:[%s3447 + $0xf4] sm:$0xf]
        %v3498 = vld [vmem:[%s3447 + $0xf8] sm:$0xf]
        %v3499 = vld [vmem:[%s3447 + $0xfc] sm:$0xf]
        %v3500 = vld [vmem:[%s3447 + $0x104] sm:$0xf]
        %v3501 = vld [vmem:[%s3447 + $0x108] sm:$0xf]
        %v3502 = vld [vmem:[%s3447 + $0x10c] sm:$0xf]
        %v3503 = vld [vmem:[%s3447 + $0x110] sm:$0xf]
        %v3504 = vld [vmem:[%s3447 + $0x118] sm:$0xf]
        %v3505 = vld [vmem:[%s3447 + $0x11c] sm:$0xf]
        %v3506 = vld [vmem:[%s3447 + $0x120] sm:$0xf]
        %v3507 = vld [vmem:[%s3447 + $0x124] sm:$0xf]
        %v3508 = vld [vmem:[%s3447 + $0x12c] sm:$0xf]
        %v3509 = vld [vmem:[%s3447 + $0x130] sm:$0xf]
        %v3510 = vld [vmem:[%s3447 + $0x134] sm:$0xf]
        %v3511 = vld [vmem:[%s3447 + $0x138] sm:$0xf]
        %s3512 = scalar_lea.vmem %s1, 8
        %v3513 = vld [vmem:[%s3512] sm:$0x3]
        %v3578 = vunpack.c.l.b16 %v3448
        %v3579 = vunpack.c.l.b16 %v3449
        %v3580 = vunpack.c.l.b16 %v3450
        %v3581 = vunpack.c.l.b16 %v3451
        %v3582 = vunpack.c.l.b16 %v3452
        %v3583 = vunpack.c.l.b16 %v3453
        %v3584 = vunpack.c.l.b16 %v3454
        %v3585 = vunpack.c.l.b16 %v3455
        %v3586 = vunpack.c.l.b16 %v3456
        %v3587 = vunpack.c.l.b16 %v3457
        %v3588 = vunpack.c.l.b16 %v3458
        %v3589 = vunpack.c.l.b16 %v3459
        %v3590 = vunpack.c.l.b16 %v3460
        %v3591 = vunpack.c.l.b16 %v3461
        %v3592 = vunpack.c.l.b16 %v3462
        %v3593 = vunpack.c.l.b16 %v3463
        %v3594 = vunpack.c.l.b16 %v3464
        %v3595 = vunpack.c.l.b16 %v3465
        %v3596 = vunpack.c.l.b16 %v3466
        %v3597 = vunpack.c.l.b16 %v3467
        %v3598 = vunpack.c.l.b16 %v3468
        %v3599 = vunpack.c.l.b16 %v3469
        %v3600 = vunpack.c.l.b16 %v3470
        %v3601 = vunpack.c.l.b16 %v3471
        %v3602 = vunpack.c.l.b16 %v3472
        %v3603 = vunpack.c.l.b16 %v3473
        %v3604 = vunpack.c.l.b16 %v3474
        %v3605 = vunpack.c.l.b16 %v3475
        %v3606 = vunpack.c.l.b16 %v3476
        %v3607 = vunpack.c.l.b16 %v3477
        %v3608 = vunpack.c.l.b16 %v3478
        %v3609 = vunpack.c.l.b16 %v3479
        %v3610 = vunpack.c.l.b16 %v3480
        %v3611 = vunpack.c.l.b16 %v3481
        %v3612 = vunpack.c.l.b16 %v3482
        %v3613 = vunpack.c.l.b16 %v3483
        %v3614 = vunpack.c.l.b16 %v3484
        %v3615 = vunpack.c.l.b16 %v3485
        %v3616 = vunpack.c.l.b16 %v3486
        %v3617 = vunpack.c.l.b16 %v3487
        %v3618 = vunpack.c.l.b16 %v3488
        %v3619 = vunpack.c.l.b16 %v3489
        %v3620 = vunpack.c.l.b16 %v3490
        %v3621 = vunpack.c.l.b16 %v3491
        %v3622 = vunpack.c.l.b16 %v3492
        %v3623 = vunpack.c.l.b16 %v3493
        %v3624 = vunpack.c.l.b16 %v3494
        %v3625 = vunpack.c.l.b16 %v3495
        %v3626 = vunpack.c.l.b16 %v3496
        %v3627 = vunpack.c.l.b16 %v3497
        %v3628 = vunpack.c.l.b16 %v3498
        %v3629 = vunpack.c.l.b16 %v3499
        %v3630 = vunpack.c.l.b16 %v3500
        %v3631 = vunpack.c.l.b16 %v3501
        %v3632 = vunpack.c.l.b16 %v3502
        %v3633 = vunpack.c.l.b16 %v3503
        %v3634 = vunpack.c.l.b16 %v3504
        %v3635 = vunpack.c.l.b16 %v3505
        %v3636 = vunpack.c.l.b16 %v3506
        %v3637 = vunpack.c.l.b16 %v3507
        %v3638 = vunpack.c.l.b16 %v3508
        %v3639 = vunpack.c.l.b16 %v3509
        %v3640 = vunpack.c.l.b16 %v3510
        %v3641 = vunpack.c.l.b16 %v3511
        %v3642 = vpack.c.b16 %v3579, %v3578
        %v3643 = vpack.c.b16 %v3581, %v3580
        %v3644 = vpack.c.b16 %v3583, %v3582
        %v3645 = vpack.c.b16 %v3585, %v3584
        %v3646 = vpack.c.b16 %v3587, %v3586
        %v3647 = vpack.c.b16 %v3589, %v3588
        %v3648 = vpack.c.b16 %v3591, %v3590
        %v3649 = vpack.c.b16 %v3593, %v3592
        %v3650 = vpack.c.b16 %v3595, %v3594
        %v3651 = vpack.c.b16 %v3597, %v3596
        %v3652 = vpack.c.b16 %v3599, %v3598
        %v3653 = vpack.c.b16 %v3601, %v3600
        %v3654 = vpack.c.b16 %v3603, %v3602
        %v3655 = vpack.c.b16 %v3605, %v3604
        %v3656 = vpack.c.b16 %v3607, %v3606
        %v3657 = vpack.c.b16 %v3609, %v3608
        %v3658 = vpack.c.b16 %v3611, %v3610
        %v3659 = vpack.c.b16 %v3613, %v3612
        %v3660 = vpack.c.b16 %v3615, %v3614
        %v3661 = vpack.c.b16 %v3617, %v3616
        %v3662 = vpack.c.b16 %v3619, %v3618
        %v3663 = vpack.c.b16 %v3621, %v3620
        %v3664 = vpack.c.b16 %v3623, %v3622
        %v3665 = vpack.c.b16 %v3625, %v3624
        %v3666 = vpack.c.b16 %v3627, %v3626
        %v3667 = vpack.c.b16 %v3629, %v3628
        %v3668 = vpack.c.b16 %v3631, %v3630
        %v3669 = vpack.c.b16 %v3633, %v3632
        %v3670 = vpack.c.b16 %v3635, %v3634
        %v3671 = vpack.c.b16 %v3637, %v3636
        %v3672 = vpack.c.b16 %v3639, %v3638
        %v3673 = vpack.c.b16 %v3641, %v3640
        %v3675 = vsel %vm484, %v3642, 0
        %v3678 = vsel %vm484, %v3643, 0
        %v3681 = vsel %vm484, %v3644, 0
        %v3684 = vsel %vm484, %v3645, 0
        %v3687 = vsel %vm484, %v3646, 0
        %v3690 = vsel %vm484, %v3647, 0
        %v3693 = vsel %vm484, %v3648, 0
        %v3696 = vsel %vm484, %v3649, 0
        %v3699 = vsel %vm484, %v3650, 0
        %v3702 = vsel %vm484, %v3651, 0
        %v3705 = vsel %vm484, %v3652, 0
        %v3708 = vsel %vm484, %v3653, 0
        %v3711 = vsel %vm484, %v3654, 0
        %v3714 = vsel %vm484, %v3655, 0
        %v3717 = vsel %vm484, %v3656, 0
        %v3720 = vsel %vm484, %v3657, 0
        %v3723 = vsel %vm484, %v3658, 0
        %v3726 = vsel %vm484, %v3659, 0
        %v3729 = vsel %vm484, %v3660, 0
        %v3732 = vsel %vm484, %v3661, 0
        %v3735 = vsel %vm484, %v3662, 0
        %v3738 = vsel %vm484, %v3663, 0
        %v3741 = vsel %vm484, %v3664, 0
        %v3744 = vsel %vm484, %v3665, 0
        %v3747 = vsel %vm484, %v3666, 0
        %v3750 = vsel %vm484, %v3667, 0
        %v3753 = vsel %vm484, %v3668, 0
        %v3756 = vsel %vm484, %v3669, 0
        %v3759 = vsel %vm484, %v3670, 0
        %v3762 = vsel %vm484, %v3671, 0
        %v3765 = vsel %vm484, %v3672, 0
        %v3768 = vsel %vm484, %v3673, 0
        %v3771 = vand.u32 %v3513, %v584
        %3773 = vmatprep.subr.bf16.mxu0 0
        %3774 = vmatpush1.bf16.msra.mxu0 %v3771
        %3775 = vmatprep.subr.bf16.mxu0 0
        %3776 = vmatpush1.bf16.msra.mxu0 0
        %3777 = vmatprep.subr.bf16.mxu0 0
        %3778 = vmatpush1.bf16.msra.mxu0 0
        %3779 = vmatprep.subr.bf16.mxu0 0
        %3780 = vmatpush1.bf16.msra.mxu0 0
        %3781 = vmatprep.subr.bf16.mxu0 0
        %3782 = vmatpush1.bf16.msra.mxu0 0
        %3783 = vmatprep.subr.bf16.mxu0 0
        %3784 = vmatpush1.bf16.msra.mxu0 0
        %3785 = vmatprep.subr.bf16.mxu0 0
        %3786 = vmatpush1.bf16.msra.mxu0 0
        %3787 = vmatprep.subr.bf16.mxu0 0
        %3788 = vmatpush1.bf16.msra.mxu0 0
        %3789 = vmatprep.subr.bf16.mxu0 0
        %3790 = vmatpush1.bf16.msra.mxu0 0
        %3791 = vmatprep.subr.bf16.mxu0 0
        %3792 = vmatpush1.bf16.msra.mxu0 0
        %3793 = vmatprep.subr.bf16.mxu0 0
        %3794 = vmatpush1.bf16.msra.mxu0 0
        %3795 = vmatprep.subr.bf16.mxu0 0
        %3796 = vmatpush1.bf16.msra.mxu0 0
        %3797 = vmatprep.subr.bf16.mxu0 0
        %3798 = vmatpush1.bf16.msra.mxu0 0
        %3799 = vmatprep.subr.bf16.mxu0 0
        %3800 = vmatpush1.bf16.msra.mxu0 0
        %3801 = vmatprep.subr.bf16.mxu0 0
        %3802 = vmatpush1.bf16.msra.mxu0 0
        %3803 = vmatprep.subr.bf16.mxu0 0
        %3804 = vmatpush1.bf16.msra.mxu0 0
        %3805 = vmatprep.mubr.bf16.mxu0 0
        %3806 = vmatmul.mubr.bf16.gmra.mrb[0].mxu0 %v3675
        %v3807 = vpop.f32.mrb[0].mxu0
        %v3808 = vadd.f32 0.0, %v3807
        %v3809 = vpop.f32.mrb[0].mxu0
        %v3810 = vpop.f32.mrb[0].mxu0
        %v3811 = vadd.f32 0.0, %v3810
        %v3812 = vpop.f32.mrb[0].mxu0
        %3813 = vmatprep.mubr.bf16.mxu0 0
        %3814 = vmatmul.mubr.bf16.gmra.mrb[0].mxu0 %v3678
        %v3815 = vpop.f32.mrb[0].mxu0
        %v3816 = vadd.f32 0.0, %v3815
        %v3817 = vpop.f32.mrb[0].mxu0
        %v3818 = vpop.f32.mrb[0].mxu0
        %v3819 = vadd.f32 0.0, %v3818
        %v3820 = vpop.f32.mrb[0].mxu0
        %3821 = vmatprep.mubr.bf16.mxu0 0
        %3822 = vmatmul.mubr.bf16.gmra.mrb[0].mxu0 %v3681
        %v3823 = vpop.f32.mrb[0].mxu0
        %v3824 = vadd.f32 0.0, %v3823
        %v3825 = vpop.f32.mrb[0].mxu0
        %v3826 = vpop.f32.mrb[0].mxu0
        %v3827 = vadd.f32 0.0, %v3826
        %v3828 = vpop.f32.mrb[0].mxu0
        %3829 = vmatprep.mubr.bf16.mxu0 0
        %3830 = vmatmul.mubr.bf16.gmra.mrb[0].mxu0 %v3684
        %v3831 = vpop.f32.mrb[0].mxu0
        %v3832 = vadd.f32 0.0, %v3831
        %v3833 = vpop.f32.mrb[0].mxu0
        %v3834 = vpop.f32.mrb[0].mxu0
        %v3835 = vadd.f32 0.0, %v3834
        %v3836 = vpop.f32.mrb[0].mxu0
        %3837 = vmatprep.mubr.bf16.mxu0 0
        %3838 = vmatmul.mubr.bf16.gmra.mrb[0].mxu0 %v3687
        %v3839 = vpop.f32.mrb[0].mxu0
        %v3840 = vadd.f32 0.0, %v3839
        %v3841 = vpop.f32.mrb[0].mxu0
        %v3842 = vpop.f32.mrb[0].mxu0
        %v3843 = vadd.f32 0.0, %v3842
        %v3844 = vpop.f32.mrb[0].mxu0
        %3845 = vmatprep.mubr.bf16.mxu0 0
        %3846 = vmatmul.mubr.bf16.gmra.mrb[0].mxu0 %v3690
        %v3847 = vpop.f32.mrb[0].mxu0
        %v3848 = vadd.f32 0.0, %v3847
        %v3849 = vpop.f32.mrb[0].mxu0
        %v3850 = vpop.f32.mrb[0].mxu0
        %v3851 = vadd.f32 0.0, %v3850
        %v3852 = vpop.f32.mrb[0].mxu0
        %3853 = vmatprep.mubr.bf16.mxu0 0
        %3854 = vmatmul.mubr.bf16.gmra.mrb[0].mxu0 %v3693
        %v3855 = vpop.f32.mrb[0].mxu0
        %v3856 = vadd.f32 0.0, %v3855
        %v3857 = vpop.f32.mrb[0].mxu0
        %v3858 = vpop.f32.mrb[0].mxu0
        %v3859 = vadd.f32 0.0, %v3858
        %v3860 = vpop.f32.mrb[0].mxu0
        %3861 = vmatprep.mubr.bf16.mxu0 0
        %3862 = vmatmul.mubr.bf16.gmra.mrb[0].mxu0 %v3696
        %v3863 = vpop.f32.mrb[0].mxu0
        %v3864 = vadd.f32 0.0, %v3863
        %v3865 = vpop.f32.mrb[0].mxu0
        %v3866 = vpop.f32.mrb[0].mxu0
        %v3867 = vadd.f32 0.0, %v3866
        %v3868 = vpop.f32.mrb[0].mxu0
        %3869 = vmatprep.mubr.bf16.mxu0 0
        %3870 = vmatmul.mubr.bf16.gmra.mrb[0].mxu0 %v3699
        %v3871 = vpop.f32.mrb[0].mxu0
        %v3872 = vadd.f32 0.0, %v3871
        %v3873 = vpop.f32.mrb[0].mxu0
        %v3874 = vpop.f32.mrb[0].mxu0
        %v3875 = vadd.f32 0.0, %v3874
        %v3876 = vpop.f32.mrb[0].mxu0
        %3877 = vmatprep.mubr.bf16.mxu0 0
        %3878 = vmatmul.mubr.bf16.gmra.mrb[0].mxu0 %v3702
        %v3879 = vpop.f32.mrb[0].mxu0
        %v3880 = vadd.f32 0.0, %v3879
        %v3881 = vpop.f32.mrb[0].mxu0
        %v3882 = vpop.f32.mrb[0].mxu0
        %v3883 = vadd.f32 0.0, %v3882
        %v3884 = vpop.f32.mrb[0].mxu0
        %3885 = vmatprep.mubr.bf16.mxu0 0
        %3886 = vmatmul.mubr.bf16.gmra.mrb[0].mxu0 %v3705
        %v3887 = vpop.f32.mrb[0].mxu0
        %v3888 = vadd.f32 0.0, %v3887
        %v3889 = vpop.f32.mrb[0].mxu0
        %v3890 = vpop.f32.mrb[0].mxu0
        %v3891 = vadd.f32 0.0, %v3890
        %v3892 = vpop.f32.mrb[0].mxu0
        %3893 = vmatprep.mubr.bf16.mxu0 0
        %3894 = vmatmul.mubr.bf16.gmra.mrb[0].mxu0 %v3708
        %v3895 = vpop.f32.mrb[0].mxu0
        %v3896 = vadd.f32 0.0, %v3895
        %v3897 = vpop.f32.mrb[0].mxu0
        %v3898 = vpop.f32.mrb[0].mxu0
        %v3899 = vadd.f32 0.0, %v3898
        %v3900 = vpop.f32.mrb[0].mxu0
        %3901 = vmatprep.mubr.bf16.mxu0 0
        %3902 = vmatmul.mubr.bf16.gmra.mrb[0].mxu0 %v3711
        %v3903 = vpop.f32.mrb[0].mxu0
        %v3904 = vadd.f32 0.0, %v3903
        %v3905 = vpop.f32.mrb[0].mxu0
        %v3906 = vpop.f32.mrb[0].mxu0
        %v3907 = vadd.f32 0.0, %v3906
        %v3908 = vpop.f32.mrb[0].mxu0
        %3909 = vmatprep.mubr.bf16.mxu0 0
        %3910 = vmatmul.mubr.bf16.gmra.mrb[0].mxu0 %v3714
        %v3911 = vpop.f32.mrb[0].mxu0
        %v3912 = vadd.f32 0.0, %v3911
        %v3913 = vpop.f32.mrb[0].mxu0
        %v3914 = vpop.f32.mrb[0].mxu0
        %v3915 = vadd.f32 0.0, %v3914
        %v3916 = vpop.f32.mrb[0].mxu0
        %3917 = vmatprep.mubr.bf16.mxu0 0
        %3918 = vmatmul.mubr.bf16.gmra.mrb[0].mxu0 %v3717
        %v3919 = vpop.f32.mrb[0].mxu0
        %v3920 = vadd.f32 0.0, %v3919
        %v3921 = vpop.f32.mrb[0].mxu0
        %v3922 = vpop.f32.mrb[0].mxu0
        %v3923 = vadd.f32 0.0, %v3922
        %v3924 = vpop.f32.mrb[0].mxu0
        %3925 = vmatprep.mubr.bf16.mxu0 0
        %3926 = vmatmul.mubr.bf16.gmra.mrb[0].mxu0 %v3720
        %v3927 = vpop.f32.mrb[0].mxu0
        %v3928 = vadd.f32 0.0, %v3927
        %v3929 = vpop.f32.mrb[0].mxu0
        %v3930 = vpop.f32.mrb[0].mxu0
        %v3931 = vadd.f32 0.0, %v3930
        %v3932 = vpop.f32.mrb[0].mxu0
        %3933 = vmatprep.mubr.bf16.mxu0 0
        %3934 = vmatmul.mubr.bf16.gmra.mrb[0].mxu0 %v3723
        %v3935 = vpop.f32.mrb[0].mxu0
        %v3936 = vadd.f32 0.0, %v3935
        %v3937 = vpop.f32.mrb[0].mxu0
        %v3938 = vpop.f32.mrb[0].mxu0
        %v3939 = vadd.f32 0.0, %v3938
        %v3940 = vpop.f32.mrb[0].mxu0
        %3941 = vmatprep.mubr.bf16.mxu0 0
        %3942 = vmatmul.mubr.bf16.gmra.mrb[0].mxu0 %v3726
        %v3943 = vpop.f32.mrb[0].mxu0
        %v3944 = vadd.f32 0.0, %v3943
        %v3945 = vpop.f32.mrb[0].mxu0
        %v3946 = vpop.f32.mrb[0].mxu0
        %v3947 = vadd.f32 0.0, %v3946
        %v3948 = vpop.f32.mrb[0].mxu0
        %3949 = vmatprep.mubr.bf16.mxu0 0
        %3950 = vmatmul.mubr.bf16.gmra.mrb[0].mxu0 %v3729
        %v3951 = vpop.f32.mrb[0].mxu0
        %v3952 = vadd.f32 0.0, %v3951
        %v3953 = vpop.f32.mrb[0].mxu0
        %v3954 = vpop.f32.mrb[0].mxu0
        %v3955 = vadd.f32 0.0, %v3954
        %v3956 = vpop.f32.mrb[0].mxu0
        %3957 = vmatprep.mubr.bf16.mxu0 0
        %3958 = vmatmul.mubr.bf16.gmra.mrb[0].mxu0 %v3732
        %v3959 = vpop.f32.mrb[0].mxu0
        %v3960 = vadd.f32 0.0, %v3959
        %v3961 = vpop.f32.mrb[0].mxu0
        %v3962 = vpop.f32.mrb[0].mxu0
        %v3963 = vadd.f32 0.0, %v3962
        %v3964 = vpop.f32.mrb[0].mxu0
        %3965 = vmatprep.mubr.bf16.mxu0 0
        %3966 = vmatmul.mubr.bf16.gmra.mrb[0].mxu0 %v3735
        %v3967 = vpop.f32.mrb[0].mxu0
        %v3968 = vadd.f32 0.0, %v3967
        %v3969 = vpop.f32.mrb[0].mxu0
        %v3970 = vpop.f32.mrb[0].mxu0
        %v3971 = vadd.f32 0.0, %v3970
        %v3972 = vpop.f32.mrb[0].mxu0
        %3973 = vmatprep.mubr.bf16.mxu0 0
        %3974 = vmatmul.mubr.bf16.gmra.mrb[0].mxu0 %v3738
        %v3975 = vpop.f32.mrb[0].mxu0
        %v3976 = vadd.f32 0.0, %v3975
        %v3977 = vpop.f32.mrb[0].mxu0
        %v3978 = vpop.f32.mrb[0].mxu0
        %v3979 = vadd.f32 0.0, %v3978
        %v3980 = vpop.f32.mrb[0].mxu0
        %3981 = vmatprep.mubr.bf16.mxu0 0
        %3982 = vmatmul.mubr.bf16.gmra.mrb[0].mxu0 %v3741
        %v3983 = vpop.f32.mrb[0].mxu0
        %v3984 = vadd.f32 0.0, %v3983
        %v3985 = vpop.f32.mrb[0].mxu0
        %v3986 = vpop.f32.mrb[0].mxu0
        %v3987 = vadd.f32 0.0, %v3986
        %v3988 = vpop.f32.mrb[0].mxu0
        %3989 = vmatprep.mubr.bf16.mxu0 0
        %3990 = vmatmul.mubr.bf16.gmra.mrb[0].mxu0 %v3744
        %v3991 = vpop.f32.mrb[0].mxu0
        %v3992 = vadd.f32 0.0, %v3991
        %v3993 = vpop.f32.mrb[0].mxu0
        %v3994 = vpop.f32.mrb[0].mxu0
        %v3995 = vadd.f32 0.0, %v3994
        %v3996 = vpop.f32.mrb[0].mxu0
        %3997 = vmatprep.mubr.bf16.mxu0 0
        %3998 = vmatmul.mubr.bf16.gmra.mrb[0].mxu0 %v3747
        %v3999 = vpop.f32.mrb[0].mxu0
        %v4000 = vadd.f32 0.0, %v3999
        %v4001 = vpop.f32.mrb[0].mxu0
        %v4002 = vpop.f32.mrb[0].mxu0
        %v4003 = vadd.f32 0.0, %v4002
        %v4004 = vpop.f32.mrb[0].mxu0
        %4005 = vmatprep.mubr.bf16.mxu0 0
        %4006 = vmatmul.mubr.bf16.gmra.mrb[0].mxu0 %v3750
        %v4007 = vpop.f32.mrb[0].mxu0
        %v4008 = vadd.f32 0.0, %v4007
        %v4009 = vpop.f32.mrb[0].mxu0
        %v4010 = vpop.f32.mrb[0].mxu0
        %v4011 = vadd.f32 0.0, %v4010
        %v4012 = vpop.f32.mrb[0].mxu0
        %4013 = vmatprep.mubr.bf16.mxu0 0
        %4014 = vmatmul.mubr.bf16.gmra.mrb[0].mxu0 %v3753
        %v4015 = vpop.f32.mrb[0].mxu0
        %v4016 = vadd.f32 0.0, %v4015
        %v4017 = vpop.f32.mrb[0].mxu0
        %v4018 = vpop.f32.mrb[0].mxu0
        %v4019 = vadd.f32 0.0, %v4018
        %v4020 = vpop.f32.mrb[0].mxu0
        %4021 = vmatprep.mubr.bf16.mxu0 0
        %4022 = vmatmul.mubr.bf16.gmra.mrb[0].mxu0 %v3756
        %v4023 = vpop.f32.mrb[0].mxu0
        %v4024 = vadd.f32 0.0, %v4023
        %v4025 = vpop.f32.mrb[0].mxu0
        %v4026 = vpop.f32.mrb[0].mxu0
        %v4027 = vadd.f32 0.0, %v4026
        %v4028 = vpop.f32.mrb[0].mxu0
        %4029 = vmatprep.mubr.bf16.mxu0 0
        %4030 = vmatmul.mubr.bf16.gmra.mrb[0].mxu0 %v3759
        %v4031 = vpop.f32.mrb[0].mxu0
        %v4032 = vadd.f32 0.0, %v4031
        %v4033 = vpop.f32.mrb[0].mxu0
        %v4034 = vpop.f32.mrb[0].mxu0
        %v4035 = vadd.f32 0.0, %v4034
        %v4036 = vpop.f32.mrb[0].mxu0
        %4037 = vmatprep.mubr.bf16.mxu0 0
        %4038 = vmatmul.mubr.bf16.gmra.mrb[0].mxu0 %v3762
        %v4039 = vpop.f32.mrb[0].mxu0
        %v4040 = vadd.f32 0.0, %v4039
        %v4041 = vpop.f32.mrb[0].mxu0
        %v4042 = vpop.f32.mrb[0].mxu0
        %v4043 = vadd.f32 0.0, %v4042
        %v4044 = vpop.f32.mrb[0].mxu0
        %4045 = vmatprep.mubr.bf16.mxu0 0
        %4046 = vmatmul.mubr.bf16.gmra.mrb[0].mxu0 %v3765
        %v4047 = vpop.f32.mrb[0].mxu0
        %v4048 = vadd.f32 0.0, %v4047
        %v4049 = vpop.f32.mrb[0].mxu0
        %v4050 = vpop.f32.mrb[0].mxu0
        %v4051 = vadd.f32 0.0, %v4050
        %v4052 = vpop.f32.mrb[0].mxu0
        %4053 = vmatprep.mubr.bf16.mxu0 0
        %4054 = vmatmul.mubr.bf16.gmra.mrb[0].mxu0 %v3768
        %v4055 = vpop.f32.mrb[0].mxu0
        %v4056 = vadd.f32 0.0, %v4055
        %v4057 = vpop.f32.mrb[0].mxu0
        %v4058 = vpop.f32.mrb[0].mxu0
        %v4059 = vadd.f32 0.0, %v4058
        %v4060 = vpop.f32.mrb[0].mxu0
        %4061 = vdwg.mxu0
        %v4062 = vadd.f32 %v3380, %v3808
        %v4063 = vadd.f32 %v3381, %v3811
        %v4064 = vadd.f32 %v3382, %v3816
        %v4065 = vadd.f32 %v3383, %v3819
        %v4066 = vadd.f32 %v3384, %v3824
        %v4067 = vadd.f32 %v3385, %v3827
        %v4068 = vadd.f32 %v3386, %v3832
        %v4069 = vadd.f32 %v3387, %v3835
        %v4070 = vadd.f32 %v3388, %v3840
        %v4071 = vadd.f32 %v3389, %v3843
        %v4072 = vadd.f32 %v3390, %v3848
        %v4073 = vadd.f32 %v3391, %v3851
        %v4074 = vadd.f32 %v3392, %v3856
        %v4075 = vadd.f32 %v3393, %v3859
        %v4076 = vadd.f32 %v3394, %v3864
        %v4077 = vadd.f32 %v3395, %v3867
        %v4078 = vadd.f32 %v3396, %v3872
        %v4079 = vadd.f32 %v3397, %v3875
        %v4080 = vadd.f32 %v3398, %v3880
        %v4081 = vadd.f32 %v3399, %v3883
        %v4082 = vadd.f32 %v3400, %v3888
        %v4083 = vadd.f32 %v3401, %v3891
        %v4084 = vadd.f32 %v3402, %v3896
        %v4085 = vadd.f32 %v3403, %v3899
        %v4086 = vadd.f32 %v3404, %v3904
        %v4087 = vadd.f32 %v3405, %v3907
        %v4088 = vadd.f32 %v3406, %v3912
        %v4089 = vadd.f32 %v3407, %v3915
        %v4090 = vadd.f32 %v3408, %v3920
        %v4091 = vadd.f32 %v3409, %v3923
        %v4092 = vadd.f32 %v3410, %v3928
        %v4093 = vadd.f32 %v3411, %v3931
        %v4094 = vadd.f32 %v3412, %v3936
        %v4095 = vadd.f32 %v3413, %v3939
        %v4096 = vadd.f32 %v3414, %v3944
        %v4097 = vadd.f32 %v3415, %v3947
        %v4098 = vadd.f32 %v3416, %v3952
        %v4099 = vadd.f32 %v3417, %v3955
        %v4100 = vadd.f32 %v3418, %v3960
        %v4101 = vadd.f32 %v3419, %v3963
        %v4102 = vadd.f32 %v3420, %v3968
        %v4103 = vadd.f32 %v3421, %v3971
        %v4104 = vadd.f32 %v3422, %v3976
        %v4105 = vadd.f32 %v3423, %v3979
        %v4106 = vadd.f32 %v3424, %v3984
        %v4107 = vadd.f32 %v3425, %v3987
        %v4108 = vadd.f32 %v3426, %v3992
        %v4109 = vadd.f32 %v3427, %v3995
        %v4110 = vadd.f32 %v3428, %v4000
        %v4111 = vadd.f32 %v3429, %v4003
        %v4112 = vadd.f32 %v3430, %v4008
        %v4113 = vadd.f32 %v3431, %v4011
        %v4114 = vadd.f32 %v3432, %v4016
        %v4115 = vadd.f32 %v3433, %v4019
        %v4116 = vadd.f32 %v3434, %v4024
        %v4117 = vadd.f32 %v3435, %v4027
        %v4118 = vadd.f32 %v3436, %v4032
        %v4119 = vadd.f32 %v3437, %v4035
        %v4120 = vadd.f32 %v3438, %v4040
        %v4121 = vadd.f32 %v3439, %v4043
        %v4122 = vadd.f32 %v3440, %v4048
        %v4123 = vadd.f32 %v3441, %v4051
        %v4124 = vadd.f32 %v3442, %v4056
        %v4125 = vadd.f32 %v3443, %v4059
        %v4126 = vld [vmem:[%s2765] sm:$0xf]
        %v4127 = vld [vmem:[%s2765 + $0x4] sm:$0xf]
        %v4128 = vld [vmem:[%s2765 + $0x8] sm:$0xf]
        %v4129 = vld [vmem:[%s2765 + $0xc] sm:$0xf]
        %v4130 = vld [vmem:[%s2765 + $0x10] sm:$0x1]
        %v4131 = vld [vmem:[%s2765 + $0x14] sm:$0xf]
        %v4132 = vld [vmem:[%s2765 + $0x18] sm:$0xf]
        %v4133 = vld [vmem:[%s2765 + $0x1c] sm:$0xf]
        %v4134 = vld [vmem:[%s2765 + $0x20] sm:$0xf]
        %v4135 = vld [vmem:[%s2765 + $0x24] sm:$0x1]
        %v4136 = vld [vmem:[%s2765 + $0x28] sm:$0xf]
        %v4137 = vld [vmem:[%s2765 + $0x2c] sm:$0xf]
        %v4138 = vld [vmem:[%s2765 + $0x30] sm:$0xf]
        %v4139 = vld [vmem:[%s2765 + $0x34] sm:$0xf]
        %v4140 = vld [vmem:[%s2765 + $0x38] sm:$0x1]
        %v4141 = vld [vmem:[%s2765 + $0x3c] sm:$0xf]
        %v4142 = vld [vmem:[%s2765 + $0x40] sm:$0xf]
        %v4143 = vld [vmem:[%s2765 + $0x44] sm:$0xf]
        %v4144 = vld [vmem:[%s2765 + $0x48] sm:$0xf]
        %v4145 = vld [vmem:[%s2765 + $0x4c] sm:$0x1]
        %v4146 = vld [vmem:[%s2765 + $0x50] sm:$0xf]
        %v4147 = vld [vmem:[%s2765 + $0x54] sm:$0xf]
        %v4148 = vld [vmem:[%s2765 + $0x58] sm:$0xf]
        %v4149 = vld [vmem:[%s2765 + $0x5c] sm:$0xf]
        %v4150 = vld [vmem:[%s2765 + $0x60] sm:$0x1]
        %v4151 = vld [vmem:[%s2765 + $0x64] sm:$0xf]
        %v4152 = vld [vmem:[%s2765 + $0x68] sm:$0xf]
        %v4153 = vld [vmem:[%s2765 + $0x6c] sm:$0xf]
        %v4154 = vld [vmem:[%s2765 + $0x70] sm:$0xf]
        %v4155 = vld [vmem:[%s2765 + $0x74] sm:$0x1]
        %v4156 = vld [vmem:[%s2765 + $0x78] sm:$0xf]
        %v4157 = vld [vmem:[%s2765 + $0x7c] sm:$0xf]
        %v4158 = vld [vmem:[%s2765 + $0x80] sm:$0xf]
        %v4159 = vld [vmem:[%s2765 + $0x84] sm:$0xf]
        %v4160 = vld [vmem:[%s2765 + $0x88] sm:$0x1]
        %v4161 = vld [vmem:[%s2765 + $0x8c] sm:$0xf]
        %v4162 = vld [vmem:[%s2765 + $0x90] sm:$0xf]
        %v4163 = vld [vmem:[%s2765 + $0x94] sm:$0xf]
        %v4164 = vld [vmem:[%s2765 + $0x98] sm:$0xf]
        %v4165 = vld [vmem:[%s2765 + $0x9c] sm:$0x1]
        %v4166 = vld [vmem:[%s2765 + $0xa0] sm:$0xf]
        %v4167 = vld [vmem:[%s2765 + $0xa4] sm:$0xf]
        %v4168 = vld [vmem:[%s2765 + $0xa8] sm:$0xf]
        %v4169 = vld [vmem:[%s2765 + $0xac] sm:$0xf]
        %v4170 = vld [vmem:[%s2765 + $0xb0] sm:$0x1]
        %v4171 = vld [vmem:[%s2765 + $0xb4] sm:$0xf]
        %v4172 = vld [vmem:[%s2765 + $0xb8] sm:$0xf]
        %v4173 = vld [vmem:[%s2765 + $0xbc] sm:$0xf]
        %v4174 = vld [vmem:[%s2765 + $0xc0] sm:$0xf]
        %v4175 = vld [vmem:[%s2765 + $0xc4] sm:$0x1]
        %v4176 = vld [vmem:[%s2765 + $0xc8] sm:$0xf]
        %v4177 = vld [vmem:[%s2765 + $0xcc] sm:$0xf]
        %v4178 = vld [vmem:[%s2765 + $0xd0] sm:$0xf]
        %v4179 = vld [vmem:[%s2765 + $0xd4] sm:$0xf]
        %v4180 = vld [vmem:[%s2765 + $0xd8] sm:$0x1]
        %v4181 = vld [vmem:[%s2765 + $0xdc] sm:$0xf]
        %v4182 = vld [vmem:[%s2765 + $0xe0] sm:$0xf]
        %v4183 = vld [vmem:[%s2765 + $0xe4] sm:$0xf]
        %v4184 = vld [vmem:[%s2765 + $0xe8] sm:$0xf]
        %v4185 = vld [vmem:[%s2765 + $0xec] sm:$0x1]
        %v4186 = vld [vmem:[%s2765 + $0xf0] sm:$0xf]
        %v4187 = vld [vmem:[%s2765 + $0xf4] sm:$0xf]
        %v4188 = vld [vmem:[%s2765 + $0xf8] sm:$0xf]
        %v4189 = vld [vmem:[%s2765 + $0xfc] sm:$0xf]
        %v4190 = vld [vmem:[%s2765 + $0x100] sm:$0x1]
        %v4191 = vld [vmem:[%s2765 + $0x104] sm:$0xf]
        %v4192 = vld [vmem:[%s2765 + $0x108] sm:$0xf]
        %v4193 = vld [vmem:[%s2765 + $0x10c] sm:$0xf]
        %v4194 = vld [vmem:[%s2765 + $0x110] sm:$0xf]
        %v4195 = vld [vmem:[%s2765 + $0x114] sm:$0x1]
        %v4196 = vld [vmem:[%s2765 + $0x118] sm:$0xf]
        %v4197 = vld [vmem:[%s2765 + $0x11c] sm:$0xf]
        %v4198 = vld [vmem:[%s2765 + $0x120] sm:$0xf]
        %v4199 = vld [vmem:[%s2765 + $0x124] sm:$0xf]
        %v4200 = vld [vmem:[%s2765 + $0x128] sm:$0x1]
        %v4201 = vld [vmem:[%s2765 + $0x12c] sm:$0xf]
        %v4202 = vld [vmem:[%s2765 + $0x130] sm:$0xf]
        %v4203 = vld [vmem:[%s2765 + $0x134] sm:$0xf]
        %v4204 = vld [vmem:[%s2765 + $0x138] sm:$0xf]
        %v4205 = vld [vmem:[%s2765 + $0x13c] sm:$0x1]
        %v4207 = vshrl.u32 %v4126, 16
        %v4209 = vrot.slane %v4207, 4
        %v4210 = vshll.u32 %v4126, 16
        %v4212 = vrot.slane %v4210, 5
        %v4213 = vor.u32 %v4209, %v4212
        %v4214 = vrot.slane %v4213, 4
        %v4216 = vshll.u32 %v4127, 16
        %v4218 = vrot.slane %v4216, 5
        %v4219 = vsel %vm1507, %v4214, %v4218
        %v4220 = vshrl.u32 %v4127, 16
        %v4222 = vrot.slane %v4220, 4
        %v4223 = vor.u32 %v4222, %v4218
        %v4224 = vrot.slane %v4223, 4
        %v4226 = vshll.u32 %v4128, 16
        %v4228 = vrot.slane %v4226, 5
        %v4229 = vsel %vm1507, %v4224, %v4228
        %v4230 = vshrl.u32 %v4128, 16
        %v4232 = vrot.slane %v4230, 4
        %v4233 = vor.u32 %v4232, %v4228
        %v4234 = vrot.slane %v4233, 4
        %v4236 = vshll.u32 %v4129, 16
        %v4238 = vrot.slane %v4236, 5
        %v4239 = vsel %vm1507, %v4234, %v4238
        %v4240 = vshrl.u32 %v4129, 16
        %v4242 = vrot.slane %v4240, 4
        %v4243 = vor.u32 %v4242, %v4238
        %v4244 = vrot.slane %v4243, 4
        %v4246 = vshll.u32 %v4130, 16
        %v4248 = vrot.slane %v4246, 5
        %v4249 = vsel %vm1507, %v4244, %v4248
        %v4251 = vshrl.u32 %v4131, 16
        %v4253 = vrot.slane %v4251, 4
        %v4254 = vshll.u32 %v4131, 16
        %v4256 = vrot.slane %v4254, 5
        %v4257 = vor.u32 %v4253, %v4256
        %v4258 = vrot.slane %v4257, 4
        %v4260 = vshll.u32 %v4132, 16
        %v4262 = vrot.slane %v4260, 5
        %v4263 = vsel %vm1507, %v4258, %v4262
        %v4264 = vshrl.u32 %v4132, 16
        %v4266 = vrot.slane %v4264, 4
        %v4267 = vor.u32 %v4266, %v4262
        %v4268 = vrot.slane %v4267, 4
        %v4270 = vshll.u32 %v4133, 16
        %v4272 = vrot.slane %v4270, 5
        %v4273 = vsel %vm1507, %v4268, %v4272
        %v4274 = vshrl.u32 %v4133, 16
        %v4276 = vrot.slane %v4274, 4
        %v4277 = vor.u32 %v4276, %v4272
        %v4278 = vrot.slane %v4277, 4
        %v4280 = vshll.u32 %v4134, 16
        %v4282 = vrot.slane %v4280, 5
        %v4283 = vsel %vm1507, %v4278, %v4282
        %v4284 = vshrl.u32 %v4134, 16
        %v4286 = vrot.slane %v4284, 4
        %v4287 = vor.u32 %v4286, %v4282
        %v4288 = vrot.slane %v4287, 4
        %v4290 = vshll.u32 %v4135, 16
        %v4292 = vrot.slane %v4290, 5
        %v4293 = vsel %vm1507, %v4288, %v4292
        %v4295 = vshrl.u32 %v4136, 16
        %v4297 = vrot.slane %v4295, 4
        %v4298 = vshll.u32 %v4136, 16
        %v4300 = vrot.slane %v4298, 5
        %v4301 = vor.u32 %v4297, %v4300
        %v4302 = vrot.slane %v4301, 4
        %v4304 = vshll.u32 %v4137, 16
        %v4306 = vrot.slane %v4304, 5
        %v4307 = vsel %vm1507, %v4302, %v4306
        %v4308 = vshrl.u32 %v4137, 16
        %v4310 = vrot.slane %v4308, 4
        %v4311 = vor.u32 %v4310, %v4306
        %v4312 = vrot.slane %v4311, 4
        %v4314 = vshll.u32 %v4138, 16
        %v4316 = vrot.slane %v4314, 5
        %v4317 = vsel %vm1507, %v4312, %v4316
        %v4318 = vshrl.u32 %v4138, 16
        %v4320 = vrot.slane %v4318, 4
        %v4321 = vor.u32 %v4320, %v4316
        %v4322 = vrot.slane %v4321, 4
        %v4324 = vshll.u32 %v4139, 16
        %v4326 = vrot.slane %v4324, 5
        %v4327 = vsel %vm1507, %v4322, %v4326
        %v4328 = vshrl.u32 %v4139, 16
        %v4330 = vrot.slane %v4328, 4
        %v4331 = vor.u32 %v4330, %v4326
        %v4332 = vrot.slane %v4331, 4
        %v4334 = vshll.u32 %v4140, 16
        %v4336 = vrot.slane %v4334, 5
        %v4337 = vsel %vm1507, %v4332, %v4336
        %v4339 = vshrl.u32 %v4141, 16
        %v4341 = vrot.slane %v4339, 4
        %v4342 = vshll.u32 %v4141, 16
        %v4344 = vrot.slane %v4342, 5
        %v4345 = vor.u32 %v4341, %v4344
        %v4346 = vrot.slane %v4345, 4
        %v4348 = vshll.u32 %v4142, 16
        %v4350 = vrot.slane %v4348, 5
        %v4351 = vsel %vm1507, %v4346, %v4350
        %v4352 = vshrl.u32 %v4142, 16
        %v4354 = vrot.slane %v4352, 4
        %v4355 = vor.u32 %v4354, %v4350
        %v4356 = vrot.slane %v4355, 4
        %v4358 = vshll.u32 %v4143, 16
        %v4360 = vrot.slane %v4358, 5
        %v4361 = vsel %vm1507, %v4356, %v4360
        %v4362 = vshrl.u32 %v4143, 16
        %v4364 = vrot.slane %v4362, 4
        %v4365 = vor.u32 %v4364, %v4360
        %v4366 = vrot.slane %v4365, 4
        %v4368 = vshll.u32 %v4144, 16
        %v4370 = vrot.slane %v4368, 5
        %v4371 = vsel %vm1507, %v4366, %v4370
        %v4372 = vshrl.u32 %v4144, 16
        %v4374 = vrot.slane %v4372, 4
        %v4375 = vor.u32 %v4374, %v4370
        %v4376 = vrot.slane %v4375, 4
        %v4378 = vshll.u32 %v4145, 16
        %v4380 = vrot.slane %v4378, 5
        %v4381 = vsel %vm1507, %v4376, %v4380
        %v4383 = vshrl.u32 %v4146, 16
        %v4385 = vrot.slane %v4383, 4
        %v4386 = vshll.u32 %v4146, 16
        %v4388 = vrot.slane %v4386, 5
        %v4389 = vor.u32 %v4385, %v4388
        %v4390 = vrot.slane %v4389, 4
        %v4392 = vshll.u32 %v4147, 16
        %v4394 = vrot.slane %v4392, 5
        %v4395 = vsel %vm1507, %v4390, %v4394
        %v4396 = vshrl.u32 %v4147, 16
        %v4398 = vrot.slane %v4396, 4
        %v4399 = vor.u32 %v4398, %v4394
        %v4400 = vrot.slane %v4399, 4
        %v4402 = vshll.u32 %v4148, 16
        %v4404 = vrot.slane %v4402, 5
        %v4405 = vsel %vm1507, %v4400, %v4404
        %v4406 = vshrl.u32 %v4148, 16
        %v4408 = vrot.slane %v4406, 4
        %v4409 = vor.u32 %v4408, %v4404
        %v4410 = vrot.slane %v4409, 4
        %v4412 = vshll.u32 %v4149, 16
        %v4414 = vrot.slane %v4412, 5
        %v4415 = vsel %vm1507, %v4410, %v4414
        %v4416 = vshrl.u32 %v4149, 16
        %v4418 = vrot.slane %v4416, 4
        %v4419 = vor.u32 %v4418, %v4414
        %v4420 = vrot.slane %v4419, 4
        %v4422 = vshll.u32 %v4150, 16
        %v4424 = vrot.slane %v4422, 5
        %v4425 = vsel %vm1507, %v4420, %v4424
        %v4427 = vshrl.u32 %v4151, 16
        %v4429 = vrot.slane %v4427, 4
        %v4430 = vshll.u32 %v4151, 16
        %v4432 = vrot.slane %v4430, 5
        %v4433 = vor.u32 %v4429, %v4432
        %v4434 = vrot.slane %v4433, 4
        %v4436 = vshll.u32 %v4152, 16
        %v4438 = vrot.slane %v4436, 5
        %v4439 = vsel %vm1507, %v4434, %v4438
        %v4440 = vshrl.u32 %v4152, 16
        %v4442 = vrot.slane %v4440, 4
        %v4443 = vor.u32 %v4442, %v4438
        %v4444 = vrot.slane %v4443, 4
        %v4446 = vshll.u32 %v4153, 16
        %v4448 = vrot.slane %v4446, 5
        %v4449 = vsel %vm1507, %v4444, %v4448
        %v4450 = vshrl.u32 %v4153, 16
        %v4452 = vrot.slane %v4450, 4
        %v4453 = vor.u32 %v4452, %v4448
        %v4454 = vrot.slane %v4453, 4
        %v4456 = vshll.u32 %v4154, 16
        %v4458 = vrot.slane %v4456, 5
        %v4459 = vsel %vm1507, %v4454, %v4458
        %v4460 = vshrl.u32 %v4154, 16
        %v4462 = vrot.slane %v4460, 4
        %v4463 = vor.u32 %v4462, %v4458
        %v4464 = vrot.slane %v4463, 4
        %v4466 = vshll.u32 %v4155, 16
        %v4468 = vrot.slane %v4466, 5
        %v4469 = vsel %vm1507, %v4464, %v4468
        %v4471 = vshrl.u32 %v4156, 16
        %v4473 = vrot.slane %v4471, 4
        %v4474 = vshll.u32 %v4156, 16
        %v4476 = vrot.slane %v4474, 5
        %v4477 = vor.u32 %v4473, %v4476
        %v4478 = vrot.slane %v4477, 4
        %v4480 = vshll.u32 %v4157, 16
        %v4482 = vrot.slane %v4480, 5
        %v4483 = vsel %vm1507, %v4478, %v4482
        %v4484 = vshrl.u32 %v4157, 16
        %v4486 = vrot.slane %v4484, 4
        %v4487 = vor.u32 %v4486, %v4482
        %v4488 = vrot.slane %v4487, 4
        %v4490 = vshll.u32 %v4158, 16
        %v4492 = vrot.slane %v4490, 5
        %v4493 = vsel %vm1507, %v4488, %v4492
        %v4494 = vshrl.u32 %v4158, 16
        %v4496 = vrot.slane %v4494, 4
        %v4497 = vor.u32 %v4496, %v4492
        %v4498 = vrot.slane %v4497, 4
        %v4500 = vshll.u32 %v4159, 16
        %v4502 = vrot.slane %v4500, 5
        %v4503 = vsel %vm1507, %v4498, %v4502
        %v4504 = vshrl.u32 %v4159, 16
        %v4506 = vrot.slane %v4504, 4
        %v4507 = vor.u32 %v4506, %v4502
        %v4508 = vrot.slane %v4507, 4
        %v4510 = vshll.u32 %v4160, 16
        %v4512 = vrot.slane %v4510, 5
        %v4513 = vsel %vm1507, %v4508, %v4512
        %v4515 = vshrl.u32 %v4161, 16
        %v4517 = vrot.slane %v4515, 4
        %v4518 = vshll.u32 %v4161, 16
        %v4520 = vrot.slane %v4518, 5
        %v4521 = vor.u32 %v4517, %v4520
        %v4522 = vrot.slane %v4521, 4
        %v4524 = vshll.u32 %v4162, 16
        %v4526 = vrot.slane %v4524, 5
        %v4527 = vsel %vm1507, %v4522, %v4526
        %v4528 = vshrl.u32 %v4162, 16
        %v4530 = vrot.slane %v4528, 4
        %v4531 = vor.u32 %v4530, %v4526
        %v4532 = vrot.slane %v4531, 4
        %v4534 = vshll.u32 %v4163, 16
        %v4536 = vrot.slane %v4534, 5
        %v4537 = vsel %vm1507, %v4532, %v4536
        %v4538 = vshrl.u32 %v4163, 16
        %v4540 = vrot.slane %v4538, 4
        %v4541 = vor.u32 %v4540, %v4536
        %v4542 = vrot.slane %v4541, 4
        %v4544 = vshll.u32 %v4164, 16
        %v4546 = vrot.slane %v4544, 5
        %v4547 = vsel %vm1507, %v4542, %v4546
        %v4548 = vshrl.u32 %v4164, 16
        %v4550 = vrot.slane %v4548, 4
        %v4551 = vor.u32 %v4550, %v4546
        %v4552 = vrot.slane %v4551, 4
        %v4554 = vshll.u32 %v4165, 16
        %v4556 = vrot.slane %v4554, 5
        %v4557 = vsel %vm1507, %v4552, %v4556
        %v4559 = vshrl.u32 %v4166, 16
        %v4561 = vrot.slane %v4559, 4
        %v4562 = vshll.u32 %v4166, 16
        %v4564 = vrot.slane %v4562, 5
        %v4565 = vor.u32 %v4561, %v4564
        %v4566 = vrot.slane %v4565, 4
        %v4568 = vshll.u32 %v4167, 16
        %v4570 = vrot.slane %v4568, 5
        %v4571 = vsel %vm1507, %v4566, %v4570
        %v4572 = vshrl.u32 %v4167, 16
        %v4574 = vrot.slane %v4572, 4
        %v4575 = vor.u32 %v4574, %v4570
        %v4576 = vrot.slane %v4575, 4
        %v4578 = vshll.u32 %v4168, 16
        %v4580 = vrot.slane %v4578, 5
        %v4581 = vsel %vm1507, %v4576, %v4580
        %v4582 = vshrl.u32 %v4168, 16
        %v4584 = vrot.slane %v4582, 4
        %v4585 = vor.u32 %v4584, %v4580
        %v4586 = vrot.slane %v4585, 4
        %v4588 = vshll.u32 %v4169, 16
        %v4590 = vrot.slane %v4588, 5
        %v4591 = vsel %vm1507, %v4586, %v4590
        %v4592 = vshrl.u32 %v4169, 16
        %v4594 = vrot.slane %v4592, 4
        %v4595 = vor.u32 %v4594, %v4590
        %v4596 = vrot.slane %v4595, 4
        %v4598 = vshll.u32 %v4170, 16
        %v4600 = vrot.slane %v4598, 5
        %v4601 = vsel %vm1507, %v4596, %v4600
        %v4603 = vshrl.u32 %v4171, 16
        %v4605 = vrot.slane %v4603, 4
        %v4606 = vshll.u32 %v4171, 16
        %v4608 = vrot.slane %v4606, 5
        %v4609 = vor.u32 %v4605, %v4608
        %v4610 = vrot.slane %v4609, 4
        %v4612 = vshll.u32 %v4172, 16
        %v4614 = vrot.slane %v4612, 5
        %v4615 = vsel %vm1507, %v4610, %v4614
        %v4616 = vshrl.u32 %v4172, 16
        %v4618 = vrot.slane %v4616, 4
        %v4619 = vor.u32 %v4618, %v4614
        %v4620 = vrot.slane %v4619, 4
        %v4622 = vshll.u32 %v4173, 16
        %v4624 = vrot.slane %v4622, 5
        %v4625 = vsel %vm1507, %v4620, %v4624
        %v4626 = vshrl.u32 %v4173, 16
        %v4628 = vrot.slane %v4626, 4
        %v4629 = vor.u32 %v4628, %v4624
        %v4630 = vrot.slane %v4629, 4
        %v4632 = vshll.u32 %v4174, 16
        %v4634 = vrot.slane %v4632, 5
        %v4635 = vsel %vm1507, %v4630, %v4634
        %v4636 = vshrl.u32 %v4174, 16
        %v4638 = vrot.slane %v4636, 4
        %v4639 = vor.u32 %v4638, %v4634
        %v4640 = vrot.slane %v4639, 4
        %v4642 = vshll.u32 %v4175, 16
        %v4644 = vrot.slane %v4642, 5
        %v4645 = vsel %vm1507, %v4640, %v4644
        %v4647 = vshrl.u32 %v4176, 16
        %v4649 = vrot.slane %v4647, 4
        %v4650 = vshll.u32 %v4176, 16
        %v4652 = vrot.slane %v4650, 5
        %v4653 = vor.u32 %v4649, %v4652
        %v4654 = vrot.slane %v4653, 4
        %v4656 = vshll.u32 %v4177, 16
        %v4658 = vrot.slane %v4656, 5
        %v4659 = vsel %vm1507, %v4654, %v4658
        %v4660 = vshrl.u32 %v4177, 16
        %v4662 = vrot.slane %v4660, 4
        %v4663 = vor.u32 %v4662, %v4658
        %v4664 = vrot.slane %v4663, 4
        %v4666 = vshll.u32 %v4178, 16
        %v4668 = vrot.slane %v4666, 5
        %v4669 = vsel %vm1507, %v4664, %v4668
        %v4670 = vshrl.u32 %v4178, 16
        %v4672 = vrot.slane %v4670, 4
        %v4673 = vor.u32 %v4672, %v4668
        %v4674 = vrot.slane %v4673, 4
        %v4676 = vshll.u32 %v4179, 16
        %v4678 = vrot.slane %v4676, 5
        %v4679 = vsel %vm1507, %v4674, %v4678
        %v4680 = vshrl.u32 %v4179, 16
        %v4682 = vrot.slane %v4680, 4
        %v4683 = vor.u32 %v4682, %v4678
        %v4684 = vrot.slane %v4683, 4
        %v4686 = vshll.u32 %v4180, 16
        %v4688 = vrot.slane %v4686, 5
        %v4689 = vsel %vm1507, %v4684, %v4688
        %v4691 = vshrl.u32 %v4181, 16
        %v4693 = vrot.slane %v4691, 4
        %v4694 = vshll.u32 %v4181, 16
        %v4696 = vrot.slane %v4694, 5
        %v4697 = vor.u32 %v4693, %v4696
        %v4698 = vrot.slane %v4697, 4
        %v4700 = vshll.u32 %v4182, 16
        %v4702 = vrot.slane %v4700, 5
        %v4703 = vsel %vm1507, %v4698, %v4702
        %v4704 = vshrl.u32 %v4182, 16
        %v4706 = vrot.slane %v4704, 4
        %v4707 = vor.u32 %v4706, %v4702
        %v4708 = vrot.slane %v4707, 4
        %v4710 = vshll.u32 %v4183, 16
        %v4712 = vrot.slane %v4710, 5
        %v4713 = vsel %vm1507, %v4708, %v4712
        %v4714 = vshrl.u32 %v4183, 16
        %v4716 = vrot.slane %v4714, 4
        %v4717 = vor.u32 %v4716, %v4712
        %v4718 = vrot.slane %v4717, 4
        %v4720 = vshll.u32 %v4184, 16
        %v4722 = vrot.slane %v4720, 5
        %v4723 = vsel %vm1507, %v4718, %v4722
        %v4724 = vshrl.u32 %v4184, 16
        %v4726 = vrot.slane %v4724, 4
        %v4727 = vor.u32 %v4726, %v4722
        %v4728 = vrot.slane %v4727, 4
        %v4730 = vshll.u32 %v4185, 16
        %v4732 = vrot.slane %v4730, 5
        %v4733 = vsel %vm1507, %v4728, %v4732
        %v4735 = vshrl.u32 %v4186, 16
        %v4737 = vrot.slane %v4735, 4
        %v4738 = vshll.u32 %v4186, 16
        %v4740 = vrot.slane %v4738, 5
        %v4741 = vor.u32 %v4737, %v4740
        %v4742 = vrot.slane %v4741, 4
        %v4744 = vshll.u32 %v4187, 16
        %v4746 = vrot.slane %v4744, 5
        %v4747 = vsel %vm1507, %v4742, %v4746
        %v4748 = vshrl.u32 %v4187, 16
        %v4750 = vrot.slane %v4748, 4
        %v4751 = vor.u32 %v4750, %v4746
        %v4752 = vrot.slane %v4751, 4
        %v4754 = vshll.u32 %v4188, 16
        %v4756 = vrot.slane %v4754, 5
        %v4757 = vsel %vm1507, %v4752, %v4756
        %v4758 = vshrl.u32 %v4188, 16
        %v4760 = vrot.slane %v4758, 4
        %v4761 = vor.u32 %v4760, %v4756
        %v4762 = vrot.slane %v4761, 4
        %v4764 = vshll.u32 %v4189, 16
        %v4766 = vrot.slane %v4764, 5
        %v4767 = vsel %vm1507, %v4762, %v4766
        %v4768 = vshrl.u32 %v4189, 16
        %v4770 = vrot.slane %v4768, 4
        %v4771 = vor.u32 %v4770, %v4766
        %v4772 = vrot.slane %v4771, 4
        %v4774 = vshll.u32 %v4190, 16
        %v4776 = vrot.slane %v4774, 5
        %v4777 = vsel %vm1507, %v4772, %v4776
        %v4779 = vshrl.u32 %v4191, 16
        %v4781 = vrot.slane %v4779, 4
        %v4782 = vshll.u32 %v4191, 16
        %v4784 = vrot.slane %v4782, 5
        %v4785 = vor.u32 %v4781, %v4784
        %v4786 = vrot.slane %v4785, 4
        %v4788 = vshll.u32 %v4192, 16
        %v4790 = vrot.slane %v4788, 5
        %v4791 = vsel %vm1507, %v4786, %v4790
        %v4792 = vshrl.u32 %v4192, 16
        %v4794 = vrot.slane %v4792, 4
        %v4795 = vor.u32 %v4794, %v4790
        %v4796 = vrot.slane %v4795, 4
        %v4798 = vshll.u32 %v4193, 16
        %v4800 = vrot.slane %v4798, 5
        %v4801 = vsel %vm1507, %v4796, %v4800
        %v4802 = vshrl.u32 %v4193, 16
        %v4804 = vrot.slane %v4802, 4
        %v4805 = vor.u32 %v4804, %v4800
        %v4806 = vrot.slane %v4805, 4
        %v4808 = vshll.u32 %v4194, 16
        %v4810 = vrot.slane %v4808, 5
        %v4811 = vsel %vm1507, %v4806, %v4810
        %v4812 = vshrl.u32 %v4194, 16
        %v4814 = vrot.slane %v4812, 4
        %v4815 = vor.u32 %v4814, %v4810
        %v4816 = vrot.slane %v4815, 4
        %v4818 = vshll.u32 %v4195, 16
        %v4820 = vrot.slane %v4818, 5
        %v4821 = vsel %vm1507, %v4816, %v4820
        %v4823 = vshrl.u32 %v4196, 16
        %v4825 = vrot.slane %v4823, 4
        %v4826 = vshll.u32 %v4196, 16
        %v4828 = vrot.slane %v4826, 5
        %v4829 = vor.u32 %v4825, %v4828
        %v4830 = vrot.slane %v4829, 4
        %v4832 = vshll.u32 %v4197, 16
        %v4834 = vrot.slane %v4832, 5
        %v4835 = vsel %vm1507, %v4830, %v4834
        %v4836 = vshrl.u32 %v4197, 16
        %v4838 = vrot.slane %v4836, 4
        %v4839 = vor.u32 %v4838, %v4834
        %v4840 = vrot.slane %v4839, 4
        %v4842 = vshll.u32 %v4198, 16
        %v4844 = vrot.slane %v4842, 5
        %v4845 = vsel %vm1507, %v4840, %v4844
        %v4846 = vshrl.u32 %v4198, 16
        %v4848 = vrot.slane %v4846, 4
        %v4849 = vor.u32 %v4848, %v4844
        %v4850 = vrot.slane %v4849, 4
        %v4852 = vshll.u32 %v4199, 16
        %v4854 = vrot.slane %v4852, 5
        %v4855 = vsel %vm1507, %v4850, %v4854
        %v4856 = vshrl.u32 %v4199, 16
        %v4858 = vrot.slane %v4856, 4
        %v4859 = vor.u32 %v4858, %v4854
        %v4860 = vrot.slane %v4859, 4
        %v4862 = vshll.u32 %v4200, 16
        %v4864 = vrot.slane %v4862, 5
        %v4865 = vsel %vm1507, %v4860, %v4864
        %v4867 = vshrl.u32 %v4201, 16
        %v4869 = vrot.slane %v4867, 4
        %v4870 = vshll.u32 %v4201, 16
        %v4872 = vrot.slane %v4870, 5
        %v4873 = vor.u32 %v4869, %v4872
        %v4874 = vrot.slane %v4873, 4
        %v4876 = vshll.u32 %v4202, 16
        %v4878 = vrot.slane %v4876, 5
        %v4879 = vsel %vm1507, %v4874, %v4878
        %v4880 = vshrl.u32 %v4202, 16
        %v4882 = vrot.slane %v4880, 4
        %v4883 = vor.u32 %v4882, %v4878
        %v4884 = vrot.slane %v4883, 4
        %v4886 = vshll.u32 %v4203, 16
        %v4888 = vrot.slane %v4886, 5
        %v4889 = vsel %vm1507, %v4884, %v4888
        %v4890 = vshrl.u32 %v4203, 16
        %v4892 = vrot.slane %v4890, 4
        %v4893 = vor.u32 %v4892, %v4888
        %v4894 = vrot.slane %v4893, 4
        %v4896 = vshll.u32 %v4204, 16
        %v4898 = vrot.slane %v4896, 5
        %v4899 = vsel %vm1507, %v4894, %v4898
        %v4900 = vshrl.u32 %v4204, 16
        %v4902 = vrot.slane %v4900, 4
        %v4903 = vor.u32 %v4902, %v4898
        %v4904 = vrot.slane %v4903, 4
        %v4906 = vshll.u32 %v4205, 16
        %v4908 = vrot.slane %v4906, 5
        %v4909 = vsel %vm1507, %v4904, %v4908
        %s4910 = scalar_lea.vmem %s1, 10
        %v4911 = vld [vmem:[%s4910] sm:$0x3]
        %v4912 = vunpack.c.l.b16 %v4219
        %v4913 = vunpack.c.l.b16 %v4229
        %v4914 = vunpack.c.l.b16 %v4239
        %v4915 = vunpack.c.l.b16 %v4249
        %v4916 = vunpack.c.l.b16 %v4263
        %v4917 = vunpack.c.l.b16 %v4273
        %v4918 = vunpack.c.l.b16 %v4283
        %v4919 = vunpack.c.l.b16 %v4293
        %v4920 = vunpack.c.l.b16 %v4307
        %v4921 = vunpack.c.l.b16 %v4317
        %v4922 = vunpack.c.l.b16 %v4327
        %v4923 = vunpack.c.l.b16 %v4337
        %v4924 = vunpack.c.l.b16 %v4351
        %v4925 = vunpack.c.l.b16 %v4361
        %v4926 = vunpack.c.l.b16 %v4371
        %v4927 = vunpack.c.l.b16 %v4381
        %v4928 = vunpack.c.l.b16 %v4395
        %v4929 = vunpack.c.l.b16 %v4405
        %v4930 = vunpack.c.l.b16 %v4415
        %v4931 = vunpack.c.l.b16 %v4425
        %v4932 = vunpack.c.l.b16 %v4439
        %v4933 = vunpack.c.l.b16 %v4449
        %v4934 = vunpack.c.l.b16 %v4459
        %v4935 = vunpack.c.l.b16 %v4469
        %v4936 = vunpack.c.l.b16 %v4483
        %v4937 = vunpack.c.l.b16 %v4493
        %v4938 = vunpack.c.l.b16 %v4503
        %v4939 = vunpack.c.l.b16 %v4513
        %v4940 = vunpack.c.l.b16 %v4527
        %v4941 = vunpack.c.l.b16 %v4537
        %v4942 = vunpack.c.l.b16 %v4547
        %v4943 = vunpack.c.l.b16 %v4557
        %v4944 = vunpack.c.l.b16 %v4571
        %v4945 = vunpack.c.l.b16 %v4581
        %v4946 = vunpack.c.l.b16 %v4591
        %v4947 = vunpack.c.l.b16 %v4601
        %v4948 = vunpack.c.l.b16 %v4615
        %v4949 = vunpack.c.l.b16 %v4625
        %v4950 = vunpack.c.l.b16 %v4635
        %v4951 = vunpack.c.l.b16 %v4645
        %v4952 = vunpack.c.l.b16 %v4659
        %v4953 = vunpack.c.l.b16 %v4669
        %v4954 = vunpack.c.l.b16 %v4679
        %v4955 = vunpack.c.l.b16 %v4689
        %v4956 = vunpack.c.l.b16 %v4703
        %v4957 = vunpack.c.l.b16 %v4713
        %v4958 = vunpack.c.l.b16 %v4723
        %v4959 = vunpack.c.l.b16 %v4733
        %v4960 = vunpack.c.l.b16 %v4747
        %v4961 = vunpack.c.l.b16 %v4757
        %v4962 = vunpack.c.l.b16 %v4767
        %v4963 = vunpack.c.l.b16 %v4777
        %v4964 = vunpack.c.l.b16 %v4791
        %v4965 = vunpack.c.l.b16 %v4801
        %v4966 = vunpack.c.l.b16 %v4811
        %v4967 = vunpack.c.l.b16 %v4821
        %v4968 = vunpack.c.l.b16 %v4835
        %v4969 = vunpack.c.l.b16 %v4845
        %v4970 = vunpack.c.l.b16 %v4855
        %v4971 = vunpack.c.l.b16 %v4865
        %v4972 = vunpack.c.l.b16 %v4879
        %v4973 = vunpack.c.l.b16 %v4889
        %v4974 = vunpack.c.l.b16 %v4899
        %v4975 = vunpack.c.l.b16 %v4909
        %v4976 = vpack.c.b16 %v4913, %v4912
        %v4977 = vpack.c.b16 %v4915, %v4914
        %v4978 = vpack.c.b16 %v4917, %v4916
        %v4979 = vpack.c.b16 %v4919, %v4918
        %v4980 = vpack.c.b16 %v4921, %v4920
        %v4981 = vpack.c.b16 %v4923, %v4922
        %v4982 = vpack.c.b16 %v4925, %v4924
        %v4983 = vpack.c.b16 %v4927, %v4926
        %v4984 = vpack.c.b16 %v4929, %v4928
        %v4985 = vpack.c.b16 %v4931, %v4930
        %v4986 = vpack.c.b16 %v4933, %v4932
        %v4987 = vpack.c.b16 %v4935, %v4934
        %v4988 = vpack.c.b16 %v4937, %v4936
        %v4989 = vpack.c.b16 %v4939, %v4938
        %v4990 = vpack.c.b16 %v4941, %v4940
        %v4991 = vpack.c.b16 %v4943, %v4942
        %v4992 = vpack.c.b16 %v4945, %v4944
        %v4993 = vpack.c.b16 %v4947, %v4946
        %v4994 = vpack.c.b16 %v4949, %v4948
        %v4995 = vpack.c.b16 %v4951, %v4950
        %v4996 = vpack.c.b16 %v4953, %v4952
        %v4997 = vpack.c.b16 %v4955, %v4954
        %v4998 = vpack.c.b16 %v4957, %v4956
        %v4999 = vpack.c.b16 %v4959, %v4958
        %v5000 = vpack.c.b16 %v4961, %v4960
        %v5001 = vpack.c.b16 %v4963, %v4962
        %v5002 = vpack.c.b16 %v4965, %v4964
        %v5003 = vpack.c.b16 %v4967, %v4966
        %v5004 = vpack.c.b16 %v4969, %v4968
        %v5005 = vpack.c.b16 %v4971, %v4970
        %v5006 = vpack.c.b16 %v4973, %v4972
        %v5007 = vpack.c.b16 %v4975, %v4974
        %v5009 = vsel %vm484, %v4976, 0
        %v5012 = vsel %vm484, %v4977, 0
        %v5015 = vsel %vm484, %v4978, 0
        %v5018 = vsel %vm484, %v4979, 0
        %v5021 = vsel %vm484, %v4980, 0
        %v5024 = vsel %vm484, %v4981, 0
        %v5027 = vsel %vm484, %v4982, 0
        %v5030 = vsel %vm484, %v4983, 0
        %v5033 = vsel %vm484, %v4984, 0
        %v5036 = vsel %vm484, %v4985, 0
        %v5039 = vsel %vm484, %v4986, 0
        %v5042 = vsel %vm484, %v4987, 0
        %v5045 = vsel %vm484, %v4988, 0
        %v5048 = vsel %vm484, %v4989, 0
        %v5051 = vsel %vm484, %v4990, 0
        %v5054 = vsel %vm484, %v4991, 0
        %v5057 = vsel %vm484, %v4992, 0
        %v5060 = vsel %vm484, %v4993, 0
        %v5063 = vsel %vm484, %v4994, 0
        %v5066 = vsel %vm484, %v4995, 0
        %v5069 = vsel %vm484, %v4996, 0
        %v5072 = vsel %vm484, %v4997, 0
        %v5075 = vsel %vm484, %v4998, 0
        %v5078 = vsel %vm484, %v4999, 0
        %v5081 = vsel %vm484, %v5000, 0
        %v5084 = vsel %vm484, %v5001, 0
        %v5087 = vsel %vm484, %v5002, 0
        %v5090 = vsel %vm484, %v5003, 0
        %v5093 = vsel %vm484, %v5004, 0
        %v5096 = vsel %vm484, %v5005, 0
        %v5099 = vsel %vm484, %v5006, 0
        %v5102 = vsel %vm484, %v5007, 0
        %v5105 = vand.u32 %v4911, %v584
        %5107 = vmatprep.subr.bf16.mxu0 0
        %5108 = vmatpush1.bf16.msra.mxu0 %v5105
        %5109 = vmatprep.subr.bf16.mxu0 0
        %5110 = vmatpush1.bf16.msra.mxu0 0
        %5111 = vmatprep.subr.bf16.mxu0 0
        %5112 = vmatpush1.bf16.msra.mxu0 0
        %5113 = vmatprep.subr.bf16.mxu0 0
        %5114 = vmatpush1.bf16.msra.mxu0 0
        %5115 = vmatprep.subr.bf16.mxu0 0
        %5116 = vmatpush1.bf16.msra.mxu0 0
        %5117 = vmatprep.subr.bf16.mxu0 0
        %5118 = vmatpush1.bf16.msra.mxu0 0
        %5119 = vmatprep.subr.bf16.mxu0 0
        %5120 = vmatpush1.bf16.msra.mxu0 0
        %5121 = vmatprep.subr.bf16.mxu0 0
        %5122 = vmatpush1.bf16.msra.mxu0 0
        %5123 = vmatprep.subr.bf16.mxu0 0
        %5124 = vmatpush1.bf16.msra.mxu0 0
        %5125 = vmatprep.subr.bf16.mxu0 0
        %5126 = vmatpush1.bf16.msra.mxu0 0
        %5127 = vmatprep.subr.bf16.mxu0 0
        %5128 = vmatpush1.bf16.msra.mxu0 0
        %5129 = vmatprep.subr.bf16.mxu0 0
        %5130 = vmatpush1.bf16.msra.mxu0 0
        %5131 = vmatprep.subr.bf16.mxu0 0
        %5132 = vmatpush1.bf16.msra.mxu0 0
        %5133 = vmatprep.subr.bf16.mxu0 0
        %5134 = vmatpush1.bf16.msra.mxu0 0
        %5135 = vmatprep.subr.bf16.mxu0 0
        %5136 = vmatpush1.bf16.msra.mxu0 0
        %5137 = vmatprep.subr.bf16.mxu0 0
        %5138 = vmatpush1.bf16.msra.mxu0 0
        %5139 = vmatprep.mubr.bf16.mxu0 0
        %5140 = vmatmul.mubr.bf16.gmra.mrb[0].mxu0 %v5009
        %v5141 = vpop.f32.mrb[0].mxu0
        %v5142 = vadd.f32 0.0, %v5141
        %v5143 = vpop.f32.mrb[0].mxu0
        %v5144 = vpop.f32.mrb[0].mxu0
        %v5145 = vadd.f32 0.0, %v5144
        %v5146 = vpop.f32.mrb[0].mxu0
        %5147 = vmatprep.mubr.bf16.mxu0 0
        %5148 = vmatmul.mubr.bf16.gmra.mrb[0].mxu0 %v5012
        %v5149 = vpop.f32.mrb[0].mxu0
        %v5150 = vadd.f32 0.0, %v5149
        %v5151 = vpop.f32.mrb[0].mxu0
        %v5152 = vpop.f32.mrb[0].mxu0
        %v5153 = vadd.f32 0.0, %v5152
        %v5154 = vpop.f32.mrb[0].mxu0
        %5155 = vmatprep.mubr.bf16.mxu0 0
        %5156 = vmatmul.mubr.bf16.gmra.mrb[0].mxu0 %v5015
        %v5157 = vpop.f32.mrb[0].mxu0
        %v5158 = vadd.f32 0.0, %v5157
        %v5159 = vpop.f32.mrb[0].mxu0
        %v5160 = vpop.f32.mrb[0].mxu0
        %v5161 = vadd.f32 0.0, %v5160
        %v5162 = vpop.f32.mrb[0].mxu0
        %5163 = vmatprep.mubr.bf16.mxu0 0
        %5164 = vmatmul.mubr.bf16.gmra.mrb[0].mxu0 %v5018
        %v5165 = vpop.f32.mrb[0].mxu0
        %v5166 = vadd.f32 0.0, %v5165
        %v5167 = vpop.f32.mrb[0].mxu0
        %v5168 = vpop.f32.mrb[0].mxu0
        %v5169 = vadd.f32 0.0, %v5168
        %v5170 = vpop.f32.mrb[0].mxu0
        %5171 = vmatprep.mubr.bf16.mxu0 0
        %5172 = vmatmul.mubr.bf16.gmra.mrb[0].mxu0 %v5021
        %v5173 = vpop.f32.mrb[0].mxu0
        %v5174 = vadd.f32 0.0, %v5173
        %v5175 = vpop.f32.mrb[0].mxu0
        %v5176 = vpop.f32.mrb[0].mxu0
        %v5177 = vadd.f32 0.0, %v5176
        %v5178 = vpop.f32.mrb[0].mxu0
        %5179 = vmatprep.mubr.bf16.mxu0 0
        %5180 = vmatmul.mubr.bf16.gmra.mrb[0].mxu0 %v5024
        %v5181 = vpop.f32.mrb[0].mxu0
        %v5182 = vadd.f32 0.0, %v5181
        %v5183 = vpop.f32.mrb[0].mxu0
        %v5184 = vpop.f32.mrb[0].mxu0
        %v5185 = vadd.f32 0.0, %v5184
        %v5186 = vpop.f32.mrb[0].mxu0
        %5187 = vmatprep.mubr.bf16.mxu0 0
        %5188 = vmatmul.mubr.bf16.gmra.mrb[0].mxu0 %v5027
        %v5189 = vpop.f32.mrb[0].mxu0
        %v5190 = vadd.f32 0.0, %v5189
        %v5191 = vpop.f32.mrb[0].mxu0
        %v5192 = vpop.f32.mrb[0].mxu0
        %v5193 = vadd.f32 0.0, %v5192
        %v5194 = vpop.f32.mrb[0].mxu0
        %5195 = vmatprep.mubr.bf16.mxu0 0
        %5196 = vmatmul.mubr.bf16.gmra.mrb[0].mxu0 %v5030
        %v5197 = vpop.f32.mrb[0].mxu0
        %v5198 = vadd.f32 0.0, %v5197
        %v5199 = vpop.f32.mrb[0].mxu0
        %v5200 = vpop.f32.mrb[0].mxu0
        %v5201 = vadd.f32 0.0, %v5200
        %v5202 = vpop.f32.mrb[0].mxu0
        %5203 = vmatprep.mubr.bf16.mxu0 0
        %5204 = vmatmul.mubr.bf16.gmra.mrb[0].mxu0 %v5033
        %v5205 = vpop.f32.mrb[0].mxu0
        %v5206 = vadd.f32 0.0, %v5205
        %v5207 = vpop.f32.mrb[0].mxu0
        %v5208 = vpop.f32.mrb[0].mxu0
        %v5209 = vadd.f32 0.0, %v5208
        %v5210 = vpop.f32.mrb[0].mxu0
        %5211 = vmatprep.mubr.bf16.mxu0 0
        %5212 = vmatmul.mubr.bf16.gmra.mrb[0].mxu0 %v5036
        %v5213 = vpop.f32.mrb[0].mxu0
        %v5214 = vadd.f32 0.0, %v5213
        %v5215 = vpop.f32.mrb[0].mxu0
        %v5216 = vpop.f32.mrb[0].mxu0
        %v5217 = vadd.f32 0.0, %v5216
        %v5218 = vpop.f32.mrb[0].mxu0
        %5219 = vmatprep.mubr.bf16.mxu0 0
        %5220 = vmatmul.mubr.bf16.gmra.mrb[0].mxu0 %v5039
        %v5221 = vpop.f32.mrb[0].mxu0
        %v5222 = vadd.f32 0.0, %v5221
        %v5223 = vpop.f32.mrb[0].mxu0
        %v5224 = vpop.f32.mrb[0].mxu0
        %v5225 = vadd.f32 0.0, %v5224
        %v5226 = vpop.f32.mrb[0].mxu0
        %5227 = vmatprep.mubr.bf16.mxu0 0
        %5228 = vmatmul.mubr.bf16.gmra.mrb[0].mxu0 %v5042
        %v5229 = vpop.f32.mrb[0].mxu0
        %v5230 = vadd.f32 0.0, %v5229
        %v5231 = vpop.f32.mrb[0].mxu0
        %v5232 = vpop.f32.mrb[0].mxu0
        %v5233 = vadd.f32 0.0, %v5232
        %v5234 = vpop.f32.mrb[0].mxu0
        %5235 = vmatprep.mubr.bf16.mxu0 0
        %5236 = vmatmul.mubr.bf16.gmra.mrb[0].mxu0 %v5045
        %v5237 = vpop.f32.mrb[0].mxu0
        %v5238 = vadd.f32 0.0, %v5237
        %v5239 = vpop.f32.mrb[0].mxu0
        %v5240 = vpop.f32.mrb[0].mxu0
        %v5241 = vadd.f32 0.0, %v5240
        %v5242 = vpop.f32.mrb[0].mxu0
        %5243 = vmatprep.mubr.bf16.mxu0 0
        %5244 = vmatmul.mubr.bf16.gmra.mrb[0].mxu0 %v5048
        %v5245 = vpop.f32.mrb[0].mxu0
        %v5246 = vadd.f32 0.0, %v5245
        %v5247 = vpop.f32.mrb[0].mxu0
        %v5248 = vpop.f32.mrb[0].mxu0
        %v5249 = vadd.f32 0.0, %v5248
        %v5250 = vpop.f32.mrb[0].mxu0
        %5251 = vmatprep.mubr.bf16.mxu0 0
        %5252 = vmatmul.mubr.bf16.gmra.mrb[0].mxu0 %v5051
        %v5253 = vpop.f32.mrb[0].mxu0
        %v5254 = vadd.f32 0.0, %v5253
        %v5255 = vpop.f32.mrb[0].mxu0
        %v5256 = vpop.f32.mrb[0].mxu0
        %v5257 = vadd.f32 0.0, %v5256
        %v5258 = vpop.f32.mrb[0].mxu0
        %5259 = vmatprep.mubr.bf16.mxu0 0
        %5260 = vmatmul.mubr.bf16.gmra.mrb[0].mxu0 %v5054
        %v5261 = vpop.f32.mrb[0].mxu0
        %v5262 = vadd.f32 0.0, %v5261
        %v5263 = vpop.f32.mrb[0].mxu0
        %v5264 = vpop.f32.mrb[0].mxu0
        %v5265 = vadd.f32 0.0, %v5264
        %v5266 = vpop.f32.mrb[0].mxu0
        %5267 = vmatprep.mubr.bf16.mxu0 0
        %5268 = vmatmul.mubr.bf16.gmra.mrb[0].mxu0 %v5057
        %v5269 = vpop.f32.mrb[0].mxu0
        %v5270 = vadd.f32 0.0, %v5269
        %v5271 = vpop.f32.mrb[0].mxu0
        %v5272 = vpop.f32.mrb[0].mxu0
        %v5273 = vadd.f32 0.0, %v5272
        %v5274 = vpop.f32.mrb[0].mxu0
        %5275 = vmatprep.mubr.bf16.mxu0 0
        %5276 = vmatmul.mubr.bf16.gmra.mrb[0].mxu0 %v5060
        %v5277 = vpop.f32.mrb[0].mxu0
        %v5278 = vadd.f32 0.0, %v5277
        %v5279 = vpop.f32.mrb[0].mxu0
        %v5280 = vpop.f32.mrb[0].mxu0
        %v5281 = vadd.f32 0.0, %v5280
        %v5282 = vpop.f32.mrb[0].mxu0
        %5283 = vmatprep.mubr.bf16.mxu0 0
        %5284 = vmatmul.mubr.bf16.gmra.mrb[0].mxu0 %v5063
        %v5285 = vpop.f32.mrb[0].mxu0
        %v5286 = vadd.f32 0.0, %v5285
        %v5287 = vpop.f32.mrb[0].mxu0
        %v5288 = vpop.f32.mrb[0].mxu0
        %v5289 = vadd.f32 0.0, %v5288
        %v5290 = vpop.f32.mrb[0].mxu0
        %5291 = vmatprep.mubr.bf16.mxu0 0
        %5292 = vmatmul.mubr.bf16.gmra.mrb[0].mxu0 %v5066
        %v5293 = vpop.f32.mrb[0].mxu0
        %v5294 = vadd.f32 0.0, %v5293
        %v5295 = vpop.f32.mrb[0].mxu0
        %v5296 = vpop.f32.mrb[0].mxu0
        %v5297 = vadd.f32 0.0, %v5296
        %v5298 = vpop.f32.mrb[0].mxu0
        %5299 = vmatprep.mubr.bf16.mxu0 0
        %5300 = vmatmul.mubr.bf16.gmra.mrb[0].mxu0 %v5069
        %v5301 = vpop.f32.mrb[0].mxu0
        %v5302 = vadd.f32 0.0, %v5301
        %v5303 = vpop.f32.mrb[0].mxu0
        %v5304 = vpop.f32.mrb[0].mxu0
        %v5305 = vadd.f32 0.0, %v5304
        %v5306 = vpop.f32.mrb[0].mxu0
        %5307 = vmatprep.mubr.bf16.mxu0 0
        %5308 = vmatmul.mubr.bf16.gmra.mrb[0].mxu0 %v5072
        %v5309 = vpop.f32.mrb[0].mxu0
        %v5310 = vadd.f32 0.0, %v5309
        %v5311 = vpop.f32.mrb[0].mxu0
        %v5312 = vpop.f32.mrb[0].mxu0
        %v5313 = vadd.f32 0.0, %v5312
        %v5314 = vpop.f32.mrb[0].mxu0
        %5315 = vmatprep.mubr.bf16.mxu0 0
        %5316 = vmatmul.mubr.bf16.gmra.mrb[0].mxu0 %v5075
        %v5317 = vpop.f32.mrb[0].mxu0
        %v5318 = vadd.f32 0.0, %v5317
        %v5319 = vpop.f32.mrb[0].mxu0
        %v5320 = vpop.f32.mrb[0].mxu0
        %v5321 = vadd.f32 0.0, %v5320
        %v5322 = vpop.f32.mrb[0].mxu0
        %5323 = vmatprep.mubr.bf16.mxu0 0
        %5324 = vmatmul.mubr.bf16.gmra.mrb[0].mxu0 %v5078
        %v5325 = vpop.f32.mrb[0].mxu0
        %v5326 = vadd.f32 0.0, %v5325
        %v5327 = vpop.f32.mrb[0].mxu0
        %v5328 = vpop.f32.mrb[0].mxu0
        %v5329 = vadd.f32 0.0, %v5328
        %v5330 = vpop.f32.mrb[0].mxu0
        %5331 = vmatprep.mubr.bf16.mxu0 0
        %5332 = vmatmul.mubr.bf16.gmra.mrb[0].mxu0 %v5081
        %v5333 = vpop.f32.mrb[0].mxu0
        %v5334 = vadd.f32 0.0, %v5333
        %v5335 = vpop.f32.mrb[0].mxu0
        %v5336 = vpop.f32.mrb[0].mxu0
        %v5337 = vadd.f32 0.0, %v5336
        %v5338 = vpop.f32.mrb[0].mxu0
        %5339 = vmatprep.mubr.bf16.mxu0 0
        %5340 = vmatmul.mubr.bf16.gmra.mrb[0].mxu0 %v5084
        %v5341 = vpop.f32.mrb[0].mxu0
        %v5342 = vadd.f32 0.0, %v5341
        %v5343 = vpop.f32.mrb[0].mxu0
        %v5344 = vpop.f32.mrb[0].mxu0
        %v5345 = vadd.f32 0.0, %v5344
        %v5346 = vpop.f32.mrb[0].mxu0
        %5347 = vmatprep.mubr.bf16.mxu0 0
        %5348 = vmatmul.mubr.bf16.gmra.mrb[0].mxu0 %v5087
        %v5349 = vpop.f32.mrb[0].mxu0
        %v5350 = vadd.f32 0.0, %v5349
        %v5351 = vpop.f32.mrb[0].mxu0
        %v5352 = vpop.f32.mrb[0].mxu0
        %v5353 = vadd.f32 0.0, %v5352
        %v5354 = vpop.f32.mrb[0].mxu0
        %5355 = vmatprep.mubr.bf16.mxu0 0
        %5356 = vmatmul.mubr.bf16.gmra.mrb[0].mxu0 %v5090
        %v5357 = vpop.f32.mrb[0].mxu0
        %v5358 = vadd.f32 0.0, %v5357
        %v5359 = vpop.f32.mrb[0].mxu0
        %v5360 = vpop.f32.mrb[0].mxu0
        %v5361 = vadd.f32 0.0, %v5360
        %v5362 = vpop.f32.mrb[0].mxu0
        %5363 = vmatprep.mubr.bf16.mxu0 0
        %5364 = vmatmul.mubr.bf16.gmra.mrb[0].mxu0 %v5093
        %v5365 = vpop.f32.mrb[0].mxu0
        %v5366 = vadd.f32 0.0, %v5365
        %v5367 = vpop.f32.mrb[0].mxu0
        %v5368 = vpop.f32.mrb[0].mxu0
        %v5369 = vadd.f32 0.0, %v5368
        %v5370 = vpop.f32.mrb[0].mxu0
        %5371 = vmatprep.mubr.bf16.mxu0 0
        %5372 = vmatmul.mubr.bf16.gmra.mrb[0].mxu0 %v5096
        %v5373 = vpop.f32.mrb[0].mxu0
        %v5374 = vadd.f32 0.0, %v5373
        %v5375 = vpop.f32.mrb[0].mxu0
        %v5376 = vpop.f32.mrb[0].mxu0
        %v5377 = vadd.f32 0.0, %v5376
        %v5378 = vpop.f32.mrb[0].mxu0
        %5379 = vmatprep.mubr.bf16.mxu0 0
        %5380 = vmatmul.mubr.bf16.gmra.mrb[0].mxu0 %v5099
        %v5381 = vpop.f32.mrb[0].mxu0
        %v5382 = vadd.f32 0.0, %v5381
        %v5383 = vpop.f32.mrb[0].mxu0
        %v5384 = vpop.f32.mrb[0].mxu0
        %v5385 = vadd.f32 0.0, %v5384
        %v5386 = vpop.f32.mrb[0].mxu0
        %5387 = vmatprep.mubr.bf16.mxu0 0
        %5388 = vmatmul.mubr.bf16.gmra.mrb[0].mxu0 %v5102
        %v5389 = vpop.f32.mrb[0].mxu0
        %v5390 = vadd.f32 0.0, %v5389
        %v5391 = vpop.f32.mrb[0].mxu0
        %v5392 = vpop.f32.mrb[0].mxu0
        %v5393 = vadd.f32 0.0, %v5392
        %v5394 = vpop.f32.mrb[0].mxu0
        %5395 = vdwg.mxu0
        %v5396 = vadd.f32 %v4062, %v5142
        %v5397 = vadd.f32 %v4063, %v5145
        %v5398 = vadd.f32 %v4064, %v5150
        %v5399 = vadd.f32 %v4065, %v5153
        %v5400 = vadd.f32 %v4066, %v5158
        %v5401 = vadd.f32 %v4067, %v5161
        %v5402 = vadd.f32 %v4068, %v5166
        %v5403 = vadd.f32 %v4069, %v5169
        %v5404 = vadd.f32 %v4070, %v5174
        %v5405 = vadd.f32 %v4071, %v5177
        %v5406 = vadd.f32 %v4072, %v5182
        %v5407 = vadd.f32 %v4073, %v5185
        %v5408 = vadd.f32 %v4074, %v5190
        %v5409 = vadd.f32 %v4075, %v5193
        %v5410 = vadd.f32 %v4076, %v5198
        %v5411 = vadd.f32 %v4077, %v5201
        %v5412 = vadd.f32 %v4078, %v5206
        %v5413 = vadd.f32 %v4079, %v5209
        %v5414 = vadd.f32 %v4080, %v5214
        %v5415 = vadd.f32 %v4081, %v5217
        %v5416 = vadd.f32 %v4082, %v5222
        %v5417 = vadd.f32 %v4083, %v5225
        %v5418 = vadd.f32 %v4084, %v5230
        %v5419 = vadd.f32 %v4085, %v5233
        %v5420 = vadd.f32 %v4086, %v5238
        %v5421 = vadd.f32 %v4087, %v5241
        %v5422 = vadd.f32 %v4088, %v5246
        %v5423 = vadd.f32 %v4089, %v5249
        %v5424 = vadd.f32 %v4090, %v5254
        %v5425 = vadd.f32 %v4091, %v5257
        %v5426 = vadd.f32 %v4092, %v5262
        %v5427 = vadd.f32 %v4093, %v5265
        %v5428 = vadd.f32 %v4094, %v5270
        %v5429 = vadd.f32 %v4095, %v5273
        %v5430 = vadd.f32 %v4096, %v5278
        %v5431 = vadd.f32 %v4097, %v5281
        %v5432 = vadd.f32 %v4098, %v5286
        %v5433 = vadd.f32 %v4099, %v5289
        %v5434 = vadd.f32 %v4100, %v5294
        %v5435 = vadd.f32 %v4101, %v5297
        %v5436 = vadd.f32 %v4102, %v5302
        %v5437 = vadd.f32 %v4103, %v5305
        %v5438 = vadd.f32 %v4104, %v5310
        %v5439 = vadd.f32 %v4105, %v5313
        %v5440 = vadd.f32 %v4106, %v5318
        %v5441 = vadd.f32 %v4107, %v5321
        %v5442 = vadd.f32 %v4108, %v5326
        %v5443 = vadd.f32 %v4109, %v5329
        %v5444 = vadd.f32 %v4110, %v5334
        %v5445 = vadd.f32 %v4111, %v5337
        %v5446 = vadd.f32 %v4112, %v5342
        %v5447 = vadd.f32 %v4113, %v5345
        %v5448 = vadd.f32 %v4114, %v5350
        %v5449 = vadd.f32 %v4115, %v5353
        %v5450 = vadd.f32 %v4116, %v5358
        %v5451 = vadd.f32 %v4117, %v5361
        %v5452 = vadd.f32 %v4118, %v5366
        %v5453 = vadd.f32 %v4119, %v5369
        %v5454 = vadd.f32 %v4120, %v5374
        %v5455 = vadd.f32 %v4121, %v5377
        %v5456 = vadd.f32 %v4122, %v5382
        %v5457 = vadd.f32 %v4123, %v5385
        %v5458 = vadd.f32 %v4124, %v5390
        %v5459 = vadd.f32 %v4125, %v5393
        %s5460 = sadd.s32 %s185, 1
        %s5461 = smul.u32 %s5460, 5
        %s5462 = smul.addr %s5461, 4
        %s5463 = scalar_lea.vmem %s182, %s5462
        %v5464 = vld [vmem:[%s5463] sm:$0xf]
        %v5465 = vld [vmem:[%s5463 + $0x4] sm:$0xf]
        %v5466 = vld [vmem:[%s5463 + $0x8] sm:$0xf]
        %v5467 = vld [vmem:[%s5463 + $0xc] sm:$0xf]
        %v5468 = vld [vmem:[%s5463 + $0x14] sm:$0xf]
        %v5469 = vld [vmem:[%s5463 + $0x18] sm:$0xf]
        %v5470 = vld [vmem:[%s5463 + $0x1c] sm:$0xf]
        %v5471 = vld [vmem:[%s5463 + $0x20] sm:$0xf]
        %v5472 = vld [vmem:[%s5463 + $0x28] sm:$0xf]
        %v5473 = vld [vmem:[%s5463 + $0x2c] sm:$0xf]
        %v5474 = vld [vmem:[%s5463 + $0x30] sm:$0xf]
        %v5475 = vld [vmem:[%s5463 + $0x34] sm:$0xf]
        %v5476 = vld [vmem:[%s5463 + $0x3c] sm:$0xf]
        %v5477 = vld [vmem:[%s5463 + $0x40] sm:$0xf]
        %v5478 = vld [vmem:[%s5463 + $0x44] sm:$0xf]
        %v5479 = vld [vmem:[%s5463 + $0x48] sm:$0xf]
        %v5480 = vld [vmem:[%s5463 + $0x50] sm:$0xf]
        %v5481 = vld [vmem:[%s5463 + $0x54] sm:$0xf]
        %v5482 = vld [vmem:[%s5463 + $0x58] sm:$0xf]
        %v5483 = vld [vmem:[%s5463 + $0x5c] sm:$0xf]
        %v5484 = vld [vmem:[%s5463 + $0x64] sm:$0xf]
        %v5485 = vld [vmem:[%s5463 + $0x68] sm:$0xf]
        %v5486 = vld [vmem:[%s5463 + $0x6c] sm:$0xf]
        %v5487 = vld [vmem:[%s5463 + $0x70] sm:$0xf]
        %v5488 = vld [vmem:[%s5463 + $0x78] sm:$0xf]
        %v5489 = vld [vmem:[%s5463 + $0x7c] sm:$0xf]
        %v5490 = vld [vmem:[%s5463 + $0x80] sm:$0xf]
        %v5491 = vld [vmem:[%s5463 + $0x84] sm:$0xf]
        %v5492 = vld [vmem:[%s5463 + $0x8c] sm:$0xf]
        %v5493 = vld [vmem:[%s5463 + $0x90] sm:$0xf]
        %v5494 = vld [vmem:[%s5463 + $0x94] sm:$0xf]
        %v5495 = vld [vmem:[%s5463 + $0x98] sm:$0xf]
        %v5496 = vld [vmem:[%s5463 + $0xa0] sm:$0xf]
        %v5497 = vld [vmem:[%s5463 + $0xa4] sm:$0xf]
        %v5498 = vld [vmem:[%s5463 + $0xa8] sm:$0xf]
        %v5499 = vld [vmem:[%s5463 + $0xac] sm:$0xf]
        %v5500 = vld [vmem:[%s5463 + $0xb4] sm:$0xf]
        %v5501 = vld [vmem:[%s5463 + $0xb8] sm:$0xf]
        %v5502 = vld [vmem:[%s5463 + $0xbc] sm:$0xf]
        %v5503 = vld [vmem:[%s5463 + $0xc0] sm:$0xf]
        %v5504 = vld [vmem:[%s5463 + $0xc8] sm:$0xf]
        %v5505 = vld [vmem:[%s5463 + $0xcc] sm:$0xf]
        %v5506 = vld [vmem:[%s5463 + $0xd0] sm:$0xf]
        %v5507 = vld [vmem:[%s5463 + $0xd4] sm:$0xf]
        %v5508 = vld [vmem:[%s5463 + $0xdc] sm:$0xf]
        %v5509 = vld [vmem:[%s5463 + $0xe0] sm:$0xf]
        %v5510 = vld [vmem:[%s5463 + $0xe4] sm:$0xf]
        %v5511 = vld [vmem:[%s5463 + $0xe8] sm:$0xf]
        %v5512 = vld [vmem:[%s5463 + $0xf0] sm:$0xf]
        %v5513 = vld [vmem:[%s5463 + $0xf4] sm:$0xf]
        %v5514 = vld [vmem:[%s5463 + $0xf8] sm:$0xf]
        %v5515 = vld [vmem:[%s5463 + $0xfc] sm:$0xf]
        %v5516 = vld [vmem:[%s5463 + $0x104] sm:$0xf]
        %v5517 = vld [vmem:[%s5463 + $0x108] sm:$0xf]
        %v5518 = vld [vmem:[%s5463 + $0x10c] sm:$0xf]
        %v5519 = vld [vmem:[%s5463 + $0x110] sm:$0xf]
        %v5520 = vld [vmem:[%s5463 + $0x118] sm:$0xf]
        %v5521 = vld [vmem:[%s5463 + $0x11c] sm:$0xf]
        %v5522 = vld [vmem:[%s5463 + $0x120] sm:$0xf]
        %v5523 = vld [vmem:[%s5463 + $0x124] sm:$0xf]
        %v5524 = vld [vmem:[%s5463 + $0x12c] sm:$0xf]
        %v5525 = vld [vmem:[%s5463 + $0x130] sm:$0xf]
        %v5526 = vld [vmem:[%s5463 + $0x134] sm:$0xf]
        %v5527 = vld [vmem:[%s5463 + $0x138] sm:$0xf]
        %s5528 = scalar_lea.vmem %s1, 12
        %v5529 = vld [vmem:[%s5528] sm:$0x3]
        %v5594 = vunpack.c.l.b16 %v5464
        %v5595 = vunpack.c.l.b16 %v5465
        %v5596 = vunpack.c.l.b16 %v5466
        %v5597 = vunpack.c.l.b16 %v5467
        %v5598 = vunpack.c.l.b16 %v5468
        %v5599 = vunpack.c.l.b16 %v5469
        %v5600 = vunpack.c.l.b16 %v5470
        %v5601 = vunpack.c.l.b16 %v5471
        %v5602 = vunpack.c.l.b16 %v5472
        %v5603 = vunpack.c.l.b16 %v5473
        %v5604 = vunpack.c.l.b16 %v5474
        %v5605 = vunpack.c.l.b16 %v5475
        %v5606 = vunpack.c.l.b16 %v5476
        %v5607 = vunpack.c.l.b16 %v5477
        %v5608 = vunpack.c.l.b16 %v5478
        %v5609 = vunpack.c.l.b16 %v5479
        %v5610 = vunpack.c.l.b16 %v5480
        %v5611 = vunpack.c.l.b16 %v5481
        %v5612 = vunpack.c.l.b16 %v5482
        %v5613 = vunpack.c.l.b16 %v5483
        %v5614 = vunpack.c.l.b16 %v5484
        %v5615 = vunpack.c.l.b16 %v5485
        %v5616 = vunpack.c.l.b16 %v5486
        %v5617 = vunpack.c.l.b16 %v5487
        %v5618 = vunpack.c.l.b16 %v5488
        %v5619 = vunpack.c.l.b16 %v5489
        %v5620 = vunpack.c.l.b16 %v5490
        %v5621 = vunpack.c.l.b16 %v5491
        %v5622 = vunpack.c.l.b16 %v5492
        %v5623 = vunpack.c.l.b16 %v5493
        %v5624 = vunpack.c.l.b16 %v5494
        %v5625 = vunpack.c.l.b16 %v5495
        %v5626 = vunpack.c.l.b16 %v5496
        %v5627 = vunpack.c.l.b16 %v5497
        %v5628 = vunpack.c.l.b16 %v5498
        %v5629 = vunpack.c.l.b16 %v5499
        %v5630 = vunpack.c.l.b16 %v5500
        %v5631 = vunpack.c.l.b16 %v5501
        %v5632 = vunpack.c.l.b16 %v5502
        %v5633 = vunpack.c.l.b16 %v5503
        %v5634 = vunpack.c.l.b16 %v5504
        %v5635 = vunpack.c.l.b16 %v5505
        %v5636 = vunpack.c.l.b16 %v5506
        %v5637 = vunpack.c.l.b16 %v5507
        %v5638 = vunpack.c.l.b16 %v5508
        %v5639 = vunpack.c.l.b16 %v5509
        %v5640 = vunpack.c.l.b16 %v5510
        %v5641 = vunpack.c.l.b16 %v5511
        %v5642 = vunpack.c.l.b16 %v5512
        %v5643 = vunpack.c.l.b16 %v5513
        %v5644 = vunpack.c.l.b16 %v5514
        %v5645 = vunpack.c.l.b16 %v5515
        %v5646 = vunpack.c.l.b16 %v5516
        %v5647 = vunpack.c.l.b16 %v5517
        %v5648 = vunpack.c.l.b16 %v5518
        %v5649 = vunpack.c.l.b16 %v5519
        %v5650 = vunpack.c.l.b16 %v5520
        %v5651 = vunpack.c.l.b16 %v5521
        %v5652 = vunpack.c.l.b16 %v5522
        %v5653 = vunpack.c.l.b16 %v5523
        %v5654 = vunpack.c.l.b16 %v5524
        %v5655 = vunpack.c.l.b16 %v5525
        %v5656 = vunpack.c.l.b16 %v5526
        %v5657 = vunpack.c.l.b16 %v5527
        %v5658 = vpack.c.b16 %v5595, %v5594
        %v5659 = vpack.c.b16 %v5597, %v5596
        %v5660 = vpack.c.b16 %v5599, %v5598
        %v5661 = vpack.c.b16 %v5601, %v5600
        %v5662 = vpack.c.b16 %v5603, %v5602
        %v5663 = vpack.c.b16 %v5605, %v5604
        %v5664 = vpack.c.b16 %v5607, %v5606
        %v5665 = vpack.c.b16 %v5609, %v5608
        %v5666 = vpack.c.b16 %v5611, %v5610
        %v5667 = vpack.c.b16 %v5613, %v5612
        %v5668 = vpack.c.b16 %v5615, %v5614
        %v5669 = vpack.c.b16 %v5617, %v5616
        %v5670 = vpack.c.b16 %v5619, %v5618
        %v5671 = vpack.c.b16 %v5621, %v5620
        %v5672 = vpack.c.b16 %v5623, %v5622
        %v5673 = vpack.c.b16 %v5625, %v5624
        %v5674 = vpack.c.b16 %v5627, %v5626
        %v5675 = vpack.c.b16 %v5629, %v5628
        %v5676 = vpack.c.b16 %v5631, %v5630
        %v5677 = vpack.c.b16 %v5633, %v5632
        %v5678 = vpack.c.b16 %v5635, %v5634
        %v5679 = vpack.c.b16 %v5637, %v5636
        %v5680 = vpack.c.b16 %v5639, %v5638
        %v5681 = vpack.c.b16 %v5641, %v5640
        %v5682 = vpack.c.b16 %v5643, %v5642
        %v5683 = vpack.c.b16 %v5645, %v5644
        %v5684 = vpack.c.b16 %v5647, %v5646
        %v5685 = vpack.c.b16 %v5649, %v5648
        %v5686 = vpack.c.b16 %v5651, %v5650
        %v5687 = vpack.c.b16 %v5653, %v5652
        %v5688 = vpack.c.b16 %v5655, %v5654
        %v5689 = vpack.c.b16 %v5657, %v5656
        %v5691 = vsel %vm484, %v5658, 0
        %v5694 = vsel %vm484, %v5659, 0
        %v5697 = vsel %vm484, %v5660, 0
        %v5700 = vsel %vm484, %v5661, 0
        %v5703 = vsel %vm484, %v5662, 0
        %v5706 = vsel %vm484, %v5663, 0
        %v5709 = vsel %vm484, %v5664, 0
        %v5712 = vsel %vm484, %v5665, 0
        %v5715 = vsel %vm484, %v5666, 0
        %v5718 = vsel %vm484, %v5667, 0
        %v5721 = vsel %vm484, %v5668, 0
        %v5724 = vsel %vm484, %v5669, 0
        %v5727 = vsel %vm484, %v5670, 0
        %v5730 = vsel %vm484, %v5671, 0
        %v5733 = vsel %vm484, %v5672, 0
        %v5736 = vsel %vm484, %v5673, 0
        %v5739 = vsel %vm484, %v5674, 0
        %v5742 = vsel %vm484, %v5675, 0
        %v5745 = vsel %vm484, %v5676, 0
        %v5748 = vsel %vm484, %v5677, 0
        %v5751 = vsel %vm484, %v5678, 0
        %v5754 = vsel %vm484, %v5679, 0
        %v5757 = vsel %vm484, %v5680, 0
        %v5760 = vsel %vm484, %v5681, 0
        %v5763 = vsel %vm484, %v5682, 0
        %v5766 = vsel %vm484, %v5683, 0
        %v5769 = vsel %vm484, %v5684, 0
        %v5772 = vsel %vm484, %v5685, 0
        %v5775 = vsel %vm484, %v5686, 0
        %v5778 = vsel %vm484, %v5687, 0
        %v5781 = vsel %vm484, %v5688, 0
        %v5784 = vsel %vm484, %v5689, 0
        %v5787 = vand.u32 %v5529, %v584
        %5789 = vmatprep.subr.bf16.mxu0 0
        %5790 = vmatpush1.bf16.msra.mxu0 %v5787
        %5791 = vmatprep.subr.bf16.mxu0 0
        %5792 = vmatpush1.bf16.msra.mxu0 0
        %5793 = vmatprep.subr.bf16.mxu0 0
        %5794 = vmatpush1.bf16.msra.mxu0 0
        %5795 = vmatprep.subr.bf16.mxu0 0
        %5796 = vmatpush1.bf16.msra.mxu0 0
        %5797 = vmatprep.subr.bf16.mxu0 0
        %5798 = vmatpush1.bf16.msra.mxu0 0
        %5799 = vmatprep.subr.bf16.mxu0 0
        %5800 = vmatpush1.bf16.msra.mxu0 0
        %5801 = vmatprep.subr.bf16.mxu0 0
        %5802 = vmatpush1.bf16.msra.mxu0 0
        %5803 = vmatprep.subr.bf16.mxu0 0
        %5804 = vmatpush1.bf16.msra.mxu0 0
        %5805 = vmatprep.subr.bf16.mxu0 0
        %5806 = vmatpush1.bf16.msra.mxu0 0
        %5807 = vmatprep.subr.bf16.mxu0 0
        %5808 = vmatpush1.bf16.msra.mxu0 0
        %5809 = vmatprep.subr.bf16.mxu0 0
        %5810 = vmatpush1.bf16.msra.mxu0 0
        %5811 = vmatprep.subr.bf16.mxu0 0
        %5812 = vmatpush1.bf16.msra.mxu0 0
        %5813 = vmatprep.subr.bf16.mxu0 0
        %5814 = vmatpush1.bf16.msra.mxu0 0
        %5815 = vmatprep.subr.bf16.mxu0 0
        %5816 = vmatpush1.bf16.msra.mxu0 0
        %5817 = vmatprep.subr.bf16.mxu0 0
        %5818 = vmatpush1.bf16.msra.mxu0 0
        %5819 = vmatprep.subr.bf16.mxu0 0
        %5820 = vmatpush1.bf16.msra.mxu0 0
        %5821 = vmatprep.mubr.bf16.mxu0 0
        %5822 = vmatmul.mubr.bf16.gmra.mrb[0].mxu0 %v5691
        %v5823 = vpop.f32.mrb[0].mxu0
        %v5824 = vadd.f32 0.0, %v5823
        %v5825 = vpop.f32.mrb[0].mxu0
        %v5826 = vpop.f32.mrb[0].mxu0
        %v5827 = vadd.f32 0.0, %v5826
        %v5828 = vpop.f32.mrb[0].mxu0
        %5829 = vmatprep.mubr.bf16.mxu0 0
        %5830 = vmatmul.mubr.bf16.gmra.mrb[0].mxu0 %v5694
        %v5831 = vpop.f32.mrb[0].mxu0
        %v5832 = vadd.f32 0.0, %v5831
        %v5833 = vpop.f32.mrb[0].mxu0
        %v5834 = vpop.f32.mrb[0].mxu0
        %v5835 = vadd.f32 0.0, %v5834
        %v5836 = vpop.f32.mrb[0].mxu0
        %5837 = vmatprep.mubr.bf16.mxu0 0
        %5838 = vmatmul.mubr.bf16.gmra.mrb[0].mxu0 %v5697
        %v5839 = vpop.f32.mrb[0].mxu0
        %v5840 = vadd.f32 0.0, %v5839
        %v5841 = vpop.f32.mrb[0].mxu0
        %v5842 = vpop.f32.mrb[0].mxu0
        %v5843 = vadd.f32 0.0, %v5842
        %v5844 = vpop.f32.mrb[0].mxu0
        %5845 = vmatprep.mubr.bf16.mxu0 0
        %5846 = vmatmul.mubr.bf16.gmra.mrb[0].mxu0 %v5700
        %v5847 = vpop.f32.mrb[0].mxu0
        %v5848 = vadd.f32 0.0, %v5847
        %v5849 = vpop.f32.mrb[0].mxu0
        %v5850 = vpop.f32.mrb[0].mxu0
        %v5851 = vadd.f32 0.0, %v5850
        %v5852 = vpop.f32.mrb[0].mxu0
        %5853 = vmatprep.mubr.bf16.mxu0 0
        %5854 = vmatmul.mubr.bf16.gmra.mrb[0].mxu0 %v5703
        %v5855 = vpop.f32.mrb[0].mxu0
        %v5856 = vadd.f32 0.0, %v5855
        %v5857 = vpop.f32.mrb[0].mxu0
        %v5858 = vpop.f32.mrb[0].mxu0
        %v5859 = vadd.f32 0.0, %v5858
        %v5860 = vpop.f32.mrb[0].mxu0
        %5861 = vmatprep.mubr.bf16.mxu0 0
        %5862 = vmatmul.mubr.bf16.gmra.mrb[0].mxu0 %v5706
        %v5863 = vpop.f32.mrb[0].mxu0
        %v5864 = vadd.f32 0.0, %v5863
        %v5865 = vpop.f32.mrb[0].mxu0
        %v5866 = vpop.f32.mrb[0].mxu0
        %v5867 = vadd.f32 0.0, %v5866
        %v5868 = vpop.f32.mrb[0].mxu0
        %5869 = vmatprep.mubr.bf16.mxu0 0
        %5870 = vmatmul.mubr.bf16.gmra.mrb[0].mxu0 %v5709
        %v5871 = vpop.f32.mrb[0].mxu0
        %v5872 = vadd.f32 0.0, %v5871
        %v5873 = vpop.f32.mrb[0].mxu0
        %v5874 = vpop.f32.mrb[0].mxu0
        %v5875 = vadd.f32 0.0, %v5874
        %v5876 = vpop.f32.mrb[0].mxu0
        %5877 = vmatprep.mubr.bf16.mxu0 0
        %5878 = vmatmul.mubr.bf16.gmra.mrb[0].mxu0 %v5712
        %v5879 = vpop.f32.mrb[0].mxu0
        %v5880 = vadd.f32 0.0, %v5879
        %v5881 = vpop.f32.mrb[0].mxu0
        %v5882 = vpop.f32.mrb[0].mxu0
        %v5883 = vadd.f32 0.0, %v5882
        %v5884 = vpop.f32.mrb[0].mxu0
        %5885 = vmatprep.mubr.bf16.mxu0 0
        %5886 = vmatmul.mubr.bf16.gmra.mrb[0].mxu0 %v5715
        %v5887 = vpop.f32.mrb[0].mxu0
        %v5888 = vadd.f32 0.0, %v5887
        %v5889 = vpop.f32.mrb[0].mxu0
        %v5890 = vpop.f32.mrb[0].mxu0
        %v5891 = vadd.f32 0.0, %v5890
        %v5892 = vpop.f32.mrb[0].mxu0
        %5893 = vmatprep.mubr.bf16.mxu0 0
        %5894 = vmatmul.mubr.bf16.gmra.mrb[0].mxu0 %v5718
        %v5895 = vpop.f32.mrb[0].mxu0
        %v5896 = vadd.f32 0.0, %v5895
        %v5897 = vpop.f32.mrb[0].mxu0
        %v5898 = vpop.f32.mrb[0].mxu0
        %v5899 = vadd.f32 0.0, %v5898
        %v5900 = vpop.f32.mrb[0].mxu0
        %5901 = vmatprep.mubr.bf16.mxu0 0
        %5902 = vmatmul.mubr.bf16.gmra.mrb[0].mxu0 %v5721
        %v5903 = vpop.f32.mrb[0].mxu0
        %v5904 = vadd.f32 0.0, %v5903
        %v5905 = vpop.f32.mrb[0].mxu0
        %v5906 = vpop.f32.mrb[0].mxu0
        %v5907 = vadd.f32 0.0, %v5906
        %v5908 = vpop.f32.mrb[0].mxu0
        %5909 = vmatprep.mubr.bf16.mxu0 0
        %5910 = vmatmul.mubr.bf16.gmra.mrb[0].mxu0 %v5724
        %v5911 = vpop.f32.mrb[0].mxu0
        %v5912 = vadd.f32 0.0, %v5911
        %v5913 = vpop.f32.mrb[0].mxu0
        %v5914 = vpop.f32.mrb[0].mxu0
        %v5915 = vadd.f32 0.0, %v5914
        %v5916 = vpop.f32.mrb[0].mxu0
        %5917 = vmatprep.mubr.bf16.mxu0 0
        %5918 = vmatmul.mubr.bf16.gmra.mrb[0].mxu0 %v5727
        %v5919 = vpop.f32.mrb[0].mxu0
        %v5920 = vadd.f32 0.0, %v5919
        %v5921 = vpop.f32.mrb[0].mxu0
        %v5922 = vpop.f32.mrb[0].mxu0
        %v5923 = vadd.f32 0.0, %v5922
        %v5924 = vpop.f32.mrb[0].mxu0
        %5925 = vmatprep.mubr.bf16.mxu0 0
        %5926 = vmatmul.mubr.bf16.gmra.mrb[0].mxu0 %v5730
        %v5927 = vpop.f32.mrb[0].mxu0
        %v5928 = vadd.f32 0.0, %v5927
        %v5929 = vpop.f32.mrb[0].mxu0
        %v5930 = vpop.f32.mrb[0].mxu0
        %v5931 = vadd.f32 0.0, %v5930
        %v5932 = vpop.f32.mrb[0].mxu0
        %5933 = vmatprep.mubr.bf16.mxu0 0
        %5934 = vmatmul.mubr.bf16.gmra.mrb[0].mxu0 %v5733
        %v5935 = vpop.f32.mrb[0].mxu0
        %v5936 = vadd.f32 0.0, %v5935
        %v5937 = vpop.f32.mrb[0].mxu0
        %v5938 = vpop.f32.mrb[0].mxu0
        %v5939 = vadd.f32 0.0, %v5938
        %v5940 = vpop.f32.mrb[0].mxu0
        %5941 = vmatprep.mubr.bf16.mxu0 0
        %5942 = vmatmul.mubr.bf16.gmra.mrb[0].mxu0 %v5736
        %v5943 = vpop.f32.mrb[0].mxu0
        %v5944 = vadd.f32 0.0, %v5943
        %v5945 = vpop.f32.mrb[0].mxu0
        %v5946 = vpop.f32.mrb[0].mxu0
        %v5947 = vadd.f32 0.0, %v5946
        %v5948 = vpop.f32.mrb[0].mxu0
        %5949 = vmatprep.mubr.bf16.mxu0 0
        %5950 = vmatmul.mubr.bf16.gmra.mrb[0].mxu0 %v5739
        %v5951 = vpop.f32.mrb[0].mxu0
        %v5952 = vadd.f32 0.0, %v5951
        %v5953 = vpop.f32.mrb[0].mxu0
        %v5954 = vpop.f32.mrb[0].mxu0
        %v5955 = vadd.f32 0.0, %v5954
        %v5956 = vpop.f32.mrb[0].mxu0
        %5957 = vmatprep.mubr.bf16.mxu0 0
        %5958 = vmatmul.mubr.bf16.gmra.mrb[0].mxu0 %v5742
        %v5959 = vpop.f32.mrb[0].mxu0
        %v5960 = vadd.f32 0.0, %v5959
        %v5961 = vpop.f32.mrb[0].mxu0
        %v5962 = vpop.f32.mrb[0].mxu0
        %v5963 = vadd.f32 0.0, %v5962
        %v5964 = vpop.f32.mrb[0].mxu0
        %5965 = vmatprep.mubr.bf16.mxu0 0
        %5966 = vmatmul.mubr.bf16.gmra.mrb[0].mxu0 %v5745
        %v5967 = vpop.f32.mrb[0].mxu0
        %v5968 = vadd.f32 0.0, %v5967
        %v5969 = vpop.f32.mrb[0].mxu0
        %v5970 = vpop.f32.mrb[0].mxu0
        %v5971 = vadd.f32 0.0, %v5970
        %v5972 = vpop.f32.mrb[0].mxu0
        %5973 = vmatprep.mubr.bf16.mxu0 0
        %5974 = vmatmul.mubr.bf16.gmra.mrb[0].mxu0 %v5748
        %v5975 = vpop.f32.mrb[0].mxu0
        %v5976 = vadd.f32 0.0, %v5975
        %v5977 = vpop.f32.mrb[0].mxu0
        %v5978 = vpop.f32.mrb[0].mxu0
        %v5979 = vadd.f32 0.0, %v5978
        %v5980 = vpop.f32.mrb[0].mxu0
        %5981 = vmatprep.mubr.bf16.mxu0 0
        %5982 = vmatmul.mubr.bf16.gmra.mrb[0].mxu0 %v5751
        %v5983 = vpop.f32.mrb[0].mxu0
        %v5984 = vadd.f32 0.0, %v5983
        %v5985 = vpop.f32.mrb[0].mxu0
        %v5986 = vpop.f32.mrb[0].mxu0
        %v5987 = vadd.f32 0.0, %v5986
        %v5988 = vpop.f32.mrb[0].mxu0
        %5989 = vmatprep.mubr.bf16.mxu0 0
        %5990 = vmatmul.mubr.bf16.gmra.mrb[0].mxu0 %v5754
        %v5991 = vpop.f32.mrb[0].mxu0
        %v5992 = vadd.f32 0.0, %v5991
        %v5993 = vpop.f32.mrb[0].mxu0
        %v5994 = vpop.f32.mrb[0].mxu0
        %v5995 = vadd.f32 0.0, %v5994
        %v5996 = vpop.f32.mrb[0].mxu0
        %5997 = vmatprep.mubr.bf16.mxu0 0
        %5998 = vmatmul.mubr.bf16.gmra.mrb[0].mxu0 %v5757
        %v5999 = vpop.f32.mrb[0].mxu0
        %v6000 = vadd.f32 0.0, %v5999
        %v6001 = vpop.f32.mrb[0].mxu0
        %v6002 = vpop.f32.mrb[0].mxu0
        %v6003 = vadd.f32 0.0, %v6002
        %v6004 = vpop.f32.mrb[0].mxu0
        %6005 = vmatprep.mubr.bf16.mxu0 0
        %6006 = vmatmul.mubr.bf16.gmra.mrb[0].mxu0 %v5760
        %v6007 = vpop.f32.mrb[0].mxu0
        %v6008 = vadd.f32 0.0, %v6007
        %v6009 = vpop.f32.mrb[0].mxu0
        %v6010 = vpop.f32.mrb[0].mxu0
        %v6011 = vadd.f32 0.0, %v6010
        %v6012 = vpop.f32.mrb[0].mxu0
        %6013 = vmatprep.mubr.bf16.mxu0 0
        %6014 = vmatmul.mubr.bf16.gmra.mrb[0].mxu0 %v5763
        %v6015 = vpop.f32.mrb[0].mxu0
        %v6016 = vadd.f32 0.0, %v6015
        %v6017 = vpop.f32.mrb[0].mxu0
        %v6018 = vpop.f32.mrb[0].mxu0
        %v6019 = vadd.f32 0.0, %v6018
        %v6020 = vpop.f32.mrb[0].mxu0
        %6021 = vmatprep.mubr.bf16.mxu0 0
        %6022 = vmatmul.mubr.bf16.gmra.mrb[0].mxu0 %v5766
        %v6023 = vpop.f32.mrb[0].mxu0
        %v6024 = vadd.f32 0.0, %v6023
        %v6025 = vpop.f32.mrb[0].mxu0
        %v6026 = vpop.f32.mrb[0].mxu0
        %v6027 = vadd.f32 0.0, %v6026
        %v6028 = vpop.f32.mrb[0].mxu0
        %6029 = vmatprep.mubr.bf16.mxu0 0
        %6030 = vmatmul.mubr.bf16.gmra.mrb[0].mxu0 %v5769
        %v6031 = vpop.f32.mrb[0].mxu0
        %v6032 = vadd.f32 0.0, %v6031
        %v6033 = vpop.f32.mrb[0].mxu0
        %v6034 = vpop.f32.mrb[0].mxu0
        %v6035 = vadd.f32 0.0, %v6034
        %v6036 = vpop.f32.mrb[0].mxu0
        %6037 = vmatprep.mubr.bf16.mxu0 0
        %6038 = vmatmul.mubr.bf16.gmra.mrb[0].mxu0 %v5772
        %v6039 = vpop.f32.mrb[0].mxu0
        %v6040 = vadd.f32 0.0, %v6039
        %v6041 = vpop.f32.mrb[0].mxu0
        %v6042 = vpop.f32.mrb[0].mxu0
        %v6043 = vadd.f32 0.0, %v6042
        %v6044 = vpop.f32.mrb[0].mxu0
        %6045 = vmatprep.mubr.bf16.mxu0 0
        %6046 = vmatmul.mubr.bf16.gmra.mrb[0].mxu0 %v5775
        %v6047 = vpop.f32.mrb[0].mxu0
        %v6048 = vadd.f32 0.0, %v6047
        %v6049 = vpop.f32.mrb[0].mxu0
        %v6050 = vpop.f32.mrb[0].mxu0
        %v6051 = vadd.f32 0.0, %v6050
        %v6052 = vpop.f32.mrb[0].mxu0
        %6053 = vmatprep.mubr.bf16.mxu0 0
        %6054 = vmatmul.mubr.bf16.gmra.mrb[0].mxu0 %v5778
        %v6055 = vpop.f32.mrb[0].mxu0
        %v6056 = vadd.f32 0.0, %v6055
        %v6057 = vpop.f32.mrb[0].mxu0
        %v6058 = vpop.f32.mrb[0].mxu0
        %v6059 = vadd.f32 0.0, %v6058
        %v6060 = vpop.f32.mrb[0].mxu0
        %6061 = vmatprep.mubr.bf16.mxu0 0
        %6062 = vmatmul.mubr.bf16.gmra.mrb[0].mxu0 %v5781
        %v6063 = vpop.f32.mrb[0].mxu0
        %v6064 = vadd.f32 0.0, %v6063
        %v6065 = vpop.f32.mrb[0].mxu0
        %v6066 = vpop.f32.mrb[0].mxu0
        %v6067 = vadd.f32 0.0, %v6066
        %v6068 = vpop.f32.mrb[0].mxu0
        %6069 = vmatprep.mubr.bf16.mxu0 0
        %6070 = vmatmul.mubr.bf16.gmra.mrb[0].mxu0 %v5784
        %v6071 = vpop.f32.mrb[0].mxu0
        %v6072 = vadd.f32 0.0, %v6071
        %v6073 = vpop.f32.mrb[0].mxu0
        %v6074 = vpop.f32.mrb[0].mxu0
        %v6075 = vadd.f32 0.0, %v6074
        %v6076 = vpop.f32.mrb[0].mxu0
        %6077 = vdwg.mxu0
        %v6078 = vadd.f32 %v5396, %v5824
        %v6079 = vadd.f32 %v5397, %v5827
        %v6080 = vadd.f32 %v5398, %v5832
        %v6081 = vadd.f32 %v5399, %v5835
        %v6082 = vadd.f32 %v5400, %v5840
        %v6083 = vadd.f32 %v5401, %v5843
        %v6084 = vadd.f32 %v5402, %v5848
        %v6085 = vadd.f32 %v5403, %v5851
        %v6086 = vadd.f32 %v5404, %v5856
        %v6087 = vadd.f32 %v5405, %v5859
        %v6088 = vadd.f32 %v5406, %v5864
        %v6089 = vadd.f32 %v5407, %v5867
        %v6090 = vadd.f32 %v5408, %v5872
        %v6091 = vadd.f32 %v5409, %v5875
        %v6092 = vadd.f32 %v5410, %v5880
        %v6093 = vadd.f32 %v5411, %v5883
        %v6094 = vadd.f32 %v5412, %v5888
        %v6095 = vadd.f32 %v5413, %v5891
        %v6096 = vadd.f32 %v5414, %v5896
        %v6097 = vadd.f32 %v5415, %v5899
        %v6098 = vadd.f32 %v5416, %v5904
        %v6099 = vadd.f32 %v5417, %v5907
        %v6100 = vadd.f32 %v5418, %v5912
        %v6101 = vadd.f32 %v5419, %v5915
        %v6102 = vadd.f32 %v5420, %v5920
        %v6103 = vadd.f32 %v5421, %v5923
        %v6104 = vadd.f32 %v5422, %v5928
        %v6105 = vadd.f32 %v5423, %v5931
        %v6106 = vadd.f32 %v5424, %v5936
        %v6107 = vadd.f32 %v5425, %v5939
        %v6108 = vadd.f32 %v5426, %v5944
        %v6109 = vadd.f32 %v5427, %v5947
        %v6110 = vadd.f32 %v5428, %v5952
        %v6111 = vadd.f32 %v5429, %v5955
        %v6112 = vadd.f32 %v5430, %v5960
        %v6113 = vadd.f32 %v5431, %v5963
        %v6114 = vadd.f32 %v5432, %v5968
        %v6115 = vadd.f32 %v5433, %v5971
        %v6116 = vadd.f32 %v5434, %v5976
        %v6117 = vadd.f32 %v5435, %v5979
        %v6118 = vadd.f32 %v5436, %v5984
        %v6119 = vadd.f32 %v5437, %v5987
        %v6120 = vadd.f32 %v5438, %v5992
        %v6121 = vadd.f32 %v5439, %v5995
        %v6122 = vadd.f32 %v5440, %v6000
        %v6123 = vadd.f32 %v5441, %v6003
        %v6124 = vadd.f32 %v5442, %v6008
        %v6125 = vadd.f32 %v5443, %v6011
        %v6126 = vadd.f32 %v5444, %v6016
        %v6127 = vadd.f32 %v5445, %v6019
        %v6128 = vadd.f32 %v5446, %v6024
        %v6129 = vadd.f32 %v5447, %v6027
        %v6130 = vadd.f32 %v5448, %v6032
        %v6131 = vadd.f32 %v5449, %v6035
        %v6132 = vadd.f32 %v5450, %v6040
        %v6133 = vadd.f32 %v5451, %v6043
        %v6134 = vadd.f32 %v5452, %v6048
        %v6135 = vadd.f32 %v5453, %v6051
        %v6136 = vadd.f32 %v5454, %v6056
        %v6137 = vadd.f32 %v5455, %v6059
        %v6138 = vadd.f32 %v5456, %v6064
        %v6139 = vadd.f32 %v5457, %v6067
        %v6140 = vadd.f32 %v5458, %v6072
        %v6141 = vadd.f32 %v5459, %v6075
        %s6142 = sadd.s32 %s185, 34
        %s6143 = smul.u32 %s6142, 5
        %s6144 = smul.addr %s6143, 4
        %s6145 = scalar_lea.vmem %s182, %s6144
        %v6146 = vld [vmem:[%s6145] sm:$0xf]
        %v6147 = vld [vmem:[%s6145 + $0x4] sm:$0xf]
        %v6148 = vld [vmem:[%s6145 + $0x8] sm:$0xf]
        %v6149 = vld [vmem:[%s6145 + $0xc] sm:$0xf]
        %v6150 = vld [vmem:[%s6145 + $0x14] sm:$0xf]
        %v6151 = vld [vmem:[%s6145 + $0x18] sm:$0xf]
        %v6152 = vld [vmem:[%s6145 + $0x1c] sm:$0xf]
        %v6153 = vld [vmem:[%s6145 + $0x20] sm:$0xf]
        %v6154 = vld [vmem:[%s6145 + $0x28] sm:$0xf]
        %v6155 = vld [vmem:[%s6145 + $0x2c] sm:$0xf]
        %v6156 = vld [vmem:[%s6145 + $0x30] sm:$0xf]
        %v6157 = vld [vmem:[%s6145 + $0x34] sm:$0xf]
        %v6158 = vld [vmem:[%s6145 + $0x3c] sm:$0xf]
        %v6159 = vld [vmem:[%s6145 + $0x40] sm:$0xf]
        %v6160 = vld [vmem:[%s6145 + $0x44] sm:$0xf]
        %v6161 = vld [vmem:[%s6145 + $0x48] sm:$0xf]
        %v6162 = vld [vmem:[%s6145 + $0x50] sm:$0xf]
        %v6163 = vld [vmem:[%s6145 + $0x54] sm:$0xf]
        %v6164 = vld [vmem:[%s6145 + $0x58] sm:$0xf]
        %v6165 = vld [vmem:[%s6145 + $0x5c] sm:$0xf]
        %v6166 = vld [vmem:[%s6145 + $0x64] sm:$0xf]
        %v6167 = vld [vmem:[%s6145 + $0x68] sm:$0xf]
        %v6168 = vld [vmem:[%s6145 + $0x6c] sm:$0xf]
        %v6169 = vld [vmem:[%s6145 + $0x70] sm:$0xf]
        %v6170 = vld [vmem:[%s6145 + $0x78] sm:$0xf]
        %v6171 = vld [vmem:[%s6145 + $0x7c] sm:$0xf]
        %v6172 = vld [vmem:[%s6145 + $0x80] sm:$0xf]
        %v6173 = vld [vmem:[%s6145 + $0x84] sm:$0xf]
        %v6174 = vld [vmem:[%s6145 + $0x8c] sm:$0xf]
        %v6175 = vld [vmem:[%s6145 + $0x90] sm:$0xf]
        %v6176 = vld [vmem:[%s6145 + $0x94] sm:$0xf]
        %v6177 = vld [vmem:[%s6145 + $0x98] sm:$0xf]
        %v6178 = vld [vmem:[%s6145 + $0xa0] sm:$0xf]
        %v6179 = vld [vmem:[%s6145 + $0xa4] sm:$0xf]
        %v6180 = vld [vmem:[%s6145 + $0xa8] sm:$0xf]
        %v6181 = vld [vmem:[%s6145 + $0xac] sm:$0xf]
        %v6182 = vld [vmem:[%s6145 + $0xb4] sm:$0xf]
        %v6183 = vld [vmem:[%s6145 + $0xb8] sm:$0xf]
        %v6184 = vld [vmem:[%s6145 + $0xbc] sm:$0xf]
        %v6185 = vld [vmem:[%s6145 + $0xc0] sm:$0xf]
        %v6186 = vld [vmem:[%s6145 + $0xc8] sm:$0xf]
        %v6187 = vld [vmem:[%s6145 + $0xcc] sm:$0xf]
        %v6188 = vld [vmem:[%s6145 + $0xd0] sm:$0xf]
        %v6189 = vld [vmem:[%s6145 + $0xd4] sm:$0xf]
        %v6190 = vld [vmem:[%s6145 + $0xdc] sm:$0xf]
        %v6191 = vld [vmem:[%s6145 + $0xe0] sm:$0xf]
        %v6192 = vld [vmem:[%s6145 + $0xe4] sm:$0xf]
        %v6193 = vld [vmem:[%s6145 + $0xe8] sm:$0xf]
        %v6194 = vld [vmem:[%s6145 + $0xf0] sm:$0xf]
        %v6195 = vld [vmem:[%s6145 + $0xf4] sm:$0xf]
        %v6196 = vld [vmem:[%s6145 + $0xf8] sm:$0xf]
        %v6197 = vld [vmem:[%s6145 + $0xfc] sm:$0xf]
        %v6198 = vld [vmem:[%s6145 + $0x104] sm:$0xf]
        %v6199 = vld [vmem:[%s6145 + $0x108] sm:$0xf]
        %v6200 = vld [vmem:[%s6145 + $0x10c] sm:$0xf]
        %v6201 = vld [vmem:[%s6145 + $0x110] sm:$0xf]
        %v6202 = vld [vmem:[%s6145 + $0x118] sm:$0xf]
        %v6203 = vld [vmem:[%s6145 + $0x11c] sm:$0xf]
        %v6204 = vld [vmem:[%s6145 + $0x120] sm:$0xf]
        %v6205 = vld [vmem:[%s6145 + $0x124] sm:$0xf]
        %v6206 = vld [vmem:[%s6145 + $0x12c] sm:$0xf]
        %v6207 = vld [vmem:[%s6145 + $0x130] sm:$0xf]
        %v6208 = vld [vmem:[%s6145 + $0x134] sm:$0xf]
        %v6209 = vld [vmem:[%s6145 + $0x138] sm:$0xf]
        %s6210 = scalar_lea.vmem %s1, 14
        %v6211 = vld [vmem:[%s6210] sm:$0x3]
        %v6276 = vunpack.c.l.b16 %v6146
        %v6277 = vunpack.c.l.b16 %v6147
        %v6278 = vunpack.c.l.b16 %v6148
        %v6279 = vunpack.c.l.b16 %v6149
        %v6280 = vunpack.c.l.b16 %v6150
        %v6281 = vunpack.c.l.b16 %v6151
        %v6282 = vunpack.c.l.b16 %v6152
        %v6283 = vunpack.c.l.b16 %v6153
        %v6284 = vunpack.c.l.b16 %v6154
        %v6285 = vunpack.c.l.b16 %v6155
        %v6286 = vunpack.c.l.b16 %v6156
        %v6287 = vunpack.c.l.b16 %v6157
        %v6288 = vunpack.c.l.b16 %v6158
        %v6289 = vunpack.c.l.b16 %v6159
        %v6290 = vunpack.c.l.b16 %v6160
        %v6291 = vunpack.c.l.b16 %v6161
        %v6292 = vunpack.c.l.b16 %v6162
        %v6293 = vunpack.c.l.b16 %v6163
        %v6294 = vunpack.c.l.b16 %v6164
        %v6295 = vunpack.c.l.b16 %v6165
        %v6296 = vunpack.c.l.b16 %v6166
        %v6297 = vunpack.c.l.b16 %v6167
        %v6298 = vunpack.c.l.b16 %v6168
        %v6299 = vunpack.c.l.b16 %v6169
        %v6300 = vunpack.c.l.b16 %v6170
        %v6301 = vunpack.c.l.b16 %v6171
        %v6302 = vunpack.c.l.b16 %v6172
        %v6303 = vunpack.c.l.b16 %v6173
        %v6304 = vunpack.c.l.b16 %v6174
        %v6305 = vunpack.c.l.b16 %v6175
        %v6306 = vunpack.c.l.b16 %v6176
        %v6307 = vunpack.c.l.b16 %v6177
        %v6308 = vunpack.c.l.b16 %v6178
        %v6309 = vunpack.c.l.b16 %v6179
        %v6310 = vunpack.c.l.b16 %v6180
        %v6311 = vunpack.c.l.b16 %v6181
        %v6312 = vunpack.c.l.b16 %v6182
        %v6313 = vunpack.c.l.b16 %v6183
        %v6314 = vunpack.c.l.b16 %v6184
        %v6315 = vunpack.c.l.b16 %v6185
        %v6316 = vunpack.c.l.b16 %v6186
        %v6317 = vunpack.c.l.b16 %v6187
        %v6318 = vunpack.c.l.b16 %v6188
        %v6319 = vunpack.c.l.b16 %v6189
        %v6320 = vunpack.c.l.b16 %v6190
        %v6321 = vunpack.c.l.b16 %v6191
        %v6322 = vunpack.c.l.b16 %v6192
        %v6323 = vunpack.c.l.b16 %v6193
        %v6324 = vunpack.c.l.b16 %v6194
        %v6325 = vunpack.c.l.b16 %v6195
        %v6326 = vunpack.c.l.b16 %v6196
        %v6327 = vunpack.c.l.b16 %v6197
        %v6328 = vunpack.c.l.b16 %v6198
        %v6329 = vunpack.c.l.b16 %v6199
        %v6330 = vunpack.c.l.b16 %v6200
        %v6331 = vunpack.c.l.b16 %v6201
        %v6332 = vunpack.c.l.b16 %v6202
        %v6333 = vunpack.c.l.b16 %v6203
        %v6334 = vunpack.c.l.b16 %v6204
        %v6335 = vunpack.c.l.b16 %v6205
        %v6336 = vunpack.c.l.b16 %v6206
        %v6337 = vunpack.c.l.b16 %v6207
        %v6338 = vunpack.c.l.b16 %v6208
        %v6339 = vunpack.c.l.b16 %v6209
        %v6340 = vpack.c.b16 %v6277, %v6276
        %v6341 = vpack.c.b16 %v6279, %v6278
        %v6342 = vpack.c.b16 %v6281, %v6280
        %v6343 = vpack.c.b16 %v6283, %v6282
        %v6344 = vpack.c.b16 %v6285, %v6284
        %v6345 = vpack.c.b16 %v6287, %v6286
        %v6346 = vpack.c.b16 %v6289, %v6288
        %v6347 = vpack.c.b16 %v6291, %v6290
        %v6348 = vpack.c.b16 %v6293, %v6292
        %v6349 = vpack.c.b16 %v6295, %v6294
        %v6350 = vpack.c.b16 %v6297, %v6296
        %v6351 = vpack.c.b16 %v6299, %v6298
        %v6352 = vpack.c.b16 %v6301, %v6300
        %v6353 = vpack.c.b16 %v6303, %v6302
        %v6354 = vpack.c.b16 %v6305, %v6304
        %v6355 = vpack.c.b16 %v6307, %v6306
        %v6356 = vpack.c.b16 %v6309, %v6308
        %v6357 = vpack.c.b16 %v6311, %v6310
        %v6358 = vpack.c.b16 %v6313, %v6312
        %v6359 = vpack.c.b16 %v6315, %v6314
        %v6360 = vpack.c.b16 %v6317, %v6316
        %v6361 = vpack.c.b16 %v6319, %v6318
        %v6362 = vpack.c.b16 %v6321, %v6320
        %v6363 = vpack.c.b16 %v6323, %v6322
        %v6364 = vpack.c.b16 %v6325, %v6324
        %v6365 = vpack.c.b16 %v6327, %v6326
        %v6366 = vpack.c.b16 %v6329, %v6328
        %v6367 = vpack.c.b16 %v6331, %v6330
        %v6368 = vpack.c.b16 %v6333, %v6332
        %v6369 = vpack.c.b16 %v6335, %v6334
        %v6370 = vpack.c.b16 %v6337, %v6336
        %v6371 = vpack.c.b16 %v6339, %v6338
        %v6373 = vsel %vm484, %v6340, 0
        %v6376 = vsel %vm484, %v6341, 0
        %v6379 = vsel %vm484, %v6342, 0
        %v6382 = vsel %vm484, %v6343, 0
        %v6385 = vsel %vm484, %v6344, 0
        %v6388 = vsel %vm484, %v6345, 0
        %v6391 = vsel %vm484, %v6346, 0
        %v6394 = vsel %vm484, %v6347, 0
        %v6397 = vsel %vm484, %v6348, 0
        %v6400 = vsel %vm484, %v6349, 0
        %v6403 = vsel %vm484, %v6350, 0
        %v6406 = vsel %vm484, %v6351, 0
        %v6409 = vsel %vm484, %v6352, 0
        %v6412 = vsel %vm484, %v6353, 0
        %v6415 = vsel %vm484, %v6354, 0
        %v6418 = vsel %vm484, %v6355, 0
        %v6421 = vsel %vm484, %v6356, 0
        %v6424 = vsel %vm484, %v6357, 0
        %v6427 = vsel %vm484, %v6358, 0
        %v6430 = vsel %vm484, %v6359, 0
        %v6433 = vsel %vm484, %v6360, 0
        %v6436 = vsel %vm484, %v6361, 0
        %v6439 = vsel %vm484, %v6362, 0
        %v6442 = vsel %vm484, %v6363, 0
        %v6445 = vsel %vm484, %v6364, 0
        %v6448 = vsel %vm484, %v6365, 0
        %v6451 = vsel %vm484, %v6366, 0
        %v6454 = vsel %vm484, %v6367, 0
        %v6457 = vsel %vm484, %v6368, 0
        %v6460 = vsel %vm484, %v6369, 0
        %v6463 = vsel %vm484, %v6370, 0
        %v6466 = vsel %vm484, %v6371, 0
        %v6469 = vand.u32 %v6211, %v584
        %6471 = vmatprep.subr.bf16.mxu0 0
        %6472 = vmatpush1.bf16.msra.mxu0 %v6469
        %6473 = vmatprep.subr.bf16.mxu0 0
        %6474 = vmatpush1.bf16.msra.mxu0 0
        %6475 = vmatprep.subr.bf16.mxu0 0
        %6476 = vmatpush1.bf16.msra.mxu0 0
        %6477 = vmatprep.subr.bf16.mxu0 0
        %6478 = vmatpush1.bf16.msra.mxu0 0
        %6479 = vmatprep.subr.bf16.mxu0 0
        %6480 = vmatpush1.bf16.msra.mxu0 0
        %6481 = vmatprep.subr.bf16.mxu0 0
        %6482 = vmatpush1.bf16.msra.mxu0 0
        %6483 = vmatprep.subr.bf16.mxu0 0
        %6484 = vmatpush1.bf16.msra.mxu0 0
        %6485 = vmatprep.subr.bf16.mxu0 0
        %6486 = vmatpush1.bf16.msra.mxu0 0
        %6487 = vmatprep.subr.bf16.mxu0 0
        %6488 = vmatpush1.bf16.msra.mxu0 0
        %6489 = vmatprep.subr.bf16.mxu0 0
        %6490 = vmatpush1.bf16.msra.mxu0 0
        %6491 = vmatprep.subr.bf16.mxu0 0
        %6492 = vmatpush1.bf16.msra.mxu0 0
        %6493 = vmatprep.subr.bf16.mxu0 0
        %6494 = vmatpush1.bf16.msra.mxu0 0
        %6495 = vmatprep.subr.bf16.mxu0 0
        %6496 = vmatpush1.bf16.msra.mxu0 0
        %6497 = vmatprep.subr.bf16.mxu0 0
        %6498 = vmatpush1.bf16.msra.mxu0 0
        %6499 = vmatprep.subr.bf16.mxu0 0
        %6500 = vmatpush1.bf16.msra.mxu0 0
        %6501 = vmatprep.subr.bf16.mxu0 0
        %6502 = vmatpush1.bf16.msra.mxu0 0
        %6503 = vmatprep.mubr.bf16.mxu0 0
        %6504 = vmatmul.mubr.bf16.gmra.mrb[0].mxu0 %v6373
        %v6505 = vpop.f32.mrb[0].mxu0
        %v6506 = vadd.f32 0.0, %v6505
        %v6507 = vpop.f32.mrb[0].mxu0
        %v6508 = vpop.f32.mrb[0].mxu0
        %v6509 = vadd.f32 0.0, %v6508
        %v6510 = vpop.f32.mrb[0].mxu0
        %6511 = vmatprep.mubr.bf16.mxu0 0
        %6512 = vmatmul.mubr.bf16.gmra.mrb[0].mxu0 %v6376
        %v6513 = vpop.f32.mrb[0].mxu0
        %v6514 = vadd.f32 0.0, %v6513
        %v6515 = vpop.f32.mrb[0].mxu0
        %v6516 = vpop.f32.mrb[0].mxu0
        %v6517 = vadd.f32 0.0, %v6516
        %v6518 = vpop.f32.mrb[0].mxu0
        %6519 = vmatprep.mubr.bf16.mxu0 0
        %6520 = vmatmul.mubr.bf16.gmra.mrb[0].mxu0 %v6379
        %v6521 = vpop.f32.mrb[0].mxu0
        %v6522 = vadd.f32 0.0, %v6521
        %v6523 = vpop.f32.mrb[0].mxu0
        %v6524 = vpop.f32.mrb[0].mxu0
        %v6525 = vadd.f32 0.0, %v6524
        %v6526 = vpop.f32.mrb[0].mxu0
        %6527 = vmatprep.mubr.bf16.mxu0 0
        %6528 = vmatmul.mubr.bf16.gmra.mrb[0].mxu0 %v6382
        %v6529 = vpop.f32.mrb[0].mxu0
        %v6530 = vadd.f32 0.0, %v6529
        %v6531 = vpop.f32.mrb[0].mxu0
        %v6532 = vpop.f32.mrb[0].mxu0
        %v6533 = vadd.f32 0.0, %v6532
        %v6534 = vpop.f32.mrb[0].mxu0
        %6535 = vmatprep.mubr.bf16.mxu0 0
        %6536 = vmatmul.mubr.bf16.gmra.mrb[0].mxu0 %v6385
        %v6537 = vpop.f32.mrb[0].mxu0
        %v6538 = vadd.f32 0.0, %v6537
        %v6539 = vpop.f32.mrb[0].mxu0
        %v6540 = vpop.f32.mrb[0].mxu0
        %v6541 = vadd.f32 0.0, %v6540
        %v6542 = vpop.f32.mrb[0].mxu0
        %6543 = vmatprep.mubr.bf16.mxu0 0
        %6544 = vmatmul.mubr.bf16.gmra.mrb[0].mxu0 %v6388
        %v6545 = vpop.f32.mrb[0].mxu0
        %v6546 = vadd.f32 0.0, %v6545
        %v6547 = vpop.f32.mrb[0].mxu0
        %v6548 = vpop.f32.mrb[0].mxu0
        %v6549 = vadd.f32 0.0, %v6548
        %v6550 = vpop.f32.mrb[0].mxu0
        %6551 = vmatprep.mubr.bf16.mxu0 0
        %6552 = vmatmul.mubr.bf16.gmra.mrb[0].mxu0 %v6391
        %v6553 = vpop.f32.mrb[0].mxu0
        %v6554 = vadd.f32 0.0, %v6553
        %v6555 = vpop.f32.mrb[0].mxu0
        %v6556 = vpop.f32.mrb[0].mxu0
        %v6557 = vadd.f32 0.0, %v6556
        %v6558 = vpop.f32.mrb[0].mxu0
        %6559 = vmatprep.mubr.bf16.mxu0 0
        %6560 = vmatmul.mubr.bf16.gmra.mrb[0].mxu0 %v6394
        %v6561 = vpop.f32.mrb[0].mxu0
        %v6562 = vadd.f32 0.0, %v6561
        %v6563 = vpop.f32.mrb[0].mxu0
        %v6564 = vpop.f32.mrb[0].mxu0
        %v6565 = vadd.f32 0.0, %v6564
        %v6566 = vpop.f32.mrb[0].mxu0
        %6567 = vmatprep.mubr.bf16.mxu0 0
        %6568 = vmatmul.mubr.bf16.gmra.mrb[0].mxu0 %v6397
        %v6569 = vpop.f32.mrb[0].mxu0
        %v6570 = vadd.f32 0.0, %v6569
        %v6571 = vpop.f32.mrb[0].mxu0
        %v6572 = vpop.f32.mrb[0].mxu0
        %v6573 = vadd.f32 0.0, %v6572
        %v6574 = vpop.f32.mrb[0].mxu0
        %6575 = vmatprep.mubr.bf16.mxu0 0
        %6576 = vmatmul.mubr.bf16.gmra.mrb[0].mxu0 %v6400
        %v6577 = vpop.f32.mrb[0].mxu0
        %v6578 = vadd.f32 0.0, %v6577
        %v6579 = vpop.f32.mrb[0].mxu0
        %v6580 = vpop.f32.mrb[0].mxu0
        %v6581 = vadd.f32 0.0, %v6580
        %v6582 = vpop.f32.mrb[0].mxu0
        %6583 = vmatprep.mubr.bf16.mxu0 0
        %6584 = vmatmul.mubr.bf16.gmra.mrb[0].mxu0 %v6403
        %v6585 = vpop.f32.mrb[0].mxu0
        %v6586 = vadd.f32 0.0, %v6585
        %v6587 = vpop.f32.mrb[0].mxu0
        %v6588 = vpop.f32.mrb[0].mxu0
        %v6589 = vadd.f32 0.0, %v6588
        %v6590 = vpop.f32.mrb[0].mxu0
        %6591 = vmatprep.mubr.bf16.mxu0 0
        %6592 = vmatmul.mubr.bf16.gmra.mrb[0].mxu0 %v6406
        %v6593 = vpop.f32.mrb[0].mxu0
        %v6594 = vadd.f32 0.0, %v6593
        %v6595 = vpop.f32.mrb[0].mxu0
        %v6596 = vpop.f32.mrb[0].mxu0
        %v6597 = vadd.f32 0.0, %v6596
        %v6598 = vpop.f32.mrb[0].mxu0
        %6599 = vmatprep.mubr.bf16.mxu0 0
        %6600 = vmatmul.mubr.bf16.gmra.mrb[0].mxu0 %v6409
        %v6601 = vpop.f32.mrb[0].mxu0
        %v6602 = vadd.f32 0.0, %v6601
        %v6603 = vpop.f32.mrb[0].mxu0
        %v6604 = vpop.f32.mrb[0].mxu0
        %v6605 = vadd.f32 0.0, %v6604
        %v6606 = vpop.f32.mrb[0].mxu0
        %6607 = vmatprep.mubr.bf16.mxu0 0
        %6608 = vmatmul.mubr.bf16.gmra.mrb[0].mxu0 %v6412
        %v6609 = vpop.f32.mrb[0].mxu0
        %v6610 = vadd.f32 0.0, %v6609
        %v6611 = vpop.f32.mrb[0].mxu0
        %v6612 = vpop.f32.mrb[0].mxu0
        %v6613 = vadd.f32 0.0, %v6612
        %v6614 = vpop.f32.mrb[0].mxu0
        %6615 = vmatprep.mubr.bf16.mxu0 0
        %6616 = vmatmul.mubr.bf16.gmra.mrb[0].mxu0 %v6415
        %v6617 = vpop.f32.mrb[0].mxu0
        %v6618 = vadd.f32 0.0, %v6617
        %v6619 = vpop.f32.mrb[0].mxu0
        %v6620 = vpop.f32.mrb[0].mxu0
        %v6621 = vadd.f32 0.0, %v6620
        %v6622 = vpop.f32.mrb[0].mxu0
        %6623 = vmatprep.mubr.bf16.mxu0 0
        %6624 = vmatmul.mubr.bf16.gmra.mrb[0].mxu0 %v6418
        %v6625 = vpop.f32.mrb[0].mxu0
        %v6626 = vadd.f32 0.0, %v6625
        %v6627 = vpop.f32.mrb[0].mxu0
        %v6628 = vpop.f32.mrb[0].mxu0
        %v6629 = vadd.f32 0.0, %v6628
        %v6630 = vpop.f32.mrb[0].mxu0
        %6631 = vmatprep.mubr.bf16.mxu0 0
        %6632 = vmatmul.mubr.bf16.gmra.mrb[0].mxu0 %v6421
        %v6633 = vpop.f32.mrb[0].mxu0
        %v6634 = vadd.f32 0.0, %v6633
        %v6635 = vpop.f32.mrb[0].mxu0
        %v6636 = vpop.f32.mrb[0].mxu0
        %v6637 = vadd.f32 0.0, %v6636
        %v6638 = vpop.f32.mrb[0].mxu0
        %6639 = vmatprep.mubr.bf16.mxu0 0
        %6640 = vmatmul.mubr.bf16.gmra.mrb[0].mxu0 %v6424
        %v6641 = vpop.f32.mrb[0].mxu0
        %v6642 = vadd.f32 0.0, %v6641
        %v6643 = vpop.f32.mrb[0].mxu0
        %v6644 = vpop.f32.mrb[0].mxu0
        %v6645 = vadd.f32 0.0, %v6644
        %v6646 = vpop.f32.mrb[0].mxu0
        %6647 = vmatprep.mubr.bf16.mxu0 0
        %6648 = vmatmul.mubr.bf16.gmra.mrb[0].mxu0 %v6427
        %v6649 = vpop.f32.mrb[0].mxu0
        %v6650 = vadd.f32 0.0, %v6649
        %v6651 = vpop.f32.mrb[0].mxu0
        %v6652 = vpop.f32.mrb[0].mxu0
        %v6653 = vadd.f32 0.0, %v6652
        %v6654 = vpop.f32.mrb[0].mxu0
        %6655 = vmatprep.mubr.bf16.mxu0 0
        %6656 = vmatmul.mubr.bf16.gmra.mrb[0].mxu0 %v6430
        %v6657 = vpop.f32.mrb[0].mxu0
        %v6658 = vadd.f32 0.0, %v6657
        %v6659 = vpop.f32.mrb[0].mxu0
        %v6660 = vpop.f32.mrb[0].mxu0
        %v6661 = vadd.f32 0.0, %v6660
        %v6662 = vpop.f32.mrb[0].mxu0
        %6663 = vmatprep.mubr.bf16.mxu0 0
        %6664 = vmatmul.mubr.bf16.gmra.mrb[0].mxu0 %v6433
        %v6665 = vpop.f32.mrb[0].mxu0
        %v6666 = vadd.f32 0.0, %v6665
        %v6667 = vpop.f32.mrb[0].mxu0
        %v6668 = vpop.f32.mrb[0].mxu0
        %v6669 = vadd.f32 0.0, %v6668
        %v6670 = vpop.f32.mrb[0].mxu0
        %6671 = vmatprep.mubr.bf16.mxu0 0
        %6672 = vmatmul.mubr.bf16.gmra.mrb[0].mxu0 %v6436
        %v6673 = vpop.f32.mrb[0].mxu0
        %v6674 = vadd.f32 0.0, %v6673
        %v6675 = vpop.f32.mrb[0].mxu0
        %v6676 = vpop.f32.mrb[0].mxu0
        %v6677 = vadd.f32 0.0, %v6676
        %v6678 = vpop.f32.mrb[0].mxu0
        %6679 = vmatprep.mubr.bf16.mxu0 0
        %6680 = vmatmul.mubr.bf16.gmra.mrb[0].mxu0 %v6439
        %v6681 = vpop.f32.mrb[0].mxu0
        %v6682 = vadd.f32 0.0, %v6681
        %v6683 = vpop.f32.mrb[0].mxu0
        %v6684 = vpop.f32.mrb[0].mxu0
        %v6685 = vadd.f32 0.0, %v6684
        %v6686 = vpop.f32.mrb[0].mxu0
        %6687 = vmatprep.mubr.bf16.mxu0 0
        %6688 = vmatmul.mubr.bf16.gmra.mrb[0].mxu0 %v6442
        %v6689 = vpop.f32.mrb[0].mxu0
        %v6690 = vadd.f32 0.0, %v6689
        %v6691 = vpop.f32.mrb[0].mxu0
        %v6692 = vpop.f32.mrb[0].mxu0
        %v6693 = vadd.f32 0.0, %v6692
        %v6694 = vpop.f32.mrb[0].mxu0
        %6695 = vmatprep.mubr.bf16.mxu0 0
        %6696 = vmatmul.mubr.bf16.gmra.mrb[0].mxu0 %v6445
        %v6697 = vpop.f32.mrb[0].mxu0
        %v6698 = vadd.f32 0.0, %v6697
        %v6699 = vpop.f32.mrb[0].mxu0
        %v6700 = vpop.f32.mrb[0].mxu0
        %v6701 = vadd.f32 0.0, %v6700
        %v6702 = vpop.f32.mrb[0].mxu0
        %6703 = vmatprep.mubr.bf16.mxu0 0
        %6704 = vmatmul.mubr.bf16.gmra.mrb[0].mxu0 %v6448
        %v6705 = vpop.f32.mrb[0].mxu0
        %v6706 = vadd.f32 0.0, %v6705
        %v6707 = vpop.f32.mrb[0].mxu0
        %v6708 = vpop.f32.mrb[0].mxu0
        %v6709 = vadd.f32 0.0, %v6708
        %v6710 = vpop.f32.mrb[0].mxu0
        %6711 = vmatprep.mubr.bf16.mxu0 0
        %6712 = vmatmul.mubr.bf16.gmra.mrb[0].mxu0 %v6451
        %v6713 = vpop.f32.mrb[0].mxu0
        %v6714 = vadd.f32 0.0, %v6713
        %v6715 = vpop.f32.mrb[0].mxu0
        %v6716 = vpop.f32.mrb[0].mxu0
        %v6717 = vadd.f32 0.0, %v6716
        %v6718 = vpop.f32.mrb[0].mxu0
        %6719 = vmatprep.mubr.bf16.mxu0 0
        %6720 = vmatmul.mubr.bf16.gmra.mrb[0].mxu0 %v6454
        %v6721 = vpop.f32.mrb[0].mxu0
        %v6722 = vadd.f32 0.0, %v6721
        %v6723 = vpop.f32.mrb[0].mxu0
        %v6724 = vpop.f32.mrb[0].mxu0
        %v6725 = vadd.f32 0.0, %v6724
        %v6726 = vpop.f32.mrb[0].mxu0
        %6727 = vmatprep.mubr.bf16.mxu0 0
        %6728 = vmatmul.mubr.bf16.gmra.mrb[0].mxu0 %v6457
        %v6729 = vpop.f32.mrb[0].mxu0
        %v6730 = vadd.f32 0.0, %v6729
        %v6731 = vpop.f32.mrb[0].mxu0
        %v6732 = vpop.f32.mrb[0].mxu0
        %v6733 = vadd.f32 0.0, %v6732
        %v6734 = vpop.f32.mrb[0].mxu0
        %6735 = vmatprep.mubr.bf16.mxu0 0
        %6736 = vmatmul.mubr.bf16.gmra.mrb[0].mxu0 %v6460
        %v6737 = vpop.f32.mrb[0].mxu0
        %v6738 = vadd.f32 0.0, %v6737
        %v6739 = vpop.f32.mrb[0].mxu0
        %v6740 = vpop.f32.mrb[0].mxu0
        %v6741 = vadd.f32 0.0, %v6740
        %v6742 = vpop.f32.mrb[0].mxu0
        %6743 = vmatprep.mubr.bf16.mxu0 0
        %6744 = vmatmul.mubr.bf16.gmra.mrb[0].mxu0 %v6463
        %v6745 = vpop.f32.mrb[0].mxu0
        %v6746 = vadd.f32 0.0, %v6745
        %v6747 = vpop.f32.mrb[0].mxu0
        %v6748 = vpop.f32.mrb[0].mxu0
        %v6749 = vadd.f32 0.0, %v6748
        %v6750 = vpop.f32.mrb[0].mxu0
        %6751 = vmatprep.mubr.bf16.mxu0 0
        %6752 = vmatmul.mubr.bf16.gmra.mrb[0].mxu0 %v6466
        %v6753 = vpop.f32.mrb[0].mxu0
        %v6754 = vadd.f32 0.0, %v6753
        %v6755 = vpop.f32.mrb[0].mxu0
        %v6756 = vpop.f32.mrb[0].mxu0
        %v6757 = vadd.f32 0.0, %v6756
        %v6758 = vpop.f32.mrb[0].mxu0
        %6759 = vdwg.mxu0
        %v6760 = vadd.f32 %v6078, %v6506
        %v6761 = vadd.f32 %v6079, %v6509
        %v6762 = vadd.f32 %v6080, %v6514
        %v6763 = vadd.f32 %v6081, %v6517
        %v6764 = vadd.f32 %v6082, %v6522
        %v6765 = vadd.f32 %v6083, %v6525
        %v6766 = vadd.f32 %v6084, %v6530
        %v6767 = vadd.f32 %v6085, %v6533
        %v6768 = vadd.f32 %v6086, %v6538
        %v6769 = vadd.f32 %v6087, %v6541
        %v6770 = vadd.f32 %v6088, %v6546
        %v6771 = vadd.f32 %v6089, %v6549
        %v6772 = vadd.f32 %v6090, %v6554
        %v6773 = vadd.f32 %v6091, %v6557
        %v6774 = vadd.f32 %v6092, %v6562
        %v6775 = vadd.f32 %v6093, %v6565
        %v6776 = vadd.f32 %v6094, %v6570
        %v6777 = vadd.f32 %v6095, %v6573
        %v6778 = vadd.f32 %v6096, %v6578
        %v6779 = vadd.f32 %v6097, %v6581
        %v6780 = vadd.f32 %v6098, %v6586
        %v6781 = vadd.f32 %v6099, %v6589
        %v6782 = vadd.f32 %v6100, %v6594
        %v6783 = vadd.f32 %v6101, %v6597
        %v6784 = vadd.f32 %v6102, %v6602
        %v6785 = vadd.f32 %v6103, %v6605
        %v6786 = vadd.f32 %v6104, %v6610
        %v6787 = vadd.f32 %v6105, %v6613
        %v6788 = vadd.f32 %v6106, %v6618
        %v6789 = vadd.f32 %v6107, %v6621
        %v6790 = vadd.f32 %v6108, %v6626
        %v6791 = vadd.f32 %v6109, %v6629
        %v6792 = vadd.f32 %v6110, %v6634
        %v6793 = vadd.f32 %v6111, %v6637
        %v6794 = vadd.f32 %v6112, %v6642
        %v6795 = vadd.f32 %v6113, %v6645
        %v6796 = vadd.f32 %v6114, %v6650
        %v6797 = vadd.f32 %v6115, %v6653
        %v6798 = vadd.f32 %v6116, %v6658
        %v6799 = vadd.f32 %v6117, %v6661
        %v6800 = vadd.f32 %v6118, %v6666
        %v6801 = vadd.f32 %v6119, %v6669
        %v6802 = vadd.f32 %v6120, %v6674
        %v6803 = vadd.f32 %v6121, %v6677
        %v6804 = vadd.f32 %v6122, %v6682
        %v6805 = vadd.f32 %v6123, %v6685
        %v6806 = vadd.f32 %v6124, %v6690
        %v6807 = vadd.f32 %v6125, %v6693
        %v6808 = vadd.f32 %v6126, %v6698
        %v6809 = vadd.f32 %v6127, %v6701
        %v6810 = vadd.f32 %v6128, %v6706
        %v6811 = vadd.f32 %v6129, %v6709
        %v6812 = vadd.f32 %v6130, %v6714
        %v6813 = vadd.f32 %v6131, %v6717
        %v6814 = vadd.f32 %v6132, %v6722
        %v6815 = vadd.f32 %v6133, %v6725
        %v6816 = vadd.f32 %v6134, %v6730
        %v6817 = vadd.f32 %v6135, %v6733
        %v6818 = vadd.f32 %v6136, %v6738
        %v6819 = vadd.f32 %v6137, %v6741
        %v6820 = vadd.f32 %v6138, %v6746
        %v6821 = vadd.f32 %v6139, %v6749
        %v6822 = vadd.f32 %v6140, %v6754
        %v6823 = vadd.f32 %v6141, %v6757
        %v6824 = vld [vmem:[%s5463] sm:$0xf]
        %v6825 = vld [vmem:[%s5463 + $0x4] sm:$0xf]
        %v6826 = vld [vmem:[%s5463 + $0x8] sm:$0xf]
        %v6827 = vld [vmem:[%s5463 + $0xc] sm:$0xf]
        %v6828 = vld [vmem:[%s5463 + $0x10] sm:$0x1]
        %v6829 = vld [vmem:[%s5463 + $0x14] sm:$0xf]
        %v6830 = vld [vmem:[%s5463 + $0x18] sm:$0xf]
        %v6831 = vld [vmem:[%s5463 + $0x1c] sm:$0xf]
        %v6832 = vld [vmem:[%s5463 + $0x20] sm:$0xf]
        %v6833 = vld [vmem:[%s5463 + $0x24] sm:$0x1]
        %v6834 = vld [vmem:[%s5463 + $0x28] sm:$0xf]
        %v6835 = vld [vmem:[%s5463 + $0x2c] sm:$0xf]
        %v6836 = vld [vmem:[%s5463 + $0x30] sm:$0xf]
        %v6837 = vld [vmem:[%s5463 + $0x34] sm:$0xf]
        %v6838 = vld [vmem:[%s5463 + $0x38] sm:$0x1]
        %v6839 = vld [vmem:[%s5463 + $0x3c] sm:$0xf]
        %v6840 = vld [vmem:[%s5463 + $0x40] sm:$0xf]
        %v6841 = vld [vmem:[%s5463 + $0x44] sm:$0xf]
        %v6842 = vld [vmem:[%s5463 + $0x48] sm:$0xf]
        %v6843 = vld [vmem:[%s5463 + $0x4c] sm:$0x1]
        %v6844 = vld [vmem:[%s5463 + $0x50] sm:$0xf]
        %v6845 = vld [vmem:[%s5463 + $0x54] sm:$0xf]
        %v6846 = vld [vmem:[%s5463 + $0x58] sm:$0xf]
        %v6847 = vld [vmem:[%s5463 + $0x5c] sm:$0xf]
        %v6848 = vld [vmem:[%s5463 + $0x60] sm:$0x1]
        %v6849 = vld [vmem:[%s5463 + $0x64] sm:$0xf]
        %v6850 = vld [vmem:[%s5463 + $0x68] sm:$0xf]
        %v6851 = vld [vmem:[%s5463 + $0x6c] sm:$0xf]
        %v6852 = vld [vmem:[%s5463 + $0x70] sm:$0xf]
        %v6853 = vld [vmem:[%s5463 + $0x74] sm:$0x1]
        %v6854 = vld [vmem:[%s5463 + $0x78] sm:$0xf]
        %v6855 = vld [vmem:[%s5463 + $0x7c] sm:$0xf]
        %v6856 = vld [vmem:[%s5463 + $0x80] sm:$0xf]
        %v6857 = vld [vmem:[%s5463 + $0x84] sm:$0xf]
        %v6858 = vld [vmem:[%s5463 + $0x88] sm:$0x1]
        %v6859 = vld [vmem:[%s5463 + $0x8c] sm:$0xf]
        %v6860 = vld [vmem:[%s5463 + $0x90] sm:$0xf]
        %v6861 = vld [vmem:[%s5463 + $0x94] sm:$0xf]
        %v6862 = vld [vmem:[%s5463 + $0x98] sm:$0xf]
        %v6863 = vld [vmem:[%s5463 + $0x9c] sm:$0x1]
        %v6864 = vld [vmem:[%s5463 + $0xa0] sm:$0xf]
        %v6865 = vld [vmem:[%s5463 + $0xa4] sm:$0xf]
        %v6866 = vld [vmem:[%s5463 + $0xa8] sm:$0xf]
        %v6867 = vld [vmem:[%s5463 + $0xac] sm:$0xf]
        %v6868 = vld [vmem:[%s5463 + $0xb0] sm:$0x1]
        %v6869 = vld [vmem:[%s5463 + $0xb4] sm:$0xf]
        %v6870 = vld [vmem:[%s5463 + $0xb8] sm:$0xf]
        %v6871 = vld [vmem:[%s5463 + $0xbc] sm:$0xf]
        %v6872 = vld [vmem:[%s5463 + $0xc0] sm:$0xf]
        %v6873 = vld [vmem:[%s5463 + $0xc4] sm:$0x1]
        %v6874 = vld [vmem:[%s5463 + $0xc8] sm:$0xf]
        %v6875 = vld [vmem:[%s5463 + $0xcc] sm:$0xf]
        %v6876 = vld [vmem:[%s5463 + $0xd0] sm:$0xf]
        %v6877 = vld [vmem:[%s5463 + $0xd4] sm:$0xf]
        %v6878 = vld [vmem:[%s5463 + $0xd8] sm:$0x1]
        %v6879 = vld [vmem:[%s5463 + $0xdc] sm:$0xf]
        %v6880 = vld [vmem:[%s5463 + $0xe0] sm:$0xf]
        %v6881 = vld [vmem:[%s5463 + $0xe4] sm:$0xf]
        %v6882 = vld [vmem:[%s5463 + $0xe8] sm:$0xf]
        %v6883 = vld [vmem:[%s5463 + $0xec] sm:$0x1]
        %v6884 = vld [vmem:[%s5463 + $0xf0] sm:$0xf]
        %v6885 = vld [vmem:[%s5463 + $0xf4] sm:$0xf]
        %v6886 = vld [vmem:[%s5463 + $0xf8] sm:$0xf]
        %v6887 = vld [vmem:[%s5463 + $0xfc] sm:$0xf]
        %v6888 = vld [vmem:[%s5463 + $0x100] sm:$0x1]
        %v6889 = vld [vmem:[%s5463 + $0x104] sm:$0xf]
        %v6890 = vld [vmem:[%s5463 + $0x108] sm:$0xf]
        %v6891 = vld [vmem:[%s5463 + $0x10c] sm:$0xf]
        %v6892 = vld [vmem:[%s5463 + $0x110] sm:$0xf]
        %v6893 = vld [vmem:[%s5463 + $0x114] sm:$0x1]
        %v6894 = vld [vmem:[%s5463 + $0x118] sm:$0xf]
        %v6895 = vld [vmem:[%s5463 + $0x11c] sm:$0xf]
        %v6896 = vld [vmem:[%s5463 + $0x120] sm:$0xf]
        %v6897 = vld [vmem:[%s5463 + $0x124] sm:$0xf]
        %v6898 = vld [vmem:[%s5463 + $0x128] sm:$0x1]
        %v6899 = vld [vmem:[%s5463 + $0x12c] sm:$0xf]
        %v6900 = vld [vmem:[%s5463 + $0x130] sm:$0xf]
        %v6901 = vld [vmem:[%s5463 + $0x134] sm:$0xf]
        %v6902 = vld [vmem:[%s5463 + $0x138] sm:$0xf]
        %v6903 = vld [vmem:[%s5463 + $0x13c] sm:$0x1]
        %v6905 = vshrl.u32 %v6824, 16
        %v6907 = vrot.slane %v6905, 4
        %v6908 = vshll.u32 %v6824, 16
        %v6910 = vrot.slane %v6908, 5
        %v6911 = vor.u32 %v6907, %v6910
        %v6912 = vrot.slane %v6911, 4
        %v6914 = vshll.u32 %v6825, 16
        %v6916 = vrot.slane %v6914, 5
        %v6917 = vsel %vm1507, %v6912, %v6916
        %v6918 = vshrl.u32 %v6825, 16
        %v6920 = vrot.slane %v6918, 4
        %v6921 = vor.u32 %v6920, %v6916
        %v6922 = vrot.slane %v6921, 4
        %v6924 = vshll.u32 %v6826, 16
        %v6926 = vrot.slane %v6924, 5
        %v6927 = vsel %vm1507, %v6922, %v6926
        %v6928 = vshrl.u32 %v6826, 16
        %v6930 = vrot.slane %v6928, 4
        %v6931 = vor.u32 %v6930, %v6926
        %v6932 = vrot.slane %v6931, 4
        %v6934 = vshll.u32 %v6827, 16
        %v6936 = vrot.slane %v6934, 5
        %v6937 = vsel %vm1507, %v6932, %v6936
        %v6938 = vshrl.u32 %v6827, 16
        %v6940 = vrot.slane %v6938, 4
        %v6941 = vor.u32 %v6940, %v6936
        %v6942 = vrot.slane %v6941, 4
        %v6944 = vshll.u32 %v6828, 16
        %v6946 = vrot.slane %v6944, 5
        %v6947 = vsel %vm1507, %v6942, %v6946
        %v6949 = vshrl.u32 %v6829, 16
        %v6951 = vrot.slane %v6949, 4
        %v6952 = vshll.u32 %v6829, 16
        %v6954 = vrot.slane %v6952, 5
        %v6955 = vor.u32 %v6951, %v6954
        %v6956 = vrot.slane %v6955, 4
        %v6958 = vshll.u32 %v6830, 16
        %v6960 = vrot.slane %v6958, 5
        %v6961 = vsel %vm1507, %v6956, %v6960
        %v6962 = vshrl.u32 %v6830, 16
        %v6964 = vrot.slane %v6962, 4
        %v6965 = vor.u32 %v6964, %v6960
        %v6966 = vrot.slane %v6965, 4
        %v6968 = vshll.u32 %v6831, 16
        %v6970 = vrot.slane %v6968, 5
        %v6971 = vsel %vm1507, %v6966, %v6970
        %v6972 = vshrl.u32 %v6831, 16
        %v6974 = vrot.slane %v6972, 4
        %v6975 = vor.u32 %v6974, %v6970
        %v6976 = vrot.slane %v6975, 4
        %v6978 = vshll.u32 %v6832, 16
        %v6980 = vrot.slane %v6978, 5
        %v6981 = vsel %vm1507, %v6976, %v6980
        %v6982 = vshrl.u32 %v6832, 16
        %v6984 = vrot.slane %v6982, 4
        %v6985 = vor.u32 %v6984, %v6980
        %v6986 = vrot.slane %v6985, 4
        %v6988 = vshll.u32 %v6833, 16
        %v6990 = vrot.slane %v6988, 5
        %v6991 = vsel %vm1507, %v6986, %v6990
        %v6993 = vshrl.u32 %v6834, 16
        %v6995 = vrot.slane %v6993, 4
        %v6996 = vshll.u32 %v6834, 16
        %v6998 = vrot.slane %v6996, 5
        %v6999 = vor.u32 %v6995, %v6998
        %v7000 = vrot.slane %v6999, 4
        %v7002 = vshll.u32 %v6835, 16
        %v7004 = vrot.slane %v7002, 5
        %v7005 = vsel %vm1507, %v7000, %v7004
        %v7006 = vshrl.u32 %v6835, 16
        %v7008 = vrot.slane %v7006, 4
        %v7009 = vor.u32 %v7008, %v7004
        %v7010 = vrot.slane %v7009, 4
        %v7012 = vshll.u32 %v6836, 16
        %v7014 = vrot.slane %v7012, 5
        %v7015 = vsel %vm1507, %v7010, %v7014
        %v7016 = vshrl.u32 %v6836, 16
        %v7018 = vrot.slane %v7016, 4
        %v7019 = vor.u32 %v7018, %v7014
        %v7020 = vrot.slane %v7019, 4
        %v7022 = vshll.u32 %v6837, 16
        %v7024 = vrot.slane %v7022, 5
        %v7025 = vsel %vm1507, %v7020, %v7024
        %v7026 = vshrl.u32 %v6837, 16
        %v7028 = vrot.slane %v7026, 4
        %v7029 = vor.u32 %v7028, %v7024
        %v7030 = vrot.slane %v7029, 4
        %v7032 = vshll.u32 %v6838, 16
        %v7034 = vrot.slane %v7032, 5
        %v7035 = vsel %vm1507, %v7030, %v7034
        %v7037 = vshrl.u32 %v6839, 16
        %v7039 = vrot.slane %v7037, 4
        %v7040 = vshll.u32 %v6839, 16
        %v7042 = vrot.slane %v7040, 5
        %v7043 = vor.u32 %v7039, %v7042
        %v7044 = vrot.slane %v7043, 4
        %v7046 = vshll.u32 %v6840, 16
        %v7048 = vrot.slane %v7046, 5
        %v7049 = vsel %vm1507, %v7044, %v7048
        %v7050 = vshrl.u32 %v6840, 16
        %v7052 = vrot.slane %v7050, 4
        %v7053 = vor.u32 %v7052, %v7048
        %v7054 = vrot.slane %v7053, 4
        %v7056 = vshll.u32 %v6841, 16
        %v7058 = vrot.slane %v7056, 5
        %v7059 = vsel %vm1507, %v7054, %v7058
        %v7060 = vshrl.u32 %v6841, 16
        %v7062 = vrot.slane %v7060, 4
        %v7063 = vor.u32 %v7062, %v7058
        %v7064 = vrot.slane %v7063, 4
        %v7066 = vshll.u32 %v6842, 16
        %v7068 = vrot.slane %v7066, 5
        %v7069 = vsel %vm1507, %v7064, %v7068
        %v7070 = vshrl.u32 %v6842, 16
        %v7072 = vrot.slane %v7070, 4
        %v7073 = vor.u32 %v7072, %v7068
        %v7074 = vrot.slane %v7073, 4
        %v7076 = vshll.u32 %v6843, 16
        %v7078 = vrot.slane %v7076, 5
        %v7079 = vsel %vm1507, %v7074, %v7078
        %v7081 = vshrl.u32 %v6844, 16
        %v7083 = vrot.slane %v7081, 4
        %v7084 = vshll.u32 %v6844, 16
        %v7086 = vrot.slane %v7084, 5
        %v7087 = vor.u32 %v7083, %v7086
        %v7088 = vrot.slane %v7087, 4
        %v7090 = vshll.u32 %v6845, 16
        %v7092 = vrot.slane %v7090, 5
        %v7093 = vsel %vm1507, %v7088, %v7092
        %v7094 = vshrl.u32 %v6845, 16
        %v7096 = vrot.slane %v7094, 4
        %v7097 = vor.u32 %v7096, %v7092
        %v7098 = vrot.slane %v7097, 4
        %v7100 = vshll.u32 %v6846, 16
        %v7102 = vrot.slane %v7100, 5
        %v7103 = vsel %vm1507, %v7098, %v7102
        %v7104 = vshrl.u32 %v6846, 16
        %v7106 = vrot.slane %v7104, 4
        %v7107 = vor.u32 %v7106, %v7102
        %v7108 = vrot.slane %v7107, 4
        %v7110 = vshll.u32 %v6847, 16
        %v7112 = vrot.slane %v7110, 5
        %v7113 = vsel %vm1507, %v7108, %v7112
        %v7114 = vshrl.u32 %v6847, 16
        %v7116 = vrot.slane %v7114, 4
        %v7117 = vor.u32 %v7116, %v7112
        %v7118 = vrot.slane %v7117, 4
        %v7120 = vshll.u32 %v6848, 16
        %v7122 = vrot.slane %v7120, 5
        %v7123 = vsel %vm1507, %v7118, %v7122
        %v7125 = vshrl.u32 %v6849, 16
        %v7127 = vrot.slane %v7125, 4
        %v7128 = vshll.u32 %v6849, 16
        %v7130 = vrot.slane %v7128, 5
        %v7131 = vor.u32 %v7127, %v7130
        %v7132 = vrot.slane %v7131, 4
        %v7134 = vshll.u32 %v6850, 16
        %v7136 = vrot.slane %v7134, 5
        %v7137 = vsel %vm1507, %v7132, %v7136
        %v7138 = vshrl.u32 %v6850, 16
        %v7140 = vrot.slane %v7138, 4
        %v7141 = vor.u32 %v7140, %v7136
        %v7142 = vrot.slane %v7141, 4
        %v7144 = vshll.u32 %v6851, 16
        %v7146 = vrot.slane %v7144, 5
        %v7147 = vsel %vm1507, %v7142, %v7146
        %v7148 = vshrl.u32 %v6851, 16
        %v7150 = vrot.slane %v7148, 4
        %v7151 = vor.u32 %v7150, %v7146
        %v7152 = vrot.slane %v7151, 4
        %v7154 = vshll.u32 %v6852, 16
        %v7156 = vrot.slane %v7154, 5
        %v7157 = vsel %vm1507, %v7152, %v7156
        %v7158 = vshrl.u32 %v6852, 16
        %v7160 = vrot.slane %v7158, 4
        %v7161 = vor.u32 %v7160, %v7156
        %v7162 = vrot.slane %v7161, 4
        %v7164 = vshll.u32 %v6853, 16
        %v7166 = vrot.slane %v7164, 5
        %v7167 = vsel %vm1507, %v7162, %v7166
        %v7169 = vshrl.u32 %v6854, 16
        %v7171 = vrot.slane %v7169, 4
        %v7172 = vshll.u32 %v6854, 16
        %v7174 = vrot.slane %v7172, 5
        %v7175 = vor.u32 %v7171, %v7174
        %v7176 = vrot.slane %v7175, 4
        %v7178 = vshll.u32 %v6855, 16
        %v7180 = vrot.slane %v7178, 5
        %v7181 = vsel %vm1507, %v7176, %v7180
        %v7182 = vshrl.u32 %v6855, 16
        %v7184 = vrot.slane %v7182, 4
        %v7185 = vor.u32 %v7184, %v7180
        %v7186 = vrot.slane %v7185, 4
        %v7188 = vshll.u32 %v6856, 16
        %v7190 = vrot.slane %v7188, 5
        %v7191 = vsel %vm1507, %v7186, %v7190
        %v7192 = vshrl.u32 %v6856, 16
        %v7194 = vrot.slane %v7192, 4
        %v7195 = vor.u32 %v7194, %v7190
        %v7196 = vrot.slane %v7195, 4
        %v7198 = vshll.u32 %v6857, 16
        %v7200 = vrot.slane %v7198, 5
        %v7201 = vsel %vm1507, %v7196, %v7200
        %v7202 = vshrl.u32 %v6857, 16
        %v7204 = vrot.slane %v7202, 4
        %v7205 = vor.u32 %v7204, %v7200
        %v7206 = vrot.slane %v7205, 4
        %v7208 = vshll.u32 %v6858, 16
        %v7210 = vrot.slane %v7208, 5
        %v7211 = vsel %vm1507, %v7206, %v7210
        %v7213 = vshrl.u32 %v6859, 16
        %v7215 = vrot.slane %v7213, 4
        %v7216 = vshll.u32 %v6859, 16
        %v7218 = vrot.slane %v7216, 5
        %v7219 = vor.u32 %v7215, %v7218
        %v7220 = vrot.slane %v7219, 4
        %v7222 = vshll.u32 %v6860, 16
        %v7224 = vrot.slane %v7222, 5
        %v7225 = vsel %vm1507, %v7220, %v7224
        %v7226 = vshrl.u32 %v6860, 16
        %v7228 = vrot.slane %v7226, 4
        %v7229 = vor.u32 %v7228, %v7224
        %v7230 = vrot.slane %v7229, 4
        %v7232 = vshll.u32 %v6861, 16
        %v7234 = vrot.slane %v7232, 5
        %v7235 = vsel %vm1507, %v7230, %v7234
        %v7236 = vshrl.u32 %v6861, 16
        %v7238 = vrot.slane %v7236, 4
        %v7239 = vor.u32 %v7238, %v7234
        %v7240 = vrot.slane %v7239, 4
        %v7242 = vshll.u32 %v6862, 16
        %v7244 = vrot.slane %v7242, 5
        %v7245 = vsel %vm1507, %v7240, %v7244
        %v7246 = vshrl.u32 %v6862, 16
        %v7248 = vrot.slane %v7246, 4
        %v7249 = vor.u32 %v7248, %v7244
        %v7250 = vrot.slane %v7249, 4
        %v7252 = vshll.u32 %v6863, 16
        %v7254 = vrot.slane %v7252, 5
        %v7255 = vsel %vm1507, %v7250, %v7254
        %v7257 = vshrl.u32 %v6864, 16
        %v7259 = vrot.slane %v7257, 4
        %v7260 = vshll.u32 %v6864, 16
        %v7262 = vrot.slane %v7260, 5
        %v7263 = vor.u32 %v7259, %v7262
        %v7264 = vrot.slane %v7263, 4
        %v7266 = vshll.u32 %v6865, 16
        %v7268 = vrot.slane %v7266, 5
        %v7269 = vsel %vm1507, %v7264, %v7268
        %v7270 = vshrl.u32 %v6865, 16
        %v7272 = vrot.slane %v7270, 4
        %v7273 = vor.u32 %v7272, %v7268
        %v7274 = vrot.slane %v7273, 4
        %v7276 = vshll.u32 %v6866, 16
        %v7278 = vrot.slane %v7276, 5
        %v7279 = vsel %vm1507, %v7274, %v7278
        %v7280 = vshrl.u32 %v6866, 16
        %v7282 = vrot.slane %v7280, 4
        %v7283 = vor.u32 %v7282, %v7278
        %v7284 = vrot.slane %v7283, 4
        %v7286 = vshll.u32 %v6867, 16
        %v7288 = vrot.slane %v7286, 5
        %v7289 = vsel %vm1507, %v7284, %v7288
        %v7290 = vshrl.u32 %v6867, 16
        %v7292 = vrot.slane %v7290, 4
        %v7293 = vor.u32 %v7292, %v7288
        %v7294 = vrot.slane %v7293, 4
        %v7296 = vshll.u32 %v6868, 16
        %v7298 = vrot.slane %v7296, 5
        %v7299 = vsel %vm1507, %v7294, %v7298
        %v7301 = vshrl.u32 %v6869, 16
        %v7303 = vrot.slane %v7301, 4
        %v7304 = vshll.u32 %v6869, 16
        %v7306 = vrot.slane %v7304, 5
        %v7307 = vor.u32 %v7303, %v7306
        %v7308 = vrot.slane %v7307, 4
        %v7310 = vshll.u32 %v6870, 16
        %v7312 = vrot.slane %v7310, 5
        %v7313 = vsel %vm1507, %v7308, %v7312
        %v7314 = vshrl.u32 %v6870, 16
        %v7316 = vrot.slane %v7314, 4
        %v7317 = vor.u32 %v7316, %v7312
        %v7318 = vrot.slane %v7317, 4
        %v7320 = vshll.u32 %v6871, 16
        %v7322 = vrot.slane %v7320, 5
        %v7323 = vsel %vm1507, %v7318, %v7322
        %v7324 = vshrl.u32 %v6871, 16
        %v7326 = vrot.slane %v7324, 4
        %v7327 = vor.u32 %v7326, %v7322
        %v7328 = vrot.slane %v7327, 4
        %v7330 = vshll.u32 %v6872, 16
        %v7332 = vrot.slane %v7330, 5
        %v7333 = vsel %vm1507, %v7328, %v7332
        %v7334 = vshrl.u32 %v6872, 16
        %v7336 = vrot.slane %v7334, 4
        %v7337 = vor.u32 %v7336, %v7332
        %v7338 = vrot.slane %v7337, 4
        %v7340 = vshll.u32 %v6873, 16
        %v7342 = vrot.slane %v7340, 5
        %v7343 = vsel %vm1507, %v7338, %v7342
        %v7345 = vshrl.u32 %v6874, 16
        %v7347 = vrot.slane %v7345, 4
        %v7348 = vshll.u32 %v6874, 16
        %v7350 = vrot.slane %v7348, 5
        %v7351 = vor.u32 %v7347, %v7350
        %v7352 = vrot.slane %v7351, 4
        %v7354 = vshll.u32 %v6875, 16
        %v7356 = vrot.slane %v7354, 5
        %v7357 = vsel %vm1507, %v7352, %v7356
        %v7358 = vshrl.u32 %v6875, 16
        %v7360 = vrot.slane %v7358, 4
        %v7361 = vor.u32 %v7360, %v7356
        %v7362 = vrot.slane %v7361, 4
        %v7364 = vshll.u32 %v6876, 16
        %v7366 = vrot.slane %v7364, 5
        %v7367 = vsel %vm1507, %v7362, %v7366
        %v7368 = vshrl.u32 %v6876, 16
        %v7370 = vrot.slane %v7368, 4
        %v7371 = vor.u32 %v7370, %v7366
        %v7372 = vrot.slane %v7371, 4
        %v7374 = vshll.u32 %v6877, 16
        %v7376 = vrot.slane %v7374, 5
        %v7377 = vsel %vm1507, %v7372, %v7376
        %v7378 = vshrl.u32 %v6877, 16
        %v7380 = vrot.slane %v7378, 4
        %v7381 = vor.u32 %v7380, %v7376
        %v7382 = vrot.slane %v7381, 4
        %v7384 = vshll.u32 %v6878, 16
        %v7386 = vrot.slane %v7384, 5
        %v7387 = vsel %vm1507, %v7382, %v7386
        %v7389 = vshrl.u32 %v6879, 16
        %v7391 = vrot.slane %v7389, 4
        %v7392 = vshll.u32 %v6879, 16
        %v7394 = vrot.slane %v7392, 5
        %v7395 = vor.u32 %v7391, %v7394
        %v7396 = vrot.slane %v7395, 4
        %v7398 = vshll.u32 %v6880, 16
        %v7400 = vrot.slane %v7398, 5
        %v7401 = vsel %vm1507, %v7396, %v7400
        %v7402 = vshrl.u32 %v6880, 16
        %v7404 = vrot.slane %v7402, 4
        %v7405 = vor.u32 %v7404, %v7400
        %v7406 = vrot.slane %v7405, 4
        %v7408 = vshll.u32 %v6881, 16
        %v7410 = vrot.slane %v7408, 5
        %v7411 = vsel %vm1507, %v7406, %v7410
        %v7412 = vshrl.u32 %v6881, 16
        %v7414 = vrot.slane %v7412, 4
        %v7415 = vor.u32 %v7414, %v7410
        %v7416 = vrot.slane %v7415, 4
        %v7418 = vshll.u32 %v6882, 16
        %v7420 = vrot.slane %v7418, 5
        %v7421 = vsel %vm1507, %v7416, %v7420
        %v7422 = vshrl.u32 %v6882, 16
        %v7424 = vrot.slane %v7422, 4
        %v7425 = vor.u32 %v7424, %v7420
        %v7426 = vrot.slane %v7425, 4
        %v7428 = vshll.u32 %v6883, 16
        %v7430 = vrot.slane %v7428, 5
        %v7431 = vsel %vm1507, %v7426, %v7430
        %v7433 = vshrl.u32 %v6884, 16
        %v7435 = vrot.slane %v7433, 4
        %v7436 = vshll.u32 %v6884, 16
        %v7438 = vrot.slane %v7436, 5
        %v7439 = vor.u32 %v7435, %v7438
        %v7440 = vrot.slane %v7439, 4
        %v7442 = vshll.u32 %v6885, 16
        %v7444 = vrot.slane %v7442, 5
        %v7445 = vsel %vm1507, %v7440, %v7444
        %v7446 = vshrl.u32 %v6885, 16
        %v7448 = vrot.slane %v7446, 4
        %v7449 = vor.u32 %v7448, %v7444
        %v7450 = vrot.slane %v7449, 4
        %v7452 = vshll.u32 %v6886, 16
        %v7454 = vrot.slane %v7452, 5
        %v7455 = vsel %vm1507, %v7450, %v7454
        %v7456 = vshrl.u32 %v6886, 16
        %v7458 = vrot.slane %v7456, 4
        %v7459 = vor.u32 %v7458, %v7454
        %v7460 = vrot.slane %v7459, 4
        %v7462 = vshll.u32 %v6887, 16
        %v7464 = vrot.slane %v7462, 5
        %v7465 = vsel %vm1507, %v7460, %v7464
        %v7466 = vshrl.u32 %v6887, 16
        %v7468 = vrot.slane %v7466, 4
        %v7469 = vor.u32 %v7468, %v7464
        %v7470 = vrot.slane %v7469, 4
        %v7472 = vshll.u32 %v6888, 16
        %v7474 = vrot.slane %v7472, 5
        %v7475 = vsel %vm1507, %v7470, %v7474
        %v7477 = vshrl.u32 %v6889, 16
        %v7479 = vrot.slane %v7477, 4
        %v7480 = vshll.u32 %v6889, 16
        %v7482 = vrot.slane %v7480, 5
        %v7483 = vor.u32 %v7479, %v7482
        %v7484 = vrot.slane %v7483, 4
        %v7486 = vshll.u32 %v6890, 16
        %v7488 = vrot.slane %v7486, 5
        %v7489 = vsel %vm1507, %v7484, %v7488
        %v7490 = vshrl.u32 %v6890, 16
        %v7492 = vrot.slane %v7490, 4
        %v7493 = vor.u32 %v7492, %v7488
        %v7494 = vrot.slane %v7493, 4
        %v7496 = vshll.u32 %v6891, 16
        %v7498 = vrot.slane %v7496, 5
        %v7499 = vsel %vm1507, %v7494, %v7498
        %v7500 = vshrl.u32 %v6891, 16
        %v7502 = vrot.slane %v7500, 4
        %v7503 = vor.u32 %v7502, %v7498
        %v7504 = vrot.slane %v7503, 4
        %v7506 = vshll.u32 %v6892, 16
        %v7508 = vrot.slane %v7506, 5
        %v7509 = vsel %vm1507, %v7504, %v7508
        %v7510 = vshrl.u32 %v6892, 16
        %v7512 = vrot.slane %v7510, 4
        %v7513 = vor.u32 %v7512, %v7508
        %v7514 = vrot.slane %v7513, 4
        %v7516 = vshll.u32 %v6893, 16
        %v7518 = vrot.slane %v7516, 5
        %v7519 = vsel %vm1507, %v7514, %v7518
        %v7521 = vshrl.u32 %v6894, 16
        %v7523 = vrot.slane %v7521, 4
        %v7524 = vshll.u32 %v6894, 16
        %v7526 = vrot.slane %v7524, 5
        %v7527 = vor.u32 %v7523, %v7526
        %v7528 = vrot.slane %v7527, 4
        %v7530 = vshll.u32 %v6895, 16
        %v7532 = vrot.slane %v7530, 5
        %v7533 = vsel %vm1507, %v7528, %v7532
        %v7534 = vshrl.u32 %v6895, 16
        %v7536 = vrot.slane %v7534, 4
        %v7537 = vor.u32 %v7536, %v7532
        %v7538 = vrot.slane %v7537, 4
        %v7540 = vshll.u32 %v6896, 16
        %v7542 = vrot.slane %v7540, 5
        %v7543 = vsel %vm1507, %v7538, %v7542
        %v7544 = vshrl.u32 %v6896, 16
        %v7546 = vrot.slane %v7544, 4
        %v7547 = vor.u32 %v7546, %v7542
        %v7548 = vrot.slane %v7547, 4
        %v7550 = vshll.u32 %v6897, 16
        %v7552 = vrot.slane %v7550, 5
        %v7553 = vsel %vm1507, %v7548, %v7552
        %v7554 = vshrl.u32 %v6897, 16
        %v7556 = vrot.slane %v7554, 4
        %v7557 = vor.u32 %v7556, %v7552
        %v7558 = vrot.slane %v7557, 4
        %v7560 = vshll.u32 %v6898, 16
        %v7562 = vrot.slane %v7560, 5
        %v7563 = vsel %vm1507, %v7558, %v7562
        %v7565 = vshrl.u32 %v6899, 16
        %v7567 = vrot.slane %v7565, 4
        %v7568 = vshll.u32 %v6899, 16
        %v7570 = vrot.slane %v7568, 5
        %v7571 = vor.u32 %v7567, %v7570
        %v7572 = vrot.slane %v7571, 4
        %v7574 = vshll.u32 %v6900, 16
        %v7576 = vrot.slane %v7574, 5
        %v7577 = vsel %vm1507, %v7572, %v7576
        %v7578 = vshrl.u32 %v6900, 16
        %v7580 = vrot.slane %v7578, 4
        %v7581 = vor.u32 %v7580, %v7576
        %v7582 = vrot.slane %v7581, 4
        %v7584 = vshll.u32 %v6901, 16
        %v7586 = vrot.slane %v7584, 5
        %v7587 = vsel %vm1507, %v7582, %v7586
        %v7588 = vshrl.u32 %v6901, 16
        %v7590 = vrot.slane %v7588, 4
        %v7591 = vor.u32 %v7590, %v7586
        %v7592 = vrot.slane %v7591, 4
        %v7594 = vshll.u32 %v6902, 16
        %v7596 = vrot.slane %v7594, 5
        %v7597 = vsel %vm1507, %v7592, %v7596
        %v7598 = vshrl.u32 %v6902, 16
        %v7600 = vrot.slane %v7598, 4
        %v7601 = vor.u32 %v7600, %v7596
        %v7602 = vrot.slane %v7601, 4
        %v7604 = vshll.u32 %v6903, 16
        %v7606 = vrot.slane %v7604, 5
        %v7607 = vsel %vm1507, %v7602, %v7606
        %s7608 = scalar_lea.vmem %s1, 16
        %v7609 = vld [vmem:[%s7608] sm:$0x3]
        %v7610 = vunpack.c.l.b16 %v6917
        %v7611 = vunpack.c.l.b16 %v6927
        %v7612 = vunpack.c.l.b16 %v6937
        %v7613 = vunpack.c.l.b16 %v6947
        %v7614 = vunpack.c.l.b16 %v6961
        %v7615 = vunpack.c.l.b16 %v6971
        %v7616 = vunpack.c.l.b16 %v6981
        %v7617 = vunpack.c.l.b16 %v6991
        %v7618 = vunpack.c.l.b16 %v7005
        %v7619 = vunpack.c.l.b16 %v7015
        %v7620 = vunpack.c.l.b16 %v7025
        %v7621 = vunpack.c.l.b16 %v7035
        %v7622 = vunpack.c.l.b16 %v7049
        %v7623 = vunpack.c.l.b16 %v7059
        %v7624 = vunpack.c.l.b16 %v7069
        %v7625 = vunpack.c.l.b16 %v7079
        %v7626 = vunpack.c.l.b16 %v7093
        %v7627 = vunpack.c.l.b16 %v7103
        %v7628 = vunpack.c.l.b16 %v7113
        %v7629 = vunpack.c.l.b16 %v7123
        %v7630 = vunpack.c.l.b16 %v7137
        %v7631 = vunpack.c.l.b16 %v7147
        %v7632 = vunpack.c.l.b16 %v7157
        %v7633 = vunpack.c.l.b16 %v7167
        %v7634 = vunpack.c.l.b16 %v7181
        %v7635 = vunpack.c.l.b16 %v7191
        %v7636 = vunpack.c.l.b16 %v7201
        %v7637 = vunpack.c.l.b16 %v7211
        %v7638 = vunpack.c.l.b16 %v7225
        %v7639 = vunpack.c.l.b16 %v7235
        %v7640 = vunpack.c.l.b16 %v7245
        %v7641 = vunpack.c.l.b16 %v7255
        %v7642 = vunpack.c.l.b16 %v7269
        %v7643 = vunpack.c.l.b16 %v7279
        %v7644 = vunpack.c.l.b16 %v7289
        %v7645 = vunpack.c.l.b16 %v7299
        %v7646 = vunpack.c.l.b16 %v7313
        %v7647 = vunpack.c.l.b16 %v7323
        %v7648 = vunpack.c.l.b16 %v7333
        %v7649 = vunpack.c.l.b16 %v7343
        %v7650 = vunpack.c.l.b16 %v7357
        %v7651 = vunpack.c.l.b16 %v7367
        %v7652 = vunpack.c.l.b16 %v7377
        %v7653 = vunpack.c.l.b16 %v7387
        %v7654 = vunpack.c.l.b16 %v7401
        %v7655 = vunpack.c.l.b16 %v7411
        %v7656 = vunpack.c.l.b16 %v7421
        %v7657 = vunpack.c.l.b16 %v7431
        %v7658 = vunpack.c.l.b16 %v7445
        %v7659 = vunpack.c.l.b16 %v7455
        %v7660 = vunpack.c.l.b16 %v7465
        %v7661 = vunpack.c.l.b16 %v7475
        %v7662 = vunpack.c.l.b16 %v7489
        %v7663 = vunpack.c.l.b16 %v7499
        %v7664 = vunpack.c.l.b16 %v7509
        %v7665 = vunpack.c.l.b16 %v7519
        %v7666 = vunpack.c.l.b16 %v7533
        %v7667 = vunpack.c.l.b16 %v7543
        %v7668 = vunpack.c.l.b16 %v7553
        %v7669 = vunpack.c.l.b16 %v7563
        %v7670 = vunpack.c.l.b16 %v7577
        %v7671 = vunpack.c.l.b16 %v7587
        %v7672 = vunpack.c.l.b16 %v7597
        %v7673 = vunpack.c.l.b16 %v7607
        %v7674 = vpack.c.b16 %v7611, %v7610
        %v7675 = vpack.c.b16 %v7613, %v7612
        %v7676 = vpack.c.b16 %v7615, %v7614
        %v7677 = vpack.c.b16 %v7617, %v7616
        %v7678 = vpack.c.b16 %v7619, %v7618
        %v7679 = vpack.c.b16 %v7621, %v7620
        %v7680 = vpack.c.b16 %v7623, %v7622
        %v7681 = vpack.c.b16 %v7625, %v7624
        %v7682 = vpack.c.b16 %v7627, %v7626
        %v7683 = vpack.c.b16 %v7629, %v7628
        %v7684 = vpack.c.b16 %v7631, %v7630
        %v7685 = vpack.c.b16 %v7633, %v7632
        %v7686 = vpack.c.b16 %v7635, %v7634
        %v7687 = vpack.c.b16 %v7637, %v7636
        %v7688 = vpack.c.b16 %v7639, %v7638
        %v7689 = vpack.c.b16 %v7641, %v7640
        %v7690 = vpack.c.b16 %v7643, %v7642
        %v7691 = vpack.c.b16 %v7645, %v7644
        %v7692 = vpack.c.b16 %v7647, %v7646
        %v7693 = vpack.c.b16 %v7649, %v7648
        %v7694 = vpack.c.b16 %v7651, %v7650
        %v7695 = vpack.c.b16 %v7653, %v7652
        %v7696 = vpack.c.b16 %v7655, %v7654
        %v7697 = vpack.c.b16 %v7657, %v7656
        %v7698 = vpack.c.b16 %v7659, %v7658
        %v7699 = vpack.c.b16 %v7661, %v7660
        %v7700 = vpack.c.b16 %v7663, %v7662
        %v7701 = vpack.c.b16 %v7665, %v7664
        %v7702 = vpack.c.b16 %v7667, %v7666
        %v7703 = vpack.c.b16 %v7669, %v7668
        %v7704 = vpack.c.b16 %v7671, %v7670
        %v7705 = vpack.c.b16 %v7673, %v7672
        %v7707 = vsel %vm484, %v7674, 0
        %v7710 = vsel %vm484, %v7675, 0
        %v7713 = vsel %vm484, %v7676, 0
        %v7716 = vsel %vm484, %v7677, 0
        %v7719 = vsel %vm484, %v7678, 0
        %v7722 = vsel %vm484, %v7679, 0
        %v7725 = vsel %vm484, %v7680, 0
        %v7728 = vsel %vm484, %v7681, 0
        %v7731 = vsel %vm484, %v7682, 0
        %v7734 = vsel %vm484, %v7683, 0
        %v7737 = vsel %vm484, %v7684, 0
        %v7740 = vsel %vm484, %v7685, 0
        %v7743 = vsel %vm484, %v7686, 0
        %v7746 = vsel %vm484, %v7687, 0
        %v7749 = vsel %vm484, %v7688, 0
        %v7752 = vsel %vm484, %v7689, 0
        %v7755 = vsel %vm484, %v7690, 0
        %v7758 = vsel %vm484, %v7691, 0
        %v7761 = vsel %vm484, %v7692, 0
        %v7764 = vsel %vm484, %v7693, 0
        %v7767 = vsel %vm484, %v7694, 0
        %v7770 = vsel %vm484, %v7695, 0
        %v7773 = vsel %vm484, %v7696, 0
        %v7776 = vsel %vm484, %v7697, 0
        %v7779 = vsel %vm484, %v7698, 0
        %v7782 = vsel %vm484, %v7699, 0
        %v7785 = vsel %vm484, %v7700, 0
        %v7788 = vsel %vm484, %v7701, 0
        %v7791 = vsel %vm484, %v7702, 0
        %v7794 = vsel %vm484, %v7703, 0
        %v7797 = vsel %vm484, %v7704, 0
        %v7800 = vsel %vm484, %v7705, 0
        %v7803 = vand.u32 %v7609, %v584
        %7805 = vmatprep.subr.bf16.mxu0 0
        %7806 = vmatpush1.bf16.msra.mxu0 %v7803
        %7807 = vmatprep.subr.bf16.mxu0 0
        %7808 = vmatpush1.bf16.msra.mxu0 0
        %7809 = vmatprep.subr.bf16.mxu0 0
        %7810 = vmatpush1.bf16.msra.mxu0 0
        %7811 = vmatprep.subr.bf16.mxu0 0
        %7812 = vmatpush1.bf16.msra.mxu0 0
        %7813 = vmatprep.subr.bf16.mxu0 0
        %7814 = vmatpush1.bf16.msra.mxu0 0
        %7815 = vmatprep.subr.bf16.mxu0 0
        %7816 = vmatpush1.bf16.msra.mxu0 0
        %7817 = vmatprep.subr.bf16.mxu0 0
        %7818 = vmatpush1.bf16.msra.mxu0 0
        %7819 = vmatprep.subr.bf16.mxu0 0
        %7820 = vmatpush1.bf16.msra.mxu0 0
        %7821 = vmatprep.subr.bf16.mxu0 0
        %7822 = vmatpush1.bf16.msra.mxu0 0
        %7823 = vmatprep.subr.bf16.mxu0 0
        %7824 = vmatpush1.bf16.msra.mxu0 0
        %7825 = vmatprep.subr.bf16.mxu0 0
        %7826 = vmatpush1.bf16.msra.mxu0 0
        %7827 = vmatprep.subr.bf16.mxu0 0
        %7828 = vmatpush1.bf16.msra.mxu0 0
        %7829 = vmatprep.subr.bf16.mxu0 0
        %7830 = vmatpush1.bf16.msra.mxu0 0
        %7831 = vmatprep.subr.bf16.mxu0 0
        %7832 = vmatpush1.bf16.msra.mxu0 0
        %7833 = vmatprep.subr.bf16.mxu0 0
        %7834 = vmatpush1.bf16.msra.mxu0 0
        %7835 = vmatprep.subr.bf16.mxu0 0
        %7836 = vmatpush1.bf16.msra.mxu0 0
        %7837 = vmatprep.mubr.bf16.mxu0 0
        %7838 = vmatmul.mubr.bf16.gmra.mrb[0].mxu0 %v7707
        %v7839 = vpop.f32.mrb[0].mxu0
        %v7840 = vadd.f32 0.0, %v7839
        %v7841 = vpop.f32.mrb[0].mxu0
        %v7842 = vpop.f32.mrb[0].mxu0
        %v7843 = vadd.f32 0.0, %v7842
        %v7844 = vpop.f32.mrb[0].mxu0
        %7845 = vmatprep.mubr.bf16.mxu0 0
        %7846 = vmatmul.mubr.bf16.gmra.mrb[0].mxu0 %v7710
        %v7847 = vpop.f32.mrb[0].mxu0
        %v7848 = vadd.f32 0.0, %v7847
        %v7849 = vpop.f32.mrb[0].mxu0
        %v7850 = vpop.f32.mrb[0].mxu0
        %v7851 = vadd.f32 0.0, %v7850
        %v7852 = vpop.f32.mrb[0].mxu0
        %7853 = vmatprep.mubr.bf16.mxu0 0
        %7854 = vmatmul.mubr.bf16.gmra.mrb[0].mxu0 %v7713
        %v7855 = vpop.f32.mrb[0].mxu0
        %v7856 = vadd.f32 0.0, %v7855
        %v7857 = vpop.f32.mrb[0].mxu0
        %v7858 = vpop.f32.mrb[0].mxu0
        %v7859 = vadd.f32 0.0, %v7858
        %v7860 = vpop.f32.mrb[0].mxu0
        %7861 = vmatprep.mubr.bf16.mxu0 0
        %7862 = vmatmul.mubr.bf16.gmra.mrb[0].mxu0 %v7716
        %v7863 = vpop.f32.mrb[0].mxu0
        %v7864 = vadd.f32 0.0, %v7863
        %v7865 = vpop.f32.mrb[0].mxu0
        %v7866 = vpop.f32.mrb[0].mxu0
        %v7867 = vadd.f32 0.0, %v7866
        %v7868 = vpop.f32.mrb[0].mxu0
        %7869 = vmatprep.mubr.bf16.mxu0 0
        %7870 = vmatmul.mubr.bf16.gmra.mrb[0].mxu0 %v7719
        %v7871 = vpop.f32.mrb[0].mxu0
        %v7872 = vadd.f32 0.0, %v7871
        %v7873 = vpop.f32.mrb[0].mxu0
        %v7874 = vpop.f32.mrb[0].mxu0
        %v7875 = vadd.f32 0.0, %v7874
        %v7876 = vpop.f32.mrb[0].mxu0
        %7877 = vmatprep.mubr.bf16.mxu0 0
        %7878 = vmatmul.mubr.bf16.gmra.mrb[0].mxu0 %v7722
        %v7879 = vpop.f32.mrb[0].mxu0
        %v7880 = vadd.f32 0.0, %v7879
        %v7881 = vpop.f32.mrb[0].mxu0
        %v7882 = vpop.f32.mrb[0].mxu0
        %v7883 = vadd.f32 0.0, %v7882
        %v7884 = vpop.f32.mrb[0].mxu0
        %7885 = vmatprep.mubr.bf16.mxu0 0
        %7886 = vmatmul.mubr.bf16.gmra.mrb[0].mxu0 %v7725
        %v7887 = vpop.f32.mrb[0].mxu0
        %v7888 = vadd.f32 0.0, %v7887
        %v7889 = vpop.f32.mrb[0].mxu0
        %v7890 = vpop.f32.mrb[0].mxu0
        %v7891 = vadd.f32 0.0, %v7890
        %v7892 = vpop.f32.mrb[0].mxu0
        %7893 = vmatprep.mubr.bf16.mxu0 0
        %7894 = vmatmul.mubr.bf16.gmra.mrb[0].mxu0 %v7728
        %v7895 = vpop.f32.mrb[0].mxu0
        %v7896 = vadd.f32 0.0, %v7895
        %v7897 = vpop.f32.mrb[0].mxu0
        %v7898 = vpop.f32.mrb[0].mxu0
        %v7899 = vadd.f32 0.0, %v7898
        %v7900 = vpop.f32.mrb[0].mxu0
        %7901 = vmatprep.mubr.bf16.mxu0 0
        %7902 = vmatmul.mubr.bf16.gmra.mrb[0].mxu0 %v7731
        %v7903 = vpop.f32.mrb[0].mxu0
        %v7904 = vadd.f32 0.0, %v7903
        %v7905 = vpop.f32.mrb[0].mxu0
        %v7906 = vpop.f32.mrb[0].mxu0
        %v7907 = vadd.f32 0.0, %v7906
        %v7908 = vpop.f32.mrb[0].mxu0
        %7909 = vmatprep.mubr.bf16.mxu0 0
        %7910 = vmatmul.mubr.bf16.gmra.mrb[0].mxu0 %v7734
        %v7911 = vpop.f32.mrb[0].mxu0
        %v7912 = vadd.f32 0.0, %v7911
        %v7913 = vpop.f32.mrb[0].mxu0
        %v7914 = vpop.f32.mrb[0].mxu0
        %v7915 = vadd.f32 0.0, %v7914
        %v7916 = vpop.f32.mrb[0].mxu0
        %7917 = vmatprep.mubr.bf16.mxu0 0
        %7918 = vmatmul.mubr.bf16.gmra.mrb[0].mxu0 %v7737
        %v7919 = vpop.f32.mrb[0].mxu0
        %v7920 = vadd.f32 0.0, %v7919
        %v7921 = vpop.f32.mrb[0].mxu0
        %v7922 = vpop.f32.mrb[0].mxu0
        %v7923 = vadd.f32 0.0, %v7922
        %v7924 = vpop.f32.mrb[0].mxu0
        %7925 = vmatprep.mubr.bf16.mxu0 0
        %7926 = vmatmul.mubr.bf16.gmra.mrb[0].mxu0 %v7740
        %v7927 = vpop.f32.mrb[0].mxu0
        %v7928 = vadd.f32 0.0, %v7927
        %v7929 = vpop.f32.mrb[0].mxu0
        %v7930 = vpop.f32.mrb[0].mxu0
        %v7931 = vadd.f32 0.0, %v7930
        %v7932 = vpop.f32.mrb[0].mxu0
        %7933 = vmatprep.mubr.bf16.mxu0 0
        %7934 = vmatmul.mubr.bf16.gmra.mrb[0].mxu0 %v7743
        %v7935 = vpop.f32.mrb[0].mxu0
        %v7936 = vadd.f32 0.0, %v7935
        %v7937 = vpop.f32.mrb[0].mxu0
        %v7938 = vpop.f32.mrb[0].mxu0
        %v7939 = vadd.f32 0.0, %v7938
        %v7940 = vpop.f32.mrb[0].mxu0
        %7941 = vmatprep.mubr.bf16.mxu0 0
        %7942 = vmatmul.mubr.bf16.gmra.mrb[0].mxu0 %v7746
        %v7943 = vpop.f32.mrb[0].mxu0
        %v7944 = vadd.f32 0.0, %v7943
        %v7945 = vpop.f32.mrb[0].mxu0
        %v7946 = vpop.f32.mrb[0].mxu0
        %v7947 = vadd.f32 0.0, %v7946
        %v7948 = vpop.f32.mrb[0].mxu0
        %7949 = vmatprep.mubr.bf16.mxu0 0
        %7950 = vmatmul.mubr.bf16.gmra.mrb[0].mxu0 %v7749
        %v7951 = vpop.f32.mrb[0].mxu0
        %v7952 = vadd.f32 0.0, %v7951
        %v7953 = vpop.f32.mrb[0].mxu0
        %v7954 = vpop.f32.mrb[0].mxu0
        %v7955 = vadd.f32 0.0, %v7954
        %v7956 = vpop.f32.mrb[0].mxu0
        %7957 = vmatprep.mubr.bf16.mxu0 0
        %7958 = vmatmul.mubr.bf16.gmra.mrb[0].mxu0 %v7752
        %v7959 = vpop.f32.mrb[0].mxu0
        %v7960 = vadd.f32 0.0, %v7959
        %v7961 = vpop.f32.mrb[0].mxu0
        %v7962 = vpop.f32.mrb[0].mxu0
        %v7963 = vadd.f32 0.0, %v7962
        %v7964 = vpop.f32.mrb[0].mxu0
        %7965 = vmatprep.mubr.bf16.mxu0 0
        %7966 = vmatmul.mubr.bf16.gmra.mrb[0].mxu0 %v7755
        %v7967 = vpop.f32.mrb[0].mxu0
        %v7968 = vadd.f32 0.0, %v7967
        %v7969 = vpop.f32.mrb[0].mxu0
        %v7970 = vpop.f32.mrb[0].mxu0
        %v7971 = vadd.f32 0.0, %v7970
        %v7972 = vpop.f32.mrb[0].mxu0
        %7973 = vmatprep.mubr.bf16.mxu0 0
        %7974 = vmatmul.mubr.bf16.gmra.mrb[0].mxu0 %v7758
        %v7975 = vpop.f32.mrb[0].mxu0
        %v7976 = vadd.f32 0.0, %v7975
        %v7977 = vpop.f32.mrb[0].mxu0
        %v7978 = vpop.f32.mrb[0].mxu0
        %v7979 = vadd.f32 0.0, %v7978
        %v7980 = vpop.f32.mrb[0].mxu0
        %7981 = vmatprep.mubr.bf16.mxu0 0
        %7982 = vmatmul.mubr.bf16.gmra.mrb[0].mxu0 %v7761
        %v7983 = vpop.f32.mrb[0].mxu0
        %v7984 = vadd.f32 0.0, %v7983
        %v7985 = vpop.f32.mrb[0].mxu0
        %v7986 = vpop.f32.mrb[0].mxu0
        %v7987 = vadd.f32 0.0, %v7986
        %v7988 = vpop.f32.mrb[0].mxu0
        %7989 = vmatprep.mubr.bf16.mxu0 0
        %7990 = vmatmul.mubr.bf16.gmra.mrb[0].mxu0 %v7764
        %v7991 = vpop.f32.mrb[0].mxu0
        %v7992 = vadd.f32 0.0, %v7991
        %v7993 = vpop.f32.mrb[0].mxu0
        %v7994 = vpop.f32.mrb[0].mxu0
        %v7995 = vadd.f32 0.0, %v7994
        %v7996 = vpop.f32.mrb[0].mxu0
        %7997 = vmatprep.mubr.bf16.mxu0 0
        %7998 = vmatmul.mubr.bf16.gmra.mrb[0].mxu0 %v7767
        %v7999 = vpop.f32.mrb[0].mxu0
        %v8000 = vadd.f32 0.0, %v7999
        %v8001 = vpop.f32.mrb[0].mxu0
        %v8002 = vpop.f32.mrb[0].mxu0
        %v8003 = vadd.f32 0.0, %v8002
        %v8004 = vpop.f32.mrb[0].mxu0
        %8005 = vmatprep.mubr.bf16.mxu0 0
        %8006 = vmatmul.mubr.bf16.gmra.mrb[0].mxu0 %v7770
        %v8007 = vpop.f32.mrb[0].mxu0
        %v8008 = vadd.f32 0.0, %v8007
        %v8009 = vpop.f32.mrb[0].mxu0
        %v8010 = vpop.f32.mrb[0].mxu0
        %v8011 = vadd.f32 0.0, %v8010
        %v8012 = vpop.f32.mrb[0].mxu0
        %8013 = vmatprep.mubr.bf16.mxu0 0
        %8014 = vmatmul.mubr.bf16.gmra.mrb[0].mxu0 %v7773
        %v8015 = vpop.f32.mrb[0].mxu0
        %v8016 = vadd.f32 0.0, %v8015
        %v8017 = vpop.f32.mrb[0].mxu0
        %v8018 = vpop.f32.mrb[0].mxu0
        %v8019 = vadd.f32 0.0, %v8018
        %v8020 = vpop.f32.mrb[0].mxu0
        %8021 = vmatprep.mubr.bf16.mxu0 0
        %8022 = vmatmul.mubr.bf16.gmra.mrb[0].mxu0 %v7776
        %v8023 = vpop.f32.mrb[0].mxu0
        %v8024 = vadd.f32 0.0, %v8023
        %v8025 = vpop.f32.mrb[0].mxu0
        %v8026 = vpop.f32.mrb[0].mxu0
        %v8027 = vadd.f32 0.0, %v8026
        %v8028 = vpop.f32.mrb[0].mxu0
        %8029 = vmatprep.mubr.bf16.mxu0 0
        %8030 = vmatmul.mubr.bf16.gmra.mrb[0].mxu0 %v7779
        %v8031 = vpop.f32.mrb[0].mxu0
        %v8032 = vadd.f32 0.0, %v8031
        %v8033 = vpop.f32.mrb[0].mxu0
        %v8034 = vpop.f32.mrb[0].mxu0
        %v8035 = vadd.f32 0.0, %v8034
        %v8036 = vpop.f32.mrb[0].mxu0
        %8037 = vmatprep.mubr.bf16.mxu0 0
        %8038 = vmatmul.mubr.bf16.gmra.mrb[0].mxu0 %v7782
        %v8039 = vpop.f32.mrb[0].mxu0
        %v8040 = vadd.f32 0.0, %v8039
        %v8041 = vpop.f32.mrb[0].mxu0
        %v8042 = vpop.f32.mrb[0].mxu0
        %v8043 = vadd.f32 0.0, %v8042
        %v8044 = vpop.f32.mrb[0].mxu0
        %8045 = vmatprep.mubr.bf16.mxu0 0
        %8046 = vmatmul.mubr.bf16.gmra.mrb[0].mxu0 %v7785
        %v8047 = vpop.f32.mrb[0].mxu0
        %v8048 = vadd.f32 0.0, %v8047
        %v8049 = vpop.f32.mrb[0].mxu0
        %v8050 = vpop.f32.mrb[0].mxu0
        %v8051 = vadd.f32 0.0, %v8050
        %v8052 = vpop.f32.mrb[0].mxu0
        %8053 = vmatprep.mubr.bf16.mxu0 0
        %8054 = vmatmul.mubr.bf16.gmra.mrb[0].mxu0 %v7788
        %v8055 = vpop.f32.mrb[0].mxu0
        %v8056 = vadd.f32 0.0, %v8055
        %v8057 = vpop.f32.mrb[0].mxu0
        %v8058 = vpop.f32.mrb[0].mxu0
        %v8059 = vadd.f32 0.0, %v8058
        %v8060 = vpop.f32.mrb[0].mxu0
        %8061 = vmatprep.mubr.bf16.mxu0 0
        %8062 = vmatmul.mubr.bf16.gmra.mrb[0].mxu0 %v7791
        %v8063 = vpop.f32.mrb[0].mxu0
        %v8064 = vadd.f32 0.0, %v8063
        %v8065 = vpop.f32.mrb[0].mxu0
        %v8066 = vpop.f32.mrb[0].mxu0
        %v8067 = vadd.f32 0.0, %v8066
        %v8068 = vpop.f32.mrb[0].mxu0
        %8069 = vmatprep.mubr.bf16.mxu0 0
        %8070 = vmatmul.mubr.bf16.gmra.mrb[0].mxu0 %v7794
        %v8071 = vpop.f32.mrb[0].mxu0
        %v8072 = vadd.f32 0.0, %v8071
        %v8073 = vpop.f32.mrb[0].mxu0
        %v8074 = vpop.f32.mrb[0].mxu0
        %v8075 = vadd.f32 0.0, %v8074
        %v8076 = vpop.f32.mrb[0].mxu0
        %8077 = vmatprep.mubr.bf16.mxu0 0
        %8078 = vmatmul.mubr.bf16.gmra.mrb[0].mxu0 %v7797
        %v8079 = vpop.f32.mrb[0].mxu0
        %v8080 = vadd.f32 0.0, %v8079
        %v8081 = vpop.f32.mrb[0].mxu0
        %v8082 = vpop.f32.mrb[0].mxu0
        %v8083 = vadd.f32 0.0, %v8082
        %v8084 = vpop.f32.mrb[0].mxu0
        %8085 = vmatprep.mubr.bf16.mxu0 0
        %8086 = vmatmul.mubr.bf16.gmra.mrb[0].mxu0 %v7800
        %v8087 = vpop.f32.mrb[0].mxu0
        %v8088 = vadd.f32 0.0, %v8087
        %v8089 = vpop.f32.mrb[0].mxu0
        %v8090 = vpop.f32.mrb[0].mxu0
        %v8091 = vadd.f32 0.0, %v8090
        %v8092 = vpop.f32.mrb[0].mxu0
        %8093 = vdwg.mxu0
        %v8094 = vadd.f32 %v6760, %v7840
        %v8095 = vadd.f32 %v6761, %v7843
        %v8096 = vadd.f32 %v6762, %v7848
        %v8097 = vadd.f32 %v6763, %v7851
        %v8098 = vadd.f32 %v6764, %v7856
        %v8099 = vadd.f32 %v6765, %v7859
        %v8100 = vadd.f32 %v6766, %v7864
        %v8101 = vadd.f32 %v6767, %v7867
        %v8102 = vadd.f32 %v6768, %v7872
        %v8103 = vadd.f32 %v6769, %v7875
        %v8104 = vadd.f32 %v6770, %v7880
        %v8105 = vadd.f32 %v6771, %v7883
        %v8106 = vadd.f32 %v6772, %v7888
        %v8107 = vadd.f32 %v6773, %v7891
        %v8108 = vadd.f32 %v6774, %v7896
        %v8109 = vadd.f32 %v6775, %v7899
        %v8110 = vadd.f32 %v6776, %v7904
        %v8111 = vadd.f32 %v6777, %v7907
        %v8112 = vadd.f32 %v6778, %v7912
        %v8113 = vadd.f32 %v6779, %v7915
        %v8114 = vadd.f32 %v6780, %v7920
        %v8115 = vadd.f32 %v6781, %v7923
        %v8116 = vadd.f32 %v6782, %v7928
        %v8117 = vadd.f32 %v6783, %v7931
        %v8118 = vadd.f32 %v6784, %v7936
        %v8119 = vadd.f32 %v6785, %v7939
        %v8120 = vadd.f32 %v6786, %v7944
        %v8121 = vadd.f32 %v6787, %v7947
        %v8122 = vadd.f32 %v6788, %v7952
        %v8123 = vadd.f32 %v6789, %v7955
        %v8124 = vadd.f32 %v6790, %v7960
        %v8125 = vadd.f32 %v6791, %v7963
        %v8126 = vadd.f32 %v6792, %v7968
        %v8127 = vadd.f32 %v6793, %v7971
        %v8128 = vadd.f32 %v6794, %v7976
        %v8129 = vadd.f32 %v6795, %v7979
        %v8130 = vadd.f32 %v6796, %v7984
        %v8131 = vadd.f32 %v6797, %v7987
        %v8132 = vadd.f32 %v6798, %v7992
        %v8133 = vadd.f32 %v6799, %v7995
        %v8134 = vadd.f32 %v6800, %v8000
        %v8135 = vadd.f32 %v6801, %v8003
        %v8136 = vadd.f32 %v6802, %v8008
        %v8137 = vadd.f32 %v6803, %v8011
        %v8138 = vadd.f32 %v6804, %v8016
        %v8139 = vadd.f32 %v6805, %v8019
        %v8140 = vadd.f32 %v6806, %v8024
        %v8141 = vadd.f32 %v6807, %v8027
        %v8142 = vadd.f32 %v6808, %v8032
        %v8143 = vadd.f32 %v6809, %v8035
        %v8144 = vadd.f32 %v6810, %v8040
        %v8145 = vadd.f32 %v6811, %v8043
        %v8146 = vadd.f32 %v6812, %v8048
        %v8147 = vadd.f32 %v6813, %v8051
        %v8148 = vadd.f32 %v6814, %v8056
        %v8149 = vadd.f32 %v6815, %v8059
        %v8150 = vadd.f32 %v6816, %v8064
        %v8151 = vadd.f32 %v6817, %v8067
        %v8152 = vadd.f32 %v6818, %v8072
        %v8153 = vadd.f32 %v6819, %v8075
        %v8154 = vadd.f32 %v6820, %v8080
        %v8155 = vadd.f32 %v6821, %v8083
        %v8156 = vadd.f32 %v6822, %v8088
        %v8157 = vadd.f32 %v6823, %v8091
        %v8158 = vld [vmem:[%s2] sm:$0x1]
        %v8160 = vlaneseq
        %v8161 = vshrl.u32 %v8160, 7
        %v8162 = vsub.s32 0, %v8161
        %v8163 = vrot.slane %v8158, %v8162
        %v8165 = vadd.f32 %v8094, %v8163
        %v8166 = vadd.f32 %v8095, %v8163
        %v8167 = vadd.f32 %v8096, %v8163
        %v8168 = vadd.f32 %v8097, %v8163
        %v8169 = vadd.f32 %v8098, %v8163
        %v8170 = vadd.f32 %v8099, %v8163
        %v8171 = vadd.f32 %v8100, %v8163
        %v8172 = vadd.f32 %v8101, %v8163
        %v8173 = vadd.f32 %v8102, %v8163
        %v8174 = vadd.f32 %v8103, %v8163
        %v8175 = vadd.f32 %v8104, %v8163
        %v8176 = vadd.f32 %v8105, %v8163
        %v8177 = vadd.f32 %v8106, %v8163
        %v8178 = vadd.f32 %v8107, %v8163
        %v8179 = vadd.f32 %v8108, %v8163
        %v8180 = vadd.f32 %v8109, %v8163
        %v8181 = vadd.f32 %v8110, %v8163
        %v8182 = vadd.f32 %v8111, %v8163
        %v8183 = vadd.f32 %v8112, %v8163
        %v8184 = vadd.f32 %v8113, %v8163
        %v8185 = vadd.f32 %v8114, %v8163
        %v8186 = vadd.f32 %v8115, %v8163
        %v8187 = vadd.f32 %v8116, %v8163
        %v8188 = vadd.f32 %v8117, %v8163
        %v8189 = vadd.f32 %v8118, %v8163
        %v8190 = vadd.f32 %v8119, %v8163
        %v8191 = vadd.f32 %v8120, %v8163
        %v8192 = vadd.f32 %v8121, %v8163
        %v8193 = vadd.f32 %v8122, %v8163
        %v8194 = vadd.f32 %v8123, %v8163
        %v8195 = vadd.f32 %v8124, %v8163
        %v8196 = vadd.f32 %v8125, %v8163
        %v8197 = vadd.f32 %v8126, %v8163
        %v8198 = vadd.f32 %v8127, %v8163
        %v8199 = vadd.f32 %v8128, %v8163
        %v8200 = vadd.f32 %v8129, %v8163
        %v8201 = vadd.f32 %v8130, %v8163
        %v8202 = vadd.f32 %v8131, %v8163
        %v8203 = vadd.f32 %v8132, %v8163
        %v8204 = vadd.f32 %v8133, %v8163
        %v8205 = vadd.f32 %v8134, %v8163
        %v8206 = vadd.f32 %v8135, %v8163
        %v8207 = vadd.f32 %v8136, %v8163
        %v8208 = vadd.f32 %v8137, %v8163
        %v8209 = vadd.f32 %v8138, %v8163
        %v8210 = vadd.f32 %v8139, %v8163
        %v8211 = vadd.f32 %v8140, %v8163
        %v8212 = vadd.f32 %v8141, %v8163
        %v8213 = vadd.f32 %v8142, %v8163
        %v8214 = vadd.f32 %v8143, %v8163
        %v8215 = vadd.f32 %v8144, %v8163
        %v8216 = vadd.f32 %v8145, %v8163
        %v8217 = vadd.f32 %v8146, %v8163
        %v8218 = vadd.f32 %v8147, %v8163
        %v8219 = vadd.f32 %v8148, %v8163
        %v8220 = vadd.f32 %v8149, %v8163
        %v8221 = vadd.f32 %v8150, %v8163
        %v8222 = vadd.f32 %v8151, %v8163
        %v8223 = vadd.f32 %v8152, %v8163
        %v8224 = vadd.f32 %v8153, %v8163
        %v8225 = vadd.f32 %v8154, %v8163
        %v8226 = vadd.f32 %v8155, %v8163
        %v8227 = vadd.f32 %v8156, %v8163
        %v8228 = vadd.f32 %v8157, %v8163
        %v8229 = vmax.f32 %v8165, 0.0
        %v8230 = vmax.f32 %v8166, 0.0
        %v8231 = vmax.f32 %v8167, 0.0
        %v8232 = vmax.f32 %v8168, 0.0
        %v8233 = vmax.f32 %v8169, 0.0
        %v8234 = vmax.f32 %v8170, 0.0
        %v8235 = vmax.f32 %v8171, 0.0
        %v8236 = vmax.f32 %v8172, 0.0
        %v8237 = vmax.f32 %v8173, 0.0
        %v8238 = vmax.f32 %v8174, 0.0
        %v8239 = vmax.f32 %v8175, 0.0
        %v8240 = vmax.f32 %v8176, 0.0
        %v8241 = vmax.f32 %v8177, 0.0
        %v8242 = vmax.f32 %v8178, 0.0
        %v8243 = vmax.f32 %v8179, 0.0
        %v8244 = vmax.f32 %v8180, 0.0
        %v8245 = vmax.f32 %v8181, 0.0
        %v8246 = vmax.f32 %v8182, 0.0
        %v8247 = vmax.f32 %v8183, 0.0
        %v8248 = vmax.f32 %v8184, 0.0
        %v8249 = vmax.f32 %v8185, 0.0
        %v8250 = vmax.f32 %v8186, 0.0
        %v8251 = vmax.f32 %v8187, 0.0
        %v8252 = vmax.f32 %v8188, 0.0
        %v8253 = vmax.f32 %v8189, 0.0
        %v8254 = vmax.f32 %v8190, 0.0
        %v8255 = vmax.f32 %v8191, 0.0
        %v8256 = vmax.f32 %v8192, 0.0
        %v8257 = vmax.f32 %v8193, 0.0
        %v8258 = vmax.f32 %v8194, 0.0
        %v8259 = vmax.f32 %v8195, 0.0
        %v8260 = vmax.f32 %v8196, 0.0
        %v8261 = vmax.f32 %v8197, 0.0
        %v8262 = vmax.f32 %v8198, 0.0
        %v8263 = vmax.f32 %v8199, 0.0
        %v8264 = vmax.f32 %v8200, 0.0
        %v8265 = vmax.f32 %v8201, 0.0
        %v8266 = vmax.f32 %v8202, 0.0
        %v8267 = vmax.f32 %v8203, 0.0
        %v8268 = vmax.f32 %v8204, 0.0
        %v8269 = vmax.f32 %v8205, 0.0
        %v8270 = vmax.f32 %v8206, 0.0
        %v8271 = vmax.f32 %v8207, 0.0
        %v8272 = vmax.f32 %v8208, 0.0
        %v8273 = vmax.f32 %v8209, 0.0
        %v8274 = vmax.f32 %v8210, 0.0
        %v8275 = vmax.f32 %v8211, 0.0
        %v8276 = vmax.f32 %v8212, 0.0
        %v8277 = vmax.f32 %v8213, 0.0
        %v8278 = vmax.f32 %v8214, 0.0
        %v8279 = vmax.f32 %v8215, 0.0
        %v8280 = vmax.f32 %v8216, 0.0
        %v8281 = vmax.f32 %v8217, 0.0
        %v8282 = vmax.f32 %v8218, 0.0
        %v8283 = vmax.f32 %v8219, 0.0
        %v8284 = vmax.f32 %v8220, 0.0
        %v8285 = vmax.f32 %v8221, 0.0
        %v8286 = vmax.f32 %v8222, 0.0
        %v8287 = vmax.f32 %v8223, 0.0
        %v8288 = vmax.f32 %v8224, 0.0
        %v8289 = vmax.f32 %v8225, 0.0
        %v8290 = vmax.f32 %v8226, 0.0
        %v8291 = vmax.f32 %v8227, 0.0
        %v8292 = vmax.f32 %v8228, 0.0
        %v8293 = vpack.c.bf16 %v8230, %v8229
        %v8294 = vpack.c.bf16 %v8232, %v8231
        %v8295 = vpack.c.bf16 %v8234, %v8233
        %v8296 = vpack.c.bf16 %v8236, %v8235
        %v8297 = vpack.c.bf16 %v8238, %v8237
        %v8298 = vpack.c.bf16 %v8240, %v8239
        %v8299 = vpack.c.bf16 %v8242, %v8241
        %v8300 = vpack.c.bf16 %v8244, %v8243
        %v8301 = vpack.c.bf16 %v8246, %v8245
        %v8302 = vpack.c.bf16 %v8248, %v8247
        %v8303 = vpack.c.bf16 %v8250, %v8249
        %v8304 = vpack.c.bf16 %v8252, %v8251
        %v8305 = vpack.c.bf16 %v8254, %v8253
        %v8306 = vpack.c.bf16 %v8256, %v8255
        %v8307 = vpack.c.bf16 %v8258, %v8257
        %v8308 = vpack.c.bf16 %v8260, %v8259
        %v8309 = vpack.c.bf16 %v8262, %v8261
        %v8310 = vpack.c.bf16 %v8264, %v8263
        %v8311 = vpack.c.bf16 %v8266, %v8265
        %v8312 = vpack.c.bf16 %v8268, %v8267
        %v8313 = vpack.c.bf16 %v8270, %v8269
        %v8314 = vpack.c.bf16 %v8272, %v8271
        %v8315 = vpack.c.bf16 %v8274, %v8273
        %v8316 = vpack.c.bf16 %v8276, %v8275
        %v8317 = vpack.c.bf16 %v8278, %v8277
        %v8318 = vpack.c.bf16 %v8280, %v8279
        %v8319 = vpack.c.bf16 %v8282, %v8281
        %v8320 = vpack.c.bf16 %v8284, %v8283
        %v8321 = vpack.c.bf16 %v8286, %v8285
        %v8322 = vpack.c.bf16 %v8288, %v8287
        %v8323 = vpack.c.bf16 %v8290, %v8289
        %v8324 = vpack.c.bf16 %v8292, %v8291
        %v8357 = vunpack.c.l.b16 %v8293
        %v8358 = vunpack.c.h.b16 %v8293
        %v8359 = vunpack.c.l.b16 %v8294
        %v8360 = vunpack.c.h.b16 %v8294
        %v8361 = vunpack.c.l.b16 %v8295
        %v8362 = vunpack.c.h.b16 %v8295
        %v8363 = vunpack.c.l.b16 %v8296
        %v8364 = vunpack.c.h.b16 %v8296
        %v8365 = vunpack.c.l.b16 %v8297
        %v8366 = vunpack.c.h.b16 %v8297
        %v8367 = vunpack.c.l.b16 %v8298
        %v8368 = vunpack.c.h.b16 %v8298
        %v8369 = vunpack.c.l.b16 %v8299
        %v8370 = vunpack.c.h.b16 %v8299
        %v8371 = vunpack.c.l.b16 %v8300
        %v8372 = vunpack.c.h.b16 %v8300
        %v8373 = vunpack.c.l.b16 %v8301
        %v8374 = vunpack.c.h.b16 %v8301
        %v8375 = vunpack.c.l.b16 %v8302
        %v8376 = vunpack.c.h.b16 %v8302
        %v8377 = vunpack.c.l.b16 %v8303
        %v8378 = vunpack.c.h.b16 %v8303
        %v8379 = vunpack.c.l.b16 %v8304
        %v8380 = vunpack.c.h.b16 %v8304
        %v8381 = vunpack.c.l.b16 %v8305
        %v8382 = vunpack.c.h.b16 %v8305
        %v8383 = vunpack.c.l.b16 %v8306
        %v8384 = vunpack.c.h.b16 %v8306
        %v8385 = vunpack.c.l.b16 %v8307
        %v8386 = vunpack.c.h.b16 %v8307
        %v8387 = vunpack.c.l.b16 %v8308
        %v8388 = vunpack.c.h.b16 %v8308
        %v8389 = vunpack.c.l.b16 %v8309
        %v8390 = vunpack.c.h.b16 %v8309
        %v8391 = vunpack.c.l.b16 %v8310
        %v8392 = vunpack.c.h.b16 %v8310
        %v8393 = vunpack.c.l.b16 %v8311
        %v8394 = vunpack.c.h.b16 %v8311
        %v8395 = vunpack.c.l.b16 %v8312
        %v8396 = vunpack.c.h.b16 %v8312
        %v8397 = vunpack.c.l.b16 %v8313
        %v8398 = vunpack.c.h.b16 %v8313
        %v8399 = vunpack.c.l.b16 %v8314
        %v8400 = vunpack.c.h.b16 %v8314
        %v8401 = vunpack.c.l.b16 %v8315
        %v8402 = vunpack.c.h.b16 %v8315
        %v8403 = vunpack.c.l.b16 %v8316
        %v8404 = vunpack.c.h.b16 %v8316
        %v8405 = vunpack.c.l.b16 %v8317
        %v8406 = vunpack.c.h.b16 %v8317
        %v8407 = vunpack.c.l.b16 %v8318
        %v8408 = vunpack.c.h.b16 %v8318
        %v8409 = vunpack.c.l.b16 %v8319
        %v8410 = vunpack.c.h.b16 %v8319
        %v8411 = vunpack.c.l.b16 %v8320
        %v8412 = vunpack.c.h.b16 %v8320
        %v8413 = vunpack.c.l.b16 %v8321
        %v8414 = vunpack.c.h.b16 %v8321
        %v8415 = vunpack.c.l.b16 %v8322
        %v8416 = vunpack.c.h.b16 %v8322
        %v8417 = vunpack.c.l.b16 %v8323
        %v8418 = vunpack.c.h.b16 %v8323
        %v8419 = vunpack.c.l.b16 %v8324
        %v8420 = vunpack.c.h.b16 %v8324
        %v8421 = vpack.c.b16 %v8357, %v8357
        %v8422 = vpack.c.b16 %v8358, %v8358
        %v8423 = vpack.c.b16 %v8359, %v8359
        %v8424 = vpack.c.b16 %v8360, %v8360
        %v8425 = vpack.c.b16 %v8361, %v8361
        %v8426 = vpack.c.b16 %v8362, %v8362
        %v8427 = vpack.c.b16 %v8363, %v8363
        %v8428 = vpack.c.b16 %v8364, %v8364
        %v8429 = vpack.c.b16 %v8365, %v8365
        %v8430 = vpack.c.b16 %v8366, %v8366
        %v8431 = vpack.c.b16 %v8367, %v8367
        %v8432 = vpack.c.b16 %v8368, %v8368
        %v8433 = vpack.c.b16 %v8369, %v8369
        %v8434 = vpack.c.b16 %v8370, %v8370
        %v8435 = vpack.c.b16 %v8371, %v8371
        %v8436 = vpack.c.b16 %v8372, %v8372
        %v8437 = vpack.c.b16 %v8373, %v8373
        %v8438 = vpack.c.b16 %v8374, %v8374
        %v8439 = vpack.c.b16 %v8375, %v8375
        %v8440 = vpack.c.b16 %v8376, %v8376
        %v8441 = vpack.c.b16 %v8377, %v8377
        %v8442 = vpack.c.b16 %v8378, %v8378
        %v8443 = vpack.c.b16 %v8379, %v8379
        %v8444 = vpack.c.b16 %v8380, %v8380
        %v8445 = vpack.c.b16 %v8381, %v8381
        %v8446 = vpack.c.b16 %v8382, %v8382
        %v8447 = vpack.c.b16 %v8383, %v8383
        %v8448 = vpack.c.b16 %v8384, %v8384
        %v8449 = vpack.c.b16 %v8385, %v8385
        %v8450 = vpack.c.b16 %v8386, %v8386
        %v8451 = vpack.c.b16 %v8387, %v8387
        %v8452 = vpack.c.b16 %v8388, %v8388
        %v8453 = vpack.c.b16 %v8389, %v8389
        %v8454 = vpack.c.b16 %v8390, %v8390
        %v8455 = vpack.c.b16 %v8391, %v8391
        %v8456 = vpack.c.b16 %v8392, %v8392
        %v8457 = vpack.c.b16 %v8393, %v8393
        %v8458 = vpack.c.b16 %v8394, %v8394
        %v8459 = vpack.c.b16 %v8395, %v8395
        %v8460 = vpack.c.b16 %v8396, %v8396
        %v8461 = vpack.c.b16 %v8397, %v8397
        %v8462 = vpack.c.b16 %v8398, %v8398
        %v8463 = vpack.c.b16 %v8399, %v8399
        %v8464 = vpack.c.b16 %v8400, %v8400
        %v8465 = vpack.c.b16 %v8401, %v8401
        %v8466 = vpack.c.b16 %v8402, %v8402
        %v8467 = vpack.c.b16 %v8403, %v8403
        %v8468 = vpack.c.b16 %v8404, %v8404
        %v8469 = vpack.c.b16 %v8405, %v8405
        %v8470 = vpack.c.b16 %v8406, %v8406
        %v8471 = vpack.c.b16 %v8407, %v8407
        %v8472 = vpack.c.b16 %v8408, %v8408
        %v8473 = vpack.c.b16 %v8409, %v8409
        %v8474 = vpack.c.b16 %v8410, %v8410
        %v8475 = vpack.c.b16 %v8411, %v8411
        %v8476 = vpack.c.b16 %v8412, %v8412
        %v8477 = vpack.c.b16 %v8413, %v8413
        %v8478 = vpack.c.b16 %v8414, %v8414
        %v8479 = vpack.c.b16 %v8415, %v8415
        %v8480 = vpack.c.b16 %v8416, %v8416
        %v8481 = vpack.c.b16 %v8417, %v8417
        %v8482 = vpack.c.b16 %v8418, %v8418
        %v8483 = vpack.c.b16 %v8419, %v8419
        %v8484 = vpack.c.b16 %v8420, %v8420
        %vm8549 = vcmask 519168
        %8550 = vst.msk [vmem:[%s177] sm:$0xf] %vm8549, %v8421
        %8551 = vst.msk [vmem:[%s177 + $0x4] sm:$0xf] %vm8549, %v8422
        %8552 = vst.msk [vmem:[%s177 + $0x8] sm:$0xf] %vm8549, %v8423
        %8553 = vst.msk [vmem:[%s177 + $0xc] sm:$0xf] %vm8549, %v8424
        %8554 = vst.msk [vmem:[%s177 + $0x10] sm:$0xf] %vm8549, %v8425
        %8555 = vst.msk [vmem:[%s177 + $0x14] sm:$0xf] %vm8549, %v8426
        %8556 = vst.msk [vmem:[%s177 + $0x18] sm:$0xf] %vm8549, %v8427
        %8557 = vst.msk [vmem:[%s177 + $0x1c] sm:$0xf] %vm8549, %v8428
        %8558 = vst.msk [vmem:[%s177 + $0x20] sm:$0xf] %vm8549, %v8429
        %8559 = vst.msk [vmem:[%s177 + $0x24] sm:$0xf] %vm8549, %v8430
        %8560 = vst.msk [vmem:[%s177 + $0x28] sm:$0xf] %vm8549, %v8431
        %8561 = vst.msk [vmem:[%s177 + $0x2c] sm:$0xf] %vm8549, %v8432
        %8562 = vst.msk [vmem:[%s177 + $0x30] sm:$0xf] %vm8549, %v8433
        %8563 = vst.msk [vmem:[%s177 + $0x34] sm:$0xf] %vm8549, %v8434
        %8564 = vst.msk [vmem:[%s177 + $0x38] sm:$0xf] %vm8549, %v8435
        %8565 = vst.msk [vmem:[%s177 + $0x3c] sm:$0xf] %vm8549, %v8436
        %8566 = vst.msk [vmem:[%s177 + $0x40] sm:$0xf] %vm8549, %v8437
        %8567 = vst.msk [vmem:[%s177 + $0x44] sm:$0xf] %vm8549, %v8438
        %8568 = vst.msk [vmem:[%s177 + $0x48] sm:$0xf] %vm8549, %v8439
        %8569 = vst.msk [vmem:[%s177 + $0x4c] sm:$0xf] %vm8549, %v8440
        %8570 = vst.msk [vmem:[%s177 + $0x50] sm:$0xf] %vm8549, %v8441
        %8571 = vst.msk [vmem:[%s177 + $0x54] sm:$0xf] %vm8549, %v8442
        %8572 = vst.msk [vmem:[%s177 + $0x58] sm:$0xf] %vm8549, %v8443
        %8573 = vst.msk [vmem:[%s177 + $0x5c] sm:$0xf] %vm8549, %v8444
        %8574 = vst.msk [vmem:[%s177 + $0x60] sm:$0xf] %vm8549, %v8445
        %8575 = vst.msk [vmem:[%s177 + $0x64] sm:$0xf] %vm8549, %v8446
        %8576 = vst.msk [vmem:[%s177 + $0x68] sm:$0xf] %vm8549, %v8447
        %8577 = vst.msk [vmem:[%s177 + $0x6c] sm:$0xf] %vm8549, %v8448
        %8578 = vst.msk [vmem:[%s177 + $0x70] sm:$0xf] %vm8549, %v8449
        %8579 = vst.msk [vmem:[%s177 + $0x74] sm:$0xf] %vm8549, %v8450
        %8580 = vst.msk [vmem:[%s177 + $0x78] sm:$0xf] %vm8549, %v8451
        %8581 = vst.msk [vmem:[%s177 + $0x7c] sm:$0xf] %vm8549, %v8452
        %8582 = vst.msk [vmem:[%s177 + $0x80] sm:$0xf] %vm8549, %v8453
        %8583 = vst.msk [vmem:[%s177 + $0x84] sm:$0xf] %vm8549, %v8454
        %8584 = vst.msk [vmem:[%s177 + $0x88] sm:$0xf] %vm8549, %v8455
        %8585 = vst.msk [vmem:[%s177 + $0x8c] sm:$0xf] %vm8549, %v8456
        %8586 = vst.msk [vmem:[%s177 + $0x90] sm:$0xf] %vm8549, %v8457
        %8587 = vst.msk [vmem:[%s177 + $0x94] sm:$0xf] %vm8549, %v8458
        %8588 = vst.msk [vmem:[%s177 + $0x98] sm:$0xf] %vm8549, %v8459
        %8589 = vst.msk [vmem:[%s177 + $0x9c] sm:$0xf] %vm8549, %v8460
        %8590 = vst.msk [vmem:[%s177 + $0xa0] sm:$0xf] %vm8549, %v8461
        %8591 = vst.msk [vmem:[%s177 + $0xa4] sm:$0xf] %vm8549, %v8462
        %8592 = vst.msk [vmem:[%s177 + $0xa8] sm:$0xf] %vm8549, %v8463
        %8593 = vst.msk [vmem:[%s177 + $0xac] sm:$0xf] %vm8549, %v8464
        %8594 = vst.msk [vmem:[%s177 + $0xb0] sm:$0xf] %vm8549, %v8465
        %8595 = vst.msk [vmem:[%s177 + $0xb4] sm:$0xf] %vm8549, %v8466
        %8596 = vst.msk [vmem:[%s177 + $0xb8] sm:$0xf] %vm8549, %v8467
        %8597 = vst.msk [vmem:[%s177 + $0xbc] sm:$0xf] %vm8549, %v8468
        %8598 = vst.msk [vmem:[%s177 + $0xc0] sm:$0xf] %vm8549, %v8469
        %8599 = vst.msk [vmem:[%s177 + $0xc4] sm:$0xf] %vm8549, %v8470
        %8600 = vst.msk [vmem:[%s177 + $0xc8] sm:$0xf] %vm8549, %v8471
        %8601 = vst.msk [vmem:[%s177 + $0xcc] sm:$0xf] %vm8549, %v8472
        %8602 = vst.msk [vmem:[%s177 + $0xd0] sm:$0xf] %vm8549, %v8473
        %8603 = vst.msk [vmem:[%s177 + $0xd4] sm:$0xf] %vm8549, %v8474
        %8604 = vst.msk [vmem:[%s177 + $0xd8] sm:$0xf] %vm8549, %v8475
        %8605 = vst.msk [vmem:[%s177 + $0xdc] sm:$0xf] %vm8549, %v8476
        %8606 = vst.msk [vmem:[%s177 + $0xe0] sm:$0xf] %vm8549, %v8477
        %8607 = vst.msk [vmem:[%s177 + $0xe4] sm:$0xf] %vm8549, %v8478
        %8608 = vst.msk [vmem:[%s177 + $0xe8] sm:$0xf] %vm8549, %v8479
        %8609 = vst.msk [vmem:[%s177 + $0xec] sm:$0xf] %vm8549, %v8480
        %8610 = vst.msk [vmem:[%s177 + $0xf0] sm:$0xf] %vm8549, %v8481
        %8611 = vst.msk [vmem:[%s177 + $0xf4] sm:$0xf] %vm8549, %v8482
        %8612 = vst.msk [vmem:[%s177 + $0xf8] sm:$0xf] %vm8549, %v8483
        %8613 = vst.msk [vmem:[%s177 + $0xfc] sm:$0xf] %vm8549, %v8484
        %s8614 = sand.u32 %s107, 1
        %s8615 = scalar_lea.sflag [#allocation3], %s8614
        %s8616 = sand.u32 %s107, 1
        %s8617 = smul.addr %s8616, 256
        %s8618 = scalar_lea.vmem [#allocation2], %s8617
        // Predicated region
        $region33: #{_conv_op.1} parent=31 // pred_check
          %p8619 = pneg %p117
        $region34: #{_conv_op.1} parent=31 // pred_check_branch
          %8621 = sbr.rel (%p8619) target = $region36
        $region35: #{_conv_op.1} parent=31 // pred_region
          %s8622 = smul.u32 16, %s22
          %s8624 = ssub.s32 4096, 4096
          %8625 = vsyncadd %s8615, %s8624
          %s8626 = smul.addr %s8622, 4
          %s8627 = smul.addr %s21, 128
          %s8628 = sadd.s32 %s8626, %s8627
          %s8629 = smul.addr %s8628, 64
          %s8630 = scalar_lea.hbm %s3, %s8629
          %s8631 = sshll.u32 %s8618, 4
          %s8632 = int_to_ptr.vmem [resolvable:$true] %s8631
          %8637 = dma.vmem_to_hbm [thread:$0]  %s8632, 4096, %s8630, %s8615, 64, 64, 4
        $region36: #{_conv_op.1} parent=31 // pred_fallthru
          _
      $region32: #{_conv_op.1} parent=5 // pred_fallthru
        _
      %p8638 = scmp.le.s32.totalorder 2, %s12
      // Predicated region
      $region37: #{_conv_op.1} parent=5 // pred_check
        %p8639 = pneg %p8638
      $region38: #{_conv_op.1} parent=5 // pred_check_branch
        %8641 = sbr.rel (%p8639) target = $region40
      $region39: #{_conv_op.1} parent=5 // pred_region
        %s8642 = ssub.s32 %s12, 2
        // Predicated region
        $region41: #{_conv_op.1} parent=39 // pred_check
          %p8643 = pneg %p123
        $region42: #{_conv_op.1} parent=39 // pred_check_branch
          %8645 = sbr.rel (%p8643) target = $region44
        $region43: #{_conv_op.1} parent=39 // pred_region
          %s8646 = sand.u32 %s108, 1
          %s8647 = scalar_lea.sflag [#allocation3], %s8646
          %s8648 = sand.u32 %s108, 1
          %s8649 = smul.addr %s8648, 256
          %s8650 = scalar_lea.vmem [#allocation2], %s8649
          %8651 = dma.done %s8647, 4096
        $region44: #{_conv_op.1} parent=39 // pred_fallthru
          _
      $region40: #{_conv_op.1} parent=5 // pred_fallthru
        _
    $region6: #{_conv_op.1} parent=1 // loop_footer
      %s16 = sadd.s32 1, %s12
    $region7: #{_conv_op.1} parent=1 // loop_footer_branch
      %11 = sbr.rel target = $region3
    $region8: #{_conv_op.1} parent=1 // loop_exit
      _
    %8652 = vsyncpa [#allocation3], 1
    %s8653 = scalar_lea.sflag [#allocation3], 1
    %8654 = vsyncpa %s8653, 1

</llo_original>
